<compile_context>
chip_gen: v7x
topology: tpu7x:2x2x1
jax: 0.10.0
libtpu: 0.0.40
codegen_flags: <defaults>
</compile_context>

<pallas_src>
import jax
import jax.numpy as jnp
from jax import lax
from jax.experimental import pallas as pl
from jax.experimental.pallas import tpu as pltpu

_HI = jax.lax.Precision.HIGHEST  # reference only; the kernel never uses it

# trans-B dimension numbers: contract lhs dim 1 with rhs dim 1 (a @ w.T
# without materializing w.T) — same pattern as the official TPU
# flash-attention kernel, lowered as a transposed MXU operand load.
_TRANS_B = (((1,), (1,)), ((), ()))


def _split_hi_lo(a_f32):
    """f32 activation -> (hi, lo) bf16 pair with a + O(2^-17) == hi + lo."""
    hi = a_f32.astype(jnp.bfloat16)
    lo = (a_f32 - hi.astype(jnp.float32)).astype(jnp.bfloat16)
    return hi, lo


def _dot_bf16w(a_f32, w_bf16):
    """a_f32 @ w_bf16 via two single-width bf16 MXU passes, f32 accumulation."""
    hi, lo = _split_hi_lo(a_f32)
    return (jnp.dot(hi, w_bf16, preferred_element_type=jnp.float32)
            + jnp.dot(lo, w_bf16, preferred_element_type=jnp.float32))


def _dot_t_bf16w(a_f32, w_bf16):
    """a_f32 @ w_bf16.T (trans-B dimension numbers), same bf16x2 scheme."""
    hi, lo = _split_hi_lo(a_f32)
    return (lax.dot_general(hi, w_bf16, _TRANS_B,
                            preferred_element_type=jnp.float32)
            + lax.dot_general(lo, w_bf16, _TRANS_B,
                              preferred_element_type=jnp.float32))


def _mmps_kernel(scal_ref,   # SMEM (3,)  : c_skip, c_out, cov_t
                 x_ref,      # VMEM (B, D): flattened x_t (f32, B padded to 16)
                 wd_ref,     # VMEM (D, D): denoiser weight, bf16 (x @ Wd)
                 aT_ref,     # VMEM (D, M): A^T, bf16  (A(x) = x @ A^T)
                 y_ref,      # VMEM (1, M): observation y
                 covy_ref,   # VMEM (1, M): diagonal of cov_y
                 out_ref):   # VMEM (B, D): x_hat + cov_t * score
    c_skip = scal_ref[0]
    c_out = scal_ref[1]
    cov_t = scal_ref[2]

    x = x_ref[...]
    wd = wd_ref[...]      # bf16, straight to the MXU (no f32 copy in VMEM)
    aT = aT_ref[...]      # bf16

    # x_hat = denoiser(x_t, sigma_t)   (EDM-preconditioned linear denoiser)
    x_hat = c_skip * x + c_out * _dot_bf16w(x, wd)

    # y_hat = A(x_hat);  residual b = y - y_hat
    y_hat = _dot_bf16w(x_hat, aT)
    b = y_ref[...] - y_hat                       # (1,M) broadcast over batch

    # u = (d x_hat / d x_t)^T (A^T b)   (denoiser VJP applied to A^T b)
    t = _dot_t_bf16w(b, aT)                      # A^T b  == b @ A_T.T
    u = c_skip * t + c_out * _dot_t_bf16w(t, wd)  # u @ Wd.T via trans-B dot

    # cov_y(b) = Σ_y ⊙ b + A(cov_t · u)
    Ab = covy_ref[...] * b + cov_t * _dot_bf16w(u, aT)

    # GMRES(1), x0 = 0: grad = α b with α = <b, Ab> / <Ab, Ab>  (per row)
    num = jnp.sum(b * Ab, axis=-1, keepdims=True)
    den = jnp.sum(Ab * Ab, axis=-1, keepdims=True)
    safe_den = jnp.where(den > 0.0, den, 1.0)
    alpha = jnp.where(den > 0.0, num / safe_den, 0.0)

    # score = (d y_hat / d x_t)^T grad.  grad = α b and the VJP is linear per
    # row, so score == α * u — no extra matmuls needed.
    score = alpha * u

    out_ref[...] = x_hat + cov_t * score


def poseidon_mmps_denoiser(x_t, sigma_t, Wd, A_T, y, cov_y, sigma_data=0.5):
    """MMPS-conditioned denoising step.  x_t: (B, C, H, W) NCHW, f32."""
    B, C, H, W = x_t.shape
    D = C * H * W
    M = y.shape[-1]
    assert Wd.shape == (D, D) and A_T.shape == (D, M)

    # Pad batch to the bf16 sublane tile (16): the dot operands are packed
    # bf16, and the f32 tile (8) divides 16, so every layout sees full tiles.
    # Padded rows compute guarded garbage and are sliced off.
    Bp = max(16, ((B + 15) // 16) * 16)
    x_flat = x_t.reshape(B, D).astype(jnp.float32)
    if Bp != B:
        x_flat = jnp.pad(x_flat, ((0, Bp - B), (0, 0)))

    sigma = jnp.asarray(sigma_t, jnp.float32)
    cov_t = sigma ** 2
    c_skip = sigma_data ** 2 / (sigma ** 2 + sigma_data ** 2)
    c_out = sigma * sigma_data / jnp.sqrt(sigma ** 2 + sigma_data ** 2)
    scal = jnp.stack([c_skip, c_out, cov_t]).astype(jnp.float32)

    # Weights stored / streamed / MXU-consumed in bf16 (the dominant HBM cost).
    wd_bf16 = Wd.astype(jnp.bfloat16)
    aT_bf16 = A_T.astype(jnp.bfloat16)

    y2d = y.astype(jnp.float32).reshape(1, M)
    covy2d = jnp.broadcast_to(jnp.asarray(cov_y, jnp.float32), (M,)).reshape(1, M)

    vmem = pl.BlockSpec(memory_space=pltpu.MemorySpace.VMEM)
    out_flat = pl.pallas_call(
        _mmps_kernel,
        out_shape=jax.ShapeDtypeStruct((Bp, D), jnp.float32),
        in_specs=[
            pl.BlockSpec(memory_space=pltpu.MemorySpace.SMEM),  # scalars
            vmem, vmem, vmem, vmem, vmem,
        ],
        out_specs=vmem,
        # ~3 MiB resident (bf16 weights + small f32/bf16 activations); 16 MiB
        # leaves scoped-VMEM headroom and fits v7x's 64 MiB physical VMEM
        # with room for D up to ~5k before tiling is needed.
        compiler_params=pltpu.CompilerParams(vmem_limit_bytes=16 * 1024 * 1024),
    )(scal, x_flat, wd_bf16, aT_bf16, y2d, covy2d)

    return out_flat[:B].reshape(B, C, H, W)


def _mmps_reference(x_t, sigma_t, Wd, A_T, y, cov_y_diag, sigma_data=0.5):
    """Pure-JAX reference mirroring the PyTorch forward (autograd via jax.vjp/jvp)."""
    B = x_t.shape[0]
    D = Wd.shape[0]
    x = x_t.reshape(B, D).astype(jnp.float32)
    Wd = Wd.astype(jnp.float32)
    A_T = A_T.astype(jnp.float32)
    sigma = jnp.asarray(sigma_t, jnp.float32)
    cov_t = sigma ** 2
    c_skip = sigma_data ** 2 / (sigma ** 2 + sigma_data ** 2)
    c_out = sigma * sigma_data / jnp.sqrt(sigma ** 2 + sigma_data ** 2)

    def denoiser(xt):
        return c_skip * xt + c_out * jnp.dot(xt, Wd, precision=_HI)

    def A_op(v):
        return jnp.dot(v, A_T, precision=_HI)

    x_hat, den_vjp = jax.vjp(denoiser, x)
    y_hat, a_vjp = jax.vjp(A_op, x_hat)

    A_lin = lambda v: jax.jvp(A_op, (x_hat,), (v,))[1]
    At = lambda v: a_vjp(v)[0]
    cov_y_op = lambda v: cov_y_diag * v + A_lin(cov_t * den_vjp(At(v))[0])

    b = y[None, :] - y_hat
    Ab = cov_y_op(b)
    num = jnp.sum(b * Ab, axis=-1, keepdims=True)
    den = jnp.sum(Ab * Ab, axis=-1, keepdims=True)
    safe_den = jnp.where(den > 0.0, den, 1.0)
    grad = jnp.where(den > 0.0, num / safe_den, 0.0) * b

    _, full_vjp = jax.vjp(lambda xt: A_op(denoiser(xt)), x)
    score = full_vjp(grad)[0]
    return (x_hat + cov_t * score).reshape(x_t.shape)


if __name__ == "__main__":
    key = jax.random.PRNGKey(0)
    B, C, H, W = 2, 4, 16, 16
    D = C * H * W          # 1024
    M = 128                # observation dimension

    k1, k2, k3, k4 = jax.random.split(key, 4)
    x_t = jax.random.normal(k1, (B, C, H, W), jnp.float32)
    # Synthetic linear stand-ins for the denoiser backbone / observation
    # operator.  Their parameters are kept in bf16 — exactly what the kernel
    # streams and feeds the MXU — so the f32 HIGHEST reference sees the same
    # weight values.
    Wd = (jax.random.normal(k2, (D, D), jnp.float32) / jnp.sqrt(D)
          ).astype(jnp.bfloat16)
    A_T = (jax.random.normal(k3, (D, M), jnp.float32) / jnp.sqrt(D)
           ).astype(jnp.bfloat16)
    y = jax.random.normal(k4, (M,), jnp.float32)
    cov_y = jnp.float32(0.01)     # diagonal observation noise variance
    sigma_t = jnp.float32(0.7)

    out = poseidon_mmps_denoiser(x_t, sigma_t, Wd, A_T, y, cov_y)
    out = jax.block_until_ready(out)

    ref = _mmps_reference(x_t, sigma_t, Wd, A_T, y,
                          jnp.broadcast_to(cov_y, (M,)))
    ref = jax.block_until_ready(ref)

    assert out.shape == (B, C, H, W)
    assert jnp.allclose(out, ref, atol=2e-3, rtol=2e-3), (
        float(jnp.max(jnp.abs(out - ref))))
    print("KERNEL_OK")
</pallas_src>

<mosaic_0001>
module attributes {stable_mosaic.version = 11 : i64} {
  func.func @_mmps_kernel(%arg0: memref<3xf32, #tpu.memory_space<smem>>, %arg1: memref<16x1024xf32, #tpu.memory_space<vmem>>, %arg2: memref<1024x1024xbf16, #tpu.memory_space<vmem>>, %arg3: memref<1024x128xbf16, #tpu.memory_space<vmem>>, %arg4: memref<1x128xf32, #tpu.memory_space<vmem>>, %arg5: memref<1x128xf32, #tpu.memory_space<vmem>>, %arg6: memref<16x1024xf32, #tpu.memory_space<vmem>>) attributes {dimension_semantics = [], scalar_prefetch = 0 : i64, scratch_operands = 0 : i64, tpu.core_type = #tpu.core_type<tc>} {
    %c0 = arith.constant 0 : index
    %0 = memref.load %arg0[%c0] : memref<3xf32, #tpu.memory_space<smem>>
    %c1 = arith.constant 1 : index
    %1 = memref.load %arg0[%c1] : memref<3xf32, #tpu.memory_space<smem>>
    %c2 = arith.constant 2 : index
    %2 = memref.load %arg0[%c2] : memref<3xf32, #tpu.memory_space<smem>>
    %c0_0 = arith.constant 0 : index
    %c0_1 = arith.constant 0 : index
    %3 = vector.load %arg1[%c0_0, %c0_1] : memref<16x1024xf32, #tpu.memory_space<vmem>>, vector<16x1024xf32>
    %c0_2 = arith.constant 0 : index
    %c0_3 = arith.constant 0 : index
    %4 = vector.load %arg2[%c0_2, %c0_3] : memref<1024x1024xbf16, #tpu.memory_space<vmem>>, vector<1024x1024xbf16>
    %c0_4 = arith.constant 0 : index
    %c0_5 = arith.constant 0 : index
    %5 = vector.load %arg3[%c0_4, %c0_5] : memref<1024x128xbf16, #tpu.memory_space<vmem>>, vector<1024x128xbf16>
    %6 = vector.broadcast %0 : f32 to vector<16x1024xf32>
    %7 = arith.mulf %6, %3 : vector<16x1024xf32>
    %8 = arith.truncf %3 : vector<16x1024xf32> to vector<16x1024xbf16>
    %9 = arith.extf %8 : vector<16x1024xbf16> to vector<16x1024xf32>
    %10 = arith.subf %3, %9 : vector<16x1024xf32>
    %11 = arith.truncf %10 : vector<16x1024xf32> to vector<16x1024xbf16>
    %cst = arith.constant dense<0.000000e+00> : vector<16x1024xf32>
    %12 = tpu.matmul %8, %4, %cst {dimension_numbers = #tpu.dot_dimension_numbers<[1], [0], [0], [1], [0, 0, 1, 1], [], []>} : vector<16x1024xbf16>, vector<1024x1024xbf16>, vector<16x1024xf32> -> vector<16x1024xf32>
    %cst_6 = arith.constant dense<0.000000e+00> : vector<16x1024xf32>
    %13 = tpu.matmul %11, %4, %cst_6 {dimension_numbers = #tpu.dot_dimension_numbers<[1], [0], [0], [1], [0, 0, 1, 1], [], []>} : vector<16x1024xbf16>, vector<1024x1024xbf16>, vector<16x1024xf32> -> vector<16x1024xf32>
    %14 = arith.addf %12, %13 : vector<16x1024xf32>
    %15 = vector.broadcast %1 : f32 to vector<16x1024xf32>
    %16 = arith.mulf %15, %14 : vector<16x1024xf32>
    %17 = arith.addf %7, %16 : vector<16x1024xf32>
    %18 = arith.truncf %17 : vector<16x1024xf32> to vector<16x1024xbf16>
    %19 = arith.extf %18 : vector<16x1024xbf16> to vector<16x1024xf32>
    %20 = arith.subf %17, %19 : vector<16x1024xf32>
    %21 = arith.truncf %20 : vector<16x1024xf32> to vector<16x1024xbf16>
    %cst_7 = arith.constant dense<0.000000e+00> : vector<16x128xf32>
    %22 = tpu.matmul %18, %5, %cst_7 {dimension_numbers = #tpu.dot_dimension_numbers<[1], [0], [0], [1], [0, 0, 1, 1], [], []>} : vector<16x1024xbf16>, vector<1024x128xbf16>, vector<16x128xf32> -> vector<16x128xf32>
    %cst_8 = arith.constant dense<0.000000e+00> : vector<16x128xf32>
    %23 = tpu.matmul %21, %5, %cst_8 {dimension_numbers = #tpu.dot_dimension_numbers<[1], [0], [0], [1], [0, 0, 1, 1], [], []>} : vector<16x1024xbf16>, vector<1024x128xbf16>, vector<16x128xf32> -> vector<16x128xf32>
    %24 = arith.addf %22, %23 : vector<16x128xf32>
    %c0_9 = arith.constant 0 : index
    %c0_10 = arith.constant 0 : index
    %25 = vector.load %arg4[%c0_9, %c0_10] : memref<1x128xf32, #tpu.memory_space<vmem>>, vector<1x128xf32>
    %26 = vector.broadcast %25 : vector<1x128xf32> to vector<16x128xf32>
    %27 = arith.subf %26, %24 : vector<16x128xf32>
    %28 = arith.truncf %27 : vector<16x128xf32> to vector<16x128xbf16>
    %29 = arith.extf %28 : vector<16x128xbf16> to vector<16x128xf32>
    %30 = arith.subf %27, %29 : vector<16x128xf32>
    %31 = arith.truncf %30 : vector<16x128xf32> to vector<16x128xbf16>
    %cst_11 = arith.constant dense<0.000000e+00> : vector<16x1024xf32>
    %32 = tpu.matmul %28, %5, %cst_11 {dimension_numbers = #tpu.dot_dimension_numbers<[1], [1], [0], [0], [0, 0, 1, 0], [], []>} : vector<16x128xbf16>, vector<1024x128xbf16>, vector<16x1024xf32> -> vector<16x1024xf32>
    %cst_12 = arith.constant dense<0.000000e+00> : vector<16x1024xf32>
    %33 = tpu.matmul %31, %5, %cst_12 {dimension_numbers = #tpu.dot_dimension_numbers<[1], [1], [0], [0], [0, 0, 1, 0], [], []>} : vector<16x128xbf16>, vector<1024x128xbf16>, vector<16x1024xf32> -> vector<16x1024xf32>
    %34 = arith.addf %32, %33 : vector<16x1024xf32>
    %35 = vector.broadcast %0 : f32 to vector<16x1024xf32>
    %36 = arith.mulf %35, %34 : vector<16x1024xf32>
    %37 = arith.truncf %34 : vector<16x1024xf32> to vector<16x1024xbf16>
    %38 = arith.extf %37 : vector<16x1024xbf16> to vector<16x1024xf32>
    %39 = arith.subf %34, %38 : vector<16x1024xf32>
    %40 = arith.truncf %39 : vector<16x1024xf32> to vector<16x1024xbf16>
    %cst_13 = arith.constant dense<0.000000e+00> : vector<16x1024xf32>
    %41 = tpu.matmul %37, %4, %cst_13 {dimension_numbers = #tpu.dot_dimension_numbers<[1], [1], [0], [0], [0, 0, 1, 0], [], []>} : vector<16x1024xbf16>, vector<1024x1024xbf16>, vector<16x1024xf32> -> vector<16x1024xf32>
    %cst_14 = arith.constant dense<0.000000e+00> : vector<16x1024xf32>
    %42 = tpu.matmul %40, %4, %cst_14 {dimension_numbers = #tpu.dot_dimension_numbers<[1], [1], [0], [0], [0, 0, 1, 0], [], []>} : vector<16x1024xbf16>, vector<1024x1024xbf16>, vector<16x1024xf32> -> vector<16x1024xf32>
    %43 = arith.addf %41, %42 : vector<16x1024xf32>
    %44 = vector.broadcast %1 : f32 to vector<16x1024xf32>
    %45 = arith.mulf %44, %43 : vector<16x1024xf32>
    %46 = arith.addf %36, %45 : vector<16x1024xf32>
    %c0_15 = arith.constant 0 : index
    %c0_16 = arith.constant 0 : index
    %47 = vector.load %arg5[%c0_15, %c0_16] : memref<1x128xf32, #tpu.memory_space<vmem>>, vector<1x128xf32>
    %48 = vector.broadcast %47 : vector<1x128xf32> to vector<16x128xf32>
    %49 = arith.mulf %48, %27 : vector<16x128xf32>
    %50 = arith.truncf %46 : vector<16x1024xf32> to vector<16x1024xbf16>
    %51 = arith.extf %50 : vector<16x1024xbf16> to vector<16x1024xf32>
    %52 = arith.subf %46, %51 : vector<16x1024xf32>
    %53 = arith.truncf %52 : vector<16x1024xf32> to vector<16x1024xbf16>
    %cst_17 = arith.constant dense<0.000000e+00> : vector<16x128xf32>
    %54 = tpu.matmul %50, %5, %cst_17 {dimension_numbers = #tpu.dot_dimension_numbers<[1], [0], [0], [1], [0, 0, 1, 1], [], []>} : vector<16x1024xbf16>, vector<1024x128xbf16>, vector<16x128xf32> -> vector<16x128xf32>
    %cst_18 = arith.constant dense<0.000000e+00> : vector<16x128xf32>
    %55 = tpu.matmul %53, %5, %cst_18 {dimension_numbers = #tpu.dot_dimension_numbers<[1], [0], [0], [1], [0, 0, 1, 1], [], []>} : vector<16x1024xbf16>, vector<1024x128xbf16>, vector<16x128xf32> -> vector<16x128xf32>
    %56 = arith.addf %54, %55 : vector<16x128xf32>
    %57 = vector.broadcast %2 : f32 to vector<16x128xf32>
    %58 = arith.mulf %57, %56 : vector<16x128xf32>
    %59 = arith.addf %49, %58 : vector<16x128xf32>
    %60 = arith.mulf %27, %59 : vector<16x128xf32>
    %cst_19 = arith.constant dense<0.000000e+00> : vector<16xf32>
    %61 = vector.multi_reduction <add>, %60, %cst_19 [1] : vector<16x128xf32> to vector<16xf32>
    %62 = vector.shape_cast %61 : vector<16xf32> to vector<16x1xf32>
    %63 = arith.mulf %59, %59 : vector<16x128xf32>
    %cst_20 = arith.constant dense<0.000000e+00> : vector<16xf32>
    %64 = vector.multi_reduction <add>, %63, %cst_20 [1] : vector<16x128xf32> to vector<16xf32>
    %65 = vector.shape_cast %64 : vector<16xf32> to vector<16x1xf32>
    %cst_21 = arith.constant 0.000000e+00 : f32
    %66 = vector.broadcast %cst_21 : f32 to vector<16x1xf32>
    %67 = arith.cmpf ogt, %65, %66 : vector<16x1xf32>
    %cst_22 = arith.constant 1.000000e+00 : f32
    %68 = vector.broadcast %cst_22 : f32 to vector<16x1xf32>
    %69 = arith.select %67, %65, %68 : vector<16x1xi1>, vector<16x1xf32>
    %cst_23 = arith.constant 0.000000e+00 : f32
    %70 = vector.broadcast %cst_23 : f32 to vector<16x1xf32>
    %71 = arith.cmpf ogt, %65, %70 : vector<16x1xf32>
    %72 = arith.divf %62, %69 : vector<16x1xf32>
    %cst_24 = arith.constant 0.000000e+00 : f32
    %73 = vector.broadcast %cst_24 : f32 to vector<16x1xf32>
    %74 = arith.select %71, %72, %73 : vector<16x1xi1>, vector<16x1xf32>
    %75 = vector.broadcast %74 : vector<16x1xf32> to vector<16x1024xf32>
    %76 = arith.mulf %75, %46 : vector<16x1024xf32>
    %77 = vector.broadcast %2 : f32 to vector<16x1024xf32>
    %78 = arith.mulf %77, %76 : vector<16x1024xf32>
    %79 = arith.addf %17, %78 : vector<16x1024xf32>
    %c0_25 = arith.constant 0 : index
    %c0_26 = arith.constant 0 : index
    %80 = vector.load %arg6[%c0_25, %c0_26] : memref<16x1024xf32, #tpu.memory_space<vmem>>, vector<16x1024xf32>
    tpu.vector_store %arg6[%c0_25, %c0_26], %79 {strides = array<i32>} : memref<16x1024xf32, #tpu.memory_space<vmem>>, vector<16x1024xf32>,
    return
  }
}

</mosaic_0001>

<llo_original>
// kernel: tpu_custom_call.1
$region0: #{tpu_custom_call.1}
  #allocation0 [shape = 'u32[]', space=smem, size = 0x4, offset = 0x4, fixed_abs, tag = 'smem constant byte address 0x4 - core index']
  #allocation1 [shape = 'u32[144,128]{1,0:T(1,128)}', space=vmem, size = 0x12000, scoped, tag = 'internal scratch']
  %s0 = inlined_call_operand.hbm [shape: f32[3], index: 0, kind: input, shape index: {}]
  %s1 = inlined_call_operand.hbm [shape: f32[16,1024], index: 1, kind: input, shape index: {}]
  %s2 = inlined_call_operand.hbm [shape: bf16[1024,1024], index: 2, kind: input, shape index: {}]
  %s3 = inlined_call_operand.hbm [shape: bf16[1024,128], index: 3, kind: input, shape index: {}]
  %s4 = inlined_call_operand.hbm [shape: f32[1,128], index: 4, kind: input, shape index: {}]
  %s5 = inlined_call_operand.hbm [shape: f32[1,128], index: 5, kind: input, shape index: {}]
  %s6 = inlined_call_operand.hbm [shape: f32[16,1024], index: 6, kind: output, shape index: {}]
  %s7 = sld [smem:[#allocation0]]
  $region58: #{tpu_custom_call.1} parent=0
    _
  %s9 = ssub.s32 1, %s7
  %s10 = scalar_select 0, %s9, %s7
  $region1: #{tpu_custom_call.1} parent=0
    #allocation2 [shape = 'u8[512]{0}', space=smem, size = 0x200, scoped, tag = 'input window, operand 0, single buffered']
    #allocation3 [shape = 's32[1]{0}', space=sflag, size = 0x4, scoped, tag = 'scoped memory for tpu_custom_call.1']
    #allocation4 [shape = 's32[1]{0}', space=sflag, size = 0x4, scoped, tag = 'scoped memory for tpu_custom_call.1']
    #allocation5 [shape = 's32[1]{0}', space=sflag, size = 0x4, scoped, tag = 'scoped memory for tpu_custom_call.1']
    #allocation6 [shape = 'u8[65536]{0}', space=vmem, size = 0x10000, scoped, tag = 'input window, operand 1, single buffered']
    #allocation7 [shape = 'u8[2097152]{0}', space=vmem, size = 0x200000, scoped, tag = 'input window, operand 2, single buffered']
    #allocation8 [shape = 's32[1]{0}', space=sflag, size = 0x4, scoped, tag = 'scoped memory for tpu_custom_call.1']
    #allocation9 [shape = 'u8[262144]{0}', space=vmem, size = 0x40000, scoped, tag = 'input window, operand 3, single buffered']
    #allocation10 [shape = 'u8[512]{0}', space=vmem, size = 0x400, scoped, tag = 'input window, operand 4, single buffered']
    #allocation11 [shape = 's32[1]{0}', space=sflag, size = 0x4, scoped, tag = 'scoped memory for tpu_custom_call.1']
    #allocation12 [shape = 'u8[512]{0}', space=vmem, size = 0x400, scoped, tag = 'input window, operand 5, single buffered']
    #allocation13 [shape = 'u8[65536]{0}', space=vmem, size = 0x10000, scoped, tag = 'output window, operand 0, single buffered']
    %11 = vsyncpa [#allocation5], 0
    %12 = vsyncpa [#allocation3], 0
    %13 = vsyncpa [#allocation8], 0
    %14 = vsyncpa [#allocation11], 0
    %15 = vsyncpa [#allocation4], 0
    // Predicated region
    $region2: #{tpu_custom_call.1} parent=1 // pred_check
      _
    $region3: #{tpu_custom_call.1} parent=1 // pred_check_branch
      %17 = sbr.rel (0) target = $region5
    $region4: #{tpu_custom_call.1} parent=1 // pred_region
      %s19 = ssub.s32 16, 16
      %20 = vsyncadd [#allocation5], %s19
      %23 = dma.hbm_to_smem %s0, 16, [#allocation2], [#allocation5]
    $region5: #{tpu_custom_call.1} parent=1 // pred_fallthru
      _
    // Predicated region
    $region6: #{tpu_custom_call.1} parent=1 // pred_check
      _
    $region7: #{tpu_custom_call.1} parent=1 // pred_check_branch
      %25 = sbr.rel (0) target = $region9
    $region8: #{tpu_custom_call.1} parent=1 // pred_region
      %s27 = ssub.s32 2048, 2048
      %28 = vsyncadd [#allocation3], %s27
      %s29 = sshll.u32 [#allocation6], 4
      %s30 = int_to_ptr.vmem [resolvable:$true] %s29
      %35 = dma.hbm_to_vmem [thread:$0]  %s1, 2048, %s30, [#allocation3], 1024, 1024, 64
    $region9: #{tpu_custom_call.1} parent=1 // pred_fallthru
      _
    // Predicated region
    $region10: #{tpu_custom_call.1} parent=1 // pred_check
      _
    $region11: #{tpu_custom_call.1} parent=1 // pred_check_branch
      %37 = sbr.rel (0) target = $region13
    $region12: #{tpu_custom_call.1} parent=1 // pred_region
      %s39 = ssub.s32 65536, 65536
      %40 = vsyncadd [#allocation8], %s39
      %s41 = sshll.u32 [#allocation7], 4
      %s42 = int_to_ptr.vmem [resolvable:$true] %s41
      %47 = dma.hbm_to_vmem [thread:$0]  %s2, 65536, %s42, [#allocation8], 512, 512, 32
    $region13: #{tpu_custom_call.1} parent=1 // pred_fallthru
      _
    // Predicated region
    $region14: #{tpu_custom_call.1} parent=1 // pred_check
      _
    $region15: #{tpu_custom_call.1} parent=1 // pred_check_branch
      %49 = sbr.rel (0) target = $region17
    $region16: #{tpu_custom_call.1} parent=1 // pred_region
      %s51 = ssub.s32 8192, 8192
      %52 = vsyncadd [#allocation8], %s51
      %s53 = sshll.u32 [#allocation9], 4
      %s54 = int_to_ptr.vmem [resolvable:$true] %s53
      %59 = dma.hbm_to_vmem [thread:$0]  %s3, 8192, %s54, [#allocation8], 64, 64, 4
    $region17: #{tpu_custom_call.1} parent=1 // pred_fallthru
      _
    // Predicated region
    $region18: #{tpu_custom_call.1} parent=1 // pred_check
      _
    $region19: #{tpu_custom_call.1} parent=1 // pred_check_branch
      %61 = sbr.rel (0) target = $region21
    $region20: #{tpu_custom_call.1} parent=1 // pred_region
      %s63 = ssub.s32 16, 16
      %64 = vsyncadd [#allocation11], %s63
      %s66 = sshll.u32 [#allocation10], 4
      %s67 = int_to_ptr.vmem [resolvable:$true] %s66
      %69 = dma.hbm_to_vmem [thread:$0]  %s4, 16, %s67, [#allocation11]
    $region21: #{tpu_custom_call.1} parent=1 // pred_fallthru
      _
    // Predicated region
    $region22: #{tpu_custom_call.1} parent=1 // pred_check
      _
    $region23: #{tpu_custom_call.1} parent=1 // pred_check_branch
      %71 = sbr.rel (0) target = $region25
    $region24: #{tpu_custom_call.1} parent=1 // pred_region
      %s73 = ssub.s32 16, 16
      %74 = vsyncadd [#allocation11], %s73
      %s76 = sshll.u32 [#allocation12], 4
      %s77 = int_to_ptr.vmem [resolvable:$true] %s76
      %79 = dma.hbm_to_vmem [thread:$0]  %s5, 16, %s77, [#allocation11]
    $region25: #{tpu_custom_call.1} parent=1 // pred_fallthru
      _
    // Predicated region
    $region26: #{tpu_custom_call.1} parent=1 // pred_check
      _
    $region27: #{tpu_custom_call.1} parent=1 // pred_check_branch
      %81 = sbr.rel (0) target = $region29
    $region28: #{tpu_custom_call.1} parent=1 // pred_region
      %82 = dma.done [#allocation5], 16
    $region29: #{tpu_custom_call.1} parent=1 // pred_fallthru
      _
    // Predicated region
    $region30: #{tpu_custom_call.1} parent=1 // pred_check
      _
    $region31: #{tpu_custom_call.1} parent=1 // pred_check_branch
      %84 = sbr.rel (0) target = $region33
    $region32: #{tpu_custom_call.1} parent=1 // pred_region
      %85 = dma.done [#allocation3], 2048
    $region33: #{tpu_custom_call.1} parent=1 // pred_fallthru
      _
    // Predicated region
    $region34: #{tpu_custom_call.1} parent=1 // pred_check
      _
    $region35: #{tpu_custom_call.1} parent=1 // pred_check_branch
      %87 = sbr.rel (0) target = $region37
    $region36: #{tpu_custom_call.1} parent=1 // pred_region
      %88 = dma.done [#allocation8], 65536
    $region37: #{tpu_custom_call.1} parent=1 // pred_fallthru
      _
    // Predicated region
    $region38: #{tpu_custom_call.1} parent=1 // pred_check
      _
    $region39: #{tpu_custom_call.1} parent=1 // pred_check_branch
      %90 = sbr.rel (0) target = $region41
    $region40: #{tpu_custom_call.1} parent=1 // pred_region
      %91 = dma.done [#allocation8], 8192
    $region41: #{tpu_custom_call.1} parent=1 // pred_fallthru
      _
    // Predicated region
    $region42: #{tpu_custom_call.1} parent=1 // pred_check
      _
    $region43: #{tpu_custom_call.1} parent=1 // pred_check_branch
      %93 = sbr.rel (0) target = $region45
    $region44: #{tpu_custom_call.1} parent=1 // pred_region
      %94 = dma.done [#allocation11], 16
    $region45: #{tpu_custom_call.1} parent=1 // pred_fallthru
      _
    // Predicated region
    $region46: #{tpu_custom_call.1} parent=1 // pred_check
      _
    $region47: #{tpu_custom_call.1} parent=1 // pred_check_branch
      %96 = sbr.rel (0) target = $region49
    $region48: #{tpu_custom_call.1} parent=1 // pred_region
      %97 = dma.done [#allocation11], 16
    $region49: #{tpu_custom_call.1} parent=1 // pred_fallthru
      _
    %98 = sfence
    %s100 = sld [smem:[#allocation2]]
    %s101 = sld [smem:[#allocation2 + $0x1]]
    %s102 = sld [smem:[#allocation2 + $0x2]]
    %v103 = vld [vmem:[#allocation6] sm:$0xff]
    %v104 = vld [vmem:[#allocation6 + $0x8] sm:$0xff]
    %v105 = vld [vmem:[#allocation6 + $0x10] sm:$0xff]
    %v106 = vld [vmem:[#allocation6 + $0x18] sm:$0xff]
    %v107 = vld [vmem:[#allocation6 + $0x20] sm:$0xff]
    %v108 = vld [vmem:[#allocation6 + $0x28] sm:$0xff]
    %v109 = vld [vmem:[#allocation6 + $0x30] sm:$0xff]
    %v110 = vld [vmem:[#allocation6 + $0x38] sm:$0xff]
    %v111 = vld [vmem:[#allocation6 + $0x40] sm:$0xff]
    %v112 = vld [vmem:[#allocation6 + $0x48] sm:$0xff]
    %v113 = vld [vmem:[#allocation6 + $0x50] sm:$0xff]
    %v114 = vld [vmem:[#allocation6 + $0x58] sm:$0xff]
    %v115 = vld [vmem:[#allocation6 + $0x60] sm:$0xff]
    %v116 = vld [vmem:[#allocation6 + $0x68] sm:$0xff]
    %v117 = vld [vmem:[#allocation6 + $0x70] sm:$0xff]
    %v118 = vld [vmem:[#allocation6 + $0x78] sm:$0xff]
    %v119 = vld [vmem:[#allocation7] sm:$0xff]
    %v120 = vld [vmem:[#allocation7 + $0x8] sm:$0xff]
    %v121 = vld [vmem:[#allocation7 + $0x10] sm:$0xff]
    %v122 = vld [vmem:[#allocation7 + $0x18] sm:$0xff]
    %v123 = vld [vmem:[#allocation7 + $0x20] sm:$0xff]
    %v124 = vld [vmem:[#allocation7 + $0x28] sm:$0xff]
    %v125 = vld [vmem:[#allocation7 + $0x30] sm:$0xff]
    %v126 = vld [vmem:[#allocation7 + $0x38] sm:$0xff]
    %v127 = vld [vmem:[#allocation7 + $0x40] sm:$0xff]
    %v128 = vld [vmem:[#allocation7 + $0x48] sm:$0xff]
    %v129 = vld [vmem:[#allocation7 + $0x50] sm:$0xff]
    %v130 = vld [vmem:[#allocation7 + $0x58] sm:$0xff]
    %v131 = vld [vmem:[#allocation7 + $0x60] sm:$0xff]
    %v132 = vld [vmem:[#allocation7 + $0x68] sm:$0xff]
    %v133 = vld [vmem:[#allocation7 + $0x70] sm:$0xff]
    %v134 = vld [vmem:[#allocation7 + $0x78] sm:$0xff]
    %v135 = vld [vmem:[#allocation7 + $0x80] sm:$0xff]
    %v136 = vld [vmem:[#allocation7 + $0x88] sm:$0xff]
    %v137 = vld [vmem:[#allocation7 + $0x90] sm:$0xff]
    %v138 = vld [vmem:[#allocation7 + $0x98] sm:$0xff]
    %v139 = vld [vmem:[#allocation7 + $0xa0] sm:$0xff]
    %v140 = vld [vmem:[#allocation7 + $0xa8] sm:$0xff]
    %v141 = vld [vmem:[#allocation7 + $0xb0] sm:$0xff]
    %v142 = vld [vmem:[#allocation7 + $0xb8] sm:$0xff]
    %v143 = vld [vmem:[#allocation7 + $0xc0] sm:$0xff]
    %v144 = vld [vmem:[#allocation7 + $0xc8] sm:$0xff]
    %v145 = vld [vmem:[#allocation7 + $0xd0] sm:$0xff]
    %v146 = vld [vmem:[#allocation7 + $0xd8] sm:$0xff]
    %v147 = vld [vmem:[#allocation7 + $0xe0] sm:$0xff]
    %v148 = vld [vmem:[#allocation7 + $0xe8] sm:$0xff]
    %v149 = vld [vmem:[#allocation7 + $0xf0] sm:$0xff]
    %v150 = vld [vmem:[#allocation7 + $0xf8] sm:$0xff]
    %v151 = vld [vmem:[#allocation7 + $0x100] sm:$0xff]
    %v152 = vld [vmem:[#allocation7 + $0x108] sm:$0xff]
    %v153 = vld [vmem:[#allocation7 + $0x110] sm:$0xff]
    %v154 = vld [vmem:[#allocation7 + $0x118] sm:$0xff]
    %v155 = vld [vmem:[#allocation7 + $0x120] sm:$0xff]
    %v156 = vld [vmem:[#allocation7 + $0x128] sm:$0xff]
    %v157 = vld [vmem:[#allocation7 + $0x130] sm:$0xff]
    %v158 = vld [vmem:[#allocation7 + $0x138] sm:$0xff]
    %v159 = vld [vmem:[#allocation7 + $0x140] sm:$0xff]
    %v160 = vld [vmem:[#allocation7 + $0x148] sm:$0xff]
    %v161 = vld [vmem:[#allocation7 + $0x150] sm:$0xff]
    %v162 = vld [vmem:[#allocation7 + $0x158] sm:$0xff]
    %v163 = vld [vmem:[#allocation7 + $0x160] sm:$0xff]
    %v164 = vld [vmem:[#allocation7 + $0x168] sm:$0xff]
    %v165 = vld [vmem:[#allocation7 + $0x170] sm:$0xff]
    %v166 = vld [vmem:[#allocation7 + $0x178] sm:$0xff]
    %v167 = vld [vmem:[#allocation7 + $0x180] sm:$0xff]
    %v168 = vld [vmem:[#allocation7 + $0x188] sm:$0xff]
    %v169 = vld [vmem:[#allocation7 + $0x190] sm:$0xff]
    %v170 = vld [vmem:[#allocation7 + $0x198] sm:$0xff]
    %v171 = vld [vmem:[#allocation7 + $0x1a0] sm:$0xff]
    %v172 = vld [vmem:[#allocation7 + $0x1a8] sm:$0xff]
    %v173 = vld [vmem:[#allocation7 + $0x1b0] sm:$0xff]
    %v174 = vld [vmem:[#allocation7 + $0x1b8] sm:$0xff]
    %v175 = vld [vmem:[#allocation7 + $0x1c0] sm:$0xff]
    %v176 = vld [vmem:[#allocation7 + $0x1c8] sm:$0xff]
    %v177 = vld [vmem:[#allocation7 + $0x1d0] sm:$0xff]
    %v178 = vld [vmem:[#allocation7 + $0x1d8] sm:$0xff]
    %v179 = vld [vmem:[#allocation7 + $0x1e0] sm:$0xff]
    %v180 = vld [vmem:[#allocation7 + $0x1e8] sm:$0xff]
    %v181 = vld [vmem:[#allocation7 + $0x1f0] sm:$0xff]
    %v182 = vld [vmem:[#allocation7 + $0x1f8] sm:$0xff]
    %v183 = vld [vmem:[#allocation7 + $0x200] sm:$0xff]
    %v184 = vld [vmem:[#allocation7 + $0x208] sm:$0xff]
    %v185 = vld [vmem:[#allocation7 + $0x210] sm:$0xff]
    %v186 = vld [vmem:[#allocation7 + $0x218] sm:$0xff]
    %v187 = vld [vmem:[#allocation7 + $0x220] sm:$0xff]
    %v188 = vld [vmem:[#allocation7 + $0x228] sm:$0xff]
    %v189 = vld [vmem:[#allocation7 + $0x230] sm:$0xff]
    %v190 = vld [vmem:[#allocation7 + $0x238] sm:$0xff]
    %v191 = vld [vmem:[#allocation7 + $0x240] sm:$0xff]
    %v192 = vld [vmem:[#allocation7 + $0x248] sm:$0xff]
    %v193 = vld [vmem:[#allocation7 + $0x250] sm:$0xff]
    %v194 = vld [vmem:[#allocation7 + $0x258] sm:$0xff]
    %v195 = vld [vmem:[#allocation7 + $0x260] sm:$0xff]
    %v196 = vld [vmem:[#allocation7 + $0x268] sm:$0xff]
    %v197 = vld [vmem:[#allocation7 + $0x270] sm:$0xff]
    %v198 = vld [vmem:[#allocation7 + $0x278] sm:$0xff]
    %v199 = vld [vmem:[#allocation7 + $0x280] sm:$0xff]
    %v200 = vld [vmem:[#allocation7 + $0x288] sm:$0xff]
    %v201 = vld [vmem:[#allocation7 + $0x290] sm:$0xff]
    %v202 = vld [vmem:[#allocation7 + $0x298] sm:$0xff]
    %v203 = vld [vmem:[#allocation7 + $0x2a0] sm:$0xff]
    %v204 = vld [vmem:[#allocation7 + $0x2a8] sm:$0xff]
    %v205 = vld [vmem:[#allocation7 + $0x2b0] sm:$0xff]
    %v206 = vld [vmem:[#allocation7 + $0x2b8] sm:$0xff]
    %v207 = vld [vmem:[#allocation7 + $0x2c0] sm:$0xff]
    %v208 = vld [vmem:[#allocation7 + $0x2c8] sm:$0xff]
    %v209 = vld [vmem:[#allocation7 + $0x2d0] sm:$0xff]
    %v210 = vld [vmem:[#allocation7 + $0x2d8] sm:$0xff]
    %v211 = vld [vmem:[#allocation7 + $0x2e0] sm:$0xff]
    %v212 = vld [vmem:[#allocation7 + $0x2e8] sm:$0xff]
    %v213 = vld [vmem:[#allocation7 + $0x2f0] sm:$0xff]
    %v214 = vld [vmem:[#allocation7 + $0x2f8] sm:$0xff]
    %v215 = vld [vmem:[#allocation7 + $0x300] sm:$0xff]
    %v216 = vld [vmem:[#allocation7 + $0x308] sm:$0xff]
    %v217 = vld [vmem:[#allocation7 + $0x310] sm:$0xff]
    %v218 = vld [vmem:[#allocation7 + $0x318] sm:$0xff]
    %v219 = vld [vmem:[#allocation7 + $0x320] sm:$0xff]
    %v220 = vld [vmem:[#allocation7 + $0x328] sm:$0xff]
    %v221 = vld [vmem:[#allocation7 + $0x330] sm:$0xff]
    %v222 = vld [vmem:[#allocation7 + $0x338] sm:$0xff]
    %v223 = vld [vmem:[#allocation7 + $0x340] sm:$0xff]
    %v224 = vld [vmem:[#allocation7 + $0x348] sm:$0xff]
    %v225 = vld [vmem:[#allocation7 + $0x350] sm:$0xff]
    %v226 = vld [vmem:[#allocation7 + $0x358] sm:$0xff]
    %v227 = vld [vmem:[#allocation7 + $0x360] sm:$0xff]
    %v228 = vld [vmem:[#allocation7 + $0x368] sm:$0xff]
    %v229 = vld [vmem:[#allocation7 + $0x370] sm:$0xff]
    %v230 = vld [vmem:[#allocation7 + $0x378] sm:$0xff]
    %v231 = vld [vmem:[#allocation7 + $0x380] sm:$0xff]
    %v232 = vld [vmem:[#allocation7 + $0x388] sm:$0xff]
    %v233 = vld [vmem:[#allocation7 + $0x390] sm:$0xff]
    %v234 = vld [vmem:[#allocation7 + $0x398] sm:$0xff]
    %v235 = vld [vmem:[#allocation7 + $0x3a0] sm:$0xff]
    %v236 = vld [vmem:[#allocation7 + $0x3a8] sm:$0xff]
    %v237 = vld [vmem:[#allocation7 + $0x3b0] sm:$0xff]
    %v238 = vld [vmem:[#allocation7 + $0x3b8] sm:$0xff]
    %v239 = vld [vmem:[#allocation7 + $0x3c0] sm:$0xff]
    %v240 = vld [vmem:[#allocation7 + $0x3c8] sm:$0xff]
    %v241 = vld [vmem:[#allocation7 + $0x3d0] sm:$0xff]
    %v242 = vld [vmem:[#allocation7 + $0x3d8] sm:$0xff]
    %v243 = vld [vmem:[#allocation7 + $0x3e0] sm:$0xff]
    %v244 = vld [vmem:[#allocation7 + $0x3e8] sm:$0xff]
    %v245 = vld [vmem:[#allocation7 + $0x3f0] sm:$0xff]
    %v246 = vld [vmem:[#allocation7 + $0x3f8] sm:$0xff]
    %v247 = vld [vmem:[#allocation7 + $0x400] sm:$0xff]
    %v248 = vld [vmem:[#allocation7 + $0x408] sm:$0xff]
    %v249 = vld [vmem:[#allocation7 + $0x410] sm:$0xff]
    %v250 = vld [vmem:[#allocation7 + $0x418] sm:$0xff]
    %v251 = vld [vmem:[#allocation7 + $0x420] sm:$0xff]
    %v252 = vld [vmem:[#allocation7 + $0x428] sm:$0xff]
    %v253 = vld [vmem:[#allocation7 + $0x430] sm:$0xff]
    %v254 = vld [vmem:[#allocation7 + $0x438] sm:$0xff]
    %v255 = vld [vmem:[#allocation7 + $0x440] sm:$0xff]
    %v256 = vld [vmem:[#allocation7 + $0x448] sm:$0xff]
    %v257 = vld [vmem:[#allocation7 + $0x450] sm:$0xff]
    %v258 = vld [vmem:[#allocation7 + $0x458] sm:$0xff]
    %v259 = vld [vmem:[#allocation7 + $0x460] sm:$0xff]
    %v260 = vld [vmem:[#allocation7 + $0x468] sm:$0xff]
    %v261 = vld [vmem:[#allocation7 + $0x470] sm:$0xff]
    %v262 = vld [vmem:[#allocation7 + $0x478] sm:$0xff]
    %v263 = vld [vmem:[#allocation7 + $0x480] sm:$0xff]
    %v264 = vld [vmem:[#allocation7 + $0x488] sm:$0xff]
    %v265 = vld [vmem:[#allocation7 + $0x490] sm:$0xff]
    %v266 = vld [vmem:[#allocation7 + $0x498] sm:$0xff]
    %v267 = vld [vmem:[#allocation7 + $0x4a0] sm:$0xff]
    %v268 = vld [vmem:[#allocation7 + $0x4a8] sm:$0xff]
    %v269 = vld [vmem:[#allocation7 + $0x4b0] sm:$0xff]
    %v270 = vld [vmem:[#allocation7 + $0x4b8] sm:$0xff]
    %v271 = vld [vmem:[#allocation7 + $0x4c0] sm:$0xff]
    %v272 = vld [vmem:[#allocation7 + $0x4c8] sm:$0xff]
    %v273 = vld [vmem:[#allocation7 + $0x4d0] sm:$0xff]
    %v274 = vld [vmem:[#allocation7 + $0x4d8] sm:$0xff]
    %v275 = vld [vmem:[#allocation7 + $0x4e0] sm:$0xff]
    %v276 = vld [vmem:[#allocation7 + $0x4e8] sm:$0xff]
    %v277 = vld [vmem:[#allocation7 + $0x4f0] sm:$0xff]
    %v278 = vld [vmem:[#allocation7 + $0x4f8] sm:$0xff]
    %v279 = vld [vmem:[#allocation7 + $0x500] sm:$0xff]
    %v280 = vld [vmem:[#allocation7 + $0x508] sm:$0xff]
    %v281 = vld [vmem:[#allocation7 + $0x510] sm:$0xff]
    %v282 = vld [vmem:[#allocation7 + $0x518] sm:$0xff]
    %v283 = vld [vmem:[#allocation7 + $0x520] sm:$0xff]
    %v284 = vld [vmem:[#allocation7 + $0x528] sm:$0xff]
    %v285 = vld [vmem:[#allocation7 + $0x530] sm:$0xff]
    %v286 = vld [vmem:[#allocation7 + $0x538] sm:$0xff]
    %v287 = vld [vmem:[#allocation7 + $0x540] sm:$0xff]
    %v288 = vld [vmem:[#allocation7 + $0x548] sm:$0xff]
    %v289 = vld [vmem:[#allocation7 + $0x550] sm:$0xff]
    %v290 = vld [vmem:[#allocation7 + $0x558] sm:$0xff]
    %v291 = vld [vmem:[#allocation7 + $0x560] sm:$0xff]
    %v292 = vld [vmem:[#allocation7 + $0x568] sm:$0xff]
    %v293 = vld [vmem:[#allocation7 + $0x570] sm:$0xff]
    %v294 = vld [vmem:[#allocation7 + $0x578] sm:$0xff]
    %v295 = vld [vmem:[#allocation7 + $0x580] sm:$0xff]
    %v296 = vld [vmem:[#allocation7 + $0x588] sm:$0xff]
    %v297 = vld [vmem:[#allocation7 + $0x590] sm:$0xff]
    %v298 = vld [vmem:[#allocation7 + $0x598] sm:$0xff]
    %v299 = vld [vmem:[#allocation7 + $0x5a0] sm:$0xff]
    %v300 = vld [vmem:[#allocation7 + $0x5a8] sm:$0xff]
    %v301 = vld [vmem:[#allocation7 + $0x5b0] sm:$0xff]
    %v302 = vld [vmem:[#allocation7 + $0x5b8] sm:$0xff]
    %v303 = vld [vmem:[#allocation7 + $0x5c0] sm:$0xff]
    %v304 = vld [vmem:[#allocation7 + $0x5c8] sm:$0xff]
    %v305 = vld [vmem:[#allocation7 + $0x5d0] sm:$0xff]
    %v306 = vld [vmem:[#allocation7 + $0x5d8] sm:$0xff]
    %v307 = vld [vmem:[#allocation7 + $0x5e0] sm:$0xff]
    %v308 = vld [vmem:[#allocation7 + $0x5e8] sm:$0xff]
    %v309 = vld [vmem:[#allocation7 + $0x5f0] sm:$0xff]
    %v310 = vld [vmem:[#allocation7 + $0x5f8] sm:$0xff]
    %v311 = vld [vmem:[#allocation7 + $0x600] sm:$0xff]
    %v312 = vld [vmem:[#allocation7 + $0x608] sm:$0xff]
    %v313 = vld [vmem:[#allocation7 + $0x610] sm:$0xff]
    %v314 = vld [vmem:[#allocation7 + $0x618] sm:$0xff]
    %v315 = vld [vmem:[#allocation7 + $0x620] sm:$0xff]
    %v316 = vld [vmem:[#allocation7 + $0x628] sm:$0xff]
    %v317 = vld [vmem:[#allocation7 + $0x630] sm:$0xff]
    %v318 = vld [vmem:[#allocation7 + $0x638] sm:$0xff]
    %v319 = vld [vmem:[#allocation7 + $0x640] sm:$0xff]
    %v320 = vld [vmem:[#allocation7 + $0x648] sm:$0xff]
    %v321 = vld [vmem:[#allocation7 + $0x650] sm:$0xff]
    %v322 = vld [vmem:[#allocation7 + $0x658] sm:$0xff]
    %v323 = vld [vmem:[#allocation7 + $0x660] sm:$0xff]
    %v324 = vld [vmem:[#allocation7 + $0x668] sm:$0xff]
    %v325 = vld [vmem:[#allocation7 + $0x670] sm:$0xff]
    %v326 = vld [vmem:[#allocation7 + $0x678] sm:$0xff]
    %v327 = vld [vmem:[#allocation7 + $0x680] sm:$0xff]
    %v328 = vld [vmem:[#allocation7 + $0x688] sm:$0xff]
    %v329 = vld [vmem:[#allocation7 + $0x690] sm:$0xff]
    %v330 = vld [vmem:[#allocation7 + $0x698] sm:$0xff]
    %v331 = vld [vmem:[#allocation7 + $0x6a0] sm:$0xff]
    %v332 = vld [vmem:[#allocation7 + $0x6a8] sm:$0xff]
    %v333 = vld [vmem:[#allocation7 + $0x6b0] sm:$0xff]
    %v334 = vld [vmem:[#allocation7 + $0x6b8] sm:$0xff]
    %v335 = vld [vmem:[#allocation7 + $0x6c0] sm:$0xff]
    %v336 = vld [vmem:[#allocation7 + $0x6c8] sm:$0xff]
    %v337 = vld [vmem:[#allocation7 + $0x6d0] sm:$0xff]
    %v338 = vld [vmem:[#allocation7 + $0x6d8] sm:$0xff]
    %v339 = vld [vmem:[#allocation7 + $0x6e0] sm:$0xff]
    %v340 = vld [vmem:[#allocation7 + $0x6e8] sm:$0xff]
    %v341 = vld [vmem:[#allocation7 + $0x6f0] sm:$0xff]
    %v342 = vld [vmem:[#allocation7 + $0x6f8] sm:$0xff]
    %v343 = vld [vmem:[#allocation7 + $0x700] sm:$0xff]
    %v344 = vld [vmem:[#allocation7 + $0x708] sm:$0xff]
    %v345 = vld [vmem:[#allocation7 + $0x710] sm:$0xff]
    %v346 = vld [vmem:[#allocation7 + $0x718] sm:$0xff]
    %v347 = vld [vmem:[#allocation7 + $0x720] sm:$0xff]
    %v348 = vld [vmem:[#allocation7 + $0x728] sm:$0xff]
    %v349 = vld [vmem:[#allocation7 + $0x730] sm:$0xff]
    %v350 = vld [vmem:[#allocation7 + $0x738] sm:$0xff]
    %v351 = vld [vmem:[#allocation7 + $0x740] sm:$0xff]
    %v352 = vld [vmem:[#allocation7 + $0x748] sm:$0xff]
    %v353 = vld [vmem:[#allocation7 + $0x750] sm:$0xff]
    %v354 = vld [vmem:[#allocation7 + $0x758] sm:$0xff]
    %v355 = vld [vmem:[#allocation7 + $0x760] sm:$0xff]
    %v356 = vld [vmem:[#allocation7 + $0x768] sm:$0xff]
    %v357 = vld [vmem:[#allocation7 + $0x770] sm:$0xff]
    %v358 = vld [vmem:[#allocation7 + $0x778] sm:$0xff]
    %v359 = vld [vmem:[#allocation7 + $0x780] sm:$0xff]
    %v360 = vld [vmem:[#allocation7 + $0x788] sm:$0xff]
    %v361 = vld [vmem:[#allocation7 + $0x790] sm:$0xff]
    %v362 = vld [vmem:[#allocation7 + $0x798] sm:$0xff]
    %v363 = vld [vmem:[#allocation7 + $0x7a0] sm:$0xff]
    %v364 = vld [vmem:[#allocation7 + $0x7a8] sm:$0xff]
    %v365 = vld [vmem:[#allocation7 + $0x7b0] sm:$0xff]
    %v366 = vld [vmem:[#allocation7 + $0x7b8] sm:$0xff]
    %v367 = vld [vmem:[#allocation7 + $0x7c0] sm:$0xff]
    %v368 = vld [vmem:[#allocation7 + $0x7c8] sm:$0xff]
    %v369 = vld [vmem:[#allocation7 + $0x7d0] sm:$0xff]
    %v370 = vld [vmem:[#allocation7 + $0x7d8] sm:$0xff]
    %v371 = vld [vmem:[#allocation7 + $0x7e0] sm:$0xff]
    %v372 = vld [vmem:[#allocation7 + $0x7e8] sm:$0xff]
    %v373 = vld [vmem:[#allocation7 + $0x7f0] sm:$0xff]
    %v374 = vld [vmem:[#allocation7 + $0x7f8] sm:$0xff]
    %v375 = vld [vmem:[#allocation7 + $0x800] sm:$0xff]
    %v376 = vld [vmem:[#allocation7 + $0x808] sm:$0xff]
    %v377 = vld [vmem:[#allocation7 + $0x810] sm:$0xff]
    %v378 = vld [vmem:[#allocation7 + $0x818] sm:$0xff]
    %v379 = vld [vmem:[#allocation7 + $0x820] sm:$0xff]
    %v380 = vld [vmem:[#allocation7 + $0x828] sm:$0xff]
    %v381 = vld [vmem:[#allocation7 + $0x830] sm:$0xff]
    %v382 = vld [vmem:[#allocation7 + $0x838] sm:$0xff]
    %v383 = vld [vmem:[#allocation7 + $0x840] sm:$0xff]
    %v384 = vld [vmem:[#allocation7 + $0x848] sm:$0xff]
    %v385 = vld [vmem:[#allocation7 + $0x850] sm:$0xff]
    %v386 = vld [vmem:[#allocation7 + $0x858] sm:$0xff]
    %v387 = vld [vmem:[#allocation7 + $0x860] sm:$0xff]
    %v388 = vld [vmem:[#allocation7 + $0x868] sm:$0xff]
    %v389 = vld [vmem:[#allocation7 + $0x870] sm:$0xff]
    %v390 = vld [vmem:[#allocation7 + $0x878] sm:$0xff]
    %v391 = vld [vmem:[#allocation7 + $0x880] sm:$0xff]
    %v392 = vld [vmem:[#allocation7 + $0x888] sm:$0xff]
    %v393 = vld [vmem:[#allocation7 + $0x890] sm:$0xff]
    %v394 = vld [vmem:[#allocation7 + $0x898] sm:$0xff]
    %v395 = vld [vmem:[#allocation7 + $0x8a0] sm:$0xff]
    %v396 = vld [vmem:[#allocation7 + $0x8a8] sm:$0xff]
    %v397 = vld [vmem:[#allocation7 + $0x8b0] sm:$0xff]
    %v398 = vld [vmem:[#allocation7 + $0x8b8] sm:$0xff]
    %v399 = vld [vmem:[#allocation7 + $0x8c0] sm:$0xff]
    %v400 = vld [vmem:[#allocation7 + $0x8c8] sm:$0xff]
    %v401 = vld [vmem:[#allocation7 + $0x8d0] sm:$0xff]
    %v402 = vld [vmem:[#allocation7 + $0x8d8] sm:$0xff]
    %v403 = vld [vmem:[#allocation7 + $0x8e0] sm:$0xff]
    %v404 = vld [vmem:[#allocation7 + $0x8e8] sm:$0xff]
    %v405 = vld [vmem:[#allocation7 + $0x8f0] sm:$0xff]
    %v406 = vld [vmem:[#allocation7 + $0x8f8] sm:$0xff]
    %v407 = vld [vmem:[#allocation7 + $0x900] sm:$0xff]
    %v408 = vld [vmem:[#allocation7 + $0x908] sm:$0xff]
    %v409 = vld [vmem:[#allocation7 + $0x910] sm:$0xff]
    %v410 = vld [vmem:[#allocation7 + $0x918] sm:$0xff]
    %v411 = vld [vmem:[#allocation7 + $0x920] sm:$0xff]
    %v412 = vld [vmem:[#allocation7 + $0x928] sm:$0xff]
    %v413 = vld [vmem:[#allocation7 + $0x930] sm:$0xff]
    %v414 = vld [vmem:[#allocation7 + $0x938] sm:$0xff]
    %v415 = vld [vmem:[#allocation7 + $0x940] sm:$0xff]
    %v416 = vld [vmem:[#allocation7 + $0x948] sm:$0xff]
    %v417 = vld [vmem:[#allocation7 + $0x950] sm:$0xff]
    %v418 = vld [vmem:[#allocation7 + $0x958] sm:$0xff]
    %v419 = vld [vmem:[#allocation7 + $0x960] sm:$0xff]
    %v420 = vld [vmem:[#allocation7 + $0x968] sm:$0xff]
    %v421 = vld [vmem:[#allocation7 + $0x970] sm:$0xff]
    %v422 = vld [vmem:[#allocation7 + $0x978] sm:$0xff]
    %v423 = vld [vmem:[#allocation7 + $0x980] sm:$0xff]
    %v424 = vld [vmem:[#allocation7 + $0x988] sm:$0xff]
    %v425 = vld [vmem:[#allocation7 + $0x990] sm:$0xff]
    %v426 = vld [vmem:[#allocation7 + $0x998] sm:$0xff]
    %v427 = vld [vmem:[#allocation7 + $0x9a0] sm:$0xff]
    %v428 = vld [vmem:[#allocation7 + $0x9a8] sm:$0xff]
    %v429 = vld [vmem:[#allocation7 + $0x9b0] sm:$0xff]
    %v430 = vld [vmem:[#allocation7 + $0x9b8] sm:$0xff]
    %v431 = vld [vmem:[#allocation7 + $0x9c0] sm:$0xff]
    %v432 = vld [vmem:[#allocation7 + $0x9c8] sm:$0xff]
    %v433 = vld [vmem:[#allocation7 + $0x9d0] sm:$0xff]
    %v434 = vld [vmem:[#allocation7 + $0x9d8] sm:$0xff]
    %v435 = vld [vmem:[#allocation7 + $0x9e0] sm:$0xff]
    %v436 = vld [vmem:[#allocation7 + $0x9e8] sm:$0xff]
    %v437 = vld [vmem:[#allocation7 + $0x9f0] sm:$0xff]
    %v438 = vld [vmem:[#allocation7 + $0x9f8] sm:$0xff]
    %v439 = vld [vmem:[#allocation7 + $0xa00] sm:$0xff]
    %v440 = vld [vmem:[#allocation7 + $0xa08] sm:$0xff]
    %v441 = vld [vmem:[#allocation7 + $0xa10] sm:$0xff]
    %v442 = vld [vmem:[#allocation7 + $0xa18] sm:$0xff]
    %v443 = vld [vmem:[#allocation7 + $0xa20] sm:$0xff]
    %v444 = vld [vmem:[#allocation7 + $0xa28] sm:$0xff]
    %v445 = vld [vmem:[#allocation7 + $0xa30] sm:$0xff]
    %v446 = vld [vmem:[#allocation7 + $0xa38] sm:$0xff]
    %v447 = vld [vmem:[#allocation7 + $0xa40] sm:$0xff]
    %v448 = vld [vmem:[#allocation7 + $0xa48] sm:$0xff]
    %v449 = vld [vmem:[#allocation7 + $0xa50] sm:$0xff]
    %v450 = vld [vmem:[#allocation7 + $0xa58] sm:$0xff]
    %v451 = vld [vmem:[#allocation7 + $0xa60] sm:$0xff]
    %v452 = vld [vmem:[#allocation7 + $0xa68] sm:$0xff]
    %v453 = vld [vmem:[#allocation7 + $0xa70] sm:$0xff]
    %v454 = vld [vmem:[#allocation7 + $0xa78] sm:$0xff]
    %v455 = vld [vmem:[#allocation7 + $0xa80] sm:$0xff]
    %v456 = vld [vmem:[#allocation7 + $0xa88] sm:$0xff]
    %v457 = vld [vmem:[#allocation7 + $0xa90] sm:$0xff]
    %v458 = vld [vmem:[#allocation7 + $0xa98] sm:$0xff]
    %v459 = vld [vmem:[#allocation7 + $0xaa0] sm:$0xff]
    %v460 = vld [vmem:[#allocation7 + $0xaa8] sm:$0xff]
    %v461 = vld [vmem:[#allocation7 + $0xab0] sm:$0xff]
    %v462 = vld [vmem:[#allocation7 + $0xab8] sm:$0xff]
    %v463 = vld [vmem:[#allocation7 + $0xac0] sm:$0xff]
    %v464 = vld [vmem:[#allocation7 + $0xac8] sm:$0xff]
    %v465 = vld [vmem:[#allocation7 + $0xad0] sm:$0xff]
    %v466 = vld [vmem:[#allocation7 + $0xad8] sm:$0xff]
    %v467 = vld [vmem:[#allocation7 + $0xae0] sm:$0xff]
    %v468 = vld [vmem:[#allocation7 + $0xae8] sm:$0xff]
    %v469 = vld [vmem:[#allocation7 + $0xaf0] sm:$0xff]
    %v470 = vld [vmem:[#allocation7 + $0xaf8] sm:$0xff]
    %v471 = vld [vmem:[#allocation7 + $0xb00] sm:$0xff]
    %v472 = vld [vmem:[#allocation7 + $0xb08] sm:$0xff]
    %v473 = vld [vmem:[#allocation7 + $0xb10] sm:$0xff]
    %v474 = vld [vmem:[#allocation7 + $0xb18] sm:$0xff]
    %v475 = vld [vmem:[#allocation7 + $0xb20] sm:$0xff]
    %v476 = vld [vmem:[#allocation7 + $0xb28] sm:$0xff]
    %v477 = vld [vmem:[#allocation7 + $0xb30] sm:$0xff]
    %v478 = vld [vmem:[#allocation7 + $0xb38] sm:$0xff]
    %v479 = vld [vmem:[#allocation7 + $0xb40] sm:$0xff]
    %v480 = vld [vmem:[#allocation7 + $0xb48] sm:$0xff]
    %v481 = vld [vmem:[#allocation7 + $0xb50] sm:$0xff]
    %v482 = vld [vmem:[#allocation7 + $0xb58] sm:$0xff]
    %v483 = vld [vmem:[#allocation7 + $0xb60] sm:$0xff]
    %v484 = vld [vmem:[#allocation7 + $0xb68] sm:$0xff]
    %v485 = vld [vmem:[#allocation7 + $0xb70] sm:$0xff]
    %v486 = vld [vmem:[#allocation7 + $0xb78] sm:$0xff]
    %v487 = vld [vmem:[#allocation7 + $0xb80] sm:$0xff]
    %v488 = vld [vmem:[#allocation7 + $0xb88] sm:$0xff]
    %v489 = vld [vmem:[#allocation7 + $0xb90] sm:$0xff]
    %v490 = vld [vmem:[#allocation7 + $0xb98] sm:$0xff]
    %v491 = vld [vmem:[#allocation7 + $0xba0] sm:$0xff]
    %v492 = vld [vmem:[#allocation7 + $0xba8] sm:$0xff]
    %v493 = vld [vmem:[#allocation7 + $0xbb0] sm:$0xff]
    %v494 = vld [vmem:[#allocation7 + $0xbb8] sm:$0xff]
    %v495 = vld [vmem:[#allocation7 + $0xbc0] sm:$0xff]
    %v496 = vld [vmem:[#allocation7 + $0xbc8] sm:$0xff]
    %v497 = vld [vmem:[#allocation7 + $0xbd0] sm:$0xff]
    %v498 = vld [vmem:[#allocation7 + $0xbd8] sm:$0xff]
    %v499 = vld [vmem:[#allocation7 + $0xbe0] sm:$0xff]
    %v500 = vld [vmem:[#allocation7 + $0xbe8] sm:$0xff]
    %v501 = vld [vmem:[#allocation7 + $0xbf0] sm:$0xff]
    %v502 = vld [vmem:[#allocation7 + $0xbf8] sm:$0xff]
    %v503 = vld [vmem:[#allocation7 + $0xc00] sm:$0xff]
    %v504 = vld [vmem:[#allocation7 + $0xc08] sm:$0xff]
    %v505 = vld [vmem:[#allocation7 + $0xc10] sm:$0xff]
    %v506 = vld [vmem:[#allocation7 + $0xc18] sm:$0xff]
    %v507 = vld [vmem:[#allocation7 + $0xc20] sm:$0xff]
    %v508 = vld [vmem:[#allocation7 + $0xc28] sm:$0xff]
    %v509 = vld [vmem:[#allocation7 + $0xc30] sm:$0xff]
    %v510 = vld [vmem:[#allocation7 + $0xc38] sm:$0xff]
    %v511 = vld [vmem:[#allocation7 + $0xc40] sm:$0xff]
    %v512 = vld [vmem:[#allocation7 + $0xc48] sm:$0xff]
    %v513 = vld [vmem:[#allocation7 + $0xc50] sm:$0xff]
    %v514 = vld [vmem:[#allocation7 + $0xc58] sm:$0xff]
    %v515 = vld [vmem:[#allocation7 + $0xc60] sm:$0xff]
    %v516 = vld [vmem:[#allocation7 + $0xc68] sm:$0xff]
    %v517 = vld [vmem:[#allocation7 + $0xc70] sm:$0xff]
    %v518 = vld [vmem:[#allocation7 + $0xc78] sm:$0xff]
    %v519 = vld [vmem:[#allocation7 + $0xc80] sm:$0xff]
    %v520 = vld [vmem:[#allocation7 + $0xc88] sm:$0xff]
    %v521 = vld [vmem:[#allocation7 + $0xc90] sm:$0xff]
    %v522 = vld [vmem:[#allocation7 + $0xc98] sm:$0xff]
    %v523 = vld [vmem:[#allocation7 + $0xca0] sm:$0xff]
    %v524 = vld [vmem:[#allocation7 + $0xca8] sm:$0xff]
    %v525 = vld [vmem:[#allocation7 + $0xcb0] sm:$0xff]
    %v526 = vld [vmem:[#allocation7 + $0xcb8] sm:$0xff]
    %v527 = vld [vmem:[#allocation7 + $0xcc0] sm:$0xff]
    %v528 = vld [vmem:[#allocation7 + $0xcc8] sm:$0xff]
    %v529 = vld [vmem:[#allocation7 + $0xcd0] sm:$0xff]
    %v530 = vld [vmem:[#allocation7 + $0xcd8] sm:$0xff]
    %v531 = vld [vmem:[#allocation7 + $0xce0] sm:$0xff]
    %v532 = vld [vmem:[#allocation7 + $0xce8] sm:$0xff]
    %v533 = vld [vmem:[#allocation7 + $0xcf0] sm:$0xff]
    %v534 = vld [vmem:[#allocation7 + $0xcf8] sm:$0xff]
    %v535 = vld [vmem:[#allocation7 + $0xd00] sm:$0xff]
    %v536 = vld [vmem:[#allocation7 + $0xd08] sm:$0xff]
    %v537 = vld [vmem:[#allocation7 + $0xd10] sm:$0xff]
    %v538 = vld [vmem:[#allocation7 + $0xd18] sm:$0xff]
    %v539 = vld [vmem:[#allocation7 + $0xd20] sm:$0xff]
    %v540 = vld [vmem:[#allocation7 + $0xd28] sm:$0xff]
    %v541 = vld [vmem:[#allocation7 + $0xd30] sm:$0xff]
    %v542 = vld [vmem:[#allocation7 + $0xd38] sm:$0xff]
    %v543 = vld [vmem:[#allocation7 + $0xd40] sm:$0xff]
    %v544 = vld [vmem:[#allocation7 + $0xd48] sm:$0xff]
    %v545 = vld [vmem:[#allocation7 + $0xd50] sm:$0xff]
    %v546 = vld [vmem:[#allocation7 + $0xd58] sm:$0xff]
    %v547 = vld [vmem:[#allocation7 + $0xd60] sm:$0xff]
    %v548 = vld [vmem:[#allocation7 + $0xd68] sm:$0xff]
    %v549 = vld [vmem:[#allocation7 + $0xd70] sm:$0xff]
    %v550 = vld [vmem:[#allocation7 + $0xd78] sm:$0xff]
    %v551 = vld [vmem:[#allocation7 + $0xd80] sm:$0xff]
    %v552 = vld [vmem:[#allocation7 + $0xd88] sm:$0xff]
    %v553 = vld [vmem:[#allocation7 + $0xd90] sm:$0xff]
    %v554 = vld [vmem:[#allocation7 + $0xd98] sm:$0xff]
    %v555 = vld [vmem:[#allocation7 + $0xda0] sm:$0xff]
    %v556 = vld [vmem:[#allocation7 + $0xda8] sm:$0xff]
    %v557 = vld [vmem:[#allocation7 + $0xdb0] sm:$0xff]
    %v558 = vld [vmem:[#allocation7 + $0xdb8] sm:$0xff]
    %v559 = vld [vmem:[#allocation7 + $0xdc0] sm:$0xff]
    %v560 = vld [vmem:[#allocation7 + $0xdc8] sm:$0xff]
    %v561 = vld [vmem:[#allocation7 + $0xdd0] sm:$0xff]
    %v562 = vld [vmem:[#allocation7 + $0xdd8] sm:$0xff]
    %v563 = vld [vmem:[#allocation7 + $0xde0] sm:$0xff]
    %v564 = vld [vmem:[#allocation7 + $0xde8] sm:$0xff]
    %v565 = vld [vmem:[#allocation7 + $0xdf0] sm:$0xff]
    %v566 = vld [vmem:[#allocation7 + $0xdf8] sm:$0xff]
    %v567 = vld [vmem:[#allocation7 + $0xe00] sm:$0xff]
    %v568 = vld [vmem:[#allocation7 + $0xe08] sm:$0xff]
    %v569 = vld [vmem:[#allocation7 + $0xe10] sm:$0xff]
    %v570 = vld [vmem:[#allocation7 + $0xe18] sm:$0xff]
    %v571 = vld [vmem:[#allocation7 + $0xe20] sm:$0xff]
    %v572 = vld [vmem:[#allocation7 + $0xe28] sm:$0xff]
    %v573 = vld [vmem:[#allocation7 + $0xe30] sm:$0xff]
    %v574 = vld [vmem:[#allocation7 + $0xe38] sm:$0xff]
    %v575 = vld [vmem:[#allocation7 + $0xe40] sm:$0xff]
    %v576 = vld [vmem:[#allocation7 + $0xe48] sm:$0xff]
    %v577 = vld [vmem:[#allocation7 + $0xe50] sm:$0xff]
    %v578 = vld [vmem:[#allocation7 + $0xe58] sm:$0xff]
    %v579 = vld [vmem:[#allocation7 + $0xe60] sm:$0xff]
    %v580 = vld [vmem:[#allocation7 + $0xe68] sm:$0xff]
    %v581 = vld [vmem:[#allocation7 + $0xe70] sm:$0xff]
    %v582 = vld [vmem:[#allocation7 + $0xe78] sm:$0xff]
    %v583 = vld [vmem:[#allocation7 + $0xe80] sm:$0xff]
    %v584 = vld [vmem:[#allocation7 + $0xe88] sm:$0xff]
    %v585 = vld [vmem:[#allocation7 + $0xe90] sm:$0xff]
    %v586 = vld [vmem:[#allocation7 + $0xe98] sm:$0xff]
    %v587 = vld [vmem:[#allocation7 + $0xea0] sm:$0xff]
    %v588 = vld [vmem:[#allocation7 + $0xea8] sm:$0xff]
    %v589 = vld [vmem:[#allocation7 + $0xeb0] sm:$0xff]
    %v590 = vld [vmem:[#allocation7 + $0xeb8] sm:$0xff]
    %v591 = vld [vmem:[#allocation7 + $0xec0] sm:$0xff]
    %v592 = vld [vmem:[#allocation7 + $0xec8] sm:$0xff]
    %v593 = vld [vmem:[#allocation7 + $0xed0] sm:$0xff]
    %v594 = vld [vmem:[#allocation7 + $0xed8] sm:$0xff]
    %v595 = vld [vmem:[#allocation7 + $0xee0] sm:$0xff]
    %v596 = vld [vmem:[#allocation7 + $0xee8] sm:$0xff]
    %v597 = vld [vmem:[#allocation7 + $0xef0] sm:$0xff]
    %v598 = vld [vmem:[#allocation7 + $0xef8] sm:$0xff]
    %v599 = vld [vmem:[#allocation7 + $0xf00] sm:$0xff]
    %v600 = vld [vmem:[#allocation7 + $0xf08] sm:$0xff]
    %v601 = vld [vmem:[#allocation7 + $0xf10] sm:$0xff]
    %v602 = vld [vmem:[#allocation7 + $0xf18] sm:$0xff]
    %v603 = vld [vmem:[#allocation7 + $0xf20] sm:$0xff]
    %v604 = vld [vmem:[#allocation7 + $0xf28] sm:$0xff]
    %v605 = vld [vmem:[#allocation7 + $0xf30] sm:$0xff]
    %v606 = vld [vmem:[#allocation7 + $0xf38] sm:$0xff]
    %v607 = vld [vmem:[#allocation7 + $0xf40] sm:$0xff]
    %v608 = vld [vmem:[#allocation7 + $0xf48] sm:$0xff]
    %v609 = vld [vmem:[#allocation7 + $0xf50] sm:$0xff]
    %v610 = vld [vmem:[#allocation7 + $0xf58] sm:$0xff]
    %v611 = vld [vmem:[#allocation7 + $0xf60] sm:$0xff]
    %v612 = vld [vmem:[#allocation7 + $0xf68] sm:$0xff]
    %v613 = vld [vmem:[#allocation7 + $0xf70] sm:$0xff]
    %v614 = vld [vmem:[#allocation7 + $0xf78] sm:$0xff]
    %v615 = vld [vmem:[#allocation7 + $0xf80] sm:$0xff]
    %v616 = vld [vmem:[#allocation7 + $0xf88] sm:$0xff]
    %v617 = vld [vmem:[#allocation7 + $0xf90] sm:$0xff]
    %v618 = vld [vmem:[#allocation7 + $0xf98] sm:$0xff]
    %v619 = vld [vmem:[#allocation7 + $0xfa0] sm:$0xff]
    %v620 = vld [vmem:[#allocation7 + $0xfa8] sm:$0xff]
    %v621 = vld [vmem:[#allocation7 + $0xfb0] sm:$0xff]
    %v622 = vld [vmem:[#allocation7 + $0xfb8] sm:$0xff]
    %v623 = vld [vmem:[#allocation7 + $0xfc0] sm:$0xff]
    %v624 = vld [vmem:[#allocation7 + $0xfc8] sm:$0xff]
    %v625 = vld [vmem:[#allocation7 + $0xfd0] sm:$0xff]
    %v626 = vld [vmem:[#allocation7 + $0xfd8] sm:$0xff]
    %v627 = vld [vmem:[#allocation7 + $0xfe0] sm:$0xff]
    %v628 = vld [vmem:[#allocation7 + $0xfe8] sm:$0xff]
    %v629 = vld [vmem:[#allocation7 + $0xff0] sm:$0xff]
    %v630 = vld [vmem:[#allocation7 + $0xff8] sm:$0xff]
    %v631 = vld [vmem:[#allocation9] sm:$0xf]
    %v632 = vld [vmem:[#allocation9 + $0x4] sm:$0xf]
    %v633 = vld [vmem:[#allocation9 + $0x8] sm:$0xf]
    %v634 = vld [vmem:[#allocation9 + $0xc] sm:$0xf]
    %v635 = vld [vmem:[#allocation9 + $0x10] sm:$0xf]
    %v636 = vld [vmem:[#allocation9 + $0x14] sm:$0xf]
    %v637 = vld [vmem:[#allocation9 + $0x18] sm:$0xf]
    %v638 = vld [vmem:[#allocation9 + $0x1c] sm:$0xf]
    %v639 = vld [vmem:[#allocation9 + $0x20] sm:$0xf]
    %v640 = vld [vmem:[#allocation9 + $0x24] sm:$0xf]
    %v641 = vld [vmem:[#allocation9 + $0x28] sm:$0xf]
    %v642 = vld [vmem:[#allocation9 + $0x2c] sm:$0xf]
    %v643 = vld [vmem:[#allocation9 + $0x30] sm:$0xf]
    %v644 = vld [vmem:[#allocation9 + $0x34] sm:$0xf]
    %v645 = vld [vmem:[#allocation9 + $0x38] sm:$0xf]
    %v646 = vld [vmem:[#allocation9 + $0x3c] sm:$0xf]
    %v647 = vld [vmem:[#allocation9 + $0x40] sm:$0xf]
    %v648 = vld [vmem:[#allocation9 + $0x44] sm:$0xf]
    %v649 = vld [vmem:[#allocation9 + $0x48] sm:$0xf]
    %v650 = vld [vmem:[#allocation9 + $0x4c] sm:$0xf]
    %v651 = vld [vmem:[#allocation9 + $0x50] sm:$0xf]
    %v652 = vld [vmem:[#allocation9 + $0x54] sm:$0xf]
    %v653 = vld [vmem:[#allocation9 + $0x58] sm:$0xf]
    %v654 = vld [vmem:[#allocation9 + $0x5c] sm:$0xf]
    %v655 = vld [vmem:[#allocation9 + $0x60] sm:$0xf]
    %v656 = vld [vmem:[#allocation9 + $0x64] sm:$0xf]
    %v657 = vld [vmem:[#allocation9 + $0x68] sm:$0xf]
    %v658 = vld [vmem:[#allocation9 + $0x6c] sm:$0xf]
    %v659 = vld [vmem:[#allocation9 + $0x70] sm:$0xf]
    %v660 = vld [vmem:[#allocation9 + $0x74] sm:$0xf]
    %v661 = vld [vmem:[#allocation9 + $0x78] sm:$0xf]
    %v662 = vld [vmem:[#allocation9 + $0x7c] sm:$0xf]
    %v663 = vld [vmem:[#allocation9 + $0x80] sm:$0xf]
    %v664 = vld [vmem:[#allocation9 + $0x84] sm:$0xf]
    %v665 = vld [vmem:[#allocation9 + $0x88] sm:$0xf]
    %v666 = vld [vmem:[#allocation9 + $0x8c] sm:$0xf]
    %v667 = vld [vmem:[#allocation9 + $0x90] sm:$0xf]
    %v668 = vld [vmem:[#allocation9 + $0x94] sm:$0xf]
    %v669 = vld [vmem:[#allocation9 + $0x98] sm:$0xf]
    %v670 = vld [vmem:[#allocation9 + $0x9c] sm:$0xf]
    %v671 = vld [vmem:[#allocation9 + $0xa0] sm:$0xf]
    %v672 = vld [vmem:[#allocation9 + $0xa4] sm:$0xf]
    %v673 = vld [vmem:[#allocation9 + $0xa8] sm:$0xf]
    %v674 = vld [vmem:[#allocation9 + $0xac] sm:$0xf]
    %v675 = vld [vmem:[#allocation9 + $0xb0] sm:$0xf]
    %v676 = vld [vmem:[#allocation9 + $0xb4] sm:$0xf]
    %v677 = vld [vmem:[#allocation9 + $0xb8] sm:$0xf]
    %v678 = vld [vmem:[#allocation9 + $0xbc] sm:$0xf]
    %v679 = vld [vmem:[#allocation9 + $0xc0] sm:$0xf]
    %v680 = vld [vmem:[#allocation9 + $0xc4] sm:$0xf]
    %v681 = vld [vmem:[#allocation9 + $0xc8] sm:$0xf]
    %v682 = vld [vmem:[#allocation9 + $0xcc] sm:$0xf]
    %v683 = vld [vmem:[#allocation9 + $0xd0] sm:$0xf]
    %v684 = vld [vmem:[#allocation9 + $0xd4] sm:$0xf]
    %v685 = vld [vmem:[#allocation9 + $0xd8] sm:$0xf]
    %v686 = vld [vmem:[#allocation9 + $0xdc] sm:$0xf]
    %v687 = vld [vmem:[#allocation9 + $0xe0] sm:$0xf]
    %v688 = vld [vmem:[#allocation9 + $0xe4] sm:$0xf]
    %v689 = vld [vmem:[#allocation9 + $0xe8] sm:$0xf]
    %v690 = vld [vmem:[#allocation9 + $0xec] sm:$0xf]
    %v691 = vld [vmem:[#allocation9 + $0xf0] sm:$0xf]
    %v692 = vld [vmem:[#allocation9 + $0xf4] sm:$0xf]
    %v693 = vld [vmem:[#allocation9 + $0xf8] sm:$0xf]
    %v694 = vld [vmem:[#allocation9 + $0xfc] sm:$0xf]
    %v695 = vld [vmem:[#allocation9 + $0x100] sm:$0xf]
    %v696 = vld [vmem:[#allocation9 + $0x104] sm:$0xf]
    %v697 = vld [vmem:[#allocation9 + $0x108] sm:$0xf]
    %v698 = vld [vmem:[#allocation9 + $0x10c] sm:$0xf]
    %v699 = vld [vmem:[#allocation9 + $0x110] sm:$0xf]
    %v700 = vld [vmem:[#allocation9 + $0x114] sm:$0xf]
    %v701 = vld [vmem:[#allocation9 + $0x118] sm:$0xf]
    %v702 = vld [vmem:[#allocation9 + $0x11c] sm:$0xf]
    %v703 = vld [vmem:[#allocation9 + $0x120] sm:$0xf]
    %v704 = vld [vmem:[#allocation9 + $0x124] sm:$0xf]
    %v705 = vld [vmem:[#allocation9 + $0x128] sm:$0xf]
    %v706 = vld [vmem:[#allocation9 + $0x12c] sm:$0xf]
    %v707 = vld [vmem:[#allocation9 + $0x130] sm:$0xf]
    %v708 = vld [vmem:[#allocation9 + $0x134] sm:$0xf]
    %v709 = vld [vmem:[#allocation9 + $0x138] sm:$0xf]
    %v710 = vld [vmem:[#allocation9 + $0x13c] sm:$0xf]
    %v711 = vld [vmem:[#allocation9 + $0x140] sm:$0xf]
    %v712 = vld [vmem:[#allocation9 + $0x144] sm:$0xf]
    %v713 = vld [vmem:[#allocation9 + $0x148] sm:$0xf]
    %v714 = vld [vmem:[#allocation9 + $0x14c] sm:$0xf]
    %v715 = vld [vmem:[#allocation9 + $0x150] sm:$0xf]
    %v716 = vld [vmem:[#allocation9 + $0x154] sm:$0xf]
    %v717 = vld [vmem:[#allocation9 + $0x158] sm:$0xf]
    %v718 = vld [vmem:[#allocation9 + $0x15c] sm:$0xf]
    %v719 = vld [vmem:[#allocation9 + $0x160] sm:$0xf]
    %v720 = vld [vmem:[#allocation9 + $0x164] sm:$0xf]
    %v721 = vld [vmem:[#allocation9 + $0x168] sm:$0xf]
    %v722 = vld [vmem:[#allocation9 + $0x16c] sm:$0xf]
    %v723 = vld [vmem:[#allocation9 + $0x170] sm:$0xf]
    %v724 = vld [vmem:[#allocation9 + $0x174] sm:$0xf]
    %v725 = vld [vmem:[#allocation9 + $0x178] sm:$0xf]
    %v726 = vld [vmem:[#allocation9 + $0x17c] sm:$0xf]
    %v727 = vld [vmem:[#allocation9 + $0x180] sm:$0xf]
    %v728 = vld [vmem:[#allocation9 + $0x184] sm:$0xf]
    %v729 = vld [vmem:[#allocation9 + $0x188] sm:$0xf]
    %v730 = vld [vmem:[#allocation9 + $0x18c] sm:$0xf]
    %v731 = vld [vmem:[#allocation9 + $0x190] sm:$0xf]
    %v732 = vld [vmem:[#allocation9 + $0x194] sm:$0xf]
    %v733 = vld [vmem:[#allocation9 + $0x198] sm:$0xf]
    %v734 = vld [vmem:[#allocation9 + $0x19c] sm:$0xf]
    %v735 = vld [vmem:[#allocation9 + $0x1a0] sm:$0xf]
    %v736 = vld [vmem:[#allocation9 + $0x1a4] sm:$0xf]
    %v737 = vld [vmem:[#allocation9 + $0x1a8] sm:$0xf]
    %v738 = vld [vmem:[#allocation9 + $0x1ac] sm:$0xf]
    %v739 = vld [vmem:[#allocation9 + $0x1b0] sm:$0xf]
    %v740 = vld [vmem:[#allocation9 + $0x1b4] sm:$0xf]
    %v741 = vld [vmem:[#allocation9 + $0x1b8] sm:$0xf]
    %v742 = vld [vmem:[#allocation9 + $0x1bc] sm:$0xf]
    %v743 = vld [vmem:[#allocation9 + $0x1c0] sm:$0xf]
    %v744 = vld [vmem:[#allocation9 + $0x1c4] sm:$0xf]
    %v745 = vld [vmem:[#allocation9 + $0x1c8] sm:$0xf]
    %v746 = vld [vmem:[#allocation9 + $0x1cc] sm:$0xf]
    %v747 = vld [vmem:[#allocation9 + $0x1d0] sm:$0xf]
    %v748 = vld [vmem:[#allocation9 + $0x1d4] sm:$0xf]
    %v749 = vld [vmem:[#allocation9 + $0x1d8] sm:$0xf]
    %v750 = vld [vmem:[#allocation9 + $0x1dc] sm:$0xf]
    %v751 = vld [vmem:[#allocation9 + $0x1e0] sm:$0xf]
    %v752 = vld [vmem:[#allocation9 + $0x1e4] sm:$0xf]
    %v753 = vld [vmem:[#allocation9 + $0x1e8] sm:$0xf]
    %v754 = vld [vmem:[#allocation9 + $0x1ec] sm:$0xf]
    %v755 = vld [vmem:[#allocation9 + $0x1f0] sm:$0xf]
    %v756 = vld [vmem:[#allocation9 + $0x1f4] sm:$0xf]
    %v757 = vld [vmem:[#allocation9 + $0x1f8] sm:$0xf]
    %v758 = vld [vmem:[#allocation9 + $0x1fc] sm:$0xf]
    %v759 = vstv %s100
    %v760 = vmul.f32 %v759, %v103
    %v761 = vmul.f32 %v759, %v104
    %v762 = vmul.f32 %v759, %v105
    %v763 = vmul.f32 %v759, %v106
    %v764 = vmul.f32 %v759, %v107
    %v765 = vmul.f32 %v759, %v108
    %v766 = vmul.f32 %v759, %v109
    %v767 = vmul.f32 %v759, %v110
    %v768 = vmul.f32 %v759, %v111
    %v769 = vmul.f32 %v759, %v112
    %v770 = vmul.f32 %v759, %v113
    %v771 = vmul.f32 %v759, %v114
    %v772 = vmul.f32 %v759, %v115
    %v773 = vmul.f32 %v759, %v116
    %v774 = vmul.f32 %v759, %v117
    %v775 = vmul.f32 %v759, %v118
    %v776 = vpack.c.bf16 %v111, %v103
    %v777 = vpack.c.bf16 %v112, %v104
    %v778 = vpack.c.bf16 %v113, %v105
    %v779 = vpack.c.bf16 %v114, %v106
    %v780 = vpack.c.bf16 %v115, %v107
    %v781 = vpack.c.bf16 %v116, %v108
    %v782 = vpack.c.bf16 %v117, %v109
    %v783 = vpack.c.bf16 %v118, %v110
    %v784 = vunpack.c.l.bf16 %v776
    %v785 = vunpack.c.l.bf16 %v777
    %v786 = vunpack.c.l.bf16 %v778
    %v787 = vunpack.c.l.bf16 %v779
    %v788 = vunpack.c.l.bf16 %v780
    %v789 = vunpack.c.l.bf16 %v781
    %v790 = vunpack.c.l.bf16 %v782
    %v791 = vunpack.c.l.bf16 %v783
    %v792 = vunpack.c.h.bf16 %v776
    %v793 = vunpack.c.h.bf16 %v777
    %v794 = vunpack.c.h.bf16 %v778
    %v795 = vunpack.c.h.bf16 %v779
    %v796 = vunpack.c.h.bf16 %v780
    %v797 = vunpack.c.h.bf16 %v781
    %v798 = vunpack.c.h.bf16 %v782
    %v799 = vunpack.c.h.bf16 %v783
    %v800 = vsub.f32 %v103, %v784
    %v801 = vsub.f32 %v104, %v785
    %v802 = vsub.f32 %v105, %v786
    %v803 = vsub.f32 %v106, %v787
    %v804 = vsub.f32 %v107, %v788
    %v805 = vsub.f32 %v108, %v789
    %v806 = vsub.f32 %v109, %v790
    %v807 = vsub.f32 %v110, %v791
    %v808 = vsub.f32 %v111, %v792
    %v809 = vsub.f32 %v112, %v793
    %v810 = vsub.f32 %v113, %v794
    %v811 = vsub.f32 %v114, %v795
    %v812 = vsub.f32 %v115, %v796
    %v813 = vsub.f32 %v116, %v797
    %v814 = vsub.f32 %v117, %v798
    %v815 = vsub.f32 %v118, %v799
    %v816 = vpack.c.bf16 %v808, %v800
    %v817 = vpack.c.bf16 %v809, %v801
    %v818 = vpack.c.bf16 %v810, %v802
    %v819 = vpack.c.bf16 %v811, %v803
    %v820 = vpack.c.bf16 %v812, %v804
    %v821 = vpack.c.bf16 %v813, %v805
    %v822 = vpack.c.bf16 %v814, %v806
    %v823 = vpack.c.bf16 %v815, %v807
    %v1336 = vunpack.c.l.b16 %v119
    %v1337 = vunpack.c.h.b16 %v119
    %v1338 = vunpack.c.l.b16 %v120
    %v1339 = vunpack.c.h.b16 %v120
    %v1340 = vunpack.c.l.b16 %v121
    %v1341 = vunpack.c.h.b16 %v121
    %v1342 = vunpack.c.l.b16 %v122
    %v1343 = vunpack.c.h.b16 %v122
    %v1344 = vunpack.c.l.b16 %v123
    %v1345 = vunpack.c.h.b16 %v123
    %v1346 = vunpack.c.l.b16 %v124
    %v1347 = vunpack.c.h.b16 %v124
    %v1348 = vunpack.c.l.b16 %v125
    %v1349 = vunpack.c.h.b16 %v125
    %v1350 = vunpack.c.l.b16 %v126
    %v1351 = vunpack.c.h.b16 %v126
    %v1352 = vunpack.c.l.b16 %v127
    %v1353 = vunpack.c.h.b16 %v127
    %v1354 = vunpack.c.l.b16 %v128
    %v1355 = vunpack.c.h.b16 %v128
    %v1356 = vunpack.c.l.b16 %v129
    %v1357 = vunpack.c.h.b16 %v129
    %v1358 = vunpack.c.l.b16 %v130
    %v1359 = vunpack.c.h.b16 %v130
    %v1360 = vunpack.c.l.b16 %v131
    %v1361 = vunpack.c.h.b16 %v131
    %v1362 = vunpack.c.l.b16 %v132
    %v1363 = vunpack.c.h.b16 %v132
    %v1364 = vunpack.c.l.b16 %v133
    %v1365 = vunpack.c.h.b16 %v133
    %v1366 = vunpack.c.l.b16 %v134
    %v1367 = vunpack.c.h.b16 %v134
    %v1368 = vunpack.c.l.b16 %v135
    %v1369 = vunpack.c.h.b16 %v135
    %v1370 = vunpack.c.l.b16 %v136
    %v1371 = vunpack.c.h.b16 %v136
    %v1372 = vunpack.c.l.b16 %v137
    %v1373 = vunpack.c.h.b16 %v137
    %v1374 = vunpack.c.l.b16 %v138
    %v1375 = vunpack.c.h.b16 %v138
    %v1376 = vunpack.c.l.b16 %v139
    %v1377 = vunpack.c.h.b16 %v139
    %v1378 = vunpack.c.l.b16 %v140
    %v1379 = vunpack.c.h.b16 %v140
    %v1380 = vunpack.c.l.b16 %v141
    %v1381 = vunpack.c.h.b16 %v141
    %v1382 = vunpack.c.l.b16 %v142
    %v1383 = vunpack.c.h.b16 %v142
    %v1384 = vunpack.c.l.b16 %v143
    %v1385 = vunpack.c.h.b16 %v143
    %v1386 = vunpack.c.l.b16 %v144
    %v1387 = vunpack.c.h.b16 %v144
    %v1388 = vunpack.c.l.b16 %v145
    %v1389 = vunpack.c.h.b16 %v145
    %v1390 = vunpack.c.l.b16 %v146
    %v1391 = vunpack.c.h.b16 %v146
    %v1392 = vunpack.c.l.b16 %v147
    %v1393 = vunpack.c.h.b16 %v147
    %v1394 = vunpack.c.l.b16 %v148
    %v1395 = vunpack.c.h.b16 %v148
    %v1396 = vunpack.c.l.b16 %v149
    %v1397 = vunpack.c.h.b16 %v149
    %v1398 = vunpack.c.l.b16 %v150
    %v1399 = vunpack.c.h.b16 %v150
    %v1400 = vunpack.c.l.b16 %v151
    %v1401 = vunpack.c.h.b16 %v151
    %v1402 = vunpack.c.l.b16 %v152
    %v1403 = vunpack.c.h.b16 %v152
    %v1404 = vunpack.c.l.b16 %v153
    %v1405 = vunpack.c.h.b16 %v153
    %v1406 = vunpack.c.l.b16 %v154
    %v1407 = vunpack.c.h.b16 %v154
    %v1408 = vunpack.c.l.b16 %v155
    %v1409 = vunpack.c.h.b16 %v155
    %v1410 = vunpack.c.l.b16 %v156
    %v1411 = vunpack.c.h.b16 %v156
    %v1412 = vunpack.c.l.b16 %v157
    %v1413 = vunpack.c.h.b16 %v157
    %v1414 = vunpack.c.l.b16 %v158
    %v1415 = vunpack.c.h.b16 %v158
    %v1416 = vunpack.c.l.b16 %v159
    %v1417 = vunpack.c.h.b16 %v159
    %v1418 = vunpack.c.l.b16 %v160
    %v1419 = vunpack.c.h.b16 %v160
    %v1420 = vunpack.c.l.b16 %v161
    %v1421 = vunpack.c.h.b16 %v161
    %v1422 = vunpack.c.l.b16 %v162
    %v1423 = vunpack.c.h.b16 %v162
    %v1424 = vunpack.c.l.b16 %v163
    %v1425 = vunpack.c.h.b16 %v163
    %v1426 = vunpack.c.l.b16 %v164
    %v1427 = vunpack.c.h.b16 %v164
    %v1428 = vunpack.c.l.b16 %v165
    %v1429 = vunpack.c.h.b16 %v165
    %v1430 = vunpack.c.l.b16 %v166
    %v1431 = vunpack.c.h.b16 %v166
    %v1432 = vunpack.c.l.b16 %v167
    %v1433 = vunpack.c.h.b16 %v167
    %v1434 = vunpack.c.l.b16 %v168
    %v1435 = vunpack.c.h.b16 %v168
    %v1436 = vunpack.c.l.b16 %v169
    %v1437 = vunpack.c.h.b16 %v169
    %v1438 = vunpack.c.l.b16 %v170
    %v1439 = vunpack.c.h.b16 %v170
    %v1440 = vunpack.c.l.b16 %v171
    %v1441 = vunpack.c.h.b16 %v171
    %v1442 = vunpack.c.l.b16 %v172
    %v1443 = vunpack.c.h.b16 %v172
    %v1444 = vunpack.c.l.b16 %v173
    %v1445 = vunpack.c.h.b16 %v173
    %v1446 = vunpack.c.l.b16 %v174
    %v1447 = vunpack.c.h.b16 %v174
    %v1448 = vunpack.c.l.b16 %v175
    %v1449 = vunpack.c.h.b16 %v175
    %v1450 = vunpack.c.l.b16 %v176
    %v1451 = vunpack.c.h.b16 %v176
    %v1452 = vunpack.c.l.b16 %v177
    %v1453 = vunpack.c.h.b16 %v177
    %v1454 = vunpack.c.l.b16 %v178
    %v1455 = vunpack.c.h.b16 %v178
    %v1456 = vunpack.c.l.b16 %v179
    %v1457 = vunpack.c.h.b16 %v179
    %v1458 = vunpack.c.l.b16 %v180
    %v1459 = vunpack.c.h.b16 %v180
    %v1460 = vunpack.c.l.b16 %v181
    %v1461 = vunpack.c.h.b16 %v181
    %v1462 = vunpack.c.l.b16 %v182
    %v1463 = vunpack.c.h.b16 %v182
    %v1464 = vunpack.c.l.b16 %v183
    %v1465 = vunpack.c.h.b16 %v183
    %v1466 = vunpack.c.l.b16 %v184
    %v1467 = vunpack.c.h.b16 %v184
    %v1468 = vunpack.c.l.b16 %v185
    %v1469 = vunpack.c.h.b16 %v185
    %v1470 = vunpack.c.l.b16 %v186
    %v1471 = vunpack.c.h.b16 %v186
    %v1472 = vunpack.c.l.b16 %v187
    %v1473 = vunpack.c.h.b16 %v187
    %v1474 = vunpack.c.l.b16 %v188
    %v1475 = vunpack.c.h.b16 %v188
    %v1476 = vunpack.c.l.b16 %v189
    %v1477 = vunpack.c.h.b16 %v189
    %v1478 = vunpack.c.l.b16 %v190
    %v1479 = vunpack.c.h.b16 %v190
    %v1480 = vunpack.c.l.b16 %v191
    %v1481 = vunpack.c.h.b16 %v191
    %v1482 = vunpack.c.l.b16 %v192
    %v1483 = vunpack.c.h.b16 %v192
    %v1484 = vunpack.c.l.b16 %v193
    %v1485 = vunpack.c.h.b16 %v193
    %v1486 = vunpack.c.l.b16 %v194
    %v1487 = vunpack.c.h.b16 %v194
    %v1488 = vunpack.c.l.b16 %v195
    %v1489 = vunpack.c.h.b16 %v195
    %v1490 = vunpack.c.l.b16 %v196
    %v1491 = vunpack.c.h.b16 %v196
    %v1492 = vunpack.c.l.b16 %v197
    %v1493 = vunpack.c.h.b16 %v197
    %v1494 = vunpack.c.l.b16 %v198
    %v1495 = vunpack.c.h.b16 %v198
    %v1496 = vunpack.c.l.b16 %v199
    %v1497 = vunpack.c.h.b16 %v199
    %v1498 = vunpack.c.l.b16 %v200
    %v1499 = vunpack.c.h.b16 %v200
    %v1500 = vunpack.c.l.b16 %v201
    %v1501 = vunpack.c.h.b16 %v201
    %v1502 = vunpack.c.l.b16 %v202
    %v1503 = vunpack.c.h.b16 %v202
    %v1504 = vunpack.c.l.b16 %v203
    %v1505 = vunpack.c.h.b16 %v203
    %v1506 = vunpack.c.l.b16 %v204
    %v1507 = vunpack.c.h.b16 %v204
    %v1508 = vunpack.c.l.b16 %v205
    %v1509 = vunpack.c.h.b16 %v205
    %v1510 = vunpack.c.l.b16 %v206
    %v1511 = vunpack.c.h.b16 %v206
    %v1512 = vunpack.c.l.b16 %v207
    %v1513 = vunpack.c.h.b16 %v207
    %v1514 = vunpack.c.l.b16 %v208
    %v1515 = vunpack.c.h.b16 %v208
    %v1516 = vunpack.c.l.b16 %v209
    %v1517 = vunpack.c.h.b16 %v209
    %v1518 = vunpack.c.l.b16 %v210
    %v1519 = vunpack.c.h.b16 %v210
    %v1520 = vunpack.c.l.b16 %v211
    %v1521 = vunpack.c.h.b16 %v211
    %v1522 = vunpack.c.l.b16 %v212
    %v1523 = vunpack.c.h.b16 %v212
    %v1524 = vunpack.c.l.b16 %v213
    %v1525 = vunpack.c.h.b16 %v213
    %v1526 = vunpack.c.l.b16 %v214
    %v1527 = vunpack.c.h.b16 %v214
    %v1528 = vunpack.c.l.b16 %v215
    %v1529 = vunpack.c.h.b16 %v215
    %v1530 = vunpack.c.l.b16 %v216
    %v1531 = vunpack.c.h.b16 %v216
    %v1532 = vunpack.c.l.b16 %v217
    %v1533 = vunpack.c.h.b16 %v217
    %v1534 = vunpack.c.l.b16 %v218
    %v1535 = vunpack.c.h.b16 %v218
    %v1536 = vunpack.c.l.b16 %v219
    %v1537 = vunpack.c.h.b16 %v219
    %v1538 = vunpack.c.l.b16 %v220
    %v1539 = vunpack.c.h.b16 %v220
    %v1540 = vunpack.c.l.b16 %v221
    %v1541 = vunpack.c.h.b16 %v221
    %v1542 = vunpack.c.l.b16 %v222
    %v1543 = vunpack.c.h.b16 %v222
    %v1544 = vunpack.c.l.b16 %v223
    %v1545 = vunpack.c.h.b16 %v223
    %v1546 = vunpack.c.l.b16 %v224
    %v1547 = vunpack.c.h.b16 %v224
    %v1548 = vunpack.c.l.b16 %v225
    %v1549 = vunpack.c.h.b16 %v225
    %v1550 = vunpack.c.l.b16 %v226
    %v1551 = vunpack.c.h.b16 %v226
    %v1552 = vunpack.c.l.b16 %v227
    %v1553 = vunpack.c.h.b16 %v227
    %v1554 = vunpack.c.l.b16 %v228
    %v1555 = vunpack.c.h.b16 %v228
    %v1556 = vunpack.c.l.b16 %v229
    %v1557 = vunpack.c.h.b16 %v229
    %v1558 = vunpack.c.l.b16 %v230
    %v1559 = vunpack.c.h.b16 %v230
    %v1560 = vunpack.c.l.b16 %v231
    %v1561 = vunpack.c.h.b16 %v231
    %v1562 = vunpack.c.l.b16 %v232
    %v1563 = vunpack.c.h.b16 %v232
    %v1564 = vunpack.c.l.b16 %v233
    %v1565 = vunpack.c.h.b16 %v233
    %v1566 = vunpack.c.l.b16 %v234
    %v1567 = vunpack.c.h.b16 %v234
    %v1568 = vunpack.c.l.b16 %v235
    %v1569 = vunpack.c.h.b16 %v235
    %v1570 = vunpack.c.l.b16 %v236
    %v1571 = vunpack.c.h.b16 %v236
    %v1572 = vunpack.c.l.b16 %v237
    %v1573 = vunpack.c.h.b16 %v237
    %v1574 = vunpack.c.l.b16 %v238
    %v1575 = vunpack.c.h.b16 %v238
    %v1576 = vunpack.c.l.b16 %v239
    %v1577 = vunpack.c.h.b16 %v239
    %v1578 = vunpack.c.l.b16 %v240
    %v1579 = vunpack.c.h.b16 %v240
    %v1580 = vunpack.c.l.b16 %v241
    %v1581 = vunpack.c.h.b16 %v241
    %v1582 = vunpack.c.l.b16 %v242
    %v1583 = vunpack.c.h.b16 %v242
    %v1584 = vunpack.c.l.b16 %v243
    %v1585 = vunpack.c.h.b16 %v243
    %v1586 = vunpack.c.l.b16 %v244
    %v1587 = vunpack.c.h.b16 %v244
    %v1588 = vunpack.c.l.b16 %v245
    %v1589 = vunpack.c.h.b16 %v245
    %v1590 = vunpack.c.l.b16 %v246
    %v1591 = vunpack.c.h.b16 %v246
    %v1592 = vunpack.c.l.b16 %v247
    %v1593 = vunpack.c.h.b16 %v247
    %v1594 = vunpack.c.l.b16 %v248
    %v1595 = vunpack.c.h.b16 %v248
    %v1596 = vunpack.c.l.b16 %v249
    %v1597 = vunpack.c.h.b16 %v249
    %v1598 = vunpack.c.l.b16 %v250
    %v1599 = vunpack.c.h.b16 %v250
    %v1600 = vunpack.c.l.b16 %v251
    %v1601 = vunpack.c.h.b16 %v251
    %v1602 = vunpack.c.l.b16 %v252
    %v1603 = vunpack.c.h.b16 %v252
    %v1604 = vunpack.c.l.b16 %v253
    %v1605 = vunpack.c.h.b16 %v253
    %v1606 = vunpack.c.l.b16 %v254
    %v1607 = vunpack.c.h.b16 %v254
    %v1608 = vunpack.c.l.b16 %v255
    %v1609 = vunpack.c.h.b16 %v255
    %v1610 = vunpack.c.l.b16 %v256
    %v1611 = vunpack.c.h.b16 %v256
    %v1612 = vunpack.c.l.b16 %v257
    %v1613 = vunpack.c.h.b16 %v257
    %v1614 = vunpack.c.l.b16 %v258
    %v1615 = vunpack.c.h.b16 %v258
    %v1616 = vunpack.c.l.b16 %v259
    %v1617 = vunpack.c.h.b16 %v259
    %v1618 = vunpack.c.l.b16 %v260
    %v1619 = vunpack.c.h.b16 %v260
    %v1620 = vunpack.c.l.b16 %v261
    %v1621 = vunpack.c.h.b16 %v261
    %v1622 = vunpack.c.l.b16 %v262
    %v1623 = vunpack.c.h.b16 %v262
    %v1624 = vunpack.c.l.b16 %v263
    %v1625 = vunpack.c.h.b16 %v263
    %v1626 = vunpack.c.l.b16 %v264
    %v1627 = vunpack.c.h.b16 %v264
    %v1628 = vunpack.c.l.b16 %v265
    %v1629 = vunpack.c.h.b16 %v265
    %v1630 = vunpack.c.l.b16 %v266
    %v1631 = vunpack.c.h.b16 %v266
    %v1632 = vunpack.c.l.b16 %v267
    %v1633 = vunpack.c.h.b16 %v267
    %v1634 = vunpack.c.l.b16 %v268
    %v1635 = vunpack.c.h.b16 %v268
    %v1636 = vunpack.c.l.b16 %v269
    %v1637 = vunpack.c.h.b16 %v269
    %v1638 = vunpack.c.l.b16 %v270
    %v1639 = vunpack.c.h.b16 %v270
    %v1640 = vunpack.c.l.b16 %v271
    %v1641 = vunpack.c.h.b16 %v271
    %v1642 = vunpack.c.l.b16 %v272
    %v1643 = vunpack.c.h.b16 %v272
    %v1644 = vunpack.c.l.b16 %v273
    %v1645 = vunpack.c.h.b16 %v273
    %v1646 = vunpack.c.l.b16 %v274
    %v1647 = vunpack.c.h.b16 %v274
    %v1648 = vunpack.c.l.b16 %v275
    %v1649 = vunpack.c.h.b16 %v275
    %v1650 = vunpack.c.l.b16 %v276
    %v1651 = vunpack.c.h.b16 %v276
    %v1652 = vunpack.c.l.b16 %v277
    %v1653 = vunpack.c.h.b16 %v277
    %v1654 = vunpack.c.l.b16 %v278
    %v1655 = vunpack.c.h.b16 %v278
    %v1656 = vunpack.c.l.b16 %v279
    %v1657 = vunpack.c.h.b16 %v279
    %v1658 = vunpack.c.l.b16 %v280
    %v1659 = vunpack.c.h.b16 %v280
    %v1660 = vunpack.c.l.b16 %v281
    %v1661 = vunpack.c.h.b16 %v281
    %v1662 = vunpack.c.l.b16 %v282
    %v1663 = vunpack.c.h.b16 %v282
    %v1664 = vunpack.c.l.b16 %v283
    %v1665 = vunpack.c.h.b16 %v283
    %v1666 = vunpack.c.l.b16 %v284
    %v1667 = vunpack.c.h.b16 %v284
    %v1668 = vunpack.c.l.b16 %v285
    %v1669 = vunpack.c.h.b16 %v285
    %v1670 = vunpack.c.l.b16 %v286
    %v1671 = vunpack.c.h.b16 %v286
    %v1672 = vunpack.c.l.b16 %v287
    %v1673 = vunpack.c.h.b16 %v287
    %v1674 = vunpack.c.l.b16 %v288
    %v1675 = vunpack.c.h.b16 %v288
    %v1676 = vunpack.c.l.b16 %v289
    %v1677 = vunpack.c.h.b16 %v289
    %v1678 = vunpack.c.l.b16 %v290
    %v1679 = vunpack.c.h.b16 %v290
    %v1680 = vunpack.c.l.b16 %v291
    %v1681 = vunpack.c.h.b16 %v291
    %v1682 = vunpack.c.l.b16 %v292
    %v1683 = vunpack.c.h.b16 %v292
    %v1684 = vunpack.c.l.b16 %v293
    %v1685 = vunpack.c.h.b16 %v293
    %v1686 = vunpack.c.l.b16 %v294
    %v1687 = vunpack.c.h.b16 %v294
    %v1688 = vunpack.c.l.b16 %v295
    %v1689 = vunpack.c.h.b16 %v295
    %v1690 = vunpack.c.l.b16 %v296
    %v1691 = vunpack.c.h.b16 %v296
    %v1692 = vunpack.c.l.b16 %v297
    %v1693 = vunpack.c.h.b16 %v297
    %v1694 = vunpack.c.l.b16 %v298
    %v1695 = vunpack.c.h.b16 %v298
    %v1696 = vunpack.c.l.b16 %v299
    %v1697 = vunpack.c.h.b16 %v299
    %v1698 = vunpack.c.l.b16 %v300
    %v1699 = vunpack.c.h.b16 %v300
    %v1700 = vunpack.c.l.b16 %v301
    %v1701 = vunpack.c.h.b16 %v301
    %v1702 = vunpack.c.l.b16 %v302
    %v1703 = vunpack.c.h.b16 %v302
    %v1704 = vunpack.c.l.b16 %v303
    %v1705 = vunpack.c.h.b16 %v303
    %v1706 = vunpack.c.l.b16 %v304
    %v1707 = vunpack.c.h.b16 %v304
    %v1708 = vunpack.c.l.b16 %v305
    %v1709 = vunpack.c.h.b16 %v305
    %v1710 = vunpack.c.l.b16 %v306
    %v1711 = vunpack.c.h.b16 %v306
    %v1712 = vunpack.c.l.b16 %v307
    %v1713 = vunpack.c.h.b16 %v307
    %v1714 = vunpack.c.l.b16 %v308
    %v1715 = vunpack.c.h.b16 %v308
    %v1716 = vunpack.c.l.b16 %v309
    %v1717 = vunpack.c.h.b16 %v309
    %v1718 = vunpack.c.l.b16 %v310
    %v1719 = vunpack.c.h.b16 %v310
    %v1720 = vunpack.c.l.b16 %v311
    %v1721 = vunpack.c.h.b16 %v311
    %v1722 = vunpack.c.l.b16 %v312
    %v1723 = vunpack.c.h.b16 %v312
    %v1724 = vunpack.c.l.b16 %v313
    %v1725 = vunpack.c.h.b16 %v313
    %v1726 = vunpack.c.l.b16 %v314
    %v1727 = vunpack.c.h.b16 %v314
    %v1728 = vunpack.c.l.b16 %v315
    %v1729 = vunpack.c.h.b16 %v315
    %v1730 = vunpack.c.l.b16 %v316
    %v1731 = vunpack.c.h.b16 %v316
    %v1732 = vunpack.c.l.b16 %v317
    %v1733 = vunpack.c.h.b16 %v317
    %v1734 = vunpack.c.l.b16 %v318
    %v1735 = vunpack.c.h.b16 %v318
    %v1736 = vunpack.c.l.b16 %v319
    %v1737 = vunpack.c.h.b16 %v319
    %v1738 = vunpack.c.l.b16 %v320
    %v1739 = vunpack.c.h.b16 %v320
    %v1740 = vunpack.c.l.b16 %v321
    %v1741 = vunpack.c.h.b16 %v321
    %v1742 = vunpack.c.l.b16 %v322
    %v1743 = vunpack.c.h.b16 %v322
    %v1744 = vunpack.c.l.b16 %v323
    %v1745 = vunpack.c.h.b16 %v323
    %v1746 = vunpack.c.l.b16 %v324
    %v1747 = vunpack.c.h.b16 %v324
    %v1748 = vunpack.c.l.b16 %v325
    %v1749 = vunpack.c.h.b16 %v325
    %v1750 = vunpack.c.l.b16 %v326
    %v1751 = vunpack.c.h.b16 %v326
    %v1752 = vunpack.c.l.b16 %v327
    %v1753 = vunpack.c.h.b16 %v327
    %v1754 = vunpack.c.l.b16 %v328
    %v1755 = vunpack.c.h.b16 %v328
    %v1756 = vunpack.c.l.b16 %v329
    %v1757 = vunpack.c.h.b16 %v329
    %v1758 = vunpack.c.l.b16 %v330
    %v1759 = vunpack.c.h.b16 %v330
    %v1760 = vunpack.c.l.b16 %v331
    %v1761 = vunpack.c.h.b16 %v331
    %v1762 = vunpack.c.l.b16 %v332
    %v1763 = vunpack.c.h.b16 %v332
    %v1764 = vunpack.c.l.b16 %v333
    %v1765 = vunpack.c.h.b16 %v333
    %v1766 = vunpack.c.l.b16 %v334
    %v1767 = vunpack.c.h.b16 %v334
    %v1768 = vunpack.c.l.b16 %v335
    %v1769 = vunpack.c.h.b16 %v335
    %v1770 = vunpack.c.l.b16 %v336
    %v1771 = vunpack.c.h.b16 %v336
    %v1772 = vunpack.c.l.b16 %v337
    %v1773 = vunpack.c.h.b16 %v337
    %v1774 = vunpack.c.l.b16 %v338
    %v1775 = vunpack.c.h.b16 %v338
    %v1776 = vunpack.c.l.b16 %v339
    %v1777 = vunpack.c.h.b16 %v339
    %v1778 = vunpack.c.l.b16 %v340
    %v1779 = vunpack.c.h.b16 %v340
    %v1780 = vunpack.c.l.b16 %v341
    %v1781 = vunpack.c.h.b16 %v341
    %v1782 = vunpack.c.l.b16 %v342
    %v1783 = vunpack.c.h.b16 %v342
    %v1784 = vunpack.c.l.b16 %v343
    %v1785 = vunpack.c.h.b16 %v343
    %v1786 = vunpack.c.l.b16 %v344
    %v1787 = vunpack.c.h.b16 %v344
    %v1788 = vunpack.c.l.b16 %v345
    %v1789 = vunpack.c.h.b16 %v345
    %v1790 = vunpack.c.l.b16 %v346
    %v1791 = vunpack.c.h.b16 %v346
    %v1792 = vunpack.c.l.b16 %v347
    %v1793 = vunpack.c.h.b16 %v347
    %v1794 = vunpack.c.l.b16 %v348
    %v1795 = vunpack.c.h.b16 %v348
    %v1796 = vunpack.c.l.b16 %v349
    %v1797 = vunpack.c.h.b16 %v349
    %v1798 = vunpack.c.l.b16 %v350
    %v1799 = vunpack.c.h.b16 %v350
    %v1800 = vunpack.c.l.b16 %v351
    %v1801 = vunpack.c.h.b16 %v351
    %v1802 = vunpack.c.l.b16 %v352
    %v1803 = vunpack.c.h.b16 %v352
    %v1804 = vunpack.c.l.b16 %v353
    %v1805 = vunpack.c.h.b16 %v353
    %v1806 = vunpack.c.l.b16 %v354
    %v1807 = vunpack.c.h.b16 %v354
    %v1808 = vunpack.c.l.b16 %v355
    %v1809 = vunpack.c.h.b16 %v355
    %v1810 = vunpack.c.l.b16 %v356
    %v1811 = vunpack.c.h.b16 %v356
    %v1812 = vunpack.c.l.b16 %v357
    %v1813 = vunpack.c.h.b16 %v357
    %v1814 = vunpack.c.l.b16 %v358
    %v1815 = vunpack.c.h.b16 %v358
    %v1816 = vunpack.c.l.b16 %v359
    %v1817 = vunpack.c.h.b16 %v359
    %v1818 = vunpack.c.l.b16 %v360
    %v1819 = vunpack.c.h.b16 %v360
    %v1820 = vunpack.c.l.b16 %v361
    %v1821 = vunpack.c.h.b16 %v361
    %v1822 = vunpack.c.l.b16 %v362
    %v1823 = vunpack.c.h.b16 %v362
    %v1824 = vunpack.c.l.b16 %v363
    %v1825 = vunpack.c.h.b16 %v363
    %v1826 = vunpack.c.l.b16 %v364
    %v1827 = vunpack.c.h.b16 %v364
    %v1828 = vunpack.c.l.b16 %v365
    %v1829 = vunpack.c.h.b16 %v365
    %v1830 = vunpack.c.l.b16 %v366
    %v1831 = vunpack.c.h.b16 %v366
    %v1832 = vunpack.c.l.b16 %v367
    %v1833 = vunpack.c.h.b16 %v367
    %v1834 = vunpack.c.l.b16 %v368
    %v1835 = vunpack.c.h.b16 %v368
    %v1836 = vunpack.c.l.b16 %v369
    %v1837 = vunpack.c.h.b16 %v369
    %v1838 = vunpack.c.l.b16 %v370
    %v1839 = vunpack.c.h.b16 %v370
    %v1840 = vunpack.c.l.b16 %v371
    %v1841 = vunpack.c.h.b16 %v371
    %v1842 = vunpack.c.l.b16 %v372
    %v1843 = vunpack.c.h.b16 %v372
    %v1844 = vunpack.c.l.b16 %v373
    %v1845 = vunpack.c.h.b16 %v373
    %v1846 = vunpack.c.l.b16 %v374
    %v1847 = vunpack.c.h.b16 %v374
    %v1848 = vunpack.c.l.b16 %v375
    %v1849 = vunpack.c.h.b16 %v375
    %v1850 = vunpack.c.l.b16 %v376
    %v1851 = vunpack.c.h.b16 %v376
    %v1852 = vunpack.c.l.b16 %v377
    %v1853 = vunpack.c.h.b16 %v377
    %v1854 = vunpack.c.l.b16 %v378
    %v1855 = vunpack.c.h.b16 %v378
    %v1856 = vunpack.c.l.b16 %v379
    %v1857 = vunpack.c.h.b16 %v379
    %v1858 = vunpack.c.l.b16 %v380
    %v1859 = vunpack.c.h.b16 %v380
    %v1860 = vunpack.c.l.b16 %v381
    %v1861 = vunpack.c.h.b16 %v381
    %v1862 = vunpack.c.l.b16 %v382
    %v1863 = vunpack.c.h.b16 %v382
    %v1864 = vunpack.c.l.b16 %v383
    %v1865 = vunpack.c.h.b16 %v383
    %v1866 = vunpack.c.l.b16 %v384
    %v1867 = vunpack.c.h.b16 %v384
    %v1868 = vunpack.c.l.b16 %v385
    %v1869 = vunpack.c.h.b16 %v385
    %v1870 = vunpack.c.l.b16 %v386
    %v1871 = vunpack.c.h.b16 %v386
    %v1872 = vunpack.c.l.b16 %v387
    %v1873 = vunpack.c.h.b16 %v387
    %v1874 = vunpack.c.l.b16 %v388
    %v1875 = vunpack.c.h.b16 %v388
    %v1876 = vunpack.c.l.b16 %v389
    %v1877 = vunpack.c.h.b16 %v389
    %v1878 = vunpack.c.l.b16 %v390
    %v1879 = vunpack.c.h.b16 %v390
    %v1880 = vunpack.c.l.b16 %v391
    %v1881 = vunpack.c.h.b16 %v391
    %v1882 = vunpack.c.l.b16 %v392
    %v1883 = vunpack.c.h.b16 %v392
    %v1884 = vunpack.c.l.b16 %v393
    %v1885 = vunpack.c.h.b16 %v393
    %v1886 = vunpack.c.l.b16 %v394
    %v1887 = vunpack.c.h.b16 %v394
    %v1888 = vunpack.c.l.b16 %v395
    %v1889 = vunpack.c.h.b16 %v395
    %v1890 = vunpack.c.l.b16 %v396
    %v1891 = vunpack.c.h.b16 %v396
    %v1892 = vunpack.c.l.b16 %v397
    %v1893 = vunpack.c.h.b16 %v397
    %v1894 = vunpack.c.l.b16 %v398
    %v1895 = vunpack.c.h.b16 %v398
    %v1896 = vunpack.c.l.b16 %v399
    %v1897 = vunpack.c.h.b16 %v399
    %v1898 = vunpack.c.l.b16 %v400
    %v1899 = vunpack.c.h.b16 %v400
    %v1900 = vunpack.c.l.b16 %v401
    %v1901 = vunpack.c.h.b16 %v401
    %v1902 = vunpack.c.l.b16 %v402
    %v1903 = vunpack.c.h.b16 %v402
    %v1904 = vunpack.c.l.b16 %v403
    %v1905 = vunpack.c.h.b16 %v403
    %v1906 = vunpack.c.l.b16 %v404
    %v1907 = vunpack.c.h.b16 %v404
    %v1908 = vunpack.c.l.b16 %v405
    %v1909 = vunpack.c.h.b16 %v405
    %v1910 = vunpack.c.l.b16 %v406
    %v1911 = vunpack.c.h.b16 %v406
    %v1912 = vunpack.c.l.b16 %v407
    %v1913 = vunpack.c.h.b16 %v407
    %v1914 = vunpack.c.l.b16 %v408
    %v1915 = vunpack.c.h.b16 %v408
    %v1916 = vunpack.c.l.b16 %v409
    %v1917 = vunpack.c.h.b16 %v409
    %v1918 = vunpack.c.l.b16 %v410
    %v1919 = vunpack.c.h.b16 %v410
    %v1920 = vunpack.c.l.b16 %v411
    %v1921 = vunpack.c.h.b16 %v411
    %v1922 = vunpack.c.l.b16 %v412
    %v1923 = vunpack.c.h.b16 %v412
    %v1924 = vunpack.c.l.b16 %v413
    %v1925 = vunpack.c.h.b16 %v413
    %v1926 = vunpack.c.l.b16 %v414
    %v1927 = vunpack.c.h.b16 %v414
    %v1928 = vunpack.c.l.b16 %v415
    %v1929 = vunpack.c.h.b16 %v415
    %v1930 = vunpack.c.l.b16 %v416
    %v1931 = vunpack.c.h.b16 %v416
    %v1932 = vunpack.c.l.b16 %v417
    %v1933 = vunpack.c.h.b16 %v417
    %v1934 = vunpack.c.l.b16 %v418
    %v1935 = vunpack.c.h.b16 %v418
    %v1936 = vunpack.c.l.b16 %v419
    %v1937 = vunpack.c.h.b16 %v419
    %v1938 = vunpack.c.l.b16 %v420
    %v1939 = vunpack.c.h.b16 %v420
    %v1940 = vunpack.c.l.b16 %v421
    %v1941 = vunpack.c.h.b16 %v421
    %v1942 = vunpack.c.l.b16 %v422
    %v1943 = vunpack.c.h.b16 %v422
    %v1944 = vunpack.c.l.b16 %v423
    %v1945 = vunpack.c.h.b16 %v423
    %v1946 = vunpack.c.l.b16 %v424
    %v1947 = vunpack.c.h.b16 %v424
    %v1948 = vunpack.c.l.b16 %v425
    %v1949 = vunpack.c.h.b16 %v425
    %v1950 = vunpack.c.l.b16 %v426
    %v1951 = vunpack.c.h.b16 %v426
    %v1952 = vunpack.c.l.b16 %v427
    %v1953 = vunpack.c.h.b16 %v427
    %v1954 = vunpack.c.l.b16 %v428
    %v1955 = vunpack.c.h.b16 %v428
    %v1956 = vunpack.c.l.b16 %v429
    %v1957 = vunpack.c.h.b16 %v429
    %v1958 = vunpack.c.l.b16 %v430
    %v1959 = vunpack.c.h.b16 %v430
    %v1960 = vunpack.c.l.b16 %v431
    %v1961 = vunpack.c.h.b16 %v431
    %v1962 = vunpack.c.l.b16 %v432
    %v1963 = vunpack.c.h.b16 %v432
    %v1964 = vunpack.c.l.b16 %v433
    %v1965 = vunpack.c.h.b16 %v433
    %v1966 = vunpack.c.l.b16 %v434
    %v1967 = vunpack.c.h.b16 %v434
    %v1968 = vunpack.c.l.b16 %v435
    %v1969 = vunpack.c.h.b16 %v435
    %v1970 = vunpack.c.l.b16 %v436
    %v1971 = vunpack.c.h.b16 %v436
    %v1972 = vunpack.c.l.b16 %v437
    %v1973 = vunpack.c.h.b16 %v437
    %v1974 = vunpack.c.l.b16 %v438
    %v1975 = vunpack.c.h.b16 %v438
    %v1976 = vunpack.c.l.b16 %v439
    %v1977 = vunpack.c.h.b16 %v439
    %v1978 = vunpack.c.l.b16 %v440
    %v1979 = vunpack.c.h.b16 %v440
    %v1980 = vunpack.c.l.b16 %v441
    %v1981 = vunpack.c.h.b16 %v441
    %v1982 = vunpack.c.l.b16 %v442
    %v1983 = vunpack.c.h.b16 %v442
    %v1984 = vunpack.c.l.b16 %v443
    %v1985 = vunpack.c.h.b16 %v443
    %v1986 = vunpack.c.l.b16 %v444
    %v1987 = vunpack.c.h.b16 %v444
    %v1988 = vunpack.c.l.b16 %v445
    %v1989 = vunpack.c.h.b16 %v445
    %v1990 = vunpack.c.l.b16 %v446
    %v1991 = vunpack.c.h.b16 %v446
    %v1992 = vunpack.c.l.b16 %v447
    %v1993 = vunpack.c.h.b16 %v447
    %v1994 = vunpack.c.l.b16 %v448
    %v1995 = vunpack.c.h.b16 %v448
    %v1996 = vunpack.c.l.b16 %v449
    %v1997 = vunpack.c.h.b16 %v449
    %v1998 = vunpack.c.l.b16 %v450
    %v1999 = vunpack.c.h.b16 %v450
    %v2000 = vunpack.c.l.b16 %v451
    %v2001 = vunpack.c.h.b16 %v451
    %v2002 = vunpack.c.l.b16 %v452
    %v2003 = vunpack.c.h.b16 %v452
    %v2004 = vunpack.c.l.b16 %v453
    %v2005 = vunpack.c.h.b16 %v453
    %v2006 = vunpack.c.l.b16 %v454
    %v2007 = vunpack.c.h.b16 %v454
    %v2008 = vunpack.c.l.b16 %v455
    %v2009 = vunpack.c.h.b16 %v455
    %v2010 = vunpack.c.l.b16 %v456
    %v2011 = vunpack.c.h.b16 %v456
    %v2012 = vunpack.c.l.b16 %v457
    %v2013 = vunpack.c.h.b16 %v457
    %v2014 = vunpack.c.l.b16 %v458
    %v2015 = vunpack.c.h.b16 %v458
    %v2016 = vunpack.c.l.b16 %v459
    %v2017 = vunpack.c.h.b16 %v459
    %v2018 = vunpack.c.l.b16 %v460
    %v2019 = vunpack.c.h.b16 %v460
    %v2020 = vunpack.c.l.b16 %v461
    %v2021 = vunpack.c.h.b16 %v461
    %v2022 = vunpack.c.l.b16 %v462
    %v2023 = vunpack.c.h.b16 %v462
    %v2024 = vunpack.c.l.b16 %v463
    %v2025 = vunpack.c.h.b16 %v463
    %v2026 = vunpack.c.l.b16 %v464
    %v2027 = vunpack.c.h.b16 %v464
    %v2028 = vunpack.c.l.b16 %v465
    %v2029 = vunpack.c.h.b16 %v465
    %v2030 = vunpack.c.l.b16 %v466
    %v2031 = vunpack.c.h.b16 %v466
    %v2032 = vunpack.c.l.b16 %v467
    %v2033 = vunpack.c.h.b16 %v467
    %v2034 = vunpack.c.l.b16 %v468
    %v2035 = vunpack.c.h.b16 %v468
    %v2036 = vunpack.c.l.b16 %v469
    %v2037 = vunpack.c.h.b16 %v469
    %v2038 = vunpack.c.l.b16 %v470
    %v2039 = vunpack.c.h.b16 %v470
    %v2040 = vunpack.c.l.b16 %v471
    %v2041 = vunpack.c.h.b16 %v471
    %v2042 = vunpack.c.l.b16 %v472
    %v2043 = vunpack.c.h.b16 %v472
    %v2044 = vunpack.c.l.b16 %v473
    %v2045 = vunpack.c.h.b16 %v473
    %v2046 = vunpack.c.l.b16 %v474
    %v2047 = vunpack.c.h.b16 %v474
    %v2048 = vunpack.c.l.b16 %v475
    %v2049 = vunpack.c.h.b16 %v475
    %v2050 = vunpack.c.l.b16 %v476
    %v2051 = vunpack.c.h.b16 %v476
    %v2052 = vunpack.c.l.b16 %v477
    %v2053 = vunpack.c.h.b16 %v477
    %v2054 = vunpack.c.l.b16 %v478
    %v2055 = vunpack.c.h.b16 %v478
    %v2056 = vunpack.c.l.b16 %v479
    %v2057 = vunpack.c.h.b16 %v479
    %v2058 = vunpack.c.l.b16 %v480
    %v2059 = vunpack.c.h.b16 %v480
    %v2060 = vunpack.c.l.b16 %v481
    %v2061 = vunpack.c.h.b16 %v481
    %v2062 = vunpack.c.l.b16 %v482
    %v2063 = vunpack.c.h.b16 %v482
    %v2064 = vunpack.c.l.b16 %v483
    %v2065 = vunpack.c.h.b16 %v483
    %v2066 = vunpack.c.l.b16 %v484
    %v2067 = vunpack.c.h.b16 %v484
    %v2068 = vunpack.c.l.b16 %v485
    %v2069 = vunpack.c.h.b16 %v485
    %v2070 = vunpack.c.l.b16 %v486
    %v2071 = vunpack.c.h.b16 %v486
    %v2072 = vunpack.c.l.b16 %v487
    %v2073 = vunpack.c.h.b16 %v487
    %v2074 = vunpack.c.l.b16 %v488
    %v2075 = vunpack.c.h.b16 %v488
    %v2076 = vunpack.c.l.b16 %v489
    %v2077 = vunpack.c.h.b16 %v489
    %v2078 = vunpack.c.l.b16 %v490
    %v2079 = vunpack.c.h.b16 %v490
    %v2080 = vunpack.c.l.b16 %v491
    %v2081 = vunpack.c.h.b16 %v491
    %v2082 = vunpack.c.l.b16 %v492
    %v2083 = vunpack.c.h.b16 %v492
    %v2084 = vunpack.c.l.b16 %v493
    %v2085 = vunpack.c.h.b16 %v493
    %v2086 = vunpack.c.l.b16 %v494
    %v2087 = vunpack.c.h.b16 %v494
    %v2088 = vunpack.c.l.b16 %v495
    %v2089 = vunpack.c.h.b16 %v495
    %v2090 = vunpack.c.l.b16 %v496
    %v2091 = vunpack.c.h.b16 %v496
    %v2092 = vunpack.c.l.b16 %v497
    %v2093 = vunpack.c.h.b16 %v497
    %v2094 = vunpack.c.l.b16 %v498
    %v2095 = vunpack.c.h.b16 %v498
    %v2096 = vunpack.c.l.b16 %v499
    %v2097 = vunpack.c.h.b16 %v499
    %v2098 = vunpack.c.l.b16 %v500
    %v2099 = vunpack.c.h.b16 %v500
    %v2100 = vunpack.c.l.b16 %v501
    %v2101 = vunpack.c.h.b16 %v501
    %v2102 = vunpack.c.l.b16 %v502
    %v2103 = vunpack.c.h.b16 %v502
    %v2104 = vunpack.c.l.b16 %v503
    %v2105 = vunpack.c.h.b16 %v503
    %v2106 = vunpack.c.l.b16 %v504
    %v2107 = vunpack.c.h.b16 %v504
    %v2108 = vunpack.c.l.b16 %v505
    %v2109 = vunpack.c.h.b16 %v505
    %v2110 = vunpack.c.l.b16 %v506
    %v2111 = vunpack.c.h.b16 %v506
    %v2112 = vunpack.c.l.b16 %v507
    %v2113 = vunpack.c.h.b16 %v507
    %v2114 = vunpack.c.l.b16 %v508
    %v2115 = vunpack.c.h.b16 %v508
    %v2116 = vunpack.c.l.b16 %v509
    %v2117 = vunpack.c.h.b16 %v509
    %v2118 = vunpack.c.l.b16 %v510
    %v2119 = vunpack.c.h.b16 %v510
    %v2120 = vunpack.c.l.b16 %v511
    %v2121 = vunpack.c.h.b16 %v511
    %v2122 = vunpack.c.l.b16 %v512
    %v2123 = vunpack.c.h.b16 %v512
    %v2124 = vunpack.c.l.b16 %v513
    %v2125 = vunpack.c.h.b16 %v513
    %v2126 = vunpack.c.l.b16 %v514
    %v2127 = vunpack.c.h.b16 %v514
    %v2128 = vunpack.c.l.b16 %v515
    %v2129 = vunpack.c.h.b16 %v515
    %v2130 = vunpack.c.l.b16 %v516
    %v2131 = vunpack.c.h.b16 %v516
    %v2132 = vunpack.c.l.b16 %v517
    %v2133 = vunpack.c.h.b16 %v517
    %v2134 = vunpack.c.l.b16 %v518
    %v2135 = vunpack.c.h.b16 %v518
    %v2136 = vunpack.c.l.b16 %v519
    %v2137 = vunpack.c.h.b16 %v519
    %v2138 = vunpack.c.l.b16 %v520
    %v2139 = vunpack.c.h.b16 %v520
    %v2140 = vunpack.c.l.b16 %v521
    %v2141 = vunpack.c.h.b16 %v521
    %v2142 = vunpack.c.l.b16 %v522
    %v2143 = vunpack.c.h.b16 %v522
    %v2144 = vunpack.c.l.b16 %v523
    %v2145 = vunpack.c.h.b16 %v523
    %v2146 = vunpack.c.l.b16 %v524
    %v2147 = vunpack.c.h.b16 %v524
    %v2148 = vunpack.c.l.b16 %v525
    %v2149 = vunpack.c.h.b16 %v525
    %v2150 = vunpack.c.l.b16 %v526
    %v2151 = vunpack.c.h.b16 %v526
    %v2152 = vunpack.c.l.b16 %v527
    %v2153 = vunpack.c.h.b16 %v527
    %v2154 = vunpack.c.l.b16 %v528
    %v2155 = vunpack.c.h.b16 %v528
    %v2156 = vunpack.c.l.b16 %v529
    %v2157 = vunpack.c.h.b16 %v529
    %v2158 = vunpack.c.l.b16 %v530
    %v2159 = vunpack.c.h.b16 %v530
    %v2160 = vunpack.c.l.b16 %v531
    %v2161 = vunpack.c.h.b16 %v531
    %v2162 = vunpack.c.l.b16 %v532
    %v2163 = vunpack.c.h.b16 %v532
    %v2164 = vunpack.c.l.b16 %v533
    %v2165 = vunpack.c.h.b16 %v533
    %v2166 = vunpack.c.l.b16 %v534
    %v2167 = vunpack.c.h.b16 %v534
    %v2168 = vunpack.c.l.b16 %v535
    %v2169 = vunpack.c.h.b16 %v535
    %v2170 = vunpack.c.l.b16 %v536
    %v2171 = vunpack.c.h.b16 %v536
    %v2172 = vunpack.c.l.b16 %v537
    %v2173 = vunpack.c.h.b16 %v537
    %v2174 = vunpack.c.l.b16 %v538
    %v2175 = vunpack.c.h.b16 %v538
    %v2176 = vunpack.c.l.b16 %v539
    %v2177 = vunpack.c.h.b16 %v539
    %v2178 = vunpack.c.l.b16 %v540
    %v2179 = vunpack.c.h.b16 %v540
    %v2180 = vunpack.c.l.b16 %v541
    %v2181 = vunpack.c.h.b16 %v541
    %v2182 = vunpack.c.l.b16 %v542
    %v2183 = vunpack.c.h.b16 %v542
    %v2184 = vunpack.c.l.b16 %v543
    %v2185 = vunpack.c.h.b16 %v543
    %v2186 = vunpack.c.l.b16 %v544
    %v2187 = vunpack.c.h.b16 %v544
    %v2188 = vunpack.c.l.b16 %v545
    %v2189 = vunpack.c.h.b16 %v545
    %v2190 = vunpack.c.l.b16 %v546
    %v2191 = vunpack.c.h.b16 %v546
    %v2192 = vunpack.c.l.b16 %v547
    %v2193 = vunpack.c.h.b16 %v547
    %v2194 = vunpack.c.l.b16 %v548
    %v2195 = vunpack.c.h.b16 %v548
    %v2196 = vunpack.c.l.b16 %v549
    %v2197 = vunpack.c.h.b16 %v549
    %v2198 = vunpack.c.l.b16 %v550
    %v2199 = vunpack.c.h.b16 %v550
    %v2200 = vunpack.c.l.b16 %v551
    %v2201 = vunpack.c.h.b16 %v551
    %v2202 = vunpack.c.l.b16 %v552
    %v2203 = vunpack.c.h.b16 %v552
    %v2204 = vunpack.c.l.b16 %v553
    %v2205 = vunpack.c.h.b16 %v553
    %v2206 = vunpack.c.l.b16 %v554
    %v2207 = vunpack.c.h.b16 %v554
    %v2208 = vunpack.c.l.b16 %v555
    %v2209 = vunpack.c.h.b16 %v555
    %v2210 = vunpack.c.l.b16 %v556
    %v2211 = vunpack.c.h.b16 %v556
    %v2212 = vunpack.c.l.b16 %v557
    %v2213 = vunpack.c.h.b16 %v557
    %v2214 = vunpack.c.l.b16 %v558
    %v2215 = vunpack.c.h.b16 %v558
    %v2216 = vunpack.c.l.b16 %v559
    %v2217 = vunpack.c.h.b16 %v559
    %v2218 = vunpack.c.l.b16 %v560
    %v2219 = vunpack.c.h.b16 %v560
    %v2220 = vunpack.c.l.b16 %v561
    %v2221 = vunpack.c.h.b16 %v561
    %v2222 = vunpack.c.l.b16 %v562
    %v2223 = vunpack.c.h.b16 %v562
    %v2224 = vunpack.c.l.b16 %v563
    %v2225 = vunpack.c.h.b16 %v563
    %v2226 = vunpack.c.l.b16 %v564
    %v2227 = vunpack.c.h.b16 %v564
    %v2228 = vunpack.c.l.b16 %v565
    %v2229 = vunpack.c.h.b16 %v565
    %v2230 = vunpack.c.l.b16 %v566
    %v2231 = vunpack.c.h.b16 %v566
    %v2232 = vunpack.c.l.b16 %v567
    %v2233 = vunpack.c.h.b16 %v567
    %v2234 = vunpack.c.l.b16 %v568
    %v2235 = vunpack.c.h.b16 %v568
    %v2236 = vunpack.c.l.b16 %v569
    %v2237 = vunpack.c.h.b16 %v569
    %v2238 = vunpack.c.l.b16 %v570
    %v2239 = vunpack.c.h.b16 %v570
    %v2240 = vunpack.c.l.b16 %v571
    %v2241 = vunpack.c.h.b16 %v571
    %v2242 = vunpack.c.l.b16 %v572
    %v2243 = vunpack.c.h.b16 %v572
    %v2244 = vunpack.c.l.b16 %v573
    %v2245 = vunpack.c.h.b16 %v573
    %v2246 = vunpack.c.l.b16 %v574
    %v2247 = vunpack.c.h.b16 %v574
    %v2248 = vunpack.c.l.b16 %v575
    %v2249 = vunpack.c.h.b16 %v575
    %v2250 = vunpack.c.l.b16 %v576
    %v2251 = vunpack.c.h.b16 %v576
    %v2252 = vunpack.c.l.b16 %v577
    %v2253 = vunpack.c.h.b16 %v577
    %v2254 = vunpack.c.l.b16 %v578
    %v2255 = vunpack.c.h.b16 %v578
    %v2256 = vunpack.c.l.b16 %v579
    %v2257 = vunpack.c.h.b16 %v579
    %v2258 = vunpack.c.l.b16 %v580
    %v2259 = vunpack.c.h.b16 %v580
    %v2260 = vunpack.c.l.b16 %v581
    %v2261 = vunpack.c.h.b16 %v581
    %v2262 = vunpack.c.l.b16 %v582
    %v2263 = vunpack.c.h.b16 %v582
    %v2264 = vunpack.c.l.b16 %v583
    %v2265 = vunpack.c.h.b16 %v583
    %v2266 = vunpack.c.l.b16 %v584
    %v2267 = vunpack.c.h.b16 %v584
    %v2268 = vunpack.c.l.b16 %v585
    %v2269 = vunpack.c.h.b16 %v585
    %v2270 = vunpack.c.l.b16 %v586
    %v2271 = vunpack.c.h.b16 %v586
    %v2272 = vunpack.c.l.b16 %v587
    %v2273 = vunpack.c.h.b16 %v587
    %v2274 = vunpack.c.l.b16 %v588
    %v2275 = vunpack.c.h.b16 %v588
    %v2276 = vunpack.c.l.b16 %v589
    %v2277 = vunpack.c.h.b16 %v589
    %v2278 = vunpack.c.l.b16 %v590
    %v2279 = vunpack.c.h.b16 %v590
    %v2280 = vunpack.c.l.b16 %v591
    %v2281 = vunpack.c.h.b16 %v591
    %v2282 = vunpack.c.l.b16 %v592
    %v2283 = vunpack.c.h.b16 %v592
    %v2284 = vunpack.c.l.b16 %v593
    %v2285 = vunpack.c.h.b16 %v593
    %v2286 = vunpack.c.l.b16 %v594
    %v2287 = vunpack.c.h.b16 %v594
    %v2288 = vunpack.c.l.b16 %v595
    %v2289 = vunpack.c.h.b16 %v595
    %v2290 = vunpack.c.l.b16 %v596
    %v2291 = vunpack.c.h.b16 %v596
    %v2292 = vunpack.c.l.b16 %v597
    %v2293 = vunpack.c.h.b16 %v597
    %v2294 = vunpack.c.l.b16 %v598
    %v2295 = vunpack.c.h.b16 %v598
    %v2296 = vunpack.c.l.b16 %v599
    %v2297 = vunpack.c.h.b16 %v599
    %v2298 = vunpack.c.l.b16 %v600
    %v2299 = vunpack.c.h.b16 %v600
    %v2300 = vunpack.c.l.b16 %v601
    %v2301 = vunpack.c.h.b16 %v601
    %v2302 = vunpack.c.l.b16 %v602
    %v2303 = vunpack.c.h.b16 %v602
    %v2304 = vunpack.c.l.b16 %v603
    %v2305 = vunpack.c.h.b16 %v603
    %v2306 = vunpack.c.l.b16 %v604
    %v2307 = vunpack.c.h.b16 %v604
    %v2308 = vunpack.c.l.b16 %v605
    %v2309 = vunpack.c.h.b16 %v605
    %v2310 = vunpack.c.l.b16 %v606
    %v2311 = vunpack.c.h.b16 %v606
    %v2312 = vunpack.c.l.b16 %v607
    %v2313 = vunpack.c.h.b16 %v607
    %v2314 = vunpack.c.l.b16 %v608
    %v2315 = vunpack.c.h.b16 %v608
    %v2316 = vunpack.c.l.b16 %v609
    %v2317 = vunpack.c.h.b16 %v609
    %v2318 = vunpack.c.l.b16 %v610
    %v2319 = vunpack.c.h.b16 %v610
    %v2320 = vunpack.c.l.b16 %v611
    %v2321 = vunpack.c.h.b16 %v611
    %v2322 = vunpack.c.l.b16 %v612
    %v2323 = vunpack.c.h.b16 %v612
    %v2324 = vunpack.c.l.b16 %v613
    %v2325 = vunpack.c.h.b16 %v613
    %v2326 = vunpack.c.l.b16 %v614
    %v2327 = vunpack.c.h.b16 %v614
    %v2328 = vunpack.c.l.b16 %v615
    %v2329 = vunpack.c.h.b16 %v615
    %v2330 = vunpack.c.l.b16 %v616
    %v2331 = vunpack.c.h.b16 %v616
    %v2332 = vunpack.c.l.b16 %v617
    %v2333 = vunpack.c.h.b16 %v617
    %v2334 = vunpack.c.l.b16 %v618
    %v2335 = vunpack.c.h.b16 %v618
    %v2336 = vunpack.c.l.b16 %v619
    %v2337 = vunpack.c.h.b16 %v619
    %v2338 = vunpack.c.l.b16 %v620
    %v2339 = vunpack.c.h.b16 %v620
    %v2340 = vunpack.c.l.b16 %v621
    %v2341 = vunpack.c.h.b16 %v621
    %v2342 = vunpack.c.l.b16 %v622
    %v2343 = vunpack.c.h.b16 %v622
    %v2344 = vunpack.c.l.b16 %v623
    %v2345 = vunpack.c.h.b16 %v623
    %v2346 = vunpack.c.l.b16 %v624
    %v2347 = vunpack.c.h.b16 %v624
    %v2348 = vunpack.c.l.b16 %v625
    %v2349 = vunpack.c.h.b16 %v625
    %v2350 = vunpack.c.l.b16 %v626
    %v2351 = vunpack.c.h.b16 %v626
    %v2352 = vunpack.c.l.b16 %v627
    %v2353 = vunpack.c.h.b16 %v627
    %v2354 = vunpack.c.l.b16 %v628
    %v2355 = vunpack.c.h.b16 %v628
    %v2356 = vunpack.c.l.b16 %v629
    %v2357 = vunpack.c.h.b16 %v629
    %v2358 = vunpack.c.l.b16 %v630
    %v2359 = vunpack.c.h.b16 %v630
    %v2360 = vpack.c.b16 %v1344, %v1336
    %v2361 = vpack.c.b16 %v1345, %v1337
    %v2362 = vpack.c.b16 %v1346, %v1338
    %v2363 = vpack.c.b16 %v1347, %v1339
    %v2364 = vpack.c.b16 %v1348, %v1340
    %v2365 = vpack.c.b16 %v1349, %v1341
    %v2366 = vpack.c.b16 %v1350, %v1342
    %v2367 = vpack.c.b16 %v1351, %v1343
    %v2368 = vpack.c.b16 %v1360, %v1352
    %v2369 = vpack.c.b16 %v1361, %v1353
    %v2370 = vpack.c.b16 %v1362, %v1354
    %v2371 = vpack.c.b16 %v1363, %v1355
    %v2372 = vpack.c.b16 %v1364, %v1356
    %v2373 = vpack.c.b16 %v1365, %v1357
    %v2374 = vpack.c.b16 %v1366, %v1358
    %v2375 = vpack.c.b16 %v1367, %v1359
    %v2376 = vpack.c.b16 %v1376, %v1368
    %v2377 = vpack.c.b16 %v1377, %v1369
    %v2378 = vpack.c.b16 %v1378, %v1370
    %v2379 = vpack.c.b16 %v1379, %v1371
    %v2380 = vpack.c.b16 %v1380, %v1372
    %v2381 = vpack.c.b16 %v1381, %v1373
    %v2382 = vpack.c.b16 %v1382, %v1374
    %v2383 = vpack.c.b16 %v1383, %v1375
    %v2384 = vpack.c.b16 %v1392, %v1384
    %v2385 = vpack.c.b16 %v1393, %v1385
    %v2386 = vpack.c.b16 %v1394, %v1386
    %v2387 = vpack.c.b16 %v1395, %v1387
    %v2388 = vpack.c.b16 %v1396, %v1388
    %v2389 = vpack.c.b16 %v1397, %v1389
    %v2390 = vpack.c.b16 %v1398, %v1390
    %v2391 = vpack.c.b16 %v1399, %v1391
    %v2392 = vpack.c.b16 %v1408, %v1400
    %v2393 = vpack.c.b16 %v1409, %v1401
    %v2394 = vpack.c.b16 %v1410, %v1402
    %v2395 = vpack.c.b16 %v1411, %v1403
    %v2396 = vpack.c.b16 %v1412, %v1404
    %v2397 = vpack.c.b16 %v1413, %v1405
    %v2398 = vpack.c.b16 %v1414, %v1406
    %v2399 = vpack.c.b16 %v1415, %v1407
    %v2400 = vpack.c.b16 %v1424, %v1416
    %v2401 = vpack.c.b16 %v1425, %v1417
    %v2402 = vpack.c.b16 %v1426, %v1418
    %v2403 = vpack.c.b16 %v1427, %v1419
    %v2404 = vpack.c.b16 %v1428, %v1420
    %v2405 = vpack.c.b16 %v1429, %v1421
    %v2406 = vpack.c.b16 %v1430, %v1422
    %v2407 = vpack.c.b16 %v1431, %v1423
    %v2408 = vpack.c.b16 %v1440, %v1432
    %v2409 = vpack.c.b16 %v1441, %v1433
    %v2410 = vpack.c.b16 %v1442, %v1434
    %v2411 = vpack.c.b16 %v1443, %v1435
    %v2412 = vpack.c.b16 %v1444, %v1436
    %v2413 = vpack.c.b16 %v1445, %v1437
    %v2414 = vpack.c.b16 %v1446, %v1438
    %v2415 = vpack.c.b16 %v1447, %v1439
    %v2416 = vpack.c.b16 %v1456, %v1448
    %v2417 = vpack.c.b16 %v1457, %v1449
    %v2418 = vpack.c.b16 %v1458, %v1450
    %v2419 = vpack.c.b16 %v1459, %v1451
    %v2420 = vpack.c.b16 %v1460, %v1452
    %v2421 = vpack.c.b16 %v1461, %v1453
    %v2422 = vpack.c.b16 %v1462, %v1454
    %v2423 = vpack.c.b16 %v1463, %v1455
    %v2424 = vpack.c.b16 %v1472, %v1464
    %v2425 = vpack.c.b16 %v1473, %v1465
    %v2426 = vpack.c.b16 %v1474, %v1466
    %v2427 = vpack.c.b16 %v1475, %v1467
    %v2428 = vpack.c.b16 %v1476, %v1468
    %v2429 = vpack.c.b16 %v1477, %v1469
    %v2430 = vpack.c.b16 %v1478, %v1470
    %v2431 = vpack.c.b16 %v1479, %v1471
    %v2432 = vpack.c.b16 %v1488, %v1480
    %v2433 = vpack.c.b16 %v1489, %v1481
    %v2434 = vpack.c.b16 %v1490, %v1482
    %v2435 = vpack.c.b16 %v1491, %v1483
    %v2436 = vpack.c.b16 %v1492, %v1484
    %v2437 = vpack.c.b16 %v1493, %v1485
    %v2438 = vpack.c.b16 %v1494, %v1486
    %v2439 = vpack.c.b16 %v1495, %v1487
    %v2440 = vpack.c.b16 %v1504, %v1496
    %v2441 = vpack.c.b16 %v1505, %v1497
    %v2442 = vpack.c.b16 %v1506, %v1498
    %v2443 = vpack.c.b16 %v1507, %v1499
    %v2444 = vpack.c.b16 %v1508, %v1500
    %v2445 = vpack.c.b16 %v1509, %v1501
    %v2446 = vpack.c.b16 %v1510, %v1502
    %v2447 = vpack.c.b16 %v1511, %v1503
    %v2448 = vpack.c.b16 %v1520, %v1512
    %v2449 = vpack.c.b16 %v1521, %v1513
    %v2450 = vpack.c.b16 %v1522, %v1514
    %v2451 = vpack.c.b16 %v1523, %v1515
    %v2452 = vpack.c.b16 %v1524, %v1516
    %v2453 = vpack.c.b16 %v1525, %v1517
    %v2454 = vpack.c.b16 %v1526, %v1518
    %v2455 = vpack.c.b16 %v1527, %v1519
    %v2456 = vpack.c.b16 %v1536, %v1528
    %v2457 = vpack.c.b16 %v1537, %v1529
    %v2458 = vpack.c.b16 %v1538, %v1530
    %v2459 = vpack.c.b16 %v1539, %v1531
    %v2460 = vpack.c.b16 %v1540, %v1532
    %v2461 = vpack.c.b16 %v1541, %v1533
    %v2462 = vpack.c.b16 %v1542, %v1534
    %v2463 = vpack.c.b16 %v1543, %v1535
    %v2464 = vpack.c.b16 %v1552, %v1544
    %v2465 = vpack.c.b16 %v1553, %v1545
    %v2466 = vpack.c.b16 %v1554, %v1546
    %v2467 = vpack.c.b16 %v1555, %v1547
    %v2468 = vpack.c.b16 %v1556, %v1548
    %v2469 = vpack.c.b16 %v1557, %v1549
    %v2470 = vpack.c.b16 %v1558, %v1550
    %v2471 = vpack.c.b16 %v1559, %v1551
    %v2472 = vpack.c.b16 %v1568, %v1560
    %v2473 = vpack.c.b16 %v1569, %v1561
    %v2474 = vpack.c.b16 %v1570, %v1562
    %v2475 = vpack.c.b16 %v1571, %v1563
    %v2476 = vpack.c.b16 %v1572, %v1564
    %v2477 = vpack.c.b16 %v1573, %v1565
    %v2478 = vpack.c.b16 %v1574, %v1566
    %v2479 = vpack.c.b16 %v1575, %v1567
    %v2480 = vpack.c.b16 %v1584, %v1576
    %v2481 = vpack.c.b16 %v1585, %v1577
    %v2482 = vpack.c.b16 %v1586, %v1578
    %v2483 = vpack.c.b16 %v1587, %v1579
    %v2484 = vpack.c.b16 %v1588, %v1580
    %v2485 = vpack.c.b16 %v1589, %v1581
    %v2486 = vpack.c.b16 %v1590, %v1582
    %v2487 = vpack.c.b16 %v1591, %v1583
    %v2488 = vpack.c.b16 %v1600, %v1592
    %v2489 = vpack.c.b16 %v1601, %v1593
    %v2490 = vpack.c.b16 %v1602, %v1594
    %v2491 = vpack.c.b16 %v1603, %v1595
    %v2492 = vpack.c.b16 %v1604, %v1596
    %v2493 = vpack.c.b16 %v1605, %v1597
    %v2494 = vpack.c.b16 %v1606, %v1598
    %v2495 = vpack.c.b16 %v1607, %v1599
    %v2496 = vpack.c.b16 %v1616, %v1608
    %v2497 = vpack.c.b16 %v1617, %v1609
    %v2498 = vpack.c.b16 %v1618, %v1610
    %v2499 = vpack.c.b16 %v1619, %v1611
    %v2500 = vpack.c.b16 %v1620, %v1612
    %v2501 = vpack.c.b16 %v1621, %v1613
    %v2502 = vpack.c.b16 %v1622, %v1614
    %v2503 = vpack.c.b16 %v1623, %v1615
    %v2504 = vpack.c.b16 %v1632, %v1624
    %v2505 = vpack.c.b16 %v1633, %v1625
    %v2506 = vpack.c.b16 %v1634, %v1626
    %v2507 = vpack.c.b16 %v1635, %v1627
    %v2508 = vpack.c.b16 %v1636, %v1628
    %v2509 = vpack.c.b16 %v1637, %v1629
    %v2510 = vpack.c.b16 %v1638, %v1630
    %v2511 = vpack.c.b16 %v1639, %v1631
    %v2512 = vpack.c.b16 %v1648, %v1640
    %v2513 = vpack.c.b16 %v1649, %v1641
    %v2514 = vpack.c.b16 %v1650, %v1642
    %v2515 = vpack.c.b16 %v1651, %v1643
    %v2516 = vpack.c.b16 %v1652, %v1644
    %v2517 = vpack.c.b16 %v1653, %v1645
    %v2518 = vpack.c.b16 %v1654, %v1646
    %v2519 = vpack.c.b16 %v1655, %v1647
    %v2520 = vpack.c.b16 %v1664, %v1656
    %v2521 = vpack.c.b16 %v1665, %v1657
    %v2522 = vpack.c.b16 %v1666, %v1658
    %v2523 = vpack.c.b16 %v1667, %v1659
    %v2524 = vpack.c.b16 %v1668, %v1660
    %v2525 = vpack.c.b16 %v1669, %v1661
    %v2526 = vpack.c.b16 %v1670, %v1662
    %v2527 = vpack.c.b16 %v1671, %v1663
    %v2528 = vpack.c.b16 %v1680, %v1672
    %v2529 = vpack.c.b16 %v1681, %v1673
    %v2530 = vpack.c.b16 %v1682, %v1674
    %v2531 = vpack.c.b16 %v1683, %v1675
    %v2532 = vpack.c.b16 %v1684, %v1676
    %v2533 = vpack.c.b16 %v1685, %v1677
    %v2534 = vpack.c.b16 %v1686, %v1678
    %v2535 = vpack.c.b16 %v1687, %v1679
    %v2536 = vpack.c.b16 %v1696, %v1688
    %v2537 = vpack.c.b16 %v1697, %v1689
    %v2538 = vpack.c.b16 %v1698, %v1690
    %v2539 = vpack.c.b16 %v1699, %v1691
    %v2540 = vpack.c.b16 %v1700, %v1692
    %v2541 = vpack.c.b16 %v1701, %v1693
    %v2542 = vpack.c.b16 %v1702, %v1694
    %v2543 = vpack.c.b16 %v1703, %v1695
    %v2544 = vpack.c.b16 %v1712, %v1704
    %v2545 = vpack.c.b16 %v1713, %v1705
    %v2546 = vpack.c.b16 %v1714, %v1706
    %v2547 = vpack.c.b16 %v1715, %v1707
    %v2548 = vpack.c.b16 %v1716, %v1708
    %v2549 = vpack.c.b16 %v1717, %v1709
    %v2550 = vpack.c.b16 %v1718, %v1710
    %v2551 = vpack.c.b16 %v1719, %v1711
    %v2552 = vpack.c.b16 %v1728, %v1720
    %v2553 = vpack.c.b16 %v1729, %v1721
    %v2554 = vpack.c.b16 %v1730, %v1722
    %v2555 = vpack.c.b16 %v1731, %v1723
    %v2556 = vpack.c.b16 %v1732, %v1724
    %v2557 = vpack.c.b16 %v1733, %v1725
    %v2558 = vpack.c.b16 %v1734, %v1726
    %v2559 = vpack.c.b16 %v1735, %v1727
    %v2560 = vpack.c.b16 %v1744, %v1736
    %v2561 = vpack.c.b16 %v1745, %v1737
    %v2562 = vpack.c.b16 %v1746, %v1738
    %v2563 = vpack.c.b16 %v1747, %v1739
    %v2564 = vpack.c.b16 %v1748, %v1740
    %v2565 = vpack.c.b16 %v1749, %v1741
    %v2566 = vpack.c.b16 %v1750, %v1742
    %v2567 = vpack.c.b16 %v1751, %v1743
    %v2568 = vpack.c.b16 %v1760, %v1752
    %v2569 = vpack.c.b16 %v1761, %v1753
    %v2570 = vpack.c.b16 %v1762, %v1754
    %v2571 = vpack.c.b16 %v1763, %v1755
    %v2572 = vpack.c.b16 %v1764, %v1756
    %v2573 = vpack.c.b16 %v1765, %v1757
    %v2574 = vpack.c.b16 %v1766, %v1758
    %v2575 = vpack.c.b16 %v1767, %v1759
    %v2576 = vpack.c.b16 %v1776, %v1768
    %v2577 = vpack.c.b16 %v1777, %v1769
    %v2578 = vpack.c.b16 %v1778, %v1770
    %v2579 = vpack.c.b16 %v1779, %v1771
    %v2580 = vpack.c.b16 %v1780, %v1772
    %v2581 = vpack.c.b16 %v1781, %v1773
    %v2582 = vpack.c.b16 %v1782, %v1774
    %v2583 = vpack.c.b16 %v1783, %v1775
    %v2584 = vpack.c.b16 %v1792, %v1784
    %v2585 = vpack.c.b16 %v1793, %v1785
    %v2586 = vpack.c.b16 %v1794, %v1786
    %v2587 = vpack.c.b16 %v1795, %v1787
    %v2588 = vpack.c.b16 %v1796, %v1788
    %v2589 = vpack.c.b16 %v1797, %v1789
    %v2590 = vpack.c.b16 %v1798, %v1790
    %v2591 = vpack.c.b16 %v1799, %v1791
    %v2592 = vpack.c.b16 %v1808, %v1800
    %v2593 = vpack.c.b16 %v1809, %v1801
    %v2594 = vpack.c.b16 %v1810, %v1802
    %v2595 = vpack.c.b16 %v1811, %v1803
    %v2596 = vpack.c.b16 %v1812, %v1804
    %v2597 = vpack.c.b16 %v1813, %v1805
    %v2598 = vpack.c.b16 %v1814, %v1806
    %v2599 = vpack.c.b16 %v1815, %v1807
    %v2600 = vpack.c.b16 %v1824, %v1816
    %v2601 = vpack.c.b16 %v1825, %v1817
    %v2602 = vpack.c.b16 %v1826, %v1818
    %v2603 = vpack.c.b16 %v1827, %v1819
    %v2604 = vpack.c.b16 %v1828, %v1820
    %v2605 = vpack.c.b16 %v1829, %v1821
    %v2606 = vpack.c.b16 %v1830, %v1822
    %v2607 = vpack.c.b16 %v1831, %v1823
    %v2608 = vpack.c.b16 %v1840, %v1832
    %v2609 = vpack.c.b16 %v1841, %v1833
    %v2610 = vpack.c.b16 %v1842, %v1834
    %v2611 = vpack.c.b16 %v1843, %v1835
    %v2612 = vpack.c.b16 %v1844, %v1836
    %v2613 = vpack.c.b16 %v1845, %v1837
    %v2614 = vpack.c.b16 %v1846, %v1838
    %v2615 = vpack.c.b16 %v1847, %v1839
    %v2616 = vpack.c.b16 %v1856, %v1848
    %v2617 = vpack.c.b16 %v1857, %v1849
    %v2618 = vpack.c.b16 %v1858, %v1850
    %v2619 = vpack.c.b16 %v1859, %v1851
    %v2620 = vpack.c.b16 %v1860, %v1852
    %v2621 = vpack.c.b16 %v1861, %v1853
    %v2622 = vpack.c.b16 %v1862, %v1854
    %v2623 = vpack.c.b16 %v1863, %v1855
    %v2624 = vpack.c.b16 %v1872, %v1864
    %v2625 = vpack.c.b16 %v1873, %v1865
    %v2626 = vpack.c.b16 %v1874, %v1866
    %v2627 = vpack.c.b16 %v1875, %v1867
    %v2628 = vpack.c.b16 %v1876, %v1868
    %v2629 = vpack.c.b16 %v1877, %v1869
    %v2630 = vpack.c.b16 %v1878, %v1870
    %v2631 = vpack.c.b16 %v1879, %v1871
    %v2632 = vpack.c.b16 %v1888, %v1880
    %v2633 = vpack.c.b16 %v1889, %v1881
    %v2634 = vpack.c.b16 %v1890, %v1882
    %v2635 = vpack.c.b16 %v1891, %v1883
    %v2636 = vpack.c.b16 %v1892, %v1884
    %v2637 = vpack.c.b16 %v1893, %v1885
    %v2638 = vpack.c.b16 %v1894, %v1886
    %v2639 = vpack.c.b16 %v1895, %v1887
    %v2640 = vpack.c.b16 %v1904, %v1896
    %v2641 = vpack.c.b16 %v1905, %v1897
    %v2642 = vpack.c.b16 %v1906, %v1898
    %v2643 = vpack.c.b16 %v1907, %v1899
    %v2644 = vpack.c.b16 %v1908, %v1900
    %v2645 = vpack.c.b16 %v1909, %v1901
    %v2646 = vpack.c.b16 %v1910, %v1902
    %v2647 = vpack.c.b16 %v1911, %v1903
    %v2648 = vpack.c.b16 %v1920, %v1912
    %v2649 = vpack.c.b16 %v1921, %v1913
    %v2650 = vpack.c.b16 %v1922, %v1914
    %v2651 = vpack.c.b16 %v1923, %v1915
    %v2652 = vpack.c.b16 %v1924, %v1916
    %v2653 = vpack.c.b16 %v1925, %v1917
    %v2654 = vpack.c.b16 %v1926, %v1918
    %v2655 = vpack.c.b16 %v1927, %v1919
    %v2656 = vpack.c.b16 %v1936, %v1928
    %v2657 = vpack.c.b16 %v1937, %v1929
    %v2658 = vpack.c.b16 %v1938, %v1930
    %v2659 = vpack.c.b16 %v1939, %v1931
    %v2660 = vpack.c.b16 %v1940, %v1932
    %v2661 = vpack.c.b16 %v1941, %v1933
    %v2662 = vpack.c.b16 %v1942, %v1934
    %v2663 = vpack.c.b16 %v1943, %v1935
    %v2664 = vpack.c.b16 %v1952, %v1944
    %v2665 = vpack.c.b16 %v1953, %v1945
    %v2666 = vpack.c.b16 %v1954, %v1946
    %v2667 = vpack.c.b16 %v1955, %v1947
    %v2668 = vpack.c.b16 %v1956, %v1948
    %v2669 = vpack.c.b16 %v1957, %v1949
    %v2670 = vpack.c.b16 %v1958, %v1950
    %v2671 = vpack.c.b16 %v1959, %v1951
    %v2672 = vpack.c.b16 %v1968, %v1960
    %v2673 = vpack.c.b16 %v1969, %v1961
    %v2674 = vpack.c.b16 %v1970, %v1962
    %v2675 = vpack.c.b16 %v1971, %v1963
    %v2676 = vpack.c.b16 %v1972, %v1964
    %v2677 = vpack.c.b16 %v1973, %v1965
    %v2678 = vpack.c.b16 %v1974, %v1966
    %v2679 = vpack.c.b16 %v1975, %v1967
    %v2680 = vpack.c.b16 %v1984, %v1976
    %v2681 = vpack.c.b16 %v1985, %v1977
    %v2682 = vpack.c.b16 %v1986, %v1978
    %v2683 = vpack.c.b16 %v1987, %v1979
    %v2684 = vpack.c.b16 %v1988, %v1980
    %v2685 = vpack.c.b16 %v1989, %v1981
    %v2686 = vpack.c.b16 %v1990, %v1982
    %v2687 = vpack.c.b16 %v1991, %v1983
    %v2688 = vpack.c.b16 %v2000, %v1992
    %v2689 = vpack.c.b16 %v2001, %v1993
    %v2690 = vpack.c.b16 %v2002, %v1994
    %v2691 = vpack.c.b16 %v2003, %v1995
    %v2692 = vpack.c.b16 %v2004, %v1996
    %v2693 = vpack.c.b16 %v2005, %v1997
    %v2694 = vpack.c.b16 %v2006, %v1998
    %v2695 = vpack.c.b16 %v2007, %v1999
    %v2696 = vpack.c.b16 %v2016, %v2008
    %v2697 = vpack.c.b16 %v2017, %v2009
    %v2698 = vpack.c.b16 %v2018, %v2010
    %v2699 = vpack.c.b16 %v2019, %v2011
    %v2700 = vpack.c.b16 %v2020, %v2012
    %v2701 = vpack.c.b16 %v2021, %v2013
    %v2702 = vpack.c.b16 %v2022, %v2014
    %v2703 = vpack.c.b16 %v2023, %v2015
    %v2704 = vpack.c.b16 %v2032, %v2024
    %v2705 = vpack.c.b16 %v2033, %v2025
    %v2706 = vpack.c.b16 %v2034, %v2026
    %v2707 = vpack.c.b16 %v2035, %v2027
    %v2708 = vpack.c.b16 %v2036, %v2028
    %v2709 = vpack.c.b16 %v2037, %v2029
    %v2710 = vpack.c.b16 %v2038, %v2030
    %v2711 = vpack.c.b16 %v2039, %v2031
    %v2712 = vpack.c.b16 %v2048, %v2040
    %v2713 = vpack.c.b16 %v2049, %v2041
    %v2714 = vpack.c.b16 %v2050, %v2042
    %v2715 = vpack.c.b16 %v2051, %v2043
    %v2716 = vpack.c.b16 %v2052, %v2044
    %v2717 = vpack.c.b16 %v2053, %v2045
    %v2718 = vpack.c.b16 %v2054, %v2046
    %v2719 = vpack.c.b16 %v2055, %v2047
    %v2720 = vpack.c.b16 %v2064, %v2056
    %v2721 = vpack.c.b16 %v2065, %v2057
    %v2722 = vpack.c.b16 %v2066, %v2058
    %v2723 = vpack.c.b16 %v2067, %v2059
    %v2724 = vpack.c.b16 %v2068, %v2060
    %v2725 = vpack.c.b16 %v2069, %v2061
    %v2726 = vpack.c.b16 %v2070, %v2062
    %v2727 = vpack.c.b16 %v2071, %v2063
    %v2728 = vpack.c.b16 %v2080, %v2072
    %v2729 = vpack.c.b16 %v2081, %v2073
    %v2730 = vpack.c.b16 %v2082, %v2074
    %v2731 = vpack.c.b16 %v2083, %v2075
    %v2732 = vpack.c.b16 %v2084, %v2076
    %v2733 = vpack.c.b16 %v2085, %v2077
    %v2734 = vpack.c.b16 %v2086, %v2078
    %v2735 = vpack.c.b16 %v2087, %v2079
    %v2736 = vpack.c.b16 %v2096, %v2088
    %v2737 = vpack.c.b16 %v2097, %v2089
    %v2738 = vpack.c.b16 %v2098, %v2090
    %v2739 = vpack.c.b16 %v2099, %v2091
    %v2740 = vpack.c.b16 %v2100, %v2092
    %v2741 = vpack.c.b16 %v2101, %v2093
    %v2742 = vpack.c.b16 %v2102, %v2094
    %v2743 = vpack.c.b16 %v2103, %v2095
    %v2744 = vpack.c.b16 %v2112, %v2104
    %v2745 = vpack.c.b16 %v2113, %v2105
    %v2746 = vpack.c.b16 %v2114, %v2106
    %v2747 = vpack.c.b16 %v2115, %v2107
    %v2748 = vpack.c.b16 %v2116, %v2108
    %v2749 = vpack.c.b16 %v2117, %v2109
    %v2750 = vpack.c.b16 %v2118, %v2110
    %v2751 = vpack.c.b16 %v2119, %v2111
    %v2752 = vpack.c.b16 %v2128, %v2120
    %v2753 = vpack.c.b16 %v2129, %v2121
    %v2754 = vpack.c.b16 %v2130, %v2122
    %v2755 = vpack.c.b16 %v2131, %v2123
    %v2756 = vpack.c.b16 %v2132, %v2124
    %v2757 = vpack.c.b16 %v2133, %v2125
    %v2758 = vpack.c.b16 %v2134, %v2126
    %v2759 = vpack.c.b16 %v2135, %v2127
    %v2760 = vpack.c.b16 %v2144, %v2136
    %v2761 = vpack.c.b16 %v2145, %v2137
    %v2762 = vpack.c.b16 %v2146, %v2138
    %v2763 = vpack.c.b16 %v2147, %v2139
    %v2764 = vpack.c.b16 %v2148, %v2140
    %v2765 = vpack.c.b16 %v2149, %v2141
    %v2766 = vpack.c.b16 %v2150, %v2142
    %v2767 = vpack.c.b16 %v2151, %v2143
    %v2768 = vpack.c.b16 %v2160, %v2152
    %v2769 = vpack.c.b16 %v2161, %v2153
    %v2770 = vpack.c.b16 %v2162, %v2154
    %v2771 = vpack.c.b16 %v2163, %v2155
    %v2772 = vpack.c.b16 %v2164, %v2156
    %v2773 = vpack.c.b16 %v2165, %v2157
    %v2774 = vpack.c.b16 %v2166, %v2158
    %v2775 = vpack.c.b16 %v2167, %v2159
    %v2776 = vpack.c.b16 %v2176, %v2168
    %v2777 = vpack.c.b16 %v2177, %v2169
    %v2778 = vpack.c.b16 %v2178, %v2170
    %v2779 = vpack.c.b16 %v2179, %v2171
    %v2780 = vpack.c.b16 %v2180, %v2172
    %v2781 = vpack.c.b16 %v2181, %v2173
    %v2782 = vpack.c.b16 %v2182, %v2174
    %v2783 = vpack.c.b16 %v2183, %v2175
    %v2784 = vpack.c.b16 %v2192, %v2184
    %v2785 = vpack.c.b16 %v2193, %v2185
    %v2786 = vpack.c.b16 %v2194, %v2186
    %v2787 = vpack.c.b16 %v2195, %v2187
    %v2788 = vpack.c.b16 %v2196, %v2188
    %v2789 = vpack.c.b16 %v2197, %v2189
    %v2790 = vpack.c.b16 %v2198, %v2190
    %v2791 = vpack.c.b16 %v2199, %v2191
    %v2792 = vpack.c.b16 %v2208, %v2200
    %v2793 = vpack.c.b16 %v2209, %v2201
    %v2794 = vpack.c.b16 %v2210, %v2202
    %v2795 = vpack.c.b16 %v2211, %v2203
    %v2796 = vpack.c.b16 %v2212, %v2204
    %v2797 = vpack.c.b16 %v2213, %v2205
    %v2798 = vpack.c.b16 %v2214, %v2206
    %v2799 = vpack.c.b16 %v2215, %v2207
    %v2800 = vpack.c.b16 %v2224, %v2216
    %v2801 = vpack.c.b16 %v2225, %v2217
    %v2802 = vpack.c.b16 %v2226, %v2218
    %v2803 = vpack.c.b16 %v2227, %v2219
    %v2804 = vpack.c.b16 %v2228, %v2220
    %v2805 = vpack.c.b16 %v2229, %v2221
    %v2806 = vpack.c.b16 %v2230, %v2222
    %v2807 = vpack.c.b16 %v2231, %v2223
    %v2808 = vpack.c.b16 %v2240, %v2232
    %v2809 = vpack.c.b16 %v2241, %v2233
    %v2810 = vpack.c.b16 %v2242, %v2234
    %v2811 = vpack.c.b16 %v2243, %v2235
    %v2812 = vpack.c.b16 %v2244, %v2236
    %v2813 = vpack.c.b16 %v2245, %v2237
    %v2814 = vpack.c.b16 %v2246, %v2238
    %v2815 = vpack.c.b16 %v2247, %v2239
    %v2816 = vpack.c.b16 %v2256, %v2248
    %v2817 = vpack.c.b16 %v2257, %v2249
    %v2818 = vpack.c.b16 %v2258, %v2250
    %v2819 = vpack.c.b16 %v2259, %v2251
    %v2820 = vpack.c.b16 %v2260, %v2252
    %v2821 = vpack.c.b16 %v2261, %v2253
    %v2822 = vpack.c.b16 %v2262, %v2254
    %v2823 = vpack.c.b16 %v2263, %v2255
    %v2824 = vpack.c.b16 %v2272, %v2264
    %v2825 = vpack.c.b16 %v2273, %v2265
    %v2826 = vpack.c.b16 %v2274, %v2266
    %v2827 = vpack.c.b16 %v2275, %v2267
    %v2828 = vpack.c.b16 %v2276, %v2268
    %v2829 = vpack.c.b16 %v2277, %v2269
    %v2830 = vpack.c.b16 %v2278, %v2270
    %v2831 = vpack.c.b16 %v2279, %v2271
    %v2832 = vpack.c.b16 %v2288, %v2280
    %v2833 = vpack.c.b16 %v2289, %v2281
    %v2834 = vpack.c.b16 %v2290, %v2282
    %v2835 = vpack.c.b16 %v2291, %v2283
    %v2836 = vpack.c.b16 %v2292, %v2284
    %v2837 = vpack.c.b16 %v2293, %v2285
    %v2838 = vpack.c.b16 %v2294, %v2286
    %v2839 = vpack.c.b16 %v2295, %v2287
    %v2840 = vpack.c.b16 %v2304, %v2296
    %v2841 = vpack.c.b16 %v2305, %v2297
    %v2842 = vpack.c.b16 %v2306, %v2298
    %v2843 = vpack.c.b16 %v2307, %v2299
    %v2844 = vpack.c.b16 %v2308, %v2300
    %v2845 = vpack.c.b16 %v2309, %v2301
    %v2846 = vpack.c.b16 %v2310, %v2302
    %v2847 = vpack.c.b16 %v2311, %v2303
    %v2848 = vpack.c.b16 %v2320, %v2312
    %v2849 = vpack.c.b16 %v2321, %v2313
    %v2850 = vpack.c.b16 %v2322, %v2314
    %v2851 = vpack.c.b16 %v2323, %v2315
    %v2852 = vpack.c.b16 %v2324, %v2316
    %v2853 = vpack.c.b16 %v2325, %v2317
    %v2854 = vpack.c.b16 %v2326, %v2318
    %v2855 = vpack.c.b16 %v2327, %v2319
    %v2856 = vpack.c.b16 %v2336, %v2328
    %v2857 = vpack.c.b16 %v2337, %v2329
    %v2858 = vpack.c.b16 %v2338, %v2330
    %v2859 = vpack.c.b16 %v2339, %v2331
    %v2860 = vpack.c.b16 %v2340, %v2332
    %v2861 = vpack.c.b16 %v2341, %v2333
    %v2862 = vpack.c.b16 %v2342, %v2334
    %v2863 = vpack.c.b16 %v2343, %v2335
    %v2864 = vpack.c.b16 %v2352, %v2344
    %v2865 = vpack.c.b16 %v2353, %v2345
    %v2866 = vpack.c.b16 %v2354, %v2346
    %v2867 = vpack.c.b16 %v2355, %v2347
    %v2868 = vpack.c.b16 %v2356, %v2348
    %v2869 = vpack.c.b16 %v2357, %v2349
    %v2870 = vpack.c.b16 %v2358, %v2350
    %v2871 = vpack.c.b16 %v2359, %v2351
    %3384 = vmatprep.subr.bf16.mxu0 %v2361
    %3385 = vmatpush1.bf16.msra.mxu0 %v2360
    %3386 = vmatprep.subr.bf16.mxu0 %v2369
    %3387 = vmatpush1.bf16.msra.mxu0 %v2368
    %3388 = vmatprep.subr.bf16.mxu0 %v2377
    %3389 = vmatpush1.bf16.msra.mxu0 %v2376
    %3390 = vmatprep.subr.bf16.mxu0 %v2385
    %3391 = vmatpush1.bf16.msra.mxu0 %v2384
    %3392 = vmatprep.subr.bf16.mxu0 %v2393
    %3393 = vmatpush1.bf16.msra.mxu0 %v2392
    %3394 = vmatprep.subr.bf16.mxu0 %v2401
    %3395 = vmatpush1.bf16.msra.mxu0 %v2400
    %3396 = vmatprep.subr.bf16.mxu0 %v2409
    %3397 = vmatpush1.bf16.msra.mxu0 %v2408
    %3398 = vmatprep.subr.bf16.mxu0 %v2417
    %3399 = vmatpush1.bf16.msra.mxu0 %v2416
    %3400 = vmatprep.subr.bf16.mxu0 %v2425
    %3401 = vmatpush1.bf16.msra.mxu0 %v2424
    %3402 = vmatprep.subr.bf16.mxu0 %v2433
    %3403 = vmatpush1.bf16.msra.mxu0 %v2432
    %3404 = vmatprep.subr.bf16.mxu0 %v2441
    %3405 = vmatpush1.bf16.msra.mxu0 %v2440
    %3406 = vmatprep.subr.bf16.mxu0 %v2449
    %3407 = vmatpush1.bf16.msra.mxu0 %v2448
    %3408 = vmatprep.subr.bf16.mxu0 %v2457
    %3409 = vmatpush1.bf16.msra.mxu0 %v2456
    %3410 = vmatprep.subr.bf16.mxu0 %v2465
    %3411 = vmatpush1.bf16.msra.mxu0 %v2464
    %3412 = vmatprep.subr.bf16.mxu0 %v2473
    %3413 = vmatpush1.bf16.msra.mxu0 %v2472
    %3414 = vmatprep.subr.bf16.mxu0 %v2481
    %3415 = vmatpush1.bf16.msra.mxu0 %v2480
    %3416 = vmatprep.mubr.bf16.mxu0 %v817
    %3417 = vmatmul.mubr.bf16.gmra.mrb[0].mxu0 %v816
    %v3418 = vpop.f32.mrb[0].mxu0
    %v3419 = vadd.f32 0.0, %v3418
    %v3420 = vpop.f32.mrb[0].mxu0
    %v3421 = vadd.f32 0.0, %v3420
    %v3422 = vpop.f32.mrb[0].mxu0
    %v3423 = vadd.f32 0.0, %v3422
    %v3424 = vpop.f32.mrb[0].mxu0
    %v3425 = vadd.f32 0.0, %v3424
    %3426 = vdwg.mxu0
    %3427 = vmatprep.subr.bf16.mxu0 %v2489
    %3428 = vmatpush1.bf16.msra.mxu0 %v2488
    %3429 = vmatprep.subr.bf16.mxu0 %v2497
    %3430 = vmatpush1.bf16.msra.mxu0 %v2496
    %3431 = vmatprep.subr.bf16.mxu0 %v2505
    %3432 = vmatpush1.bf16.msra.mxu0 %v2504
    %3433 = vmatprep.subr.bf16.mxu0 %v2513
    %3434 = vmatpush1.bf16.msra.mxu0 %v2512
    %3435 = vmatprep.subr.bf16.mxu0 %v2521
    %3436 = vmatpush1.bf16.msra.mxu0 %v2520
    %3437 = vmatprep.subr.bf16.mxu0 %v2529
    %3438 = vmatpush1.bf16.msra.mxu0 %v2528
    %3439 = vmatprep.subr.bf16.mxu0 %v2537
    %3440 = vmatpush1.bf16.msra.mxu0 %v2536
    %3441 = vmatprep.subr.bf16.mxu0 %v2545
    %3442 = vmatpush1.bf16.msra.mxu0 %v2544
    %3443 = vmatprep.subr.bf16.mxu0 %v2553
    %3444 = vmatpush1.bf16.msra.mxu0 %v2552
    %3445 = vmatprep.subr.bf16.mxu0 %v2561
    %3446 = vmatpush1.bf16.msra.mxu0 %v2560
    %3447 = vmatprep.subr.bf16.mxu0 %v2569
    %3448 = vmatpush1.bf16.msra.mxu0 %v2568
    %3449 = vmatprep.subr.bf16.mxu0 %v2577
    %3450 = vmatpush1.bf16.msra.mxu0 %v2576
    %3451 = vmatprep.subr.bf16.mxu0 %v2585
    %3452 = vmatpush1.bf16.msra.mxu0 %v2584
    %3453 = vmatprep.subr.bf16.mxu0 %v2593
    %3454 = vmatpush1.bf16.msra.mxu0 %v2592
    %3455 = vmatprep.subr.bf16.mxu0 %v2601
    %3456 = vmatpush1.bf16.msra.mxu0 %v2600
    %3457 = vmatprep.subr.bf16.mxu0 %v2609
    %3458 = vmatpush1.bf16.msra.mxu0 %v2608
    %3459 = vmatprep.mubr.bf16.mxu0 %v819
    %3460 = vmatmul.mubr.bf16.gmra.mrb[0].mxu0 %v818
    %v3461 = vpop.f32.mrb[0].mxu0
    %v3462 = vadd.f32 %v3419, %v3461
    %v3463 = vpop.f32.mrb[0].mxu0
    %v3464 = vadd.f32 %v3421, %v3463
    %v3465 = vpop.f32.mrb[0].mxu0
    %v3466 = vadd.f32 %v3423, %v3465
    %v3467 = vpop.f32.mrb[0].mxu0
    %v3468 = vadd.f32 %v3425, %v3467
    %3469 = vdwg.mxu0
    %3470 = vmatprep.subr.bf16.mxu0 %v2617
    %3471 = vmatpush1.bf16.msra.mxu0 %v2616
    %3472 = vmatprep.subr.bf16.mxu0 %v2625
    %3473 = vmatpush1.bf16.msra.mxu0 %v2624
    %3474 = vmatprep.subr.bf16.mxu0 %v2633
    %3475 = vmatpush1.bf16.msra.mxu0 %v2632
    %3476 = vmatprep.subr.bf16.mxu0 %v2641
    %3477 = vmatpush1.bf16.msra.mxu0 %v2640
    %3478 = vmatprep.subr.bf16.mxu0 %v2649
    %3479 = vmatpush1.bf16.msra.mxu0 %v2648
    %3480 = vmatprep.subr.bf16.mxu0 %v2657
    %3481 = vmatpush1.bf16.msra.mxu0 %v2656
    %3482 = vmatprep.subr.bf16.mxu0 %v2665
    %3483 = vmatpush1.bf16.msra.mxu0 %v2664
    %3484 = vmatprep.subr.bf16.mxu0 %v2673
    %3485 = vmatpush1.bf16.msra.mxu0 %v2672
    %3486 = vmatprep.subr.bf16.mxu0 %v2681
    %3487 = vmatpush1.bf16.msra.mxu0 %v2680
    %3488 = vmatprep.subr.bf16.mxu0 %v2689
    %3489 = vmatpush1.bf16.msra.mxu0 %v2688
    %3490 = vmatprep.subr.bf16.mxu0 %v2697
    %3491 = vmatpush1.bf16.msra.mxu0 %v2696
    %3492 = vmatprep.subr.bf16.mxu0 %v2705
    %3493 = vmatpush1.bf16.msra.mxu0 %v2704
    %3494 = vmatprep.subr.bf16.mxu0 %v2713
    %3495 = vmatpush1.bf16.msra.mxu0 %v2712
    %3496 = vmatprep.subr.bf16.mxu0 %v2721
    %3497 = vmatpush1.bf16.msra.mxu0 %v2720
    %3498 = vmatprep.subr.bf16.mxu0 %v2729
    %3499 = vmatpush1.bf16.msra.mxu0 %v2728
    %3500 = vmatprep.subr.bf16.mxu0 %v2737
    %3501 = vmatpush1.bf16.msra.mxu0 %v2736
    %3502 = vmatprep.mubr.bf16.mxu0 %v821
    %3503 = vmatmul.mubr.bf16.gmra.mrb[0].mxu0 %v820
    %v3504 = vpop.f32.mrb[0].mxu0
    %v3505 = vadd.f32 %v3462, %v3504
    %v3506 = vpop.f32.mrb[0].mxu0
    %v3507 = vadd.f32 %v3464, %v3506
    %v3508 = vpop.f32.mrb[0].mxu0
    %v3509 = vadd.f32 %v3466, %v3508
    %v3510 = vpop.f32.mrb[0].mxu0
    %v3511 = vadd.f32 %v3468, %v3510
    %3512 = vdwg.mxu0
    %3513 = vmatprep.subr.bf16.mxu0 %v2745
    %3514 = vmatpush1.bf16.msra.mxu0 %v2744
    %3515 = vmatprep.subr.bf16.mxu0 %v2753
    %3516 = vmatpush1.bf16.msra.mxu0 %v2752
    %3517 = vmatprep.subr.bf16.mxu0 %v2761
    %3518 = vmatpush1.bf16.msra.mxu0 %v2760
    %3519 = vmatprep.subr.bf16.mxu0 %v2769
    %3520 = vmatpush1.bf16.msra.mxu0 %v2768
    %3521 = vmatprep.subr.bf16.mxu0 %v2777
    %3522 = vmatpush1.bf16.msra.mxu0 %v2776
    %3523 = vmatprep.subr.bf16.mxu0 %v2785
    %3524 = vmatpush1.bf16.msra.mxu0 %v2784
    %3525 = vmatprep.subr.bf16.mxu0 %v2793
    %3526 = vmatpush1.bf16.msra.mxu0 %v2792
    %3527 = vmatprep.subr.bf16.mxu0 %v2801
    %3528 = vmatpush1.bf16.msra.mxu0 %v2800
    %3529 = vmatprep.subr.bf16.mxu0 %v2809
    %3530 = vmatpush1.bf16.msra.mxu0 %v2808
    %3531 = vmatprep.subr.bf16.mxu0 %v2817
    %3532 = vmatpush1.bf16.msra.mxu0 %v2816
    %3533 = vmatprep.subr.bf16.mxu0 %v2825
    %3534 = vmatpush1.bf16.msra.mxu0 %v2824
    %3535 = vmatprep.subr.bf16.mxu0 %v2833
    %3536 = vmatpush1.bf16.msra.mxu0 %v2832
    %3537 = vmatprep.subr.bf16.mxu0 %v2841
    %3538 = vmatpush1.bf16.msra.mxu0 %v2840
    %3539 = vmatprep.subr.bf16.mxu0 %v2849
    %3540 = vmatpush1.bf16.msra.mxu0 %v2848
    %3541 = vmatprep.subr.bf16.mxu0 %v2857
    %3542 = vmatpush1.bf16.msra.mxu0 %v2856
    %3543 = vmatprep.subr.bf16.mxu0 %v2865
    %3544 = vmatpush1.bf16.msra.mxu0 %v2864
    %3545 = vmatprep.mubr.bf16.mxu0 %v823
    %3546 = vmatmul.mubr.bf16.gmra.mrb[0].mxu0 %v822
    %v3547 = vpop.f32.mrb[0].mxu0
    %v3548 = vadd.f32 %v3505, %v3547
    %v3549 = vpop.f32.mrb[0].mxu0
    %v3550 = vadd.f32 %v3507, %v3549
    %v3551 = vpop.f32.mrb[0].mxu0
    %v3552 = vadd.f32 %v3509, %v3551
    %v3553 = vpop.f32.mrb[0].mxu0
    %v3554 = vadd.f32 %v3511, %v3553
    %3555 = vdwg.mxu0
    %3556 = vmatprep.subr.bf16.mxu0 %v2363
    %3557 = vmatpush1.bf16.msra.mxu0 %v2362
    %3558 = vmatprep.subr.bf16.mxu0 %v2371
    %3559 = vmatpush1.bf16.msra.mxu0 %v2370
    %3560 = vmatprep.subr.bf16.mxu0 %v2379
    %3561 = vmatpush1.bf16.msra.mxu0 %v2378
    %3562 = vmatprep.subr.bf16.mxu0 %v2387
    %3563 = vmatpush1.bf16.msra.mxu0 %v2386
    %3564 = vmatprep.subr.bf16.mxu0 %v2395
    %3565 = vmatpush1.bf16.msra.mxu0 %v2394
    %3566 = vmatprep.subr.bf16.mxu0 %v2403
    %3567 = vmatpush1.bf16.msra.mxu0 %v2402
    %3568 = vmatprep.subr.bf16.mxu0 %v2411
    %3569 = vmatpush1.bf16.msra.mxu0 %v2410
    %3570 = vmatprep.subr.bf16.mxu0 %v2419
    %3571 = vmatpush1.bf16.msra.mxu0 %v2418
    %3572 = vmatprep.subr.bf16.mxu0 %v2427
    %3573 = vmatpush1.bf16.msra.mxu0 %v2426
    %3574 = vmatprep.subr.bf16.mxu0 %v2435
    %3575 = vmatpush1.bf16.msra.mxu0 %v2434
    %3576 = vmatprep.subr.bf16.mxu0 %v2443
    %3577 = vmatpush1.bf16.msra.mxu0 %v2442
    %3578 = vmatprep.subr.bf16.mxu0 %v2451
    %3579 = vmatpush1.bf16.msra.mxu0 %v2450
    %3580 = vmatprep.subr.bf16.mxu0 %v2459
    %3581 = vmatpush1.bf16.msra.mxu0 %v2458
    %3582 = vmatprep.subr.bf16.mxu0 %v2467
    %3583 = vmatpush1.bf16.msra.mxu0 %v2466
    %3584 = vmatprep.subr.bf16.mxu0 %v2475
    %3585 = vmatpush1.bf16.msra.mxu0 %v2474
    %3586 = vmatprep.subr.bf16.mxu0 %v2483
    %3587 = vmatpush1.bf16.msra.mxu0 %v2482
    %3588 = vmatprep.mubr.bf16.mxu0 %v817
    %3589 = vmatmul.mubr.bf16.gmra.mrb[0].mxu0 %v816
    %v3590 = vpop.f32.mrb[0].mxu0
    %v3591 = vadd.f32 0.0, %v3590
    %v3592 = vpop.f32.mrb[0].mxu0
    %v3593 = vadd.f32 0.0, %v3592
    %v3594 = vpop.f32.mrb[0].mxu0
    %v3595 = vadd.f32 0.0, %v3594
    %v3596 = vpop.f32.mrb[0].mxu0
    %v3597 = vadd.f32 0.0, %v3596
    %3598 = vdwg.mxu0
    %3599 = vmatprep.subr.bf16.mxu0 %v2491
    %3600 = vmatpush1.bf16.msra.mxu0 %v2490
    %3601 = vmatprep.subr.bf16.mxu0 %v2499
    %3602 = vmatpush1.bf16.msra.mxu0 %v2498
    %3603 = vmatprep.subr.bf16.mxu0 %v2507
    %3604 = vmatpush1.bf16.msra.mxu0 %v2506
    %3605 = vmatprep.subr.bf16.mxu0 %v2515
    %3606 = vmatpush1.bf16.msra.mxu0 %v2514
    %3607 = vmatprep.subr.bf16.mxu0 %v2523
    %3608 = vmatpush1.bf16.msra.mxu0 %v2522
    %3609 = vmatprep.subr.bf16.mxu0 %v2531
    %3610 = vmatpush1.bf16.msra.mxu0 %v2530
    %3611 = vmatprep.subr.bf16.mxu0 %v2539
    %3612 = vmatpush1.bf16.msra.mxu0 %v2538
    %3613 = vmatprep.subr.bf16.mxu0 %v2547
    %3614 = vmatpush1.bf16.msra.mxu0 %v2546
    %3615 = vmatprep.subr.bf16.mxu0 %v2555
    %3616 = vmatpush1.bf16.msra.mxu0 %v2554
    %3617 = vmatprep.subr.bf16.mxu0 %v2563
    %3618 = vmatpush1.bf16.msra.mxu0 %v2562
    %3619 = vmatprep.subr.bf16.mxu0 %v2571
    %3620 = vmatpush1.bf16.msra.mxu0 %v2570
    %3621 = vmatprep.subr.bf16.mxu0 %v2579
    %3622 = vmatpush1.bf16.msra.mxu0 %v2578
    %3623 = vmatprep.subr.bf16.mxu0 %v2587
    %3624 = vmatpush1.bf16.msra.mxu0 %v2586
    %3625 = vmatprep.subr.bf16.mxu0 %v2595
    %3626 = vmatpush1.bf16.msra.mxu0 %v2594
    %3627 = vmatprep.subr.bf16.mxu0 %v2603
    %3628 = vmatpush1.bf16.msra.mxu0 %v2602
    %3629 = vmatprep.subr.bf16.mxu0 %v2611
    %3630 = vmatpush1.bf16.msra.mxu0 %v2610
    %3631 = vmatprep.mubr.bf16.mxu0 %v819
    %3632 = vmatmul.mubr.bf16.gmra.mrb[0].mxu0 %v818
    %v3633 = vpop.f32.mrb[0].mxu0
    %v3634 = vadd.f32 %v3591, %v3633
    %v3635 = vpop.f32.mrb[0].mxu0
    %v3636 = vadd.f32 %v3593, %v3635
    %v3637 = vpop.f32.mrb[0].mxu0
    %v3638 = vadd.f32 %v3595, %v3637
    %v3639 = vpop.f32.mrb[0].mxu0
    %v3640 = vadd.f32 %v3597, %v3639
    %3641 = vdwg.mxu0
    %3642 = vmatprep.subr.bf16.mxu0 %v2619
    %3643 = vmatpush1.bf16.msra.mxu0 %v2618
    %3644 = vmatprep.subr.bf16.mxu0 %v2627
    %3645 = vmatpush1.bf16.msra.mxu0 %v2626
    %3646 = vmatprep.subr.bf16.mxu0 %v2635
    %3647 = vmatpush1.bf16.msra.mxu0 %v2634
    %3648 = vmatprep.subr.bf16.mxu0 %v2643
    %3649 = vmatpush1.bf16.msra.mxu0 %v2642
    %3650 = vmatprep.subr.bf16.mxu0 %v2651
    %3651 = vmatpush1.bf16.msra.mxu0 %v2650
    %3652 = vmatprep.subr.bf16.mxu0 %v2659
    %3653 = vmatpush1.bf16.msra.mxu0 %v2658
    %3654 = vmatprep.subr.bf16.mxu0 %v2667
    %3655 = vmatpush1.bf16.msra.mxu0 %v2666
    %3656 = vmatprep.subr.bf16.mxu0 %v2675
    %3657 = vmatpush1.bf16.msra.mxu0 %v2674
    %3658 = vmatprep.subr.bf16.mxu0 %v2683
    %3659 = vmatpush1.bf16.msra.mxu0 %v2682
    %3660 = vmatprep.subr.bf16.mxu0 %v2691
    %3661 = vmatpush1.bf16.msra.mxu0 %v2690
    %3662 = vmatprep.subr.bf16.mxu0 %v2699
    %3663 = vmatpush1.bf16.msra.mxu0 %v2698
    %3664 = vmatprep.subr.bf16.mxu0 %v2707
    %3665 = vmatpush1.bf16.msra.mxu0 %v2706
    %3666 = vmatprep.subr.bf16.mxu0 %v2715
    %3667 = vmatpush1.bf16.msra.mxu0 %v2714
    %3668 = vmatprep.subr.bf16.mxu0 %v2723
    %3669 = vmatpush1.bf16.msra.mxu0 %v2722
    %3670 = vmatprep.subr.bf16.mxu0 %v2731
    %3671 = vmatpush1.bf16.msra.mxu0 %v2730
    %3672 = vmatprep.subr.bf16.mxu0 %v2739
    %3673 = vmatpush1.bf16.msra.mxu0 %v2738
    %3674 = vmatprep.mubr.bf16.mxu0 %v821
    %3675 = vmatmul.mubr.bf16.gmra.mrb[0].mxu0 %v820
    %v3676 = vpop.f32.mrb[0].mxu0
    %v3677 = vadd.f32 %v3634, %v3676
    %v3678 = vpop.f32.mrb[0].mxu0
    %v3679 = vadd.f32 %v3636, %v3678
    %v3680 = vpop.f32.mrb[0].mxu0
    %v3681 = vadd.f32 %v3638, %v3680
    %v3682 = vpop.f32.mrb[0].mxu0
    %v3683 = vadd.f32 %v3640, %v3682
    %3684 = vdwg.mxu0
    %3685 = vmatprep.subr.bf16.mxu0 %v2747
    %3686 = vmatpush1.bf16.msra.mxu0 %v2746
    %3687 = vmatprep.subr.bf16.mxu0 %v2755
    %3688 = vmatpush1.bf16.msra.mxu0 %v2754
    %3689 = vmatprep.subr.bf16.mxu0 %v2763
    %3690 = vmatpush1.bf16.msra.mxu0 %v2762
    %3691 = vmatprep.subr.bf16.mxu0 %v2771
    %3692 = vmatpush1.bf16.msra.mxu0 %v2770
    %3693 = vmatprep.subr.bf16.mxu0 %v2779
    %3694 = vmatpush1.bf16.msra.mxu0 %v2778
    %3695 = vmatprep.subr.bf16.mxu0 %v2787
    %3696 = vmatpush1.bf16.msra.mxu0 %v2786
    %3697 = vmatprep.subr.bf16.mxu0 %v2795
    %3698 = vmatpush1.bf16.msra.mxu0 %v2794
    %3699 = vmatprep.subr.bf16.mxu0 %v2803
    %3700 = vmatpush1.bf16.msra.mxu0 %v2802
    %3701 = vmatprep.subr.bf16.mxu0 %v2811
    %3702 = vmatpush1.bf16.msra.mxu0 %v2810
    %3703 = vmatprep.subr.bf16.mxu0 %v2819
    %3704 = vmatpush1.bf16.msra.mxu0 %v2818
    %3705 = vmatprep.subr.bf16.mxu0 %v2827
    %3706 = vmatpush1.bf16.msra.mxu0 %v2826
    %3707 = vmatprep.subr.bf16.mxu0 %v2835
    %3708 = vmatpush1.bf16.msra.mxu0 %v2834
    %3709 = vmatprep.subr.bf16.mxu0 %v2843
    %3710 = vmatpush1.bf16.msra.mxu0 %v2842
    %3711 = vmatprep.subr.bf16.mxu0 %v2851
    %3712 = vmatpush1.bf16.msra.mxu0 %v2850
    %3713 = vmatprep.subr.bf16.mxu0 %v2859
    %3714 = vmatpush1.bf16.msra.mxu0 %v2858
    %3715 = vmatprep.subr.bf16.mxu0 %v2867
    %3716 = vmatpush1.bf16.msra.mxu0 %v2866
    %3717 = vmatprep.mubr.bf16.mxu0 %v823
    %3718 = vmatmul.mubr.bf16.gmra.mrb[0].mxu0 %v822
    %v3719 = vpop.f32.mrb[0].mxu0
    %v3720 = vadd.f32 %v3677, %v3719
    %v3721 = vpop.f32.mrb[0].mxu0
    %v3722 = vadd.f32 %v3679, %v3721
    %v3723 = vpop.f32.mrb[0].mxu0
    %v3724 = vadd.f32 %v3681, %v3723
    %v3725 = vpop.f32.mrb[0].mxu0
    %v3726 = vadd.f32 %v3683, %v3725
    %3727 = vdwg.mxu0
    %3728 = vmatprep.subr.bf16.mxu0 %v2365
    %3729 = vmatpush1.bf16.msra.mxu0 %v2364
    %3730 = vmatprep.subr.bf16.mxu0 %v2373
    %3731 = vmatpush1.bf16.msra.mxu0 %v2372
    %3732 = vmatprep.subr.bf16.mxu0 %v2381
    %3733 = vmatpush1.bf16.msra.mxu0 %v2380
    %3734 = vmatprep.subr.bf16.mxu0 %v2389
    %3735 = vmatpush1.bf16.msra.mxu0 %v2388
    %3736 = vmatprep.subr.bf16.mxu0 %v2397
    %3737 = vmatpush1.bf16.msra.mxu0 %v2396
    %3738 = vmatprep.subr.bf16.mxu0 %v2405
    %3739 = vmatpush1.bf16.msra.mxu0 %v2404
    %3740 = vmatprep.subr.bf16.mxu0 %v2413
    %3741 = vmatpush1.bf16.msra.mxu0 %v2412
    %3742 = vmatprep.subr.bf16.mxu0 %v2421
    %3743 = vmatpush1.bf16.msra.mxu0 %v2420
    %3744 = vmatprep.subr.bf16.mxu0 %v2429
    %3745 = vmatpush1.bf16.msra.mxu0 %v2428
    %3746 = vmatprep.subr.bf16.mxu0 %v2437
    %3747 = vmatpush1.bf16.msra.mxu0 %v2436
    %3748 = vmatprep.subr.bf16.mxu0 %v2445
    %3749 = vmatpush1.bf16.msra.mxu0 %v2444
    %3750 = vmatprep.subr.bf16.mxu0 %v2453
    %3751 = vmatpush1.bf16.msra.mxu0 %v2452
    %3752 = vmatprep.subr.bf16.mxu0 %v2461
    %3753 = vmatpush1.bf16.msra.mxu0 %v2460
    %3754 = vmatprep.subr.bf16.mxu0 %v2469
    %3755 = vmatpush1.bf16.msra.mxu0 %v2468
    %3756 = vmatprep.subr.bf16.mxu0 %v2477
    %3757 = vmatpush1.bf16.msra.mxu0 %v2476
    %3758 = vmatprep.subr.bf16.mxu0 %v2485
    %3759 = vmatpush1.bf16.msra.mxu0 %v2484
    %3760 = vmatprep.mubr.bf16.mxu0 %v817
    %3761 = vmatmul.mubr.bf16.gmra.mrb[0].mxu0 %v816
    %v3762 = vpop.f32.mrb[0].mxu0
    %v3763 = vadd.f32 0.0, %v3762
    %v3764 = vpop.f32.mrb[0].mxu0
    %v3765 = vadd.f32 0.0, %v3764
    %v3766 = vpop.f32.mrb[0].mxu0
    %v3767 = vadd.f32 0.0, %v3766
    %v3768 = vpop.f32.mrb[0].mxu0
    %v3769 = vadd.f32 0.0, %v3768
    %3770 = vdwg.mxu0
    %3771 = vmatprep.subr.bf16.mxu0 %v2493
    %3772 = vmatpush1.bf16.msra.mxu0 %v2492
    %3773 = vmatprep.subr.bf16.mxu0 %v2501
    %3774 = vmatpush1.bf16.msra.mxu0 %v2500
    %3775 = vmatprep.subr.bf16.mxu0 %v2509
    %3776 = vmatpush1.bf16.msra.mxu0 %v2508
    %3777 = vmatprep.subr.bf16.mxu0 %v2517
    %3778 = vmatpush1.bf16.msra.mxu0 %v2516
    %3779 = vmatprep.subr.bf16.mxu0 %v2525
    %3780 = vmatpush1.bf16.msra.mxu0 %v2524
    %3781 = vmatprep.subr.bf16.mxu0 %v2533
    %3782 = vmatpush1.bf16.msra.mxu0 %v2532
    %3783 = vmatprep.subr.bf16.mxu0 %v2541
    %3784 = vmatpush1.bf16.msra.mxu0 %v2540
    %3785 = vmatprep.subr.bf16.mxu0 %v2549
    %3786 = vmatpush1.bf16.msra.mxu0 %v2548
    %3787 = vmatprep.subr.bf16.mxu0 %v2557
    %3788 = vmatpush1.bf16.msra.mxu0 %v2556
    %3789 = vmatprep.subr.bf16.mxu0 %v2565
    %3790 = vmatpush1.bf16.msra.mxu0 %v2564
    %3791 = vmatprep.subr.bf16.mxu0 %v2573
    %3792 = vmatpush1.bf16.msra.mxu0 %v2572
    %3793 = vmatprep.subr.bf16.mxu0 %v2581
    %3794 = vmatpush1.bf16.msra.mxu0 %v2580
    %3795 = vmatprep.subr.bf16.mxu0 %v2589
    %3796 = vmatpush1.bf16.msra.mxu0 %v2588
    %3797 = vmatprep.subr.bf16.mxu0 %v2597
    %3798 = vmatpush1.bf16.msra.mxu0 %v2596
    %3799 = vmatprep.subr.bf16.mxu0 %v2605
    %3800 = vmatpush1.bf16.msra.mxu0 %v2604
    %3801 = vmatprep.subr.bf16.mxu0 %v2613
    %3802 = vmatpush1.bf16.msra.mxu0 %v2612
    %3803 = vmatprep.mubr.bf16.mxu0 %v819
    %3804 = vmatmul.mubr.bf16.gmra.mrb[0].mxu0 %v818
    %v3805 = vpop.f32.mrb[0].mxu0
    %v3806 = vadd.f32 %v3763, %v3805
    %v3807 = vpop.f32.mrb[0].mxu0
    %v3808 = vadd.f32 %v3765, %v3807
    %v3809 = vpop.f32.mrb[0].mxu0
    %v3810 = vadd.f32 %v3767, %v3809
    %v3811 = vpop.f32.mrb[0].mxu0
    %v3812 = vadd.f32 %v3769, %v3811
    %3813 = vdwg.mxu0
    %3814 = vmatprep.subr.bf16.mxu0 %v2621
    %3815 = vmatpush1.bf16.msra.mxu0 %v2620
    %3816 = vmatprep.subr.bf16.mxu0 %v2629
    %3817 = vmatpush1.bf16.msra.mxu0 %v2628
    %3818 = vmatprep.subr.bf16.mxu0 %v2637
    %3819 = vmatpush1.bf16.msra.mxu0 %v2636
    %3820 = vmatprep.subr.bf16.mxu0 %v2645
    %3821 = vmatpush1.bf16.msra.mxu0 %v2644
    %3822 = vmatprep.subr.bf16.mxu0 %v2653
    %3823 = vmatpush1.bf16.msra.mxu0 %v2652
    %3824 = vmatprep.subr.bf16.mxu0 %v2661
    %3825 = vmatpush1.bf16.msra.mxu0 %v2660
    %3826 = vmatprep.subr.bf16.mxu0 %v2669
    %3827 = vmatpush1.bf16.msra.mxu0 %v2668
    %3828 = vmatprep.subr.bf16.mxu0 %v2677
    %3829 = vmatpush1.bf16.msra.mxu0 %v2676
    %3830 = vmatprep.subr.bf16.mxu0 %v2685
    %3831 = vmatpush1.bf16.msra.mxu0 %v2684
    %3832 = vmatprep.subr.bf16.mxu0 %v2693
    %3833 = vmatpush1.bf16.msra.mxu0 %v2692
    %3834 = vmatprep.subr.bf16.mxu0 %v2701
    %3835 = vmatpush1.bf16.msra.mxu0 %v2700
    %3836 = vmatprep.subr.bf16.mxu0 %v2709
    %3837 = vmatpush1.bf16.msra.mxu0 %v2708
    %3838 = vmatprep.subr.bf16.mxu0 %v2717
    %3839 = vmatpush1.bf16.msra.mxu0 %v2716
    %3840 = vmatprep.subr.bf16.mxu0 %v2725
    %3841 = vmatpush1.bf16.msra.mxu0 %v2724
    %3842 = vmatprep.subr.bf16.mxu0 %v2733
    %3843 = vmatpush1.bf16.msra.mxu0 %v2732
    %3844 = vmatprep.subr.bf16.mxu0 %v2741
    %3845 = vmatpush1.bf16.msra.mxu0 %v2740
    %3846 = vmatprep.mubr.bf16.mxu0 %v821
    %3847 = vmatmul.mubr.bf16.gmra.mrb[0].mxu0 %v820
    %v3848 = vpop.f32.mrb[0].mxu0
    %v3849 = vadd.f32 %v3806, %v3848
    %v3850 = vpop.f32.mrb[0].mxu0
    %v3851 = vadd.f32 %v3808, %v3850
    %v3852 = vpop.f32.mrb[0].mxu0
    %v3853 = vadd.f32 %v3810, %v3852
    %v3854 = vpop.f32.mrb[0].mxu0
    %v3855 = vadd.f32 %v3812, %v3854
    %3856 = vdwg.mxu0
    %3857 = vmatprep.subr.bf16.mxu0 %v2749
    %3858 = vmatpush1.bf16.msra.mxu0 %v2748
    %3859 = vmatprep.subr.bf16.mxu0 %v2757
    %3860 = vmatpush1.bf16.msra.mxu0 %v2756
    %3861 = vmatprep.subr.bf16.mxu0 %v2765
    %3862 = vmatpush1.bf16.msra.mxu0 %v2764
    %3863 = vmatprep.subr.bf16.mxu0 %v2773
    %3864 = vmatpush1.bf16.msra.mxu0 %v2772
    %3865 = vmatprep.subr.bf16.mxu0 %v2781
    %3866 = vmatpush1.bf16.msra.mxu0 %v2780
    %3867 = vmatprep.subr.bf16.mxu0 %v2789
    %3868 = vmatpush1.bf16.msra.mxu0 %v2788
    %3869 = vmatprep.subr.bf16.mxu0 %v2797
    %3870 = vmatpush1.bf16.msra.mxu0 %v2796
    %3871 = vmatprep.subr.bf16.mxu0 %v2805
    %3872 = vmatpush1.bf16.msra.mxu0 %v2804
    %3873 = vmatprep.subr.bf16.mxu0 %v2813
    %3874 = vmatpush1.bf16.msra.mxu0 %v2812
    %3875 = vmatprep.subr.bf16.mxu0 %v2821
    %3876 = vmatpush1.bf16.msra.mxu0 %v2820
    %3877 = vmatprep.subr.bf16.mxu0 %v2829
    %3878 = vmatpush1.bf16.msra.mxu0 %v2828
    %3879 = vmatprep.subr.bf16.mxu0 %v2837
    %3880 = vmatpush1.bf16.msra.mxu0 %v2836
    %3881 = vmatprep.subr.bf16.mxu0 %v2845
    %3882 = vmatpush1.bf16.msra.mxu0 %v2844
    %3883 = vmatprep.subr.bf16.mxu0 %v2853
    %3884 = vmatpush1.bf16.msra.mxu0 %v2852
    %3885 = vmatprep.subr.bf16.mxu0 %v2861
    %3886 = vmatpush1.bf16.msra.mxu0 %v2860
    %3887 = vmatprep.subr.bf16.mxu0 %v2869
    %3888 = vmatpush1.bf16.msra.mxu0 %v2868
    %3889 = vmatprep.mubr.bf16.mxu0 %v823
    %3890 = vmatmul.mubr.bf16.gmra.mrb[0].mxu0 %v822
    %v3891 = vpop.f32.mrb[0].mxu0
    %v3892 = vadd.f32 %v3849, %v3891
    %v3893 = vpop.f32.mrb[0].mxu0
    %v3894 = vadd.f32 %v3851, %v3893
    %v3895 = vpop.f32.mrb[0].mxu0
    %v3896 = vadd.f32 %v3853, %v3895
    %v3897 = vpop.f32.mrb[0].mxu0
    %v3898 = vadd.f32 %v3855, %v3897
    %3899 = vdwg.mxu0
    %3900 = vmatprep.subr.bf16.mxu0 %v2367
    %3901 = vmatpush1.bf16.msra.mxu0 %v2366
    %3902 = vmatprep.subr.bf16.mxu0 %v2375
    %3903 = vmatpush1.bf16.msra.mxu0 %v2374
    %3904 = vmatprep.subr.bf16.mxu0 %v2383
    %3905 = vmatpush1.bf16.msra.mxu0 %v2382
    %3906 = vmatprep.subr.bf16.mxu0 %v2391
    %3907 = vmatpush1.bf16.msra.mxu0 %v2390
    %3908 = vmatprep.subr.bf16.mxu0 %v2399
    %3909 = vmatpush1.bf16.msra.mxu0 %v2398
    %3910 = vmatprep.subr.bf16.mxu0 %v2407
    %3911 = vmatpush1.bf16.msra.mxu0 %v2406
    %3912 = vmatprep.subr.bf16.mxu0 %v2415
    %3913 = vmatpush1.bf16.msra.mxu0 %v2414
    %3914 = vmatprep.subr.bf16.mxu0 %v2423
    %3915 = vmatpush1.bf16.msra.mxu0 %v2422
    %3916 = vmatprep.subr.bf16.mxu0 %v2431
    %3917 = vmatpush1.bf16.msra.mxu0 %v2430
    %3918 = vmatprep.subr.bf16.mxu0 %v2439
    %3919 = vmatpush1.bf16.msra.mxu0 %v2438
    %3920 = vmatprep.subr.bf16.mxu0 %v2447
    %3921 = vmatpush1.bf16.msra.mxu0 %v2446
    %3922 = vmatprep.subr.bf16.mxu0 %v2455
    %3923 = vmatpush1.bf16.msra.mxu0 %v2454
    %3924 = vmatprep.subr.bf16.mxu0 %v2463
    %3925 = vmatpush1.bf16.msra.mxu0 %v2462
    %3926 = vmatprep.subr.bf16.mxu0 %v2471
    %3927 = vmatpush1.bf16.msra.mxu0 %v2470
    %3928 = vmatprep.subr.bf16.mxu0 %v2479
    %3929 = vmatpush1.bf16.msra.mxu0 %v2478
    %3930 = vmatprep.subr.bf16.mxu0 %v2487
    %3931 = vmatpush1.bf16.msra.mxu0 %v2486
    %3932 = vmatprep.mubr.bf16.mxu0 %v817
    %3933 = vmatmul.mubr.bf16.gmra.mrb[0].mxu0 %v816
    %v3934 = vpop.f32.mrb[0].mxu0
    %v3935 = vadd.f32 0.0, %v3934
    %v3936 = vpop.f32.mrb[0].mxu0
    %v3937 = vadd.f32 0.0, %v3936
    %v3938 = vpop.f32.mrb[0].mxu0
    %v3939 = vadd.f32 0.0, %v3938
    %v3940 = vpop.f32.mrb[0].mxu0
    %v3941 = vadd.f32 0.0, %v3940
    %3942 = vdwg.mxu0
    %3943 = vmatprep.subr.bf16.mxu0 %v2495
    %3944 = vmatpush1.bf16.msra.mxu0 %v2494
    %3945 = vmatprep.subr.bf16.mxu0 %v2503
    %3946 = vmatpush1.bf16.msra.mxu0 %v2502
    %3947 = vmatprep.subr.bf16.mxu0 %v2511
    %3948 = vmatpush1.bf16.msra.mxu0 %v2510
    %3949 = vmatprep.subr.bf16.mxu0 %v2519
    %3950 = vmatpush1.bf16.msra.mxu0 %v2518
    %3951 = vmatprep.subr.bf16.mxu0 %v2527
    %3952 = vmatpush1.bf16.msra.mxu0 %v2526
    %3953 = vmatprep.subr.bf16.mxu0 %v2535
    %3954 = vmatpush1.bf16.msra.mxu0 %v2534
    %3955 = vmatprep.subr.bf16.mxu0 %v2543
    %3956 = vmatpush1.bf16.msra.mxu0 %v2542
    %3957 = vmatprep.subr.bf16.mxu0 %v2551
    %3958 = vmatpush1.bf16.msra.mxu0 %v2550
    %3959 = vmatprep.subr.bf16.mxu0 %v2559
    %3960 = vmatpush1.bf16.msra.mxu0 %v2558
    %3961 = vmatprep.subr.bf16.mxu0 %v2567
    %3962 = vmatpush1.bf16.msra.mxu0 %v2566
    %3963 = vmatprep.subr.bf16.mxu0 %v2575
    %3964 = vmatpush1.bf16.msra.mxu0 %v2574
    %3965 = vmatprep.subr.bf16.mxu0 %v2583
    %3966 = vmatpush1.bf16.msra.mxu0 %v2582
    %3967 = vmatprep.subr.bf16.mxu0 %v2591
    %3968 = vmatpush1.bf16.msra.mxu0 %v2590
    %3969 = vmatprep.subr.bf16.mxu0 %v2599
    %3970 = vmatpush1.bf16.msra.mxu0 %v2598
    %3971 = vmatprep.subr.bf16.mxu0 %v2607
    %3972 = vmatpush1.bf16.msra.mxu0 %v2606
    %3973 = vmatprep.subr.bf16.mxu0 %v2615
    %3974 = vmatpush1.bf16.msra.mxu0 %v2614
    %3975 = vmatprep.mubr.bf16.mxu0 %v819
    %3976 = vmatmul.mubr.bf16.gmra.mrb[0].mxu0 %v818
    %v3977 = vpop.f32.mrb[0].mxu0
    %v3978 = vadd.f32 %v3935, %v3977
    %v3979 = vpop.f32.mrb[0].mxu0
    %v3980 = vadd.f32 %v3937, %v3979
    %v3981 = vpop.f32.mrb[0].mxu0
    %v3982 = vadd.f32 %v3939, %v3981
    %v3983 = vpop.f32.mrb[0].mxu0
    %v3984 = vadd.f32 %v3941, %v3983
    %3985 = vdwg.mxu0
    %3986 = vmatprep.subr.bf16.mxu0 %v2623
    %3987 = vmatpush1.bf16.msra.mxu0 %v2622
    %3988 = vmatprep.subr.bf16.mxu0 %v2631
    %3989 = vmatpush1.bf16.msra.mxu0 %v2630
    %3990 = vmatprep.subr.bf16.mxu0 %v2639
    %3991 = vmatpush1.bf16.msra.mxu0 %v2638
    %3992 = vmatprep.subr.bf16.mxu0 %v2647
    %3993 = vmatpush1.bf16.msra.mxu0 %v2646
    %3994 = vmatprep.subr.bf16.mxu0 %v2655
    %3995 = vmatpush1.bf16.msra.mxu0 %v2654
    %3996 = vmatprep.subr.bf16.mxu0 %v2663
    %3997 = vmatpush1.bf16.msra.mxu0 %v2662
    %3998 = vmatprep.subr.bf16.mxu0 %v2671
    %3999 = vmatpush1.bf16.msra.mxu0 %v2670
    %4000 = vmatprep.subr.bf16.mxu0 %v2679
    %4001 = vmatpush1.bf16.msra.mxu0 %v2678
    %4002 = vmatprep.subr.bf16.mxu0 %v2687
    %4003 = vmatpush1.bf16.msra.mxu0 %v2686
    %4004 = vmatprep.subr.bf16.mxu0 %v2695
    %4005 = vmatpush1.bf16.msra.mxu0 %v2694
    %4006 = vmatprep.subr.bf16.mxu0 %v2703
    %4007 = vmatpush1.bf16.msra.mxu0 %v2702
    %4008 = vmatprep.subr.bf16.mxu0 %v2711
    %4009 = vmatpush1.bf16.msra.mxu0 %v2710
    %4010 = vmatprep.subr.bf16.mxu0 %v2719
    %4011 = vmatpush1.bf16.msra.mxu0 %v2718
    %4012 = vmatprep.subr.bf16.mxu0 %v2727
    %4013 = vmatpush1.bf16.msra.mxu0 %v2726
    %4014 = vmatprep.subr.bf16.mxu0 %v2735
    %4015 = vmatpush1.bf16.msra.mxu0 %v2734
    %4016 = vmatprep.subr.bf16.mxu0 %v2743
    %4017 = vmatpush1.bf16.msra.mxu0 %v2742
    %4018 = vmatprep.mubr.bf16.mxu0 %v821
    %4019 = vmatmul.mubr.bf16.gmra.mrb[0].mxu0 %v820
    %v4020 = vpop.f32.mrb[0].mxu0
    %v4021 = vadd.f32 %v3978, %v4020
    %v4022 = vpop.f32.mrb[0].mxu0
    %v4023 = vadd.f32 %v3980, %v4022
    %v4024 = vpop.f32.mrb[0].mxu0
    %v4025 = vadd.f32 %v3982, %v4024
    %v4026 = vpop.f32.mrb[0].mxu0
    %v4027 = vadd.f32 %v3984, %v4026
    %4028 = vdwg.mxu0
    %4029 = vmatprep.subr.bf16.mxu0 %v2751
    %4030 = vmatpush1.bf16.msra.mxu0 %v2750
    %4031 = vmatprep.subr.bf16.mxu0 %v2759
    %4032 = vmatpush1.bf16.msra.mxu0 %v2758
    %4033 = vmatprep.subr.bf16.mxu0 %v2767
    %4034 = vmatpush1.bf16.msra.mxu0 %v2766
    %4035 = vmatprep.subr.bf16.mxu0 %v2775
    %4036 = vmatpush1.bf16.msra.mxu0 %v2774
    %4037 = vmatprep.subr.bf16.mxu0 %v2783
    %4038 = vmatpush1.bf16.msra.mxu0 %v2782
    %4039 = vmatprep.subr.bf16.mxu0 %v2791
    %4040 = vmatpush1.bf16.msra.mxu0 %v2790
    %4041 = vmatprep.subr.bf16.mxu0 %v2799
    %4042 = vmatpush1.bf16.msra.mxu0 %v2798
    %4043 = vmatprep.subr.bf16.mxu0 %v2807
    %4044 = vmatpush1.bf16.msra.mxu0 %v2806
    %4045 = vmatprep.subr.bf16.mxu0 %v2815
    %4046 = vmatpush1.bf16.msra.mxu0 %v2814
    %4047 = vmatprep.subr.bf16.mxu0 %v2823
    %4048 = vmatpush1.bf16.msra.mxu0 %v2822
    %4049 = vmatprep.subr.bf16.mxu0 %v2831
    %4050 = vmatpush1.bf16.msra.mxu0 %v2830
    %4051 = vmatprep.subr.bf16.mxu0 %v2839
    %4052 = vmatpush1.bf16.msra.mxu0 %v2838
    %4053 = vmatprep.subr.bf16.mxu0 %v2847
    %4054 = vmatpush1.bf16.msra.mxu0 %v2846
    %4055 = vmatprep.subr.bf16.mxu0 %v2855
    %4056 = vmatpush1.bf16.msra.mxu0 %v2854
    %4057 = vmatprep.subr.bf16.mxu0 %v2863
    %4058 = vmatpush1.bf16.msra.mxu0 %v2862
    %4059 = vmatprep.subr.bf16.mxu0 %v2871
    %4060 = vmatpush1.bf16.msra.mxu0 %v2870
    %4061 = vmatprep.mubr.bf16.mxu0 %v823
    %4062 = vmatmul.mubr.bf16.gmra.mrb[0].mxu0 %v822
    %v4063 = vpop.f32.mrb[0].mxu0
    %v4064 = vadd.f32 %v4021, %v4063
    %v4065 = vpop.f32.mrb[0].mxu0
    %v4066 = vadd.f32 %v4023, %v4065
    %v4067 = vpop.f32.mrb[0].mxu0
    %v4068 = vadd.f32 %v4025, %v4067
    %v4069 = vpop.f32.mrb[0].mxu0
    %v4070 = vadd.f32 %v4027, %v4069
    %4071 = vdwg.mxu0
    %4072 = vmatprep.subr.bf16.mxu0 %v2361
    %4073 = vmatpush1.bf16.msra.mxu0 %v2360
    %4074 = vmatprep.subr.bf16.mxu0 %v2369
    %4075 = vmatpush1.bf16.msra.mxu0 %v2368
    %4076 = vmatprep.subr.bf16.mxu0 %v2377
    %4077 = vmatpush1.bf16.msra.mxu0 %v2376
    %4078 = vmatprep.subr.bf16.mxu0 %v2385
    %4079 = vmatpush1.bf16.msra.mxu0 %v2384
    %4080 = vmatprep.subr.bf16.mxu0 %v2393
    %4081 = vmatpush1.bf16.msra.mxu0 %v2392
    %4082 = vmatprep.subr.bf16.mxu0 %v2401
    %4083 = vmatpush1.bf16.msra.mxu0 %v2400
    %4084 = vmatprep.subr.bf16.mxu0 %v2409
    %4085 = vmatpush1.bf16.msra.mxu0 %v2408
    %4086 = vmatprep.subr.bf16.mxu0 %v2417
    %4087 = vmatpush1.bf16.msra.mxu0 %v2416
    %4088 = vmatprep.subr.bf16.mxu0 %v2425
    %4089 = vmatpush1.bf16.msra.mxu0 %v2424
    %4090 = vmatprep.subr.bf16.mxu0 %v2433
    %4091 = vmatpush1.bf16.msra.mxu0 %v2432
    %4092 = vmatprep.subr.bf16.mxu0 %v2441
    %4093 = vmatpush1.bf16.msra.mxu0 %v2440
    %4094 = vmatprep.subr.bf16.mxu0 %v2449
    %4095 = vmatpush1.bf16.msra.mxu0 %v2448
    %4096 = vmatprep.subr.bf16.mxu0 %v2457
    %4097 = vmatpush1.bf16.msra.mxu0 %v2456
    %4098 = vmatprep.subr.bf16.mxu0 %v2465
    %4099 = vmatpush1.bf16.msra.mxu0 %v2464
    %4100 = vmatprep.subr.bf16.mxu0 %v2473
    %4101 = vmatpush1.bf16.msra.mxu0 %v2472
    %4102 = vmatprep.subr.bf16.mxu0 %v2481
    %4103 = vmatpush1.bf16.msra.mxu0 %v2480
    %4104 = vmatprep.mubr.bf16.mxu0 %v777
    %4105 = vmatmul.mubr.bf16.gmra.mrb[0].mxu0 %v776
    %v4106 = vpop.f32.mrb[0].mxu0
    %v4107 = vadd.f32 %v3548, %v4106
    %v4108 = vpop.f32.mrb[0].mxu0
    %v4109 = vadd.f32 %v3550, %v4108
    %v4110 = vpop.f32.mrb[0].mxu0
    %v4111 = vadd.f32 %v3552, %v4110
    %v4112 = vpop.f32.mrb[0].mxu0
    %v4113 = vadd.f32 %v3554, %v4112
    %4114 = vdwg.mxu0
    %4115 = vmatprep.subr.bf16.mxu0 %v2489
    %4116 = vmatpush1.bf16.msra.mxu0 %v2488
    %4117 = vmatprep.subr.bf16.mxu0 %v2497
    %4118 = vmatpush1.bf16.msra.mxu0 %v2496
    %4119 = vmatprep.subr.bf16.mxu0 %v2505
    %4120 = vmatpush1.bf16.msra.mxu0 %v2504
    %4121 = vmatprep.subr.bf16.mxu0 %v2513
    %4122 = vmatpush1.bf16.msra.mxu0 %v2512
    %4123 = vmatprep.subr.bf16.mxu0 %v2521
    %4124 = vmatpush1.bf16.msra.mxu0 %v2520
    %4125 = vmatprep.subr.bf16.mxu0 %v2529
    %4126 = vmatpush1.bf16.msra.mxu0 %v2528
    %4127 = vmatprep.subr.bf16.mxu0 %v2537
    %4128 = vmatpush1.bf16.msra.mxu0 %v2536
    %4129 = vmatprep.subr.bf16.mxu0 %v2545
    %4130 = vmatpush1.bf16.msra.mxu0 %v2544
    %4131 = vmatprep.subr.bf16.mxu0 %v2553
    %4132 = vmatpush1.bf16.msra.mxu0 %v2552
    %4133 = vmatprep.subr.bf16.mxu0 %v2561
    %4134 = vmatpush1.bf16.msra.mxu0 %v2560
    %4135 = vmatprep.subr.bf16.mxu0 %v2569
    %4136 = vmatpush1.bf16.msra.mxu0 %v2568
    %4137 = vmatprep.subr.bf16.mxu0 %v2577
    %4138 = vmatpush1.bf16.msra.mxu0 %v2576
    %4139 = vmatprep.subr.bf16.mxu0 %v2585
    %4140 = vmatpush1.bf16.msra.mxu0 %v2584
    %4141 = vmatprep.subr.bf16.mxu0 %v2593
    %4142 = vmatpush1.bf16.msra.mxu0 %v2592
    %4143 = vmatprep.subr.bf16.mxu0 %v2601
    %4144 = vmatpush1.bf16.msra.mxu0 %v2600
    %4145 = vmatprep.subr.bf16.mxu0 %v2609
    %4146 = vmatpush1.bf16.msra.mxu0 %v2608
    %4147 = vmatprep.mubr.bf16.mxu0 %v779
    %4148 = vmatmul.mubr.bf16.gmra.mrb[0].mxu0 %v778
    %v4149 = vpop.f32.mrb[0].mxu0
    %v4150 = vadd.f32 %v4107, %v4149
    %v4151 = vpop.f32.mrb[0].mxu0
    %v4152 = vadd.f32 %v4109, %v4151
    %v4153 = vpop.f32.mrb[0].mxu0
    %v4154 = vadd.f32 %v4111, %v4153
    %v4155 = vpop.f32.mrb[0].mxu0
    %v4156 = vadd.f32 %v4113, %v4155
    %4157 = vdwg.mxu0
    %4158 = vmatprep.subr.bf16.mxu0 %v2617
    %4159 = vmatpush1.bf16.msra.mxu0 %v2616
    %4160 = vmatprep.subr.bf16.mxu0 %v2625
    %4161 = vmatpush1.bf16.msra.mxu0 %v2624
    %4162 = vmatprep.subr.bf16.mxu0 %v2633
    %4163 = vmatpush1.bf16.msra.mxu0 %v2632
    %4164 = vmatprep.subr.bf16.mxu0 %v2641
    %4165 = vmatpush1.bf16.msra.mxu0 %v2640
    %4166 = vmatprep.subr.bf16.mxu0 %v2649
    %4167 = vmatpush1.bf16.msra.mxu0 %v2648
    %4168 = vmatprep.subr.bf16.mxu0 %v2657
    %4169 = vmatpush1.bf16.msra.mxu0 %v2656
    %4170 = vmatprep.subr.bf16.mxu0 %v2665
    %4171 = vmatpush1.bf16.msra.mxu0 %v2664
    %4172 = vmatprep.subr.bf16.mxu0 %v2673
    %4173 = vmatpush1.bf16.msra.mxu0 %v2672
    %4174 = vmatprep.subr.bf16.mxu0 %v2681
    %4175 = vmatpush1.bf16.msra.mxu0 %v2680
    %4176 = vmatprep.subr.bf16.mxu0 %v2689
    %4177 = vmatpush1.bf16.msra.mxu0 %v2688
    %4178 = vmatprep.subr.bf16.mxu0 %v2697
    %4179 = vmatpush1.bf16.msra.mxu0 %v2696
    %4180 = vmatprep.subr.bf16.mxu0 %v2705
    %4181 = vmatpush1.bf16.msra.mxu0 %v2704
    %4182 = vmatprep.subr.bf16.mxu0 %v2713
    %4183 = vmatpush1.bf16.msra.mxu0 %v2712
    %4184 = vmatprep.subr.bf16.mxu0 %v2721
    %4185 = vmatpush1.bf16.msra.mxu0 %v2720
    %4186 = vmatprep.subr.bf16.mxu0 %v2729
    %4187 = vmatpush1.bf16.msra.mxu0 %v2728
    %4188 = vmatprep.subr.bf16.mxu0 %v2737
    %4189 = vmatpush1.bf16.msra.mxu0 %v2736
    %4190 = vmatprep.mubr.bf16.mxu0 %v781
    %4191 = vmatmul.mubr.bf16.gmra.mrb[0].mxu0 %v780
    %v4192 = vpop.f32.mrb[0].mxu0
    %v4193 = vadd.f32 %v4150, %v4192
    %v4194 = vpop.f32.mrb[0].mxu0
    %v4195 = vadd.f32 %v4152, %v4194
    %v4196 = vpop.f32.mrb[0].mxu0
    %v4197 = vadd.f32 %v4154, %v4196
    %v4198 = vpop.f32.mrb[0].mxu0
    %v4199 = vadd.f32 %v4156, %v4198
    %4200 = vdwg.mxu0
    %4201 = vmatprep.subr.bf16.mxu0 %v2745
    %4202 = vmatpush1.bf16.msra.mxu0 %v2744
    %4203 = vmatprep.subr.bf16.mxu0 %v2753
    %4204 = vmatpush1.bf16.msra.mxu0 %v2752
    %4205 = vmatprep.subr.bf16.mxu0 %v2761
    %4206 = vmatpush1.bf16.msra.mxu0 %v2760
    %4207 = vmatprep.subr.bf16.mxu0 %v2769
    %4208 = vmatpush1.bf16.msra.mxu0 %v2768
    %4209 = vmatprep.subr.bf16.mxu0 %v2777
    %4210 = vmatpush1.bf16.msra.mxu0 %v2776
    %4211 = vmatprep.subr.bf16.mxu0 %v2785
    %4212 = vmatpush1.bf16.msra.mxu0 %v2784
    %4213 = vmatprep.subr.bf16.mxu0 %v2793
    %4214 = vmatpush1.bf16.msra.mxu0 %v2792
    %4215 = vmatprep.subr.bf16.mxu0 %v2801
    %4216 = vmatpush1.bf16.msra.mxu0 %v2800
    %4217 = vmatprep.subr.bf16.mxu0 %v2809
    %4218 = vmatpush1.bf16.msra.mxu0 %v2808
    %4219 = vmatprep.subr.bf16.mxu0 %v2817
    %4220 = vmatpush1.bf16.msra.mxu0 %v2816
    %4221 = vmatprep.subr.bf16.mxu0 %v2825
    %4222 = vmatpush1.bf16.msra.mxu0 %v2824
    %4223 = vmatprep.subr.bf16.mxu0 %v2833
    %4224 = vmatpush1.bf16.msra.mxu0 %v2832
    %4225 = vmatprep.subr.bf16.mxu0 %v2841
    %4226 = vmatpush1.bf16.msra.mxu0 %v2840
    %4227 = vmatprep.subr.bf16.mxu0 %v2849
    %4228 = vmatpush1.bf16.msra.mxu0 %v2848
    %4229 = vmatprep.subr.bf16.mxu0 %v2857
    %4230 = vmatpush1.bf16.msra.mxu0 %v2856
    %4231 = vmatprep.subr.bf16.mxu0 %v2865
    %4232 = vmatpush1.bf16.msra.mxu0 %v2864
    %4233 = vmatprep.mubr.bf16.mxu0 %v783
    %4234 = vmatmul.mubr.bf16.gmra.mrb[0].mxu0 %v782
    %v4235 = vpop.f32.mrb[0].mxu0
    %v4236 = vadd.f32 %v4193, %v4235
    %v4237 = vpop.f32.mrb[0].mxu0
    %v4238 = vadd.f32 %v4195, %v4237
    %v4239 = vpop.f32.mrb[0].mxu0
    %v4240 = vadd.f32 %v4197, %v4239
    %v4241 = vpop.f32.mrb[0].mxu0
    %v4242 = vadd.f32 %v4199, %v4241
    %4243 = vdwg.mxu0
    %4244 = vmatprep.subr.bf16.mxu0 %v2363
    %4245 = vmatpush1.bf16.msra.mxu0 %v2362
    %4246 = vmatprep.subr.bf16.mxu0 %v2371
    %4247 = vmatpush1.bf16.msra.mxu0 %v2370
    %4248 = vmatprep.subr.bf16.mxu0 %v2379
    %4249 = vmatpush1.bf16.msra.mxu0 %v2378
    %4250 = vmatprep.subr.bf16.mxu0 %v2387
    %4251 = vmatpush1.bf16.msra.mxu0 %v2386
    %4252 = vmatprep.subr.bf16.mxu0 %v2395
    %4253 = vmatpush1.bf16.msra.mxu0 %v2394
    %4254 = vmatprep.subr.bf16.mxu0 %v2403
    %4255 = vmatpush1.bf16.msra.mxu0 %v2402
    %4256 = vmatprep.subr.bf16.mxu0 %v2411
    %4257 = vmatpush1.bf16.msra.mxu0 %v2410
    %4258 = vmatprep.subr.bf16.mxu0 %v2419
    %4259 = vmatpush1.bf16.msra.mxu0 %v2418
    %4260 = vmatprep.subr.bf16.mxu0 %v2427
    %4261 = vmatpush1.bf16.msra.mxu0 %v2426
    %4262 = vmatprep.subr.bf16.mxu0 %v2435
    %4263 = vmatpush1.bf16.msra.mxu0 %v2434
    %4264 = vmatprep.subr.bf16.mxu0 %v2443
    %4265 = vmatpush1.bf16.msra.mxu0 %v2442
    %4266 = vmatprep.subr.bf16.mxu0 %v2451
    %4267 = vmatpush1.bf16.msra.mxu0 %v2450
    %4268 = vmatprep.subr.bf16.mxu0 %v2459
    %4269 = vmatpush1.bf16.msra.mxu0 %v2458
    %4270 = vmatprep.subr.bf16.mxu0 %v2467
    %4271 = vmatpush1.bf16.msra.mxu0 %v2466
    %4272 = vmatprep.subr.bf16.mxu0 %v2475
    %4273 = vmatpush1.bf16.msra.mxu0 %v2474
    %4274 = vmatprep.subr.bf16.mxu0 %v2483
    %4275 = vmatpush1.bf16.msra.mxu0 %v2482
    %4276 = vmatprep.mubr.bf16.mxu0 %v777
    %4277 = vmatmul.mubr.bf16.gmra.mrb[0].mxu0 %v776
    %v4278 = vpop.f32.mrb[0].mxu0
    %v4279 = vadd.f32 %v3720, %v4278
    %v4280 = vpop.f32.mrb[0].mxu0
    %v4281 = vadd.f32 %v3722, %v4280
    %v4282 = vpop.f32.mrb[0].mxu0
    %v4283 = vadd.f32 %v3724, %v4282
    %v4284 = vpop.f32.mrb[0].mxu0
    %v4285 = vadd.f32 %v3726, %v4284
    %4286 = vdwg.mxu0
    %4287 = vmatprep.subr.bf16.mxu0 %v2491
    %4288 = vmatpush1.bf16.msra.mxu0 %v2490
    %4289 = vmatprep.subr.bf16.mxu0 %v2499
    %4290 = vmatpush1.bf16.msra.mxu0 %v2498
    %4291 = vmatprep.subr.bf16.mxu0 %v2507
    %4292 = vmatpush1.bf16.msra.mxu0 %v2506
    %4293 = vmatprep.subr.bf16.mxu0 %v2515
    %4294 = vmatpush1.bf16.msra.mxu0 %v2514
    %4295 = vmatprep.subr.bf16.mxu0 %v2523
    %4296 = vmatpush1.bf16.msra.mxu0 %v2522
    %4297 = vmatprep.subr.bf16.mxu0 %v2531
    %4298 = vmatpush1.bf16.msra.mxu0 %v2530
    %4299 = vmatprep.subr.bf16.mxu0 %v2539
    %4300 = vmatpush1.bf16.msra.mxu0 %v2538
    %4301 = vmatprep.subr.bf16.mxu0 %v2547
    %4302 = vmatpush1.bf16.msra.mxu0 %v2546
    %4303 = vmatprep.subr.bf16.mxu0 %v2555
    %4304 = vmatpush1.bf16.msra.mxu0 %v2554
    %4305 = vmatprep.subr.bf16.mxu0 %v2563
    %4306 = vmatpush1.bf16.msra.mxu0 %v2562
    %4307 = vmatprep.subr.bf16.mxu0 %v2571
    %4308 = vmatpush1.bf16.msra.mxu0 %v2570
    %4309 = vmatprep.subr.bf16.mxu0 %v2579
    %4310 = vmatpush1.bf16.msra.mxu0 %v2578
    %4311 = vmatprep.subr.bf16.mxu0 %v2587
    %4312 = vmatpush1.bf16.msra.mxu0 %v2586
    %4313 = vmatprep.subr.bf16.mxu0 %v2595
    %4314 = vmatpush1.bf16.msra.mxu0 %v2594
    %4315 = vmatprep.subr.bf16.mxu0 %v2603
    %4316 = vmatpush1.bf16.msra.mxu0 %v2602
    %4317 = vmatprep.subr.bf16.mxu0 %v2611
    %4318 = vmatpush1.bf16.msra.mxu0 %v2610
    %4319 = vmatprep.mubr.bf16.mxu0 %v779
    %4320 = vmatmul.mubr.bf16.gmra.mrb[0].mxu0 %v778
    %v4321 = vpop.f32.mrb[0].mxu0
    %v4322 = vadd.f32 %v4279, %v4321
    %v4323 = vpop.f32.mrb[0].mxu0
    %v4324 = vadd.f32 %v4281, %v4323
    %v4325 = vpop.f32.mrb[0].mxu0
    %v4326 = vadd.f32 %v4283, %v4325
    %v4327 = vpop.f32.mrb[0].mxu0
    %v4328 = vadd.f32 %v4285, %v4327
    %4329 = vdwg.mxu0
    %4330 = vmatprep.subr.bf16.mxu0 %v2619
    %4331 = vmatpush1.bf16.msra.mxu0 %v2618
    %4332 = vmatprep.subr.bf16.mxu0 %v2627
    %4333 = vmatpush1.bf16.msra.mxu0 %v2626
    %4334 = vmatprep.subr.bf16.mxu0 %v2635
    %4335 = vmatpush1.bf16.msra.mxu0 %v2634
    %4336 = vmatprep.subr.bf16.mxu0 %v2643
    %4337 = vmatpush1.bf16.msra.mxu0 %v2642
    %4338 = vmatprep.subr.bf16.mxu0 %v2651
    %4339 = vmatpush1.bf16.msra.mxu0 %v2650
    %4340 = vmatprep.subr.bf16.mxu0 %v2659
    %4341 = vmatpush1.bf16.msra.mxu0 %v2658
    %4342 = vmatprep.subr.bf16.mxu0 %v2667
    %4343 = vmatpush1.bf16.msra.mxu0 %v2666
    %4344 = vmatprep.subr.bf16.mxu0 %v2675
    %4345 = vmatpush1.bf16.msra.mxu0 %v2674
    %4346 = vmatprep.subr.bf16.mxu0 %v2683
    %4347 = vmatpush1.bf16.msra.mxu0 %v2682
    %4348 = vmatprep.subr.bf16.mxu0 %v2691
    %4349 = vmatpush1.bf16.msra.mxu0 %v2690
    %4350 = vmatprep.subr.bf16.mxu0 %v2699
    %4351 = vmatpush1.bf16.msra.mxu0 %v2698
    %4352 = vmatprep.subr.bf16.mxu0 %v2707
    %4353 = vmatpush1.bf16.msra.mxu0 %v2706
    %4354 = vmatprep.subr.bf16.mxu0 %v2715
    %4355 = vmatpush1.bf16.msra.mxu0 %v2714
    %4356 = vmatprep.subr.bf16.mxu0 %v2723
    %4357 = vmatpush1.bf16.msra.mxu0 %v2722
    %4358 = vmatprep.subr.bf16.mxu0 %v2731
    %4359 = vmatpush1.bf16.msra.mxu0 %v2730
    %4360 = vmatprep.subr.bf16.mxu0 %v2739
    %4361 = vmatpush1.bf16.msra.mxu0 %v2738
    %4362 = vmatprep.mubr.bf16.mxu0 %v781
    %4363 = vmatmul.mubr.bf16.gmra.mrb[0].mxu0 %v780
    %v4364 = vpop.f32.mrb[0].mxu0
    %v4365 = vadd.f32 %v4322, %v4364
    %v4366 = vpop.f32.mrb[0].mxu0
    %v4367 = vadd.f32 %v4324, %v4366
    %v4368 = vpop.f32.mrb[0].mxu0
    %v4369 = vadd.f32 %v4326, %v4368
    %v4370 = vpop.f32.mrb[0].mxu0
    %v4371 = vadd.f32 %v4328, %v4370
    %4372 = vdwg.mxu0
    %4373 = vmatprep.subr.bf16.mxu0 %v2747
    %4374 = vmatpush1.bf16.msra.mxu0 %v2746
    %4375 = vmatprep.subr.bf16.mxu0 %v2755
    %4376 = vmatpush1.bf16.msra.mxu0 %v2754
    %4377 = vmatprep.subr.bf16.mxu0 %v2763
    %4378 = vmatpush1.bf16.msra.mxu0 %v2762
    %4379 = vmatprep.subr.bf16.mxu0 %v2771
    %4380 = vmatpush1.bf16.msra.mxu0 %v2770
    %4381 = vmatprep.subr.bf16.mxu0 %v2779
    %4382 = vmatpush1.bf16.msra.mxu0 %v2778
    %4383 = vmatprep.subr.bf16.mxu0 %v2787
    %4384 = vmatpush1.bf16.msra.mxu0 %v2786
    %4385 = vmatprep.subr.bf16.mxu0 %v2795
    %4386 = vmatpush1.bf16.msra.mxu0 %v2794
    %4387 = vmatprep.subr.bf16.mxu0 %v2803
    %4388 = vmatpush1.bf16.msra.mxu0 %v2802
    %4389 = vmatprep.subr.bf16.mxu0 %v2811
    %4390 = vmatpush1.bf16.msra.mxu0 %v2810
    %4391 = vmatprep.subr.bf16.mxu0 %v2819
    %4392 = vmatpush1.bf16.msra.mxu0 %v2818
    %4393 = vmatprep.subr.bf16.mxu0 %v2827
    %4394 = vmatpush1.bf16.msra.mxu0 %v2826
    %4395 = vmatprep.subr.bf16.mxu0 %v2835
    %4396 = vmatpush1.bf16.msra.mxu0 %v2834
    %4397 = vmatprep.subr.bf16.mxu0 %v2843
    %4398 = vmatpush1.bf16.msra.mxu0 %v2842
    %4399 = vmatprep.subr.bf16.mxu0 %v2851
    %4400 = vmatpush1.bf16.msra.mxu0 %v2850
    %4401 = vmatprep.subr.bf16.mxu0 %v2859
    %4402 = vmatpush1.bf16.msra.mxu0 %v2858
    %4403 = vmatprep.subr.bf16.mxu0 %v2867
    %4404 = vmatpush1.bf16.msra.mxu0 %v2866
    %4405 = vmatprep.mubr.bf16.mxu0 %v783
    %4406 = vmatmul.mubr.bf16.gmra.mrb[0].mxu0 %v782
    %v4407 = vpop.f32.mrb[0].mxu0
    %v4408 = vadd.f32 %v4365, %v4407
    %v4409 = vpop.f32.mrb[0].mxu0
    %v4410 = vadd.f32 %v4367, %v4409
    %v4411 = vpop.f32.mrb[0].mxu0
    %v4412 = vadd.f32 %v4369, %v4411
    %v4413 = vpop.f32.mrb[0].mxu0
    %v4414 = vadd.f32 %v4371, %v4413
    %4415 = vdwg.mxu0
    %4416 = vmatprep.subr.bf16.mxu0 %v2365
    %4417 = vmatpush1.bf16.msra.mxu0 %v2364
    %4418 = vmatprep.subr.bf16.mxu0 %v2373
    %4419 = vmatpush1.bf16.msra.mxu0 %v2372
    %4420 = vmatprep.subr.bf16.mxu0 %v2381
    %4421 = vmatpush1.bf16.msra.mxu0 %v2380
    %4422 = vmatprep.subr.bf16.mxu0 %v2389
    %4423 = vmatpush1.bf16.msra.mxu0 %v2388
    %4424 = vmatprep.subr.bf16.mxu0 %v2397
    %4425 = vmatpush1.bf16.msra.mxu0 %v2396
    %4426 = vmatprep.subr.bf16.mxu0 %v2405
    %4427 = vmatpush1.bf16.msra.mxu0 %v2404
    %4428 = vmatprep.subr.bf16.mxu0 %v2413
    %4429 = vmatpush1.bf16.msra.mxu0 %v2412
    %4430 = vmatprep.subr.bf16.mxu0 %v2421
    %4431 = vmatpush1.bf16.msra.mxu0 %v2420
    %4432 = vmatprep.subr.bf16.mxu0 %v2429
    %4433 = vmatpush1.bf16.msra.mxu0 %v2428
    %4434 = vmatprep.subr.bf16.mxu0 %v2437
    %4435 = vmatpush1.bf16.msra.mxu0 %v2436
    %4436 = vmatprep.subr.bf16.mxu0 %v2445
    %4437 = vmatpush1.bf16.msra.mxu0 %v2444
    %4438 = vmatprep.subr.bf16.mxu0 %v2453
    %4439 = vmatpush1.bf16.msra.mxu0 %v2452
    %4440 = vmatprep.subr.bf16.mxu0 %v2461
    %4441 = vmatpush1.bf16.msra.mxu0 %v2460
    %4442 = vmatprep.subr.bf16.mxu0 %v2469
    %4443 = vmatpush1.bf16.msra.mxu0 %v2468
    %4444 = vmatprep.subr.bf16.mxu0 %v2477
    %4445 = vmatpush1.bf16.msra.mxu0 %v2476
    %4446 = vmatprep.subr.bf16.mxu0 %v2485
    %4447 = vmatpush1.bf16.msra.mxu0 %v2484
    %4448 = vmatprep.mubr.bf16.mxu0 %v777
    %4449 = vmatmul.mubr.bf16.gmra.mrb[0].mxu0 %v776
    %v4450 = vpop.f32.mrb[0].mxu0
    %v4451 = vadd.f32 %v3892, %v4450
    %v4452 = vpop.f32.mrb[0].mxu0
    %v4453 = vadd.f32 %v3894, %v4452
    %v4454 = vpop.f32.mrb[0].mxu0
    %v4455 = vadd.f32 %v3896, %v4454
    %v4456 = vpop.f32.mrb[0].mxu0
    %v4457 = vadd.f32 %v3898, %v4456
    %4458 = vdwg.mxu0
    %4459 = vmatprep.subr.bf16.mxu0 %v2493
    %4460 = vmatpush1.bf16.msra.mxu0 %v2492
    %4461 = vmatprep.subr.bf16.mxu0 %v2501
    %4462 = vmatpush1.bf16.msra.mxu0 %v2500
    %4463 = vmatprep.subr.bf16.mxu0 %v2509
    %4464 = vmatpush1.bf16.msra.mxu0 %v2508
    %4465 = vmatprep.subr.bf16.mxu0 %v2517
    %4466 = vmatpush1.bf16.msra.mxu0 %v2516
    %4467 = vmatprep.subr.bf16.mxu0 %v2525
    %4468 = vmatpush1.bf16.msra.mxu0 %v2524
    %4469 = vmatprep.subr.bf16.mxu0 %v2533
    %4470 = vmatpush1.bf16.msra.mxu0 %v2532
    %4471 = vmatprep.subr.bf16.mxu0 %v2541
    %4472 = vmatpush1.bf16.msra.mxu0 %v2540
    %4473 = vmatprep.subr.bf16.mxu0 %v2549
    %4474 = vmatpush1.bf16.msra.mxu0 %v2548
    %4475 = vmatprep.subr.bf16.mxu0 %v2557
    %4476 = vmatpush1.bf16.msra.mxu0 %v2556
    %4477 = vmatprep.subr.bf16.mxu0 %v2565
    %4478 = vmatpush1.bf16.msra.mxu0 %v2564
    %4479 = vmatprep.subr.bf16.mxu0 %v2573
    %4480 = vmatpush1.bf16.msra.mxu0 %v2572
    %4481 = vmatprep.subr.bf16.mxu0 %v2581
    %4482 = vmatpush1.bf16.msra.mxu0 %v2580
    %4483 = vmatprep.subr.bf16.mxu0 %v2589
    %4484 = vmatpush1.bf16.msra.mxu0 %v2588
    %4485 = vmatprep.subr.bf16.mxu0 %v2597
    %4486 = vmatpush1.bf16.msra.mxu0 %v2596
    %4487 = vmatprep.subr.bf16.mxu0 %v2605
    %4488 = vmatpush1.bf16.msra.mxu0 %v2604
    %4489 = vmatprep.subr.bf16.mxu0 %v2613
    %4490 = vmatpush1.bf16.msra.mxu0 %v2612
    %4491 = vmatprep.mubr.bf16.mxu0 %v779
    %4492 = vmatmul.mubr.bf16.gmra.mrb[0].mxu0 %v778
    %v4493 = vpop.f32.mrb[0].mxu0
    %v4494 = vadd.f32 %v4451, %v4493
    %v4495 = vpop.f32.mrb[0].mxu0
    %v4496 = vadd.f32 %v4453, %v4495
    %v4497 = vpop.f32.mrb[0].mxu0
    %v4498 = vadd.f32 %v4455, %v4497
    %v4499 = vpop.f32.mrb[0].mxu0
    %v4500 = vadd.f32 %v4457, %v4499
    %4501 = vdwg.mxu0
    %4502 = vmatprep.subr.bf16.mxu0 %v2621
    %4503 = vmatpush1.bf16.msra.mxu0 %v2620
    %4504 = vmatprep.subr.bf16.mxu0 %v2629
    %4505 = vmatpush1.bf16.msra.mxu0 %v2628
    %4506 = vmatprep.subr.bf16.mxu0 %v2637
    %4507 = vmatpush1.bf16.msra.mxu0 %v2636
    %4508 = vmatprep.subr.bf16.mxu0 %v2645
    %4509 = vmatpush1.bf16.msra.mxu0 %v2644
    %4510 = vmatprep.subr.bf16.mxu0 %v2653
    %4511 = vmatpush1.bf16.msra.mxu0 %v2652
    %4512 = vmatprep.subr.bf16.mxu0 %v2661
    %4513 = vmatpush1.bf16.msra.mxu0 %v2660
    %4514 = vmatprep.subr.bf16.mxu0 %v2669
    %4515 = vmatpush1.bf16.msra.mxu0 %v2668
    %4516 = vmatprep.subr.bf16.mxu0 %v2677
    %4517 = vmatpush1.bf16.msra.mxu0 %v2676
    %4518 = vmatprep.subr.bf16.mxu0 %v2685
    %4519 = vmatpush1.bf16.msra.mxu0 %v2684
    %4520 = vmatprep.subr.bf16.mxu0 %v2693
    %4521 = vmatpush1.bf16.msra.mxu0 %v2692
    %4522 = vmatprep.subr.bf16.mxu0 %v2701
    %4523 = vmatpush1.bf16.msra.mxu0 %v2700
    %4524 = vmatprep.subr.bf16.mxu0 %v2709
    %4525 = vmatpush1.bf16.msra.mxu0 %v2708
    %4526 = vmatprep.subr.bf16.mxu0 %v2717
    %4527 = vmatpush1.bf16.msra.mxu0 %v2716
    %4528 = vmatprep.subr.bf16.mxu0 %v2725
    %4529 = vmatpush1.bf16.msra.mxu0 %v2724
    %4530 = vmatprep.subr.bf16.mxu0 %v2733
    %4531 = vmatpush1.bf16.msra.mxu0 %v2732
    %4532 = vmatprep.subr.bf16.mxu0 %v2741
    %4533 = vmatpush1.bf16.msra.mxu0 %v2740
    %4534 = vmatprep.mubr.bf16.mxu0 %v781
    %4535 = vmatmul.mubr.bf16.gmra.mrb[0].mxu0 %v780
    %v4536 = vpop.f32.mrb[0].mxu0
    %v4537 = vadd.f32 %v4494, %v4536
    %v4538 = vpop.f32.mrb[0].mxu0
    %v4539 = vadd.f32 %v4496, %v4538
    %v4540 = vpop.f32.mrb[0].mxu0
    %v4541 = vadd.f32 %v4498, %v4540
    %v4542 = vpop.f32.mrb[0].mxu0
    %v4543 = vadd.f32 %v4500, %v4542
    %4544 = vdwg.mxu0
    %4545 = vmatprep.subr.bf16.mxu0 %v2749
    %4546 = vmatpush1.bf16.msra.mxu0 %v2748
    %4547 = vmatprep.subr.bf16.mxu0 %v2757
    %4548 = vmatpush1.bf16.msra.mxu0 %v2756
    %4549 = vmatprep.subr.bf16.mxu0 %v2765
    %4550 = vmatpush1.bf16.msra.mxu0 %v2764
    %4551 = vmatprep.subr.bf16.mxu0 %v2773
    %4552 = vmatpush1.bf16.msra.mxu0 %v2772
    %4553 = vmatprep.subr.bf16.mxu0 %v2781
    %4554 = vmatpush1.bf16.msra.mxu0 %v2780
    %4555 = vmatprep.subr.bf16.mxu0 %v2789
    %4556 = vmatpush1.bf16.msra.mxu0 %v2788
    %4557 = vmatprep.subr.bf16.mxu0 %v2797
    %4558 = vmatpush1.bf16.msra.mxu0 %v2796
    %4559 = vmatprep.subr.bf16.mxu0 %v2805
    %4560 = vmatpush1.bf16.msra.mxu0 %v2804
    %4561 = vmatprep.subr.bf16.mxu0 %v2813
    %4562 = vmatpush1.bf16.msra.mxu0 %v2812
    %4563 = vmatprep.subr.bf16.mxu0 %v2821
    %4564 = vmatpush1.bf16.msra.mxu0 %v2820
    %4565 = vmatprep.subr.bf16.mxu0 %v2829
    %4566 = vmatpush1.bf16.msra.mxu0 %v2828
    %4567 = vmatprep.subr.bf16.mxu0 %v2837
    %4568 = vmatpush1.bf16.msra.mxu0 %v2836
    %4569 = vmatprep.subr.bf16.mxu0 %v2845
    %4570 = vmatpush1.bf16.msra.mxu0 %v2844
    %4571 = vmatprep.subr.bf16.mxu0 %v2853
    %4572 = vmatpush1.bf16.msra.mxu0 %v2852
    %4573 = vmatprep.subr.bf16.mxu0 %v2861
    %4574 = vmatpush1.bf16.msra.mxu0 %v2860
    %4575 = vmatprep.subr.bf16.mxu0 %v2869
    %4576 = vmatpush1.bf16.msra.mxu0 %v2868
    %4577 = vmatprep.mubr.bf16.mxu0 %v783
    %4578 = vmatmul.mubr.bf16.gmra.mrb[0].mxu0 %v782
    %v4579 = vpop.f32.mrb[0].mxu0
    %v4580 = vadd.f32 %v4537, %v4579
    %v4581 = vpop.f32.mrb[0].mxu0
    %v4582 = vadd.f32 %v4539, %v4581
    %v4583 = vpop.f32.mrb[0].mxu0
    %v4584 = vadd.f32 %v4541, %v4583
    %v4585 = vpop.f32.mrb[0].mxu0
    %v4586 = vadd.f32 %v4543, %v4585
    %4587 = vdwg.mxu0
    %4588 = vmatprep.subr.bf16.mxu0 %v2367
    %4589 = vmatpush1.bf16.msra.mxu0 %v2366
    %4590 = vmatprep.subr.bf16.mxu0 %v2375
    %4591 = vmatpush1.bf16.msra.mxu0 %v2374
    %4592 = vmatprep.subr.bf16.mxu0 %v2383
    %4593 = vmatpush1.bf16.msra.mxu0 %v2382
    %4594 = vmatprep.subr.bf16.mxu0 %v2391
    %4595 = vmatpush1.bf16.msra.mxu0 %v2390
    %4596 = vmatprep.subr.bf16.mxu0 %v2399
    %4597 = vmatpush1.bf16.msra.mxu0 %v2398
    %4598 = vmatprep.subr.bf16.mxu0 %v2407
    %4599 = vmatpush1.bf16.msra.mxu0 %v2406
    %4600 = vmatprep.subr.bf16.mxu0 %v2415
    %4601 = vmatpush1.bf16.msra.mxu0 %v2414
    %4602 = vmatprep.subr.bf16.mxu0 %v2423
    %4603 = vmatpush1.bf16.msra.mxu0 %v2422
    %4604 = vmatprep.subr.bf16.mxu0 %v2431
    %4605 = vmatpush1.bf16.msra.mxu0 %v2430
    %4606 = vmatprep.subr.bf16.mxu0 %v2439
    %4607 = vmatpush1.bf16.msra.mxu0 %v2438
    %4608 = vmatprep.subr.bf16.mxu0 %v2447
    %4609 = vmatpush1.bf16.msra.mxu0 %v2446
    %4610 = vmatprep.subr.bf16.mxu0 %v2455
    %4611 = vmatpush1.bf16.msra.mxu0 %v2454
    %4612 = vmatprep.subr.bf16.mxu0 %v2463
    %4613 = vmatpush1.bf16.msra.mxu0 %v2462
    %4614 = vmatprep.subr.bf16.mxu0 %v2471
    %4615 = vmatpush1.bf16.msra.mxu0 %v2470
    %4616 = vmatprep.subr.bf16.mxu0 %v2479
    %4617 = vmatpush1.bf16.msra.mxu0 %v2478
    %4618 = vmatprep.subr.bf16.mxu0 %v2487
    %4619 = vmatpush1.bf16.msra.mxu0 %v2486
    %4620 = vmatprep.mubr.bf16.mxu0 %v777
    %4621 = vmatmul.mubr.bf16.gmra.mrb[0].mxu0 %v776
    %v4622 = vpop.f32.mrb[0].mxu0
    %v4623 = vadd.f32 %v4064, %v4622
    %v4624 = vpop.f32.mrb[0].mxu0
    %v4625 = vadd.f32 %v4066, %v4624
    %v4626 = vpop.f32.mrb[0].mxu0
    %v4627 = vadd.f32 %v4068, %v4626
    %v4628 = vpop.f32.mrb[0].mxu0
    %v4629 = vadd.f32 %v4070, %v4628
    %4630 = vdwg.mxu0
    %4631 = vmatprep.subr.bf16.mxu0 %v2495
    %4632 = vmatpush1.bf16.msra.mxu0 %v2494
    %4633 = vmatprep.subr.bf16.mxu0 %v2503
    %4634 = vmatpush1.bf16.msra.mxu0 %v2502
    %4635 = vmatprep.subr.bf16.mxu0 %v2511
    %4636 = vmatpush1.bf16.msra.mxu0 %v2510
    %4637 = vmatprep.subr.bf16.mxu0 %v2519
    %4638 = vmatpush1.bf16.msra.mxu0 %v2518
    %4639 = vmatprep.subr.bf16.mxu0 %v2527
    %4640 = vmatpush1.bf16.msra.mxu0 %v2526
    %4641 = vmatprep.subr.bf16.mxu0 %v2535
    %4642 = vmatpush1.bf16.msra.mxu0 %v2534
    %4643 = vmatprep.subr.bf16.mxu0 %v2543
    %4644 = vmatpush1.bf16.msra.mxu0 %v2542
    %4645 = vmatprep.subr.bf16.mxu0 %v2551
    %4646 = vmatpush1.bf16.msra.mxu0 %v2550
    %4647 = vmatprep.subr.bf16.mxu0 %v2559
    %4648 = vmatpush1.bf16.msra.mxu0 %v2558
    %4649 = vmatprep.subr.bf16.mxu0 %v2567
    %4650 = vmatpush1.bf16.msra.mxu0 %v2566
    %4651 = vmatprep.subr.bf16.mxu0 %v2575
    %4652 = vmatpush1.bf16.msra.mxu0 %v2574
    %4653 = vmatprep.subr.bf16.mxu0 %v2583
    %4654 = vmatpush1.bf16.msra.mxu0 %v2582
    %4655 = vmatprep.subr.bf16.mxu0 %v2591
    %4656 = vmatpush1.bf16.msra.mxu0 %v2590
    %4657 = vmatprep.subr.bf16.mxu0 %v2599
    %4658 = vmatpush1.bf16.msra.mxu0 %v2598
    %4659 = vmatprep.subr.bf16.mxu0 %v2607
    %4660 = vmatpush1.bf16.msra.mxu0 %v2606
    %4661 = vmatprep.subr.bf16.mxu0 %v2615
    %4662 = vmatpush1.bf16.msra.mxu0 %v2614
    %4663 = vmatprep.mubr.bf16.mxu0 %v779
    %4664 = vmatmul.mubr.bf16.gmra.mrb[0].mxu0 %v778
    %v4665 = vpop.f32.mrb[0].mxu0
    %v4666 = vadd.f32 %v4623, %v4665
    %v4667 = vpop.f32.mrb[0].mxu0
    %v4668 = vadd.f32 %v4625, %v4667
    %v4669 = vpop.f32.mrb[0].mxu0
    %v4670 = vadd.f32 %v4627, %v4669
    %v4671 = vpop.f32.mrb[0].mxu0
    %v4672 = vadd.f32 %v4629, %v4671
    %4673 = vdwg.mxu0
    %4674 = vmatprep.subr.bf16.mxu0 %v2623
    %4675 = vmatpush1.bf16.msra.mxu0 %v2622
    %4676 = vmatprep.subr.bf16.mxu0 %v2631
    %4677 = vmatpush1.bf16.msra.mxu0 %v2630
    %4678 = vmatprep.subr.bf16.mxu0 %v2639
    %4679 = vmatpush1.bf16.msra.mxu0 %v2638
    %4680 = vmatprep.subr.bf16.mxu0 %v2647
    %4681 = vmatpush1.bf16.msra.mxu0 %v2646
    %4682 = vmatprep.subr.bf16.mxu0 %v2655
    %4683 = vmatpush1.bf16.msra.mxu0 %v2654
    %4684 = vmatprep.subr.bf16.mxu0 %v2663
    %4685 = vmatpush1.bf16.msra.mxu0 %v2662
    %4686 = vmatprep.subr.bf16.mxu0 %v2671
    %4687 = vmatpush1.bf16.msra.mxu0 %v2670
    %4688 = vmatprep.subr.bf16.mxu0 %v2679
    %4689 = vmatpush1.bf16.msra.mxu0 %v2678
    %4690 = vmatprep.subr.bf16.mxu0 %v2687
    %4691 = vmatpush1.bf16.msra.mxu0 %v2686
    %4692 = vmatprep.subr.bf16.mxu0 %v2695
    %4693 = vmatpush1.bf16.msra.mxu0 %v2694
    %4694 = vmatprep.subr.bf16.mxu0 %v2703
    %4695 = vmatpush1.bf16.msra.mxu0 %v2702
    %4696 = vmatprep.subr.bf16.mxu0 %v2711
    %4697 = vmatpush1.bf16.msra.mxu0 %v2710
    %4698 = vmatprep.subr.bf16.mxu0 %v2719
    %4699 = vmatpush1.bf16.msra.mxu0 %v2718
    %4700 = vmatprep.subr.bf16.mxu0 %v2727
    %4701 = vmatpush1.bf16.msra.mxu0 %v2726
    %4702 = vmatprep.subr.bf16.mxu0 %v2735
    %4703 = vmatpush1.bf16.msra.mxu0 %v2734
    %4704 = vmatprep.subr.bf16.mxu0 %v2743
    %4705 = vmatpush1.bf16.msra.mxu0 %v2742
    %4706 = vmatprep.mubr.bf16.mxu0 %v781
    %4707 = vmatmul.mubr.bf16.gmra.mrb[0].mxu0 %v780
    %v4708 = vpop.f32.mrb[0].mxu0
    %v4709 = vadd.f32 %v4666, %v4708
    %v4710 = vpop.f32.mrb[0].mxu0
    %v4711 = vadd.f32 %v4668, %v4710
    %v4712 = vpop.f32.mrb[0].mxu0
    %v4713 = vadd.f32 %v4670, %v4712
    %v4714 = vpop.f32.mrb[0].mxu0
    %v4715 = vadd.f32 %v4672, %v4714
    %4716 = vdwg.mxu0
    %4717 = vmatprep.subr.bf16.mxu0 %v2751
    %4718 = vmatpush1.bf16.msra.mxu0 %v2750
    %4719 = vmatprep.subr.bf16.mxu0 %v2759
    %4720 = vmatpush1.bf16.msra.mxu0 %v2758
    %4721 = vmatprep.subr.bf16.mxu0 %v2767
    %4722 = vmatpush1.bf16.msra.mxu0 %v2766
    %4723 = vmatprep.subr.bf16.mxu0 %v2775
    %4724 = vmatpush1.bf16.msra.mxu0 %v2774
    %4725 = vmatprep.subr.bf16.mxu0 %v2783
    %4726 = vmatpush1.bf16.msra.mxu0 %v2782
    %4727 = vmatprep.subr.bf16.mxu0 %v2791
    %4728 = vmatpush1.bf16.msra.mxu0 %v2790
    %4729 = vmatprep.subr.bf16.mxu0 %v2799
    %4730 = vmatpush1.bf16.msra.mxu0 %v2798
    %4731 = vmatprep.subr.bf16.mxu0 %v2807
    %4732 = vmatpush1.bf16.msra.mxu0 %v2806
    %4733 = vmatprep.subr.bf16.mxu0 %v2815
    %4734 = vmatpush1.bf16.msra.mxu0 %v2814
    %4735 = vmatprep.subr.bf16.mxu0 %v2823
    %4736 = vmatpush1.bf16.msra.mxu0 %v2822
    %4737 = vmatprep.subr.bf16.mxu0 %v2831
    %4738 = vmatpush1.bf16.msra.mxu0 %v2830
    %4739 = vmatprep.subr.bf16.mxu0 %v2839
    %4740 = vmatpush1.bf16.msra.mxu0 %v2838
    %4741 = vmatprep.subr.bf16.mxu0 %v2847
    %4742 = vmatpush1.bf16.msra.mxu0 %v2846
    %4743 = vmatprep.subr.bf16.mxu0 %v2855
    %4744 = vmatpush1.bf16.msra.mxu0 %v2854
    %4745 = vmatprep.subr.bf16.mxu0 %v2863
    %4746 = vmatpush1.bf16.msra.mxu0 %v2862
    %4747 = vmatprep.subr.bf16.mxu0 %v2871
    %4748 = vmatpush1.bf16.msra.mxu0 %v2870
    %4749 = vmatprep.mubr.bf16.mxu0 %v783
    %4750 = vmatmul.mubr.bf16.gmra.mrb[0].mxu0 %v782
    %v4751 = vpop.f32.mrb[0].mxu0
    %v4752 = vadd.f32 %v4709, %v4751
    %v4753 = vpop.f32.mrb[0].mxu0
    %v4754 = vadd.f32 %v4711, %v4753
    %v4755 = vpop.f32.mrb[0].mxu0
    %v4756 = vadd.f32 %v4713, %v4755
    %v4757 = vpop.f32.mrb[0].mxu0
    %v4758 = vadd.f32 %v4715, %v4757
    %4759 = vdwg.mxu0
    %v4760 = vstv %s101
    %v4761 = vmul.f32 %v4760, %v4236
    %v4762 = vmul.f32 %v4760, %v4238
    %v4763 = vmul.f32 %v4760, %v4408
    %v4764 = vmul.f32 %v4760, %v4410
    %v4765 = vmul.f32 %v4760, %v4580
    %v4766 = vmul.f32 %v4760, %v4582
    %v4767 = vmul.f32 %v4760, %v4752
    %v4768 = vmul.f32 %v4760, %v4754
    %v4769 = vmul.f32 %v4760, %v4240
    %v4770 = vmul.f32 %v4760, %v4242
    %v4771 = vmul.f32 %v4760, %v4412
    %v4772 = vmul.f32 %v4760, %v4414
    %v4773 = vmul.f32 %v4760, %v4584
    %v4774 = vmul.f32 %v4760, %v4586
    %v4775 = vmul.f32 %v4760, %v4756
    %v4776 = vmul.f32 %v4760, %v4758
    %v4777 = vadd.f32 %v760, %v4761
    %v4778 = vadd.f32 %v761, %v4762
    %v4779 = vadd.f32 %v762, %v4763
    %v4780 = vadd.f32 %v763, %v4764
    %v4781 = vadd.f32 %v764, %v4765
    %v4782 = vadd.f32 %v765, %v4766
    %v4783 = vadd.f32 %v766, %v4767
    %v4784 = vadd.f32 %v767, %v4768
    %v4785 = vadd.f32 %v768, %v4769
    %v4786 = vadd.f32 %v769, %v4770
    %v4787 = vadd.f32 %v770, %v4771
    %v4788 = vadd.f32 %v771, %v4772
    %v4789 = vadd.f32 %v772, %v4773
    %v4790 = vadd.f32 %v773, %v4774
    %v4791 = vadd.f32 %v774, %v4775
    %v4792 = vadd.f32 %v775, %v4776
    %v4793 = vpack.c.bf16 %v4785, %v4777
    %v4794 = vpack.c.bf16 %v4786, %v4778
    %v4795 = vpack.c.bf16 %v4787, %v4779
    %v4796 = vpack.c.bf16 %v4788, %v4780
    %v4797 = vpack.c.bf16 %v4789, %v4781
    %v4798 = vpack.c.bf16 %v4790, %v4782
    %v4799 = vpack.c.bf16 %v4791, %v4783
    %v4800 = vpack.c.bf16 %v4792, %v4784
    %v4801 = vunpack.c.l.bf16 %v4793
    %v4802 = vunpack.c.l.bf16 %v4794
    %v4803 = vunpack.c.l.bf16 %v4795
    %v4804 = vunpack.c.l.bf16 %v4796
    %v4805 = vunpack.c.l.bf16 %v4797
    %v4806 = vunpack.c.l.bf16 %v4798
    %v4807 = vunpack.c.l.bf16 %v4799
    %v4808 = vunpack.c.l.bf16 %v4800
    %v4809 = vunpack.c.h.bf16 %v4793
    %v4810 = vunpack.c.h.bf16 %v4794
    %v4811 = vunpack.c.h.bf16 %v4795
    %v4812 = vunpack.c.h.bf16 %v4796
    %v4813 = vunpack.c.h.bf16 %v4797
    %v4814 = vunpack.c.h.bf16 %v4798
    %v4815 = vunpack.c.h.bf16 %v4799
    %v4816 = vunpack.c.h.bf16 %v4800
    %v4817 = vsub.f32 %v4777, %v4801
    %v4818 = vsub.f32 %v4778, %v4802
    %v4819 = vsub.f32 %v4779, %v4803
    %v4820 = vsub.f32 %v4780, %v4804
    %v4821 = vsub.f32 %v4781, %v4805
    %v4822 = vsub.f32 %v4782, %v4806
    %v4823 = vsub.f32 %v4783, %v4807
    %v4824 = vsub.f32 %v4784, %v4808
    %v4825 = vsub.f32 %v4785, %v4809
    %v4826 = vsub.f32 %v4786, %v4810
    %v4827 = vsub.f32 %v4787, %v4811
    %v4828 = vsub.f32 %v4788, %v4812
    %v4829 = vsub.f32 %v4789, %v4813
    %v4830 = vsub.f32 %v4790, %v4814
    %v4831 = vsub.f32 %v4791, %v4815
    %v4832 = vsub.f32 %v4792, %v4816
    %v4833 = vpack.c.bf16 %v4825, %v4817
    %v4834 = vpack.c.bf16 %v4826, %v4818
    %v4835 = vpack.c.bf16 %v4827, %v4819
    %v4836 = vpack.c.bf16 %v4828, %v4820
    %v4837 = vpack.c.bf16 %v4829, %v4821
    %v4838 = vpack.c.bf16 %v4830, %v4822
    %v4839 = vpack.c.bf16 %v4831, %v4823
    %v4840 = vpack.c.bf16 %v4832, %v4824
    %v4969 = vunpack.c.l.b16 %v631
    %v4970 = vunpack.c.l.b16 %v632
    %v4971 = vunpack.c.l.b16 %v633
    %v4972 = vunpack.c.l.b16 %v634
    %v4973 = vunpack.c.l.b16 %v635
    %v4974 = vunpack.c.l.b16 %v636
    %v4975 = vunpack.c.l.b16 %v637
    %v4976 = vunpack.c.l.b16 %v638
    %v4977 = vunpack.c.l.b16 %v639
    %v4978 = vunpack.c.l.b16 %v640
    %v4979 = vunpack.c.l.b16 %v641
    %v4980 = vunpack.c.l.b16 %v642
    %v4981 = vunpack.c.l.b16 %v643
    %v4982 = vunpack.c.l.b16 %v644
    %v4983 = vunpack.c.l.b16 %v645
    %v4984 = vunpack.c.l.b16 %v646
    %v4985 = vunpack.c.l.b16 %v647
    %v4986 = vunpack.c.l.b16 %v648
    %v4987 = vunpack.c.l.b16 %v649
    %v4988 = vunpack.c.l.b16 %v650
    %v4989 = vunpack.c.l.b16 %v651
    %v4990 = vunpack.c.l.b16 %v652
    %v4991 = vunpack.c.l.b16 %v653
    %v4992 = vunpack.c.l.b16 %v654
    %v4993 = vunpack.c.l.b16 %v655
    %v4994 = vunpack.c.l.b16 %v656
    %v4995 = vunpack.c.l.b16 %v657
    %v4996 = vunpack.c.l.b16 %v658
    %v4997 = vunpack.c.l.b16 %v659
    %v4998 = vunpack.c.l.b16 %v660
    %v4999 = vunpack.c.l.b16 %v661
    %v5000 = vunpack.c.l.b16 %v662
    %v5001 = vunpack.c.l.b16 %v663
    %v5002 = vunpack.c.l.b16 %v664
    %v5003 = vunpack.c.l.b16 %v665
    %v5004 = vunpack.c.l.b16 %v666
    %v5005 = vunpack.c.l.b16 %v667
    %v5006 = vunpack.c.l.b16 %v668
    %v5007 = vunpack.c.l.b16 %v669
    %v5008 = vunpack.c.l.b16 %v670
    %v5009 = vunpack.c.l.b16 %v671
    %v5010 = vunpack.c.l.b16 %v672
    %v5011 = vunpack.c.l.b16 %v673
    %v5012 = vunpack.c.l.b16 %v674
    %v5013 = vunpack.c.l.b16 %v675
    %v5014 = vunpack.c.l.b16 %v676
    %v5015 = vunpack.c.l.b16 %v677
    %v5016 = vunpack.c.l.b16 %v678
    %v5017 = vunpack.c.l.b16 %v679
    %v5018 = vunpack.c.l.b16 %v680
    %v5019 = vunpack.c.l.b16 %v681
    %v5020 = vunpack.c.l.b16 %v682
    %v5021 = vunpack.c.l.b16 %v683
    %v5022 = vunpack.c.l.b16 %v684
    %v5023 = vunpack.c.l.b16 %v685
    %v5024 = vunpack.c.l.b16 %v686
    %v5025 = vunpack.c.l.b16 %v687
    %v5026 = vunpack.c.l.b16 %v688
    %v5027 = vunpack.c.l.b16 %v689
    %v5028 = vunpack.c.l.b16 %v690
    %v5029 = vunpack.c.l.b16 %v691
    %v5030 = vunpack.c.l.b16 %v692
    %v5031 = vunpack.c.l.b16 %v693
    %v5032 = vunpack.c.l.b16 %v694
    %v5033 = vunpack.c.l.b16 %v695
    %v5034 = vunpack.c.l.b16 %v696
    %v5035 = vunpack.c.l.b16 %v697
    %v5036 = vunpack.c.l.b16 %v698
    %v5037 = vunpack.c.l.b16 %v699
    %v5038 = vunpack.c.l.b16 %v700
    %v5039 = vunpack.c.l.b16 %v701
    %v5040 = vunpack.c.l.b16 %v702
    %v5041 = vunpack.c.l.b16 %v703
    %v5042 = vunpack.c.l.b16 %v704
    %v5043 = vunpack.c.l.b16 %v705
    %v5044 = vunpack.c.l.b16 %v706
    %v5045 = vunpack.c.l.b16 %v707
    %v5046 = vunpack.c.l.b16 %v708
    %v5047 = vunpack.c.l.b16 %v709
    %v5048 = vunpack.c.l.b16 %v710
    %v5049 = vunpack.c.l.b16 %v711
    %v5050 = vunpack.c.l.b16 %v712
    %v5051 = vunpack.c.l.b16 %v713
    %v5052 = vunpack.c.l.b16 %v714
    %v5053 = vunpack.c.l.b16 %v715
    %v5054 = vunpack.c.l.b16 %v716
    %v5055 = vunpack.c.l.b16 %v717
    %v5056 = vunpack.c.l.b16 %v718
    %v5057 = vunpack.c.l.b16 %v719
    %v5058 = vunpack.c.l.b16 %v720
    %v5059 = vunpack.c.l.b16 %v721
    %v5060 = vunpack.c.l.b16 %v722
    %v5061 = vunpack.c.l.b16 %v723
    %v5062 = vunpack.c.l.b16 %v724
    %v5063 = vunpack.c.l.b16 %v725
    %v5064 = vunpack.c.l.b16 %v726
    %v5065 = vunpack.c.l.b16 %v727
    %v5066 = vunpack.c.l.b16 %v728
    %v5067 = vunpack.c.l.b16 %v729
    %v5068 = vunpack.c.l.b16 %v730
    %v5069 = vunpack.c.l.b16 %v731
    %v5070 = vunpack.c.l.b16 %v732
    %v5071 = vunpack.c.l.b16 %v733
    %v5072 = vunpack.c.l.b16 %v734
    %v5073 = vunpack.c.l.b16 %v735
    %v5074 = vunpack.c.l.b16 %v736
    %v5075 = vunpack.c.l.b16 %v737
    %v5076 = vunpack.c.l.b16 %v738
    %v5077 = vunpack.c.l.b16 %v739
    %v5078 = vunpack.c.l.b16 %v740
    %v5079 = vunpack.c.l.b16 %v741
    %v5080 = vunpack.c.l.b16 %v742
    %v5081 = vunpack.c.l.b16 %v743
    %v5082 = vunpack.c.l.b16 %v744
    %v5083 = vunpack.c.l.b16 %v745
    %v5084 = vunpack.c.l.b16 %v746
    %v5085 = vunpack.c.l.b16 %v747
    %v5086 = vunpack.c.l.b16 %v748
    %v5087 = vunpack.c.l.b16 %v749
    %v5088 = vunpack.c.l.b16 %v750
    %v5089 = vunpack.c.l.b16 %v751
    %v5090 = vunpack.c.l.b16 %v752
    %v5091 = vunpack.c.l.b16 %v753
    %v5092 = vunpack.c.l.b16 %v754
    %v5093 = vunpack.c.l.b16 %v755
    %v5094 = vunpack.c.l.b16 %v756
    %v5095 = vunpack.c.l.b16 %v757
    %v5096 = vunpack.c.l.b16 %v758
    %v5097 = vpack.c.b16 %v4970, %v4969
    %v5098 = vpack.c.b16 %v4972, %v4971
    %v5099 = vpack.c.b16 %v4974, %v4973
    %v5100 = vpack.c.b16 %v4976, %v4975
    %v5101 = vpack.c.b16 %v4978, %v4977
    %v5102 = vpack.c.b16 %v4980, %v4979
    %v5103 = vpack.c.b16 %v4982, %v4981
    %v5104 = vpack.c.b16 %v4984, %v4983
    %v5105 = vpack.c.b16 %v4986, %v4985
    %v5106 = vpack.c.b16 %v4988, %v4987
    %v5107 = vpack.c.b16 %v4990, %v4989
    %v5108 = vpack.c.b16 %v4992, %v4991
    %v5109 = vpack.c.b16 %v4994, %v4993
    %v5110 = vpack.c.b16 %v4996, %v4995
    %v5111 = vpack.c.b16 %v4998, %v4997
    %v5112 = vpack.c.b16 %v5000, %v4999
    %v5113 = vpack.c.b16 %v5002, %v5001
    %v5114 = vpack.c.b16 %v5004, %v5003
    %v5115 = vpack.c.b16 %v5006, %v5005
    %v5116 = vpack.c.b16 %v5008, %v5007
    %v5117 = vpack.c.b16 %v5010, %v5009
    %v5118 = vpack.c.b16 %v5012, %v5011
    %v5119 = vpack.c.b16 %v5014, %v5013
    %v5120 = vpack.c.b16 %v5016, %v5015
    %v5121 = vpack.c.b16 %v5018, %v5017
    %v5122 = vpack.c.b16 %v5020, %v5019
    %v5123 = vpack.c.b16 %v5022, %v5021
    %v5124 = vpack.c.b16 %v5024, %v5023
    %v5125 = vpack.c.b16 %v5026, %v5025
    %v5126 = vpack.c.b16 %v5028, %v5027
    %v5127 = vpack.c.b16 %v5030, %v5029
    %v5128 = vpack.c.b16 %v5032, %v5031
    %v5129 = vpack.c.b16 %v5034, %v5033
    %v5130 = vpack.c.b16 %v5036, %v5035
    %v5131 = vpack.c.b16 %v5038, %v5037
    %v5132 = vpack.c.b16 %v5040, %v5039
    %v5133 = vpack.c.b16 %v5042, %v5041
    %v5134 = vpack.c.b16 %v5044, %v5043
    %v5135 = vpack.c.b16 %v5046, %v5045
    %v5136 = vpack.c.b16 %v5048, %v5047
    %v5137 = vpack.c.b16 %v5050, %v5049
    %v5138 = vpack.c.b16 %v5052, %v5051
    %v5139 = vpack.c.b16 %v5054, %v5053
    %v5140 = vpack.c.b16 %v5056, %v5055
    %v5141 = vpack.c.b16 %v5058, %v5057
    %v5142 = vpack.c.b16 %v5060, %v5059
    %v5143 = vpack.c.b16 %v5062, %v5061
    %v5144 = vpack.c.b16 %v5064, %v5063
    %v5145 = vpack.c.b16 %v5066, %v5065
    %v5146 = vpack.c.b16 %v5068, %v5067
    %v5147 = vpack.c.b16 %v5070, %v5069
    %v5148 = vpack.c.b16 %v5072, %v5071
    %v5149 = vpack.c.b16 %v5074, %v5073
    %v5150 = vpack.c.b16 %v5076, %v5075
    %v5151 = vpack.c.b16 %v5078, %v5077
    %v5152 = vpack.c.b16 %v5080, %v5079
    %v5153 = vpack.c.b16 %v5082, %v5081
    %v5154 = vpack.c.b16 %v5084, %v5083
    %v5155 = vpack.c.b16 %v5086, %v5085
    %v5156 = vpack.c.b16 %v5088, %v5087
    %v5157 = vpack.c.b16 %v5090, %v5089
    %v5158 = vpack.c.b16 %v5092, %v5091
    %v5159 = vpack.c.b16 %v5094, %v5093
    %v5160 = vpack.c.b16 %v5096, %v5095
    %5225 = vmatprep.subr.bf16.mxu0 0
    %5226 = vmatpush1.bf16.msra.mxu0 %v5097
    %5227 = vmatprep.subr.bf16.mxu0 0
    %5228 = vmatpush1.bf16.msra.mxu0 %v5098
    %5229 = vmatprep.subr.bf16.mxu0 0
    %5230 = vmatpush1.bf16.msra.mxu0 %v5099
    %5231 = vmatprep.subr.bf16.mxu0 0
    %5232 = vmatpush1.bf16.msra.mxu0 %v5100
    %5233 = vmatprep.subr.bf16.mxu0 0
    %5234 = vmatpush1.bf16.msra.mxu0 %v5101
    %5235 = vmatprep.subr.bf16.mxu0 0
    %5236 = vmatpush1.bf16.msra.mxu0 %v5102
    %5237 = vmatprep.subr.bf16.mxu0 0
    %5238 = vmatpush1.bf16.msra.mxu0 %v5103
    %5239 = vmatprep.subr.bf16.mxu0 0
    %5240 = vmatpush1.bf16.msra.mxu0 %v5104
    %5241 = vmatprep.subr.bf16.mxu0 0
    %5242 = vmatpush1.bf16.msra.mxu0 %v5105
    %5243 = vmatprep.subr.bf16.mxu0 0
    %5244 = vmatpush1.bf16.msra.mxu0 %v5106
    %5245 = vmatprep.subr.bf16.mxu0 0
    %5246 = vmatpush1.bf16.msra.mxu0 %v5107
    %5247 = vmatprep.subr.bf16.mxu0 0
    %5248 = vmatpush1.bf16.msra.mxu0 %v5108
    %5249 = vmatprep.subr.bf16.mxu0 0
    %5250 = vmatpush1.bf16.msra.mxu0 %v5109
    %5251 = vmatprep.subr.bf16.mxu0 0
    %5252 = vmatpush1.bf16.msra.mxu0 %v5110
    %5253 = vmatprep.subr.bf16.mxu0 0
    %5254 = vmatpush1.bf16.msra.mxu0 %v5111
    %5255 = vmatprep.subr.bf16.mxu0 0
    %5256 = vmatpush1.bf16.msra.mxu0 %v5112
    %5257 = vmatprep.mubr.bf16.mxu0 %v4834
    %5258 = vmatmul.mubr.bf16.gmra.mrb[0].mxu0 %v4833
    %v5259 = vpop.f32.mrb[0].mxu0
    %v5260 = vadd.f32 0.0, %v5259
    %v5261 = vpop.f32.mrb[0].mxu0
    %v5262 = vpop.f32.mrb[0].mxu0
    %v5263 = vadd.f32 0.0, %v5262
    %v5264 = vpop.f32.mrb[0].mxu0
    %5265 = vdwg.mxu0
    %5266 = vmatprep.subr.bf16.mxu0 0
    %5267 = vmatpush1.bf16.msra.mxu0 %v5113
    %5268 = vmatprep.subr.bf16.mxu0 0
    %5269 = vmatpush1.bf16.msra.mxu0 %v5114
    %5270 = vmatprep.subr.bf16.mxu0 0
    %5271 = vmatpush1.bf16.msra.mxu0 %v5115
    %5272 = vmatprep.subr.bf16.mxu0 0
    %5273 = vmatpush1.bf16.msra.mxu0 %v5116
    %5274 = vmatprep.subr.bf16.mxu0 0
    %5275 = vmatpush1.bf16.msra.mxu0 %v5117
    %5276 = vmatprep.subr.bf16.mxu0 0
    %5277 = vmatpush1.bf16.msra.mxu0 %v5118
    %5278 = vmatprep.subr.bf16.mxu0 0
    %5279 = vmatpush1.bf16.msra.mxu0 %v5119
    %5280 = vmatprep.subr.bf16.mxu0 0
    %5281 = vmatpush1.bf16.msra.mxu0 %v5120
    %5282 = vmatprep.subr.bf16.mxu0 0
    %5283 = vmatpush1.bf16.msra.mxu0 %v5121
    %5284 = vmatprep.subr.bf16.mxu0 0
    %5285 = vmatpush1.bf16.msra.mxu0 %v5122
    %5286 = vmatprep.subr.bf16.mxu0 0
    %5287 = vmatpush1.bf16.msra.mxu0 %v5123
    %5288 = vmatprep.subr.bf16.mxu0 0
    %5289 = vmatpush1.bf16.msra.mxu0 %v5124
    %5290 = vmatprep.subr.bf16.mxu0 0
    %5291 = vmatpush1.bf16.msra.mxu0 %v5125
    %5292 = vmatprep.subr.bf16.mxu0 0
    %5293 = vmatpush1.bf16.msra.mxu0 %v5126
    %5294 = vmatprep.subr.bf16.mxu0 0
    %5295 = vmatpush1.bf16.msra.mxu0 %v5127
    %5296 = vmatprep.subr.bf16.mxu0 0
    %5297 = vmatpush1.bf16.msra.mxu0 %v5128
    %5298 = vmatprep.mubr.bf16.mxu0 %v4836
    %5299 = vmatmul.mubr.bf16.gmra.mrb[0].mxu0 %v4835
    %v5300 = vpop.f32.mrb[0].mxu0
    %v5301 = vadd.f32 %v5260, %v5300
    %v5302 = vpop.f32.mrb[0].mxu0
    %v5303 = vpop.f32.mrb[0].mxu0
    %v5304 = vadd.f32 %v5263, %v5303
    %v5305 = vpop.f32.mrb[0].mxu0
    %5306 = vdwg.mxu0
    %5307 = vmatprep.subr.bf16.mxu0 0
    %5308 = vmatpush1.bf16.msra.mxu0 %v5129
    %5309 = vmatprep.subr.bf16.mxu0 0
    %5310 = vmatpush1.bf16.msra.mxu0 %v5130
    %5311 = vmatprep.subr.bf16.mxu0 0
    %5312 = vmatpush1.bf16.msra.mxu0 %v5131
    %5313 = vmatprep.subr.bf16.mxu0 0
    %5314 = vmatpush1.bf16.msra.mxu0 %v5132
    %5315 = vmatprep.subr.bf16.mxu0 0
    %5316 = vmatpush1.bf16.msra.mxu0 %v5133
    %5317 = vmatprep.subr.bf16.mxu0 0
    %5318 = vmatpush1.bf16.msra.mxu0 %v5134
    %5319 = vmatprep.subr.bf16.mxu0 0
    %5320 = vmatpush1.bf16.msra.mxu0 %v5135
    %5321 = vmatprep.subr.bf16.mxu0 0
    %5322 = vmatpush1.bf16.msra.mxu0 %v5136
    %5323 = vmatprep.subr.bf16.mxu0 0
    %5324 = vmatpush1.bf16.msra.mxu0 %v5137
    %5325 = vmatprep.subr.bf16.mxu0 0
    %5326 = vmatpush1.bf16.msra.mxu0 %v5138
    %5327 = vmatprep.subr.bf16.mxu0 0
    %5328 = vmatpush1.bf16.msra.mxu0 %v5139
    %5329 = vmatprep.subr.bf16.mxu0 0
    %5330 = vmatpush1.bf16.msra.mxu0 %v5140
    %5331 = vmatprep.subr.bf16.mxu0 0
    %5332 = vmatpush1.bf16.msra.mxu0 %v5141
    %5333 = vmatprep.subr.bf16.mxu0 0
    %5334 = vmatpush1.bf16.msra.mxu0 %v5142
    %5335 = vmatprep.subr.bf16.mxu0 0
    %5336 = vmatpush1.bf16.msra.mxu0 %v5143
    %5337 = vmatprep.subr.bf16.mxu0 0
    %5338 = vmatpush1.bf16.msra.mxu0 %v5144
    %5339 = vmatprep.mubr.bf16.mxu0 %v4838
    %5340 = vmatmul.mubr.bf16.gmra.mrb[0].mxu0 %v4837
    %v5341 = vpop.f32.mrb[0].mxu0
    %v5342 = vadd.f32 %v5301, %v5341
    %v5343 = vpop.f32.mrb[0].mxu0
    %v5344 = vpop.f32.mrb[0].mxu0
    %v5345 = vadd.f32 %v5304, %v5344
    %v5346 = vpop.f32.mrb[0].mxu0
    %5347 = vdwg.mxu0
    %5348 = vmatprep.subr.bf16.mxu0 0
    %5349 = vmatpush1.bf16.msra.mxu0 %v5145
    %5350 = vmatprep.subr.bf16.mxu0 0
    %5351 = vmatpush1.bf16.msra.mxu0 %v5146
    %5352 = vmatprep.subr.bf16.mxu0 0
    %5353 = vmatpush1.bf16.msra.mxu0 %v5147
    %5354 = vmatprep.subr.bf16.mxu0 0
    %5355 = vmatpush1.bf16.msra.mxu0 %v5148
    %5356 = vmatprep.subr.bf16.mxu0 0
    %5357 = vmatpush1.bf16.msra.mxu0 %v5149
    %5358 = vmatprep.subr.bf16.mxu0 0
    %5359 = vmatpush1.bf16.msra.mxu0 %v5150
    %5360 = vmatprep.subr.bf16.mxu0 0
    %5361 = vmatpush1.bf16.msra.mxu0 %v5151
    %5362 = vmatprep.subr.bf16.mxu0 0
    %5363 = vmatpush1.bf16.msra.mxu0 %v5152
    %5364 = vmatprep.subr.bf16.mxu0 0
    %5365 = vmatpush1.bf16.msra.mxu0 %v5153
    %5366 = vmatprep.subr.bf16.mxu0 0
    %5367 = vmatpush1.bf16.msra.mxu0 %v5154
    %5368 = vmatprep.subr.bf16.mxu0 0
    %5369 = vmatpush1.bf16.msra.mxu0 %v5155
    %5370 = vmatprep.subr.bf16.mxu0 0
    %5371 = vmatpush1.bf16.msra.mxu0 %v5156
    %5372 = vmatprep.subr.bf16.mxu0 0
    %5373 = vmatpush1.bf16.msra.mxu0 %v5157
    %5374 = vmatprep.subr.bf16.mxu0 0
    %5375 = vmatpush1.bf16.msra.mxu0 %v5158
    %5376 = vmatprep.subr.bf16.mxu0 0
    %5377 = vmatpush1.bf16.msra.mxu0 %v5159
    %5378 = vmatprep.subr.bf16.mxu0 0
    %5379 = vmatpush1.bf16.msra.mxu0 %v5160
    %5380 = vmatprep.mubr.bf16.mxu0 %v4840
    %5381 = vmatmul.mubr.bf16.gmra.mrb[0].mxu0 %v4839
    %v5382 = vpop.f32.mrb[0].mxu0
    %v5383 = vadd.f32 %v5342, %v5382
    %v5384 = vpop.f32.mrb[0].mxu0
    %v5385 = vpop.f32.mrb[0].mxu0
    %v5386 = vadd.f32 %v5345, %v5385
    %v5387 = vpop.f32.mrb[0].mxu0
    %5388 = vdwg.mxu0
    %5389 = vmatprep.subr.bf16.mxu0 0
    %5390 = vmatpush1.bf16.msra.mxu0 %v5097
    %5391 = vmatprep.subr.bf16.mxu0 0
    %5392 = vmatpush1.bf16.msra.mxu0 %v5098
    %5393 = vmatprep.subr.bf16.mxu0 0
    %5394 = vmatpush1.bf16.msra.mxu0 %v5099
    %5395 = vmatprep.subr.bf16.mxu0 0
    %5396 = vmatpush1.bf16.msra.mxu0 %v5100
    %5397 = vmatprep.subr.bf16.mxu0 0
    %5398 = vmatpush1.bf16.msra.mxu0 %v5101
    %5399 = vmatprep.subr.bf16.mxu0 0
    %5400 = vmatpush1.bf16.msra.mxu0 %v5102
    %5401 = vmatprep.subr.bf16.mxu0 0
    %5402 = vmatpush1.bf16.msra.mxu0 %v5103
    %5403 = vmatprep.subr.bf16.mxu0 0
    %5404 = vmatpush1.bf16.msra.mxu0 %v5104
    %5405 = vmatprep.subr.bf16.mxu0 0
    %5406 = vmatpush1.bf16.msra.mxu0 %v5105
    %5407 = vmatprep.subr.bf16.mxu0 0
    %5408 = vmatpush1.bf16.msra.mxu0 %v5106
    %5409 = vmatprep.subr.bf16.mxu0 0
    %5410 = vmatpush1.bf16.msra.mxu0 %v5107
    %5411 = vmatprep.subr.bf16.mxu0 0
    %5412 = vmatpush1.bf16.msra.mxu0 %v5108
    %5413 = vmatprep.subr.bf16.mxu0 0
    %5414 = vmatpush1.bf16.msra.mxu0 %v5109
    %5415 = vmatprep.subr.bf16.mxu0 0
    %5416 = vmatpush1.bf16.msra.mxu0 %v5110
    %5417 = vmatprep.subr.bf16.mxu0 0
    %5418 = vmatpush1.bf16.msra.mxu0 %v5111
    %5419 = vmatprep.subr.bf16.mxu0 0
    %5420 = vmatpush1.bf16.msra.mxu0 %v5112
    %5421 = vmatprep.mubr.bf16.mxu0 %v4794
    %5422 = vmatmul.mubr.bf16.gmra.mrb[0].mxu0 %v4793
    %v5423 = vpop.f32.mrb[0].mxu0
    %v5424 = vadd.f32 %v5383, %v5423
    %v5425 = vpop.f32.mrb[0].mxu0
    %v5426 = vpop.f32.mrb[0].mxu0
    %v5427 = vadd.f32 %v5386, %v5426
    %v5428 = vpop.f32.mrb[0].mxu0
    %5429 = vdwg.mxu0
    %5430 = vmatprep.subr.bf16.mxu0 0
    %5431 = vmatpush1.bf16.msra.mxu0 %v5113
    %5432 = vmatprep.subr.bf16.mxu0 0
    %5433 = vmatpush1.bf16.msra.mxu0 %v5114
    %5434 = vmatprep.subr.bf16.mxu0 0
    %5435 = vmatpush1.bf16.msra.mxu0 %v5115
    %5436 = vmatprep.subr.bf16.mxu0 0
    %5437 = vmatpush1.bf16.msra.mxu0 %v5116
    %5438 = vmatprep.subr.bf16.mxu0 0
    %5439 = vmatpush1.bf16.msra.mxu0 %v5117
    %5440 = vmatprep.subr.bf16.mxu0 0
    %5441 = vmatpush1.bf16.msra.mxu0 %v5118
    %5442 = vmatprep.subr.bf16.mxu0 0
    %5443 = vmatpush1.bf16.msra.mxu0 %v5119
    %5444 = vmatprep.subr.bf16.mxu0 0
    %5445 = vmatpush1.bf16.msra.mxu0 %v5120
    %5446 = vmatprep.subr.bf16.mxu0 0
    %5447 = vmatpush1.bf16.msra.mxu0 %v5121
    %5448 = vmatprep.subr.bf16.mxu0 0
    %5449 = vmatpush1.bf16.msra.mxu0 %v5122
    %5450 = vmatprep.subr.bf16.mxu0 0
    %5451 = vmatpush1.bf16.msra.mxu0 %v5123
    %5452 = vmatprep.subr.bf16.mxu0 0
    %5453 = vmatpush1.bf16.msra.mxu0 %v5124
    %5454 = vmatprep.subr.bf16.mxu0 0
    %5455 = vmatpush1.bf16.msra.mxu0 %v5125
    %5456 = vmatprep.subr.bf16.mxu0 0
    %5457 = vmatpush1.bf16.msra.mxu0 %v5126
    %5458 = vmatprep.subr.bf16.mxu0 0
    %5459 = vmatpush1.bf16.msra.mxu0 %v5127
    %5460 = vmatprep.subr.bf16.mxu0 0
    %5461 = vmatpush1.bf16.msra.mxu0 %v5128
    %5462 = vmatprep.mubr.bf16.mxu0 %v4796
    %5463 = vmatmul.mubr.bf16.gmra.mrb[0].mxu0 %v4795
    %v5464 = vpop.f32.mrb[0].mxu0
    %v5465 = vadd.f32 %v5424, %v5464
    %v5466 = vpop.f32.mrb[0].mxu0
    %v5467 = vpop.f32.mrb[0].mxu0
    %v5468 = vadd.f32 %v5427, %v5467
    %v5469 = vpop.f32.mrb[0].mxu0
    %5470 = vdwg.mxu0
    %5471 = vmatprep.subr.bf16.mxu0 0
    %5472 = vmatpush1.bf16.msra.mxu0 %v5129
    %5473 = vmatprep.subr.bf16.mxu0 0
    %5474 = vmatpush1.bf16.msra.mxu0 %v5130
    %5475 = vmatprep.subr.bf16.mxu0 0
    %5476 = vmatpush1.bf16.msra.mxu0 %v5131
    %5477 = vmatprep.subr.bf16.mxu0 0
    %5478 = vmatpush1.bf16.msra.mxu0 %v5132
    %5479 = vmatprep.subr.bf16.mxu0 0
    %5480 = vmatpush1.bf16.msra.mxu0 %v5133
    %5481 = vmatprep.subr.bf16.mxu0 0
    %5482 = vmatpush1.bf16.msra.mxu0 %v5134
    %5483 = vmatprep.subr.bf16.mxu0 0
    %5484 = vmatpush1.bf16.msra.mxu0 %v5135
    %5485 = vmatprep.subr.bf16.mxu0 0
    %5486 = vmatpush1.bf16.msra.mxu0 %v5136
    %5487 = vmatprep.subr.bf16.mxu0 0
    %5488 = vmatpush1.bf16.msra.mxu0 %v5137
    %5489 = vmatprep.subr.bf16.mxu0 0
    %5490 = vmatpush1.bf16.msra.mxu0 %v5138
    %5491 = vmatprep.subr.bf16.mxu0 0
    %5492 = vmatpush1.bf16.msra.mxu0 %v5139
    %5493 = vmatprep.subr.bf16.mxu0 0
    %5494 = vmatpush1.bf16.msra.mxu0 %v5140
    %5495 = vmatprep.subr.bf16.mxu0 0
    %5496 = vmatpush1.bf16.msra.mxu0 %v5141
    %5497 = vmatprep.subr.bf16.mxu0 0
    %5498 = vmatpush1.bf16.msra.mxu0 %v5142
    %5499 = vmatprep.subr.bf16.mxu0 0
    %5500 = vmatpush1.bf16.msra.mxu0 %v5143
    %5501 = vmatprep.subr.bf16.mxu0 0
    %5502 = vmatpush1.bf16.msra.mxu0 %v5144
    %5503 = vmatprep.mubr.bf16.mxu0 %v4798
    %5504 = vmatmul.mubr.bf16.gmra.mrb[0].mxu0 %v4797
    %v5505 = vpop.f32.mrb[0].mxu0
    %v5506 = vadd.f32 %v5465, %v5505
    %v5507 = vpop.f32.mrb[0].mxu0
    %v5508 = vpop.f32.mrb[0].mxu0
    %v5509 = vadd.f32 %v5468, %v5508
    %v5510 = vpop.f32.mrb[0].mxu0
    %5511 = vdwg.mxu0
    %5512 = vmatprep.subr.bf16.mxu0 0
    %5513 = vmatpush1.bf16.msra.mxu0 %v5145
    %5514 = vmatprep.subr.bf16.mxu0 0
    %5515 = vmatpush1.bf16.msra.mxu0 %v5146
    %5516 = vmatprep.subr.bf16.mxu0 0
    %5517 = vmatpush1.bf16.msra.mxu0 %v5147
    %5518 = vmatprep.subr.bf16.mxu0 0
    %5519 = vmatpush1.bf16.msra.mxu0 %v5148
    %5520 = vmatprep.subr.bf16.mxu0 0
    %5521 = vmatpush1.bf16.msra.mxu0 %v5149
    %5522 = vmatprep.subr.bf16.mxu0 0
    %5523 = vmatpush1.bf16.msra.mxu0 %v5150
    %5524 = vmatprep.subr.bf16.mxu0 0
    %5525 = vmatpush1.bf16.msra.mxu0 %v5151
    %5526 = vmatprep.subr.bf16.mxu0 0
    %5527 = vmatpush1.bf16.msra.mxu0 %v5152
    %5528 = vmatprep.subr.bf16.mxu0 0
    %5529 = vmatpush1.bf16.msra.mxu0 %v5153
    %5530 = vmatprep.subr.bf16.mxu0 0
    %5531 = vmatpush1.bf16.msra.mxu0 %v5154
    %5532 = vmatprep.subr.bf16.mxu0 0
    %5533 = vmatpush1.bf16.msra.mxu0 %v5155
    %5534 = vmatprep.subr.bf16.mxu0 0
    %5535 = vmatpush1.bf16.msra.mxu0 %v5156
    %5536 = vmatprep.subr.bf16.mxu0 0
    %5537 = vmatpush1.bf16.msra.mxu0 %v5157
    %5538 = vmatprep.subr.bf16.mxu0 0
    %5539 = vmatpush1.bf16.msra.mxu0 %v5158
    %5540 = vmatprep.subr.bf16.mxu0 0
    %5541 = vmatpush1.bf16.msra.mxu0 %v5159
    %5542 = vmatprep.subr.bf16.mxu0 0
    %5543 = vmatpush1.bf16.msra.mxu0 %v5160
    %5544 = vmatprep.mubr.bf16.mxu0 %v4800
    %5545 = vmatmul.mubr.bf16.gmra.mrb[0].mxu0 %v4799
    %v5546 = vpop.f32.mrb[0].mxu0
    %v5547 = vadd.f32 %v5506, %v5546
    %v5548 = vpop.f32.mrb[0].mxu0
    %v5549 = vpop.f32.mrb[0].mxu0
    %v5550 = vadd.f32 %v5509, %v5549
    %v5551 = vpop.f32.mrb[0].mxu0
    %5552 = vdwg.mxu0
    %v5553 = vld [vmem:[#allocation10] sm:$0x1]
    %v5555 = vlaneseq
    %v5556 = vshrl.u32 %v5555, 7
    %v5557 = vsub.s32 0, %v5556
    %v5558 = vrot.slane %v5553, %v5557
    %v5560 = vsub.f32 %v5558, %v5547
    %v5561 = vsub.f32 %v5558, %v5550
    %v5562 = vpack.c.bf16 %v5561, %v5560
    %v5563 = vunpack.c.l.bf16 %v5562
    %v5564 = vunpack.c.h.bf16 %v5562
    %v5565 = vsub.f32 %v5560, %v5563
    %v5566 = vsub.f32 %v5561, %v5564
    %v5567 = vpack.c.bf16 %v5566, %v5565
    %5568 = vmatprep.subr.bf16.mxu0 0
    %5569 = vmatpush1.bf16.xpose.msra.mxu0 %v5097
    %5570 = vmatprep.subr.bf16.mxu0 0
    %5571 = vmatpush1.bf16.xpose.msra.mxu0 %v5098
    %5572 = vmatprep.subr.bf16.mxu0 0
    %5573 = vmatpush1.bf16.xpose.msra.mxu0 %v5099
    %5574 = vmatprep.subr.bf16.mxu0 0
    %5575 = vmatpush1.bf16.xpose.msra.mxu0 %v5100
    %5576 = vmatprep.subr.bf16.mxu0 0
    %5577 = vmatpush1.bf16.xpose.msra.mxu0 %v5101
    %5578 = vmatprep.subr.bf16.mxu0 0
    %5579 = vmatpush1.bf16.xpose.msra.mxu0 %v5102
    %5580 = vmatprep.subr.bf16.mxu0 0
    %5581 = vmatpush1.bf16.xpose.msra.mxu0 %v5103
    %5582 = vmatprep.subr.bf16.mxu0 0
    %5583 = vmatpush1.bf16.xpose.msra.mxu0 %v5104
    %5584 = vmatprep.subr.bf16.mxu0 0
    %5585 = vmatpush1.bf16.xpose.msra.mxu0 %v5105
    %5586 = vmatprep.subr.bf16.mxu0 0
    %5587 = vmatpush1.bf16.xpose.msra.mxu0 %v5106
    %5588 = vmatprep.subr.bf16.mxu0 0
    %5589 = vmatpush1.bf16.xpose.msra.mxu0 %v5107
    %5590 = vmatprep.subr.bf16.mxu0 0
    %5591 = vmatpush1.bf16.xpose.msra.mxu0 %v5108
    %5592 = vmatprep.subr.bf16.mxu0 0
    %5593 = vmatpush1.bf16.xpose.msra.mxu0 %v5109
    %5594 = vmatprep.subr.bf16.mxu0 0
    %5595 = vmatpush1.bf16.xpose.msra.mxu0 %v5110
    %5596 = vmatprep.subr.bf16.mxu0 0
    %5597 = vmatpush1.bf16.xpose.msra.mxu0 %v5111
    %5598 = vmatprep.subr.bf16.mxu0 0
    %5599 = vmatpush1.bf16.xpose.msra.mxu0 %v5112
    %5600 = vmatprep.mubr.bf16.mxu0 0
    %5601 = vmatmul.mubr.bf16.gmra.mrb[0].mxu0 %v5567
    %v5602 = vpop.f32.mrb[0].mxu0
    %v5603 = vadd.f32 0.0, %v5602
    %v5604 = vpop.f32.mrb[0].mxu0
    %v5605 = vadd.f32 0.0, %v5604
    %v5606 = vpop.f32.mrb[0].mxu0
    %v5607 = vadd.f32 0.0, %v5606
    %v5608 = vpop.f32.mrb[0].mxu0
    %v5609 = vadd.f32 0.0, %v5608
    %5610 = vdwg.mxu0
    %5611 = vmatprep.subr.bf16.mxu0 0
    %5612 = vmatpush1.bf16.xpose.msra.mxu0 %v5113
    %5613 = vmatprep.subr.bf16.mxu0 0
    %5614 = vmatpush1.bf16.xpose.msra.mxu0 %v5114
    %5615 = vmatprep.subr.bf16.mxu0 0
    %5616 = vmatpush1.bf16.xpose.msra.mxu0 %v5115
    %5617 = vmatprep.subr.bf16.mxu0 0
    %5618 = vmatpush1.bf16.xpose.msra.mxu0 %v5116
    %5619 = vmatprep.subr.bf16.mxu0 0
    %5620 = vmatpush1.bf16.xpose.msra.mxu0 %v5117
    %5621 = vmatprep.subr.bf16.mxu0 0
    %5622 = vmatpush1.bf16.xpose.msra.mxu0 %v5118
    %5623 = vmatprep.subr.bf16.mxu0 0
    %5624 = vmatpush1.bf16.xpose.msra.mxu0 %v5119
    %5625 = vmatprep.subr.bf16.mxu0 0
    %5626 = vmatpush1.bf16.xpose.msra.mxu0 %v5120
    %5627 = vmatprep.subr.bf16.mxu0 0
    %5628 = vmatpush1.bf16.xpose.msra.mxu0 %v5121
    %5629 = vmatprep.subr.bf16.mxu0 0
    %5630 = vmatpush1.bf16.xpose.msra.mxu0 %v5122
    %5631 = vmatprep.subr.bf16.mxu0 0
    %5632 = vmatpush1.bf16.xpose.msra.mxu0 %v5123
    %5633 = vmatprep.subr.bf16.mxu0 0
    %5634 = vmatpush1.bf16.xpose.msra.mxu0 %v5124
    %5635 = vmatprep.subr.bf16.mxu0 0
    %5636 = vmatpush1.bf16.xpose.msra.mxu0 %v5125
    %5637 = vmatprep.subr.bf16.mxu0 0
    %5638 = vmatpush1.bf16.xpose.msra.mxu0 %v5126
    %5639 = vmatprep.subr.bf16.mxu0 0
    %5640 = vmatpush1.bf16.xpose.msra.mxu0 %v5127
    %5641 = vmatprep.subr.bf16.mxu0 0
    %5642 = vmatpush1.bf16.xpose.msra.mxu0 %v5128
    %5643 = vmatprep.mubr.bf16.mxu0 0
    %5644 = vmatmul.mubr.bf16.gmra.mrb[0].mxu0 %v5567
    %v5645 = vpop.f32.mrb[0].mxu0
    %v5646 = vadd.f32 0.0, %v5645
    %v5647 = vpop.f32.mrb[0].mxu0
    %v5648 = vadd.f32 0.0, %v5647
    %v5649 = vpop.f32.mrb[0].mxu0
    %v5650 = vadd.f32 0.0, %v5649
    %v5651 = vpop.f32.mrb[0].mxu0
    %v5652 = vadd.f32 0.0, %v5651
    %5653 = vdwg.mxu0
    %5654 = vmatprep.subr.bf16.mxu0 0
    %5655 = vmatpush1.bf16.xpose.msra.mxu0 %v5129
    %5656 = vmatprep.subr.bf16.mxu0 0
    %5657 = vmatpush1.bf16.xpose.msra.mxu0 %v5130
    %5658 = vmatprep.subr.bf16.mxu0 0
    %5659 = vmatpush1.bf16.xpose.msra.mxu0 %v5131
    %5660 = vmatprep.subr.bf16.mxu0 0
    %5661 = vmatpush1.bf16.xpose.msra.mxu0 %v5132
    %5662 = vmatprep.subr.bf16.mxu0 0
    %5663 = vmatpush1.bf16.xpose.msra.mxu0 %v5133
    %5664 = vmatprep.subr.bf16.mxu0 0
    %5665 = vmatpush1.bf16.xpose.msra.mxu0 %v5134
    %5666 = vmatprep.subr.bf16.mxu0 0
    %5667 = vmatpush1.bf16.xpose.msra.mxu0 %v5135
    %5668 = vmatprep.subr.bf16.mxu0 0
    %5669 = vmatpush1.bf16.xpose.msra.mxu0 %v5136
    %5670 = vmatprep.subr.bf16.mxu0 0
    %5671 = vmatpush1.bf16.xpose.msra.mxu0 %v5137
    %5672 = vmatprep.subr.bf16.mxu0 0
    %5673 = vmatpush1.bf16.xpose.msra.mxu0 %v5138
    %5674 = vmatprep.subr.bf16.mxu0 0
    %5675 = vmatpush1.bf16.xpose.msra.mxu0 %v5139
    %5676 = vmatprep.subr.bf16.mxu0 0
    %5677 = vmatpush1.bf16.xpose.msra.mxu0 %v5140
    %5678 = vmatprep.subr.bf16.mxu0 0
    %5679 = vmatpush1.bf16.xpose.msra.mxu0 %v5141
    %5680 = vmatprep.subr.bf16.mxu0 0
    %5681 = vmatpush1.bf16.xpose.msra.mxu0 %v5142
    %5682 = vmatprep.subr.bf16.mxu0 0
    %5683 = vmatpush1.bf16.xpose.msra.mxu0 %v5143
    %5684 = vmatprep.subr.bf16.mxu0 0
    %5685 = vmatpush1.bf16.xpose.msra.mxu0 %v5144
    %5686 = vmatprep.mubr.bf16.mxu0 0
    %5687 = vmatmul.mubr.bf16.gmra.mrb[0].mxu0 %v5567
    %v5688 = vpop.f32.mrb[0].mxu0
    %v5689 = vadd.f32 0.0, %v5688
    %v5690 = vpop.f32.mrb[0].mxu0
    %v5691 = vadd.f32 0.0, %v5690
    %v5692 = vpop.f32.mrb[0].mxu0
    %v5693 = vadd.f32 0.0, %v5692
    %v5694 = vpop.f32.mrb[0].mxu0
    %v5695 = vadd.f32 0.0, %v5694
    %5696 = vdwg.mxu0
    %5697 = vmatprep.subr.bf16.mxu0 0
    %5698 = vmatpush1.bf16.xpose.msra.mxu0 %v5145
    %5699 = vmatprep.subr.bf16.mxu0 0
    %5700 = vmatpush1.bf16.xpose.msra.mxu0 %v5146
    %5701 = vmatprep.subr.bf16.mxu0 0
    %5702 = vmatpush1.bf16.xpose.msra.mxu0 %v5147
    %5703 = vmatprep.subr.bf16.mxu0 0
    %5704 = vmatpush1.bf16.xpose.msra.mxu0 %v5148
    %5705 = vmatprep.subr.bf16.mxu0 0
    %5706 = vmatpush1.bf16.xpose.msra.mxu0 %v5149
    %5707 = vmatprep.subr.bf16.mxu0 0
    %5708 = vmatpush1.bf16.xpose.msra.mxu0 %v5150
    %5709 = vmatprep.subr.bf16.mxu0 0
    %5710 = vmatpush1.bf16.xpose.msra.mxu0 %v5151
    %5711 = vmatprep.subr.bf16.mxu0 0
    %5712 = vmatpush1.bf16.xpose.msra.mxu0 %v5152
    %5713 = vmatprep.subr.bf16.mxu0 0
    %5714 = vmatpush1.bf16.xpose.msra.mxu0 %v5153
    %5715 = vmatprep.subr.bf16.mxu0 0
    %5716 = vmatpush1.bf16.xpose.msra.mxu0 %v5154
    %5717 = vmatprep.subr.bf16.mxu0 0
    %5718 = vmatpush1.bf16.xpose.msra.mxu0 %v5155
    %5719 = vmatprep.subr.bf16.mxu0 0
    %5720 = vmatpush1.bf16.xpose.msra.mxu0 %v5156
    %5721 = vmatprep.subr.bf16.mxu0 0
    %5722 = vmatpush1.bf16.xpose.msra.mxu0 %v5157
    %5723 = vmatprep.subr.bf16.mxu0 0
    %5724 = vmatpush1.bf16.xpose.msra.mxu0 %v5158
    %5725 = vmatprep.subr.bf16.mxu0 0
    %5726 = vmatpush1.bf16.xpose.msra.mxu0 %v5159
    %5727 = vmatprep.subr.bf16.mxu0 0
    %5728 = vmatpush1.bf16.xpose.msra.mxu0 %v5160
    %5729 = vmatprep.mubr.bf16.mxu0 0
    %5730 = vmatmul.mubr.bf16.gmra.mrb[0].mxu0 %v5567
    %v5731 = vpop.f32.mrb[0].mxu0
    %v5732 = vadd.f32 0.0, %v5731
    %v5733 = vpop.f32.mrb[0].mxu0
    %v5734 = vadd.f32 0.0, %v5733
    %v5735 = vpop.f32.mrb[0].mxu0
    %v5736 = vadd.f32 0.0, %v5735
    %v5737 = vpop.f32.mrb[0].mxu0
    %v5738 = vadd.f32 0.0, %v5737
    %5739 = vdwg.mxu0
    %5740 = vmatprep.subr.bf16.mxu0 0
    %5741 = vmatpush1.bf16.xpose.msra.mxu0 %v5097
    %5742 = vmatprep.subr.bf16.mxu0 0
    %5743 = vmatpush1.bf16.xpose.msra.mxu0 %v5098
    %5744 = vmatprep.subr.bf16.mxu0 0
    %5745 = vmatpush1.bf16.xpose.msra.mxu0 %v5099
    %5746 = vmatprep.subr.bf16.mxu0 0
    %5747 = vmatpush1.bf16.xpose.msra.mxu0 %v5100
    %5748 = vmatprep.subr.bf16.mxu0 0
    %5749 = vmatpush1.bf16.xpose.msra.mxu0 %v5101
    %5750 = vmatprep.subr.bf16.mxu0 0
    %5751 = vmatpush1.bf16.xpose.msra.mxu0 %v5102
    %5752 = vmatprep.subr.bf16.mxu0 0
    %5753 = vmatpush1.bf16.xpose.msra.mxu0 %v5103
    %5754 = vmatprep.subr.bf16.mxu0 0
    %5755 = vmatpush1.bf16.xpose.msra.mxu0 %v5104
    %5756 = vmatprep.subr.bf16.mxu0 0
    %5757 = vmatpush1.bf16.xpose.msra.mxu0 %v5105
    %5758 = vmatprep.subr.bf16.mxu0 0
    %5759 = vmatpush1.bf16.xpose.msra.mxu0 %v5106
    %5760 = vmatprep.subr.bf16.mxu0 0
    %5761 = vmatpush1.bf16.xpose.msra.mxu0 %v5107
    %5762 = vmatprep.subr.bf16.mxu0 0
    %5763 = vmatpush1.bf16.xpose.msra.mxu0 %v5108
    %5764 = vmatprep.subr.bf16.mxu0 0
    %5765 = vmatpush1.bf16.xpose.msra.mxu0 %v5109
    %5766 = vmatprep.subr.bf16.mxu0 0
    %5767 = vmatpush1.bf16.xpose.msra.mxu0 %v5110
    %5768 = vmatprep.subr.bf16.mxu0 0
    %5769 = vmatpush1.bf16.xpose.msra.mxu0 %v5111
    %5770 = vmatprep.subr.bf16.mxu0 0
    %5771 = vmatpush1.bf16.xpose.msra.mxu0 %v5112
    %5772 = vmatprep.mubr.bf16.mxu0 0
    %5773 = vmatmul.mubr.bf16.gmra.mrb[0].mxu0 %v5562
    %v5774 = vpop.f32.mrb[0].mxu0
    %v5775 = vadd.f32 %v5603, %v5774
    %v5776 = vpop.f32.mrb[0].mxu0
    %v5777 = vadd.f32 %v5605, %v5776
    %v5778 = vpop.f32.mrb[0].mxu0
    %v5779 = vadd.f32 %v5607, %v5778
    %v5780 = vpop.f32.mrb[0].mxu0
    %v5781 = vadd.f32 %v5609, %v5780
    %5782 = vdwg.mxu0
    %5783 = vmatprep.subr.bf16.mxu0 0
    %5784 = vmatpush1.bf16.xpose.msra.mxu0 %v5113
    %5785 = vmatprep.subr.bf16.mxu0 0
    %5786 = vmatpush1.bf16.xpose.msra.mxu0 %v5114
    %5787 = vmatprep.subr.bf16.mxu0 0
    %5788 = vmatpush1.bf16.xpose.msra.mxu0 %v5115
    %5789 = vmatprep.subr.bf16.mxu0 0
    %5790 = vmatpush1.bf16.xpose.msra.mxu0 %v5116
    %5791 = vmatprep.subr.bf16.mxu0 0
    %5792 = vmatpush1.bf16.xpose.msra.mxu0 %v5117
    %5793 = vmatprep.subr.bf16.mxu0 0
    %5794 = vmatpush1.bf16.xpose.msra.mxu0 %v5118
    %5795 = vmatprep.subr.bf16.mxu0 0
    %5796 = vmatpush1.bf16.xpose.msra.mxu0 %v5119
    %5797 = vmatprep.subr.bf16.mxu0 0
    %5798 = vmatpush1.bf16.xpose.msra.mxu0 %v5120
    %5799 = vmatprep.subr.bf16.mxu0 0
    %5800 = vmatpush1.bf16.xpose.msra.mxu0 %v5121
    %5801 = vmatprep.subr.bf16.mxu0 0
    %5802 = vmatpush1.bf16.xpose.msra.mxu0 %v5122
    %5803 = vmatprep.subr.bf16.mxu0 0
    %5804 = vmatpush1.bf16.xpose.msra.mxu0 %v5123
    %5805 = vmatprep.subr.bf16.mxu0 0
    %5806 = vmatpush1.bf16.xpose.msra.mxu0 %v5124
    %5807 = vmatprep.subr.bf16.mxu0 0
    %5808 = vmatpush1.bf16.xpose.msra.mxu0 %v5125
    %5809 = vmatprep.subr.bf16.mxu0 0
    %5810 = vmatpush1.bf16.xpose.msra.mxu0 %v5126
    %5811 = vmatprep.subr.bf16.mxu0 0
    %5812 = vmatpush1.bf16.xpose.msra.mxu0 %v5127
    %5813 = vmatprep.subr.bf16.mxu0 0
    %5814 = vmatpush1.bf16.xpose.msra.mxu0 %v5128
    %5815 = vmatprep.mubr.bf16.mxu0 0
    %5816 = vmatmul.mubr.bf16.gmra.mrb[0].mxu0 %v5562
    %v5817 = vpop.f32.mrb[0].mxu0
    %v5818 = vadd.f32 %v5646, %v5817
    %v5819 = vpop.f32.mrb[0].mxu0
    %v5820 = vadd.f32 %v5648, %v5819
    %v5821 = vpop.f32.mrb[0].mxu0
    %v5822 = vadd.f32 %v5650, %v5821
    %v5823 = vpop.f32.mrb[0].mxu0
    %v5824 = vadd.f32 %v5652, %v5823
    %5825 = vdwg.mxu0
    %5826 = vmatprep.subr.bf16.mxu0 0
    %5827 = vmatpush1.bf16.xpose.msra.mxu0 %v5129
    %5828 = vmatprep.subr.bf16.mxu0 0
    %5829 = vmatpush1.bf16.xpose.msra.mxu0 %v5130
    %5830 = vmatprep.subr.bf16.mxu0 0
    %5831 = vmatpush1.bf16.xpose.msra.mxu0 %v5131
    %5832 = vmatprep.subr.bf16.mxu0 0
    %5833 = vmatpush1.bf16.xpose.msra.mxu0 %v5132
    %5834 = vmatprep.subr.bf16.mxu0 0
    %5835 = vmatpush1.bf16.xpose.msra.mxu0 %v5133
    %5836 = vmatprep.subr.bf16.mxu0 0
    %5837 = vmatpush1.bf16.xpose.msra.mxu0 %v5134
    %5838 = vmatprep.subr.bf16.mxu0 0
    %5839 = vmatpush1.bf16.xpose.msra.mxu0 %v5135
    %5840 = vmatprep.subr.bf16.mxu0 0
    %5841 = vmatpush1.bf16.xpose.msra.mxu0 %v5136
    %5842 = vmatprep.subr.bf16.mxu0 0
    %5843 = vmatpush1.bf16.xpose.msra.mxu0 %v5137
    %5844 = vmatprep.subr.bf16.mxu0 0
    %5845 = vmatpush1.bf16.xpose.msra.mxu0 %v5138
    %5846 = vmatprep.subr.bf16.mxu0 0
    %5847 = vmatpush1.bf16.xpose.msra.mxu0 %v5139
    %5848 = vmatprep.subr.bf16.mxu0 0
    %5849 = vmatpush1.bf16.xpose.msra.mxu0 %v5140
    %5850 = vmatprep.subr.bf16.mxu0 0
    %5851 = vmatpush1.bf16.xpose.msra.mxu0 %v5141
    %5852 = vmatprep.subr.bf16.mxu0 0
    %5853 = vmatpush1.bf16.xpose.msra.mxu0 %v5142
    %5854 = vmatprep.subr.bf16.mxu0 0
    %5855 = vmatpush1.bf16.xpose.msra.mxu0 %v5143
    %5856 = vmatprep.subr.bf16.mxu0 0
    %5857 = vmatpush1.bf16.xpose.msra.mxu0 %v5144
    %5858 = vmatprep.mubr.bf16.mxu0 0
    %5859 = vmatmul.mubr.bf16.gmra.mrb[0].mxu0 %v5562
    %v5860 = vpop.f32.mrb[0].mxu0
    %v5861 = vadd.f32 %v5689, %v5860
    %v5862 = vpop.f32.mrb[0].mxu0
    %v5863 = vadd.f32 %v5691, %v5862
    %v5864 = vpop.f32.mrb[0].mxu0
    %v5865 = vadd.f32 %v5693, %v5864
    %v5866 = vpop.f32.mrb[0].mxu0
    %v5867 = vadd.f32 %v5695, %v5866
    %5868 = vdwg.mxu0
    %5869 = vmatprep.subr.bf16.mxu0 0
    %5870 = vmatpush1.bf16.xpose.msra.mxu0 %v5145
    %5871 = vmatprep.subr.bf16.mxu0 0
    %5872 = vmatpush1.bf16.xpose.msra.mxu0 %v5146
    %5873 = vmatprep.subr.bf16.mxu0 0
    %5874 = vmatpush1.bf16.xpose.msra.mxu0 %v5147
    %5875 = vmatprep.subr.bf16.mxu0 0
    %5876 = vmatpush1.bf16.xpose.msra.mxu0 %v5148
    %5877 = vmatprep.subr.bf16.mxu0 0
    %5878 = vmatpush1.bf16.xpose.msra.mxu0 %v5149
    %5879 = vmatprep.subr.bf16.mxu0 0
    %5880 = vmatpush1.bf16.xpose.msra.mxu0 %v5150
    %5881 = vmatprep.subr.bf16.mxu0 0
    %5882 = vmatpush1.bf16.xpose.msra.mxu0 %v5151
    %5883 = vmatprep.subr.bf16.mxu0 0
    %5884 = vmatpush1.bf16.xpose.msra.mxu0 %v5152
    %5885 = vmatprep.subr.bf16.mxu0 0
    %5886 = vmatpush1.bf16.xpose.msra.mxu0 %v5153
    %5887 = vmatprep.subr.bf16.mxu0 0
    %5888 = vmatpush1.bf16.xpose.msra.mxu0 %v5154
    %5889 = vmatprep.subr.bf16.mxu0 0
    %5890 = vmatpush1.bf16.xpose.msra.mxu0 %v5155
    %5891 = vmatprep.subr.bf16.mxu0 0
    %5892 = vmatpush1.bf16.xpose.msra.mxu0 %v5156
    %5893 = vmatprep.subr.bf16.mxu0 0
    %5894 = vmatpush1.bf16.xpose.msra.mxu0 %v5157
    %5895 = vmatprep.subr.bf16.mxu0 0
    %5896 = vmatpush1.bf16.xpose.msra.mxu0 %v5158
    %5897 = vmatprep.subr.bf16.mxu0 0
    %5898 = vmatpush1.bf16.xpose.msra.mxu0 %v5159
    %5899 = vmatprep.subr.bf16.mxu0 0
    %5900 = vmatpush1.bf16.xpose.msra.mxu0 %v5160
    %5901 = vmatprep.mubr.bf16.mxu0 0
    %5902 = vmatmul.mubr.bf16.gmra.mrb[0].mxu0 %v5562
    %v5903 = vpop.f32.mrb[0].mxu0
    %v5904 = vadd.f32 %v5732, %v5903
    %v5905 = vpop.f32.mrb[0].mxu0
    %v5906 = vadd.f32 %v5734, %v5905
    %v5907 = vpop.f32.mrb[0].mxu0
    %v5908 = vadd.f32 %v5736, %v5907
    %v5909 = vpop.f32.mrb[0].mxu0
    %v5910 = vadd.f32 %v5738, %v5909
    %5911 = vdwg.mxu0
    %v5912 = vmul.f32 %v759, %v5775
    %v5913 = vmul.f32 %v759, %v5777
    %v5914 = vmul.f32 %v759, %v5818
    %v5915 = vmul.f32 %v759, %v5820
    %v5916 = vmul.f32 %v759, %v5861
    %v5917 = vmul.f32 %v759, %v5863
    %v5918 = vmul.f32 %v759, %v5904
    %v5919 = vmul.f32 %v759, %v5906
    %v5920 = vmul.f32 %v759, %v5779
    %v5921 = vmul.f32 %v759, %v5781
    %v5922 = vmul.f32 %v759, %v5822
    %v5923 = vmul.f32 %v759, %v5824
    %v5924 = vmul.f32 %v759, %v5865
    %v5925 = vmul.f32 %v759, %v5867
    %v5926 = vmul.f32 %v759, %v5908
    %v5927 = vmul.f32 %v759, %v5910
    %v5928 = vpack.c.bf16 %v5779, %v5775
    %v5929 = vpack.c.bf16 %v5781, %v5777
    %v5930 = vpack.c.bf16 %v5822, %v5818
    %v5931 = vpack.c.bf16 %v5824, %v5820
    %v5932 = vpack.c.bf16 %v5865, %v5861
    %v5933 = vpack.c.bf16 %v5867, %v5863
    %v5934 = vpack.c.bf16 %v5908, %v5904
    %v5935 = vpack.c.bf16 %v5910, %v5906
    %v5936 = vunpack.c.l.bf16 %v5928
    %v5937 = vunpack.c.l.bf16 %v5929
    %v5938 = vunpack.c.l.bf16 %v5930
    %v5939 = vunpack.c.l.bf16 %v5931
    %v5940 = vunpack.c.l.bf16 %v5932
    %v5941 = vunpack.c.l.bf16 %v5933
    %v5942 = vunpack.c.l.bf16 %v5934
    %v5943 = vunpack.c.l.bf16 %v5935
    %v5944 = vunpack.c.h.bf16 %v5928
    %v5945 = vunpack.c.h.bf16 %v5929
    %v5946 = vunpack.c.h.bf16 %v5930
    %v5947 = vunpack.c.h.bf16 %v5931
    %v5948 = vunpack.c.h.bf16 %v5932
    %v5949 = vunpack.c.h.bf16 %v5933
    %v5950 = vunpack.c.h.bf16 %v5934
    %v5951 = vunpack.c.h.bf16 %v5935
    %v5952 = vsub.f32 %v5775, %v5936
    %v5953 = vsub.f32 %v5777, %v5937
    %v5954 = vsub.f32 %v5818, %v5938
    %v5955 = vsub.f32 %v5820, %v5939
    %v5956 = vsub.f32 %v5861, %v5940
    %v5957 = vsub.f32 %v5863, %v5941
    %v5958 = vsub.f32 %v5904, %v5942
    %v5959 = vsub.f32 %v5906, %v5943
    %v5960 = vsub.f32 %v5779, %v5944
    %v5961 = vsub.f32 %v5781, %v5945
    %v5962 = vsub.f32 %v5822, %v5946
    %v5963 = vsub.f32 %v5824, %v5947
    %v5964 = vsub.f32 %v5865, %v5948
    %v5965 = vsub.f32 %v5867, %v5949
    %v5966 = vsub.f32 %v5908, %v5950
    %v5967 = vsub.f32 %v5910, %v5951
    %v5968 = vpack.c.bf16 %v5960, %v5952
    %v5969 = vpack.c.bf16 %v5961, %v5953
    %v5970 = vpack.c.bf16 %v5962, %v5954
    %v5971 = vpack.c.bf16 %v5963, %v5955
    %v5972 = vpack.c.bf16 %v5964, %v5956
    %v5973 = vpack.c.bf16 %v5965, %v5957
    %v5974 = vpack.c.bf16 %v5966, %v5958
    %v5975 = vpack.c.bf16 %v5967, %v5959
    %5976 = vmatprep.subr.bf16.mxu0 %v2361
    %5977 = vmatpush1.bf16.xpose.msra.mxu0 %v2360
    %5978 = vmatprep.subr.bf16.mxu0 %v2369
    %5979 = vmatpush1.bf16.xpose.msra.mxu0 %v2368
    %5980 = vmatprep.subr.bf16.mxu0 %v2377
    %5981 = vmatpush1.bf16.xpose.msra.mxu0 %v2376
    %5982 = vmatprep.subr.bf16.mxu0 %v2385
    %5983 = vmatpush1.bf16.xpose.msra.mxu0 %v2384
    %5984 = vmatprep.subr.bf16.mxu0 %v2393
    %5985 = vmatpush1.bf16.xpose.msra.mxu0 %v2392
    %5986 = vmatprep.subr.bf16.mxu0 %v2401
    %5987 = vmatpush1.bf16.xpose.msra.mxu0 %v2400
    %5988 = vmatprep.subr.bf16.mxu0 %v2409
    %5989 = vmatpush1.bf16.xpose.msra.mxu0 %v2408
    %5990 = vmatprep.subr.bf16.mxu0 %v2417
    %5991 = vmatpush1.bf16.xpose.msra.mxu0 %v2416
    %5992 = vmatprep.subr.bf16.mxu0 %v2425
    %5993 = vmatpush1.bf16.xpose.msra.mxu0 %v2424
    %5994 = vmatprep.subr.bf16.mxu0 %v2433
    %5995 = vmatpush1.bf16.xpose.msra.mxu0 %v2432
    %5996 = vmatprep.subr.bf16.mxu0 %v2441
    %5997 = vmatpush1.bf16.xpose.msra.mxu0 %v2440
    %5998 = vmatprep.subr.bf16.mxu0 %v2449
    %5999 = vmatpush1.bf16.xpose.msra.mxu0 %v2448
    %6000 = vmatprep.subr.bf16.mxu0 %v2457
    %6001 = vmatpush1.bf16.xpose.msra.mxu0 %v2456
    %6002 = vmatprep.subr.bf16.mxu0 %v2465
    %6003 = vmatpush1.bf16.xpose.msra.mxu0 %v2464
    %6004 = vmatprep.subr.bf16.mxu0 %v2473
    %6005 = vmatpush1.bf16.xpose.msra.mxu0 %v2472
    %6006 = vmatprep.subr.bf16.mxu0 %v2481
    %6007 = vmatpush1.bf16.xpose.msra.mxu0 %v2480
    %6008 = vmatprep.mubr.bf16.mxu0 %v5969
    %6009 = vmatmul.mubr.bf16.gmra.mrb[0].mxu0 %v5968
    %v6010 = vpop.f32.mrb[0].mxu0
    %v6011 = vadd.f32 0.0, %v6010
    %v6012 = vpop.f32.mrb[0].mxu0
    %v6013 = vadd.f32 0.0, %v6012
    %v6014 = vpop.f32.mrb[0].mxu0
    %v6015 = vadd.f32 0.0, %v6014
    %v6016 = vpop.f32.mrb[0].mxu0
    %v6017 = vadd.f32 0.0, %v6016
    %6018 = vdwg.mxu0
    %6019 = vmatprep.subr.bf16.mxu0 %v2363
    %6020 = vmatpush1.bf16.xpose.msra.mxu0 %v2362
    %6021 = vmatprep.subr.bf16.mxu0 %v2371
    %6022 = vmatpush1.bf16.xpose.msra.mxu0 %v2370
    %6023 = vmatprep.subr.bf16.mxu0 %v2379
    %6024 = vmatpush1.bf16.xpose.msra.mxu0 %v2378
    %6025 = vmatprep.subr.bf16.mxu0 %v2387
    %6026 = vmatpush1.bf16.xpose.msra.mxu0 %v2386
    %6027 = vmatprep.subr.bf16.mxu0 %v2395
    %6028 = vmatpush1.bf16.xpose.msra.mxu0 %v2394
    %6029 = vmatprep.subr.bf16.mxu0 %v2403
    %6030 = vmatpush1.bf16.xpose.msra.mxu0 %v2402
    %6031 = vmatprep.subr.bf16.mxu0 %v2411
    %6032 = vmatpush1.bf16.xpose.msra.mxu0 %v2410
    %6033 = vmatprep.subr.bf16.mxu0 %v2419
    %6034 = vmatpush1.bf16.xpose.msra.mxu0 %v2418
    %6035 = vmatprep.subr.bf16.mxu0 %v2427
    %6036 = vmatpush1.bf16.xpose.msra.mxu0 %v2426
    %6037 = vmatprep.subr.bf16.mxu0 %v2435
    %6038 = vmatpush1.bf16.xpose.msra.mxu0 %v2434
    %6039 = vmatprep.subr.bf16.mxu0 %v2443
    %6040 = vmatpush1.bf16.xpose.msra.mxu0 %v2442
    %6041 = vmatprep.subr.bf16.mxu0 %v2451
    %6042 = vmatpush1.bf16.xpose.msra.mxu0 %v2450
    %6043 = vmatprep.subr.bf16.mxu0 %v2459
    %6044 = vmatpush1.bf16.xpose.msra.mxu0 %v2458
    %6045 = vmatprep.subr.bf16.mxu0 %v2467
    %6046 = vmatpush1.bf16.xpose.msra.mxu0 %v2466
    %6047 = vmatprep.subr.bf16.mxu0 %v2475
    %6048 = vmatpush1.bf16.xpose.msra.mxu0 %v2474
    %6049 = vmatprep.subr.bf16.mxu0 %v2483
    %6050 = vmatpush1.bf16.xpose.msra.mxu0 %v2482
    %6051 = vmatprep.mubr.bf16.mxu0 %v5971
    %6052 = vmatmul.mubr.bf16.gmra.mrb[0].mxu0 %v5970
    %v6053 = vpop.f32.mrb[0].mxu0
    %v6054 = vadd.f32 %v6011, %v6053
    %v6055 = vpop.f32.mrb[0].mxu0
    %v6056 = vadd.f32 %v6013, %v6055
    %v6057 = vpop.f32.mrb[0].mxu0
    %v6058 = vadd.f32 %v6015, %v6057
    %v6059 = vpop.f32.mrb[0].mxu0
    %v6060 = vadd.f32 %v6017, %v6059
    %6061 = vdwg.mxu0
    %6062 = vmatprep.subr.bf16.mxu0 %v2365
    %6063 = vmatpush1.bf16.xpose.msra.mxu0 %v2364
    %6064 = vmatprep.subr.bf16.mxu0 %v2373
    %6065 = vmatpush1.bf16.xpose.msra.mxu0 %v2372
    %6066 = vmatprep.subr.bf16.mxu0 %v2381
    %6067 = vmatpush1.bf16.xpose.msra.mxu0 %v2380
    %6068 = vmatprep.subr.bf16.mxu0 %v2389
    %6069 = vmatpush1.bf16.xpose.msra.mxu0 %v2388
    %6070 = vmatprep.subr.bf16.mxu0 %v2397
    %6071 = vmatpush1.bf16.xpose.msra.mxu0 %v2396
    %6072 = vmatprep.subr.bf16.mxu0 %v2405
    %6073 = vmatpush1.bf16.xpose.msra.mxu0 %v2404
    %6074 = vmatprep.subr.bf16.mxu0 %v2413
    %6075 = vmatpush1.bf16.xpose.msra.mxu0 %v2412
    %6076 = vmatprep.subr.bf16.mxu0 %v2421
    %6077 = vmatpush1.bf16.xpose.msra.mxu0 %v2420
    %6078 = vmatprep.subr.bf16.mxu0 %v2429
    %6079 = vmatpush1.bf16.xpose.msra.mxu0 %v2428
    %6080 = vmatprep.subr.bf16.mxu0 %v2437
    %6081 = vmatpush1.bf16.xpose.msra.mxu0 %v2436
    %6082 = vmatprep.subr.bf16.mxu0 %v2445
    %6083 = vmatpush1.bf16.xpose.msra.mxu0 %v2444
    %6084 = vmatprep.subr.bf16.mxu0 %v2453
    %6085 = vmatpush1.bf16.xpose.msra.mxu0 %v2452
    %6086 = vmatprep.subr.bf16.mxu0 %v2461
    %6087 = vmatpush1.bf16.xpose.msra.mxu0 %v2460
    %6088 = vmatprep.subr.bf16.mxu0 %v2469
    %6089 = vmatpush1.bf16.xpose.msra.mxu0 %v2468
    %6090 = vmatprep.subr.bf16.mxu0 %v2477
    %6091 = vmatpush1.bf16.xpose.msra.mxu0 %v2476
    %6092 = vmatprep.subr.bf16.mxu0 %v2485
    %6093 = vmatpush1.bf16.xpose.msra.mxu0 %v2484
    %6094 = vmatprep.mubr.bf16.mxu0 %v5973
    %6095 = vmatmul.mubr.bf16.gmra.mrb[0].mxu0 %v5972
    %v6096 = vpop.f32.mrb[0].mxu0
    %v6097 = vadd.f32 %v6054, %v6096
    %v6098 = vpop.f32.mrb[0].mxu0
    %v6099 = vadd.f32 %v6056, %v6098
    %v6100 = vpop.f32.mrb[0].mxu0
    %v6101 = vadd.f32 %v6058, %v6100
    %v6102 = vpop.f32.mrb[0].mxu0
    %v6103 = vadd.f32 %v6060, %v6102
    %6104 = vdwg.mxu0
    %6105 = vmatprep.subr.bf16.mxu0 %v2367
    %6106 = vmatpush1.bf16.xpose.msra.mxu0 %v2366
    %6107 = vmatprep.subr.bf16.mxu0 %v2375
    %6108 = vmatpush1.bf16.xpose.msra.mxu0 %v2374
    %6109 = vmatprep.subr.bf16.mxu0 %v2383
    %6110 = vmatpush1.bf16.xpose.msra.mxu0 %v2382
    %6111 = vmatprep.subr.bf16.mxu0 %v2391
    %6112 = vmatpush1.bf16.xpose.msra.mxu0 %v2390
    %6113 = vmatprep.subr.bf16.mxu0 %v2399
    %6114 = vmatpush1.bf16.xpose.msra.mxu0 %v2398
    %6115 = vmatprep.subr.bf16.mxu0 %v2407
    %6116 = vmatpush1.bf16.xpose.msra.mxu0 %v2406
    %6117 = vmatprep.subr.bf16.mxu0 %v2415
    %6118 = vmatpush1.bf16.xpose.msra.mxu0 %v2414
    %6119 = vmatprep.subr.bf16.mxu0 %v2423
    %6120 = vmatpush1.bf16.xpose.msra.mxu0 %v2422
    %6121 = vmatprep.subr.bf16.mxu0 %v2431
    %6122 = vmatpush1.bf16.xpose.msra.mxu0 %v2430
    %6123 = vmatprep.subr.bf16.mxu0 %v2439
    %6124 = vmatpush1.bf16.xpose.msra.mxu0 %v2438
    %6125 = vmatprep.subr.bf16.mxu0 %v2447
    %6126 = vmatpush1.bf16.xpose.msra.mxu0 %v2446
    %6127 = vmatprep.subr.bf16.mxu0 %v2455
    %6128 = vmatpush1.bf16.xpose.msra.mxu0 %v2454
    %6129 = vmatprep.subr.bf16.mxu0 %v2463
    %6130 = vmatpush1.bf16.xpose.msra.mxu0 %v2462
    %6131 = vmatprep.subr.bf16.mxu0 %v2471
    %6132 = vmatpush1.bf16.xpose.msra.mxu0 %v2470
    %6133 = vmatprep.subr.bf16.mxu0 %v2479
    %6134 = vmatpush1.bf16.xpose.msra.mxu0 %v2478
    %6135 = vmatprep.subr.bf16.mxu0 %v2487
    %6136 = vmatpush1.bf16.xpose.msra.mxu0 %v2486
    %6137 = vmatprep.mubr.bf16.mxu0 %v5975
    %6138 = vmatmul.mubr.bf16.gmra.mrb[0].mxu0 %v5974
    %v6139 = vpop.f32.mrb[0].mxu0
    %v6140 = vadd.f32 %v6097, %v6139
    %v6141 = vpop.f32.mrb[0].mxu0
    %v6142 = vadd.f32 %v6099, %v6141
    %v6143 = vpop.f32.mrb[0].mxu0
    %v6144 = vadd.f32 %v6101, %v6143
    %v6145 = vpop.f32.mrb[0].mxu0
    %v6146 = vadd.f32 %v6103, %v6145
    %6147 = vdwg.mxu0
    %6148 = vmatprep.subr.bf16.mxu0 %v2489
    %6149 = vmatpush1.bf16.xpose.msra.mxu0 %v2488
    %6150 = vmatprep.subr.bf16.mxu0 %v2497
    %6151 = vmatpush1.bf16.xpose.msra.mxu0 %v2496
    %6152 = vmatprep.subr.bf16.mxu0 %v2505
    %6153 = vmatpush1.bf16.xpose.msra.mxu0 %v2504
    %6154 = vmatprep.subr.bf16.mxu0 %v2513
    %6155 = vmatpush1.bf16.xpose.msra.mxu0 %v2512
    %6156 = vmatprep.subr.bf16.mxu0 %v2521
    %6157 = vmatpush1.bf16.xpose.msra.mxu0 %v2520
    %6158 = vmatprep.subr.bf16.mxu0 %v2529
    %6159 = vmatpush1.bf16.xpose.msra.mxu0 %v2528
    %6160 = vmatprep.subr.bf16.mxu0 %v2537
    %6161 = vmatpush1.bf16.xpose.msra.mxu0 %v2536
    %6162 = vmatprep.subr.bf16.mxu0 %v2545
    %6163 = vmatpush1.bf16.xpose.msra.mxu0 %v2544
    %6164 = vmatprep.subr.bf16.mxu0 %v2553
    %6165 = vmatpush1.bf16.xpose.msra.mxu0 %v2552
    %6166 = vmatprep.subr.bf16.mxu0 %v2561
    %6167 = vmatpush1.bf16.xpose.msra.mxu0 %v2560
    %6168 = vmatprep.subr.bf16.mxu0 %v2569
    %6169 = vmatpush1.bf16.xpose.msra.mxu0 %v2568
    %6170 = vmatprep.subr.bf16.mxu0 %v2577
    %6171 = vmatpush1.bf16.xpose.msra.mxu0 %v2576
    %6172 = vmatprep.subr.bf16.mxu0 %v2585
    %6173 = vmatpush1.bf16.xpose.msra.mxu0 %v2584
    %6174 = vmatprep.subr.bf16.mxu0 %v2593
    %6175 = vmatpush1.bf16.xpose.msra.mxu0 %v2592
    %6176 = vmatprep.subr.bf16.mxu0 %v2601
    %6177 = vmatpush1.bf16.xpose.msra.mxu0 %v2600
    %6178 = vmatprep.subr.bf16.mxu0 %v2609
    %6179 = vmatpush1.bf16.xpose.msra.mxu0 %v2608
    %6180 = vmatprep.mubr.bf16.mxu0 %v5969
    %6181 = vmatmul.mubr.bf16.gmra.mrb[0].mxu0 %v5968
    %v6182 = vpop.f32.mrb[0].mxu0
    %v6183 = vadd.f32 0.0, %v6182
    %v6184 = vpop.f32.mrb[0].mxu0
    %v6185 = vadd.f32 0.0, %v6184
    %v6186 = vpop.f32.mrb[0].mxu0
    %v6187 = vadd.f32 0.0, %v6186
    %v6188 = vpop.f32.mrb[0].mxu0
    %v6189 = vadd.f32 0.0, %v6188
    %6190 = vdwg.mxu0
    %6191 = vmatprep.subr.bf16.mxu0 %v2491
    %6192 = vmatpush1.bf16.xpose.msra.mxu0 %v2490
    %6193 = vmatprep.subr.bf16.mxu0 %v2499
    %6194 = vmatpush1.bf16.xpose.msra.mxu0 %v2498
    %6195 = vmatprep.subr.bf16.mxu0 %v2507
    %6196 = vmatpush1.bf16.xpose.msra.mxu0 %v2506
    %6197 = vmatprep.subr.bf16.mxu0 %v2515
    %6198 = vmatpush1.bf16.xpose.msra.mxu0 %v2514
    %6199 = vmatprep.subr.bf16.mxu0 %v2523
    %6200 = vmatpush1.bf16.xpose.msra.mxu0 %v2522
    %6201 = vmatprep.subr.bf16.mxu0 %v2531
    %6202 = vmatpush1.bf16.xpose.msra.mxu0 %v2530
    %6203 = vmatprep.subr.bf16.mxu0 %v2539
    %6204 = vmatpush1.bf16.xpose.msra.mxu0 %v2538
    %6205 = vmatprep.subr.bf16.mxu0 %v2547
    %6206 = vmatpush1.bf16.xpose.msra.mxu0 %v2546
    %6207 = vmatprep.subr.bf16.mxu0 %v2555
    %6208 = vmatpush1.bf16.xpose.msra.mxu0 %v2554
    %6209 = vmatprep.subr.bf16.mxu0 %v2563
    %6210 = vmatpush1.bf16.xpose.msra.mxu0 %v2562
    %6211 = vmatprep.subr.bf16.mxu0 %v2571
    %6212 = vmatpush1.bf16.xpose.msra.mxu0 %v2570
    %6213 = vmatprep.subr.bf16.mxu0 %v2579
    %6214 = vmatpush1.bf16.xpose.msra.mxu0 %v2578
    %6215 = vmatprep.subr.bf16.mxu0 %v2587
    %6216 = vmatpush1.bf16.xpose.msra.mxu0 %v2586
    %6217 = vmatprep.subr.bf16.mxu0 %v2595
    %6218 = vmatpush1.bf16.xpose.msra.mxu0 %v2594
    %6219 = vmatprep.subr.bf16.mxu0 %v2603
    %6220 = vmatpush1.bf16.xpose.msra.mxu0 %v2602
    %6221 = vmatprep.subr.bf16.mxu0 %v2611
    %6222 = vmatpush1.bf16.xpose.msra.mxu0 %v2610
    %6223 = vmatprep.mubr.bf16.mxu0 %v5971
    %6224 = vmatmul.mubr.bf16.gmra.mrb[0].mxu0 %v5970
    %v6225 = vpop.f32.mrb[0].mxu0
    %v6226 = vadd.f32 %v6183, %v6225
    %v6227 = vpop.f32.mrb[0].mxu0
    %v6228 = vadd.f32 %v6185, %v6227
    %v6229 = vpop.f32.mrb[0].mxu0
    %v6230 = vadd.f32 %v6187, %v6229
    %v6231 = vpop.f32.mrb[0].mxu0
    %v6232 = vadd.f32 %v6189, %v6231
    %6233 = vdwg.mxu0
    %6234 = vmatprep.subr.bf16.mxu0 %v2493
    %6235 = vmatpush1.bf16.xpose.msra.mxu0 %v2492
    %6236 = vmatprep.subr.bf16.mxu0 %v2501
    %6237 = vmatpush1.bf16.xpose.msra.mxu0 %v2500
    %6238 = vmatprep.subr.bf16.mxu0 %v2509
    %6239 = vmatpush1.bf16.xpose.msra.mxu0 %v2508
    %6240 = vmatprep.subr.bf16.mxu0 %v2517
    %6241 = vmatpush1.bf16.xpose.msra.mxu0 %v2516
    %6242 = vmatprep.subr.bf16.mxu0 %v2525
    %6243 = vmatpush1.bf16.xpose.msra.mxu0 %v2524
    %6244 = vmatprep.subr.bf16.mxu0 %v2533
    %6245 = vmatpush1.bf16.xpose.msra.mxu0 %v2532
    %6246 = vmatprep.subr.bf16.mxu0 %v2541
    %6247 = vmatpush1.bf16.xpose.msra.mxu0 %v2540
    %6248 = vmatprep.subr.bf16.mxu0 %v2549
    %6249 = vmatpush1.bf16.xpose.msra.mxu0 %v2548
    %6250 = vmatprep.subr.bf16.mxu0 %v2557
    %6251 = vmatpush1.bf16.xpose.msra.mxu0 %v2556
    %6252 = vmatprep.subr.bf16.mxu0 %v2565
    %6253 = vmatpush1.bf16.xpose.msra.mxu0 %v2564
    %6254 = vmatprep.subr.bf16.mxu0 %v2573
    %6255 = vmatpush1.bf16.xpose.msra.mxu0 %v2572
    %6256 = vmatprep.subr.bf16.mxu0 %v2581
    %6257 = vmatpush1.bf16.xpose.msra.mxu0 %v2580
    %6258 = vmatprep.subr.bf16.mxu0 %v2589
    %6259 = vmatpush1.bf16.xpose.msra.mxu0 %v2588
    %6260 = vmatprep.subr.bf16.mxu0 %v2597
    %6261 = vmatpush1.bf16.xpose.msra.mxu0 %v2596
    %6262 = vmatprep.subr.bf16.mxu0 %v2605
    %6263 = vmatpush1.bf16.xpose.msra.mxu0 %v2604
    %6264 = vmatprep.subr.bf16.mxu0 %v2613
    %6265 = vmatpush1.bf16.xpose.msra.mxu0 %v2612
    %6266 = vmatprep.mubr.bf16.mxu0 %v5973
    %6267 = vmatmul.mubr.bf16.gmra.mrb[0].mxu0 %v5972
    %v6268 = vpop.f32.mrb[0].mxu0
    %v6269 = vadd.f32 %v6226, %v6268
    %v6270 = vpop.f32.mrb[0].mxu0
    %v6271 = vadd.f32 %v6228, %v6270
    %v6272 = vpop.f32.mrb[0].mxu0
    %v6273 = vadd.f32 %v6230, %v6272
    %v6274 = vpop.f32.mrb[0].mxu0
    %v6275 = vadd.f32 %v6232, %v6274
    %6276 = vdwg.mxu0
    %6277 = vmatprep.subr.bf16.mxu0 %v2495
    %6278 = vmatpush1.bf16.xpose.msra.mxu0 %v2494
    %6279 = vmatprep.subr.bf16.mxu0 %v2503
    %6280 = vmatpush1.bf16.xpose.msra.mxu0 %v2502
    %6281 = vmatprep.subr.bf16.mxu0 %v2511
    %6282 = vmatpush1.bf16.xpose.msra.mxu0 %v2510
    %6283 = vmatprep.subr.bf16.mxu0 %v2519
    %6284 = vmatpush1.bf16.xpose.msra.mxu0 %v2518
    %6285 = vmatprep.subr.bf16.mxu0 %v2527
    %6286 = vmatpush1.bf16.xpose.msra.mxu0 %v2526
    %6287 = vmatprep.subr.bf16.mxu0 %v2535
    %6288 = vmatpush1.bf16.xpose.msra.mxu0 %v2534
    %6289 = vmatprep.subr.bf16.mxu0 %v2543
    %6290 = vmatpush1.bf16.xpose.msra.mxu0 %v2542
    %6291 = vmatprep.subr.bf16.mxu0 %v2551
    %6292 = vmatpush1.bf16.xpose.msra.mxu0 %v2550
    %6293 = vmatprep.subr.bf16.mxu0 %v2559
    %6294 = vmatpush1.bf16.xpose.msra.mxu0 %v2558
    %6295 = vmatprep.subr.bf16.mxu0 %v2567
    %6296 = vmatpush1.bf16.xpose.msra.mxu0 %v2566
    %6297 = vmatprep.subr.bf16.mxu0 %v2575
    %6298 = vmatpush1.bf16.xpose.msra.mxu0 %v2574
    %6299 = vmatprep.subr.bf16.mxu0 %v2583
    %6300 = vmatpush1.bf16.xpose.msra.mxu0 %v2582
    %6301 = vmatprep.subr.bf16.mxu0 %v2591
    %6302 = vmatpush1.bf16.xpose.msra.mxu0 %v2590
    %6303 = vmatprep.subr.bf16.mxu0 %v2599
    %6304 = vmatpush1.bf16.xpose.msra.mxu0 %v2598
    %6305 = vmatprep.subr.bf16.mxu0 %v2607
    %6306 = vmatpush1.bf16.xpose.msra.mxu0 %v2606
    %6307 = vmatprep.subr.bf16.mxu0 %v2615
    %6308 = vmatpush1.bf16.xpose.msra.mxu0 %v2614
    %6309 = vmatprep.mubr.bf16.mxu0 %v5975
    %6310 = vmatmul.mubr.bf16.gmra.mrb[0].mxu0 %v5974
    %v6311 = vpop.f32.mrb[0].mxu0
    %v6312 = vadd.f32 %v6269, %v6311
    %v6313 = vpop.f32.mrb[0].mxu0
    %v6314 = vadd.f32 %v6271, %v6313
    %v6315 = vpop.f32.mrb[0].mxu0
    %v6316 = vadd.f32 %v6273, %v6315
    %v6317 = vpop.f32.mrb[0].mxu0
    %v6318 = vadd.f32 %v6275, %v6317
    %6319 = vdwg.mxu0
    %6320 = vmatprep.subr.bf16.mxu0 %v2617
    %6321 = vmatpush1.bf16.xpose.msra.mxu0 %v2616
    %6322 = vmatprep.subr.bf16.mxu0 %v2625
    %6323 = vmatpush1.bf16.xpose.msra.mxu0 %v2624
    %6324 = vmatprep.subr.bf16.mxu0 %v2633
    %6325 = vmatpush1.bf16.xpose.msra.mxu0 %v2632
    %6326 = vmatprep.subr.bf16.mxu0 %v2641
    %6327 = vmatpush1.bf16.xpose.msra.mxu0 %v2640
    %6328 = vmatprep.subr.bf16.mxu0 %v2649
    %6329 = vmatpush1.bf16.xpose.msra.mxu0 %v2648
    %6330 = vmatprep.subr.bf16.mxu0 %v2657
    %6331 = vmatpush1.bf16.xpose.msra.mxu0 %v2656
    %6332 = vmatprep.subr.bf16.mxu0 %v2665
    %6333 = vmatpush1.bf16.xpose.msra.mxu0 %v2664
    %6334 = vmatprep.subr.bf16.mxu0 %v2673
    %6335 = vmatpush1.bf16.xpose.msra.mxu0 %v2672
    %6336 = vmatprep.subr.bf16.mxu0 %v2681
    %6337 = vmatpush1.bf16.xpose.msra.mxu0 %v2680
    %6338 = vmatprep.subr.bf16.mxu0 %v2689
    %6339 = vmatpush1.bf16.xpose.msra.mxu0 %v2688
    %6340 = vmatprep.subr.bf16.mxu0 %v2697
    %6341 = vmatpush1.bf16.xpose.msra.mxu0 %v2696
    %6342 = vmatprep.subr.bf16.mxu0 %v2705
    %6343 = vmatpush1.bf16.xpose.msra.mxu0 %v2704
    %6344 = vmatprep.subr.bf16.mxu0 %v2713
    %6345 = vmatpush1.bf16.xpose.msra.mxu0 %v2712
    %6346 = vmatprep.subr.bf16.mxu0 %v2721
    %6347 = vmatpush1.bf16.xpose.msra.mxu0 %v2720
    %6348 = vmatprep.subr.bf16.mxu0 %v2729
    %6349 = vmatpush1.bf16.xpose.msra.mxu0 %v2728
    %6350 = vmatprep.subr.bf16.mxu0 %v2737
    %6351 = vmatpush1.bf16.xpose.msra.mxu0 %v2736
    %6352 = vmatprep.mubr.bf16.mxu0 %v5969
    %6353 = vmatmul.mubr.bf16.gmra.mrb[0].mxu0 %v5968
    %v6354 = vpop.f32.mrb[0].mxu0
    %v6355 = vadd.f32 0.0, %v6354
    %v6356 = vpop.f32.mrb[0].mxu0
    %v6357 = vadd.f32 0.0, %v6356
    %v6358 = vpop.f32.mrb[0].mxu0
    %v6359 = vadd.f32 0.0, %v6358
    %v6360 = vpop.f32.mrb[0].mxu0
    %v6361 = vadd.f32 0.0, %v6360
    %6362 = vdwg.mxu0
    %6363 = vmatprep.subr.bf16.mxu0 %v2619
    %6364 = vmatpush1.bf16.xpose.msra.mxu0 %v2618
    %6365 = vmatprep.subr.bf16.mxu0 %v2627
    %6366 = vmatpush1.bf16.xpose.msra.mxu0 %v2626
    %6367 = vmatprep.subr.bf16.mxu0 %v2635
    %6368 = vmatpush1.bf16.xpose.msra.mxu0 %v2634
    %6369 = vmatprep.subr.bf16.mxu0 %v2643
    %6370 = vmatpush1.bf16.xpose.msra.mxu0 %v2642
    %6371 = vmatprep.subr.bf16.mxu0 %v2651
    %6372 = vmatpush1.bf16.xpose.msra.mxu0 %v2650
    %6373 = vmatprep.subr.bf16.mxu0 %v2659
    %6374 = vmatpush1.bf16.xpose.msra.mxu0 %v2658
    %6375 = vmatprep.subr.bf16.mxu0 %v2667
    %6376 = vmatpush1.bf16.xpose.msra.mxu0 %v2666
    %6377 = vmatprep.subr.bf16.mxu0 %v2675
    %6378 = vmatpush1.bf16.xpose.msra.mxu0 %v2674
    %6379 = vmatprep.subr.bf16.mxu0 %v2683
    %6380 = vmatpush1.bf16.xpose.msra.mxu0 %v2682
    %6381 = vmatprep.subr.bf16.mxu0 %v2691
    %6382 = vmatpush1.bf16.xpose.msra.mxu0 %v2690
    %6383 = vmatprep.subr.bf16.mxu0 %v2699
    %6384 = vmatpush1.bf16.xpose.msra.mxu0 %v2698
    %6385 = vmatprep.subr.bf16.mxu0 %v2707
    %6386 = vmatpush1.bf16.xpose.msra.mxu0 %v2706
    %6387 = vmatprep.subr.bf16.mxu0 %v2715
    %6388 = vmatpush1.bf16.xpose.msra.mxu0 %v2714
    %6389 = vmatprep.subr.bf16.mxu0 %v2723
    %6390 = vmatpush1.bf16.xpose.msra.mxu0 %v2722
    %6391 = vmatprep.subr.bf16.mxu0 %v2731
    %6392 = vmatpush1.bf16.xpose.msra.mxu0 %v2730
    %6393 = vmatprep.subr.bf16.mxu0 %v2739
    %6394 = vmatpush1.bf16.xpose.msra.mxu0 %v2738
    %6395 = vmatprep.mubr.bf16.mxu0 %v5971
    %6396 = vmatmul.mubr.bf16.gmra.mrb[0].mxu0 %v5970
    %v6397 = vpop.f32.mrb[0].mxu0
    %v6398 = vadd.f32 %v6355, %v6397
    %v6399 = vpop.f32.mrb[0].mxu0
    %v6400 = vadd.f32 %v6357, %v6399
    %v6401 = vpop.f32.mrb[0].mxu0
    %v6402 = vadd.f32 %v6359, %v6401
    %v6403 = vpop.f32.mrb[0].mxu0
    %v6404 = vadd.f32 %v6361, %v6403
    %6405 = vdwg.mxu0
    %6406 = vmatprep.subr.bf16.mxu0 %v2621
    %6407 = vmatpush1.bf16.xpose.msra.mxu0 %v2620
    %6408 = vmatprep.subr.bf16.mxu0 %v2629
    %6409 = vmatpush1.bf16.xpose.msra.mxu0 %v2628
    %6410 = vmatprep.subr.bf16.mxu0 %v2637
    %6411 = vmatpush1.bf16.xpose.msra.mxu0 %v2636
    %6412 = vmatprep.subr.bf16.mxu0 %v2645
    %6413 = vmatpush1.bf16.xpose.msra.mxu0 %v2644
    %6414 = vmatprep.subr.bf16.mxu0 %v2653
    %6415 = vmatpush1.bf16.xpose.msra.mxu0 %v2652
    %6416 = vmatprep.subr.bf16.mxu0 %v2661
    %6417 = vmatpush1.bf16.xpose.msra.mxu0 %v2660
    %6418 = vmatprep.subr.bf16.mxu0 %v2669
    %6419 = vmatpush1.bf16.xpose.msra.mxu0 %v2668
    %6420 = vmatprep.subr.bf16.mxu0 %v2677
    %6421 = vmatpush1.bf16.xpose.msra.mxu0 %v2676
    %6422 = vmatprep.subr.bf16.mxu0 %v2685
    %6423 = vmatpush1.bf16.xpose.msra.mxu0 %v2684
    %6424 = vmatprep.subr.bf16.mxu0 %v2693
    %6425 = vmatpush1.bf16.xpose.msra.mxu0 %v2692
    %6426 = vmatprep.subr.bf16.mxu0 %v2701
    %6427 = vmatpush1.bf16.xpose.msra.mxu0 %v2700
    %6428 = vmatprep.subr.bf16.mxu0 %v2709
    %6429 = vmatpush1.bf16.xpose.msra.mxu0 %v2708
    %6430 = vmatprep.subr.bf16.mxu0 %v2717
    %6431 = vmatpush1.bf16.xpose.msra.mxu0 %v2716
    %6432 = vmatprep.subr.bf16.mxu0 %v2725
    %6433 = vmatpush1.bf16.xpose.msra.mxu0 %v2724
    %6434 = vmatprep.subr.bf16.mxu0 %v2733
    %6435 = vmatpush1.bf16.xpose.msra.mxu0 %v2732
    %6436 = vmatprep.subr.bf16.mxu0 %v2741
    %6437 = vmatpush1.bf16.xpose.msra.mxu0 %v2740
    %6438 = vmatprep.mubr.bf16.mxu0 %v5973
    %6439 = vmatmul.mubr.bf16.gmra.mrb[0].mxu0 %v5972
    %v6440 = vpop.f32.mrb[0].mxu0
    %v6441 = vadd.f32 %v6398, %v6440
    %v6442 = vpop.f32.mrb[0].mxu0
    %v6443 = vadd.f32 %v6400, %v6442
    %v6444 = vpop.f32.mrb[0].mxu0
    %v6445 = vadd.f32 %v6402, %v6444
    %v6446 = vpop.f32.mrb[0].mxu0
    %v6447 = vadd.f32 %v6404, %v6446
    %6448 = vdwg.mxu0
    %6449 = vmatprep.subr.bf16.mxu0 %v2623
    %6450 = vmatpush1.bf16.xpose.msra.mxu0 %v2622
    %6451 = vmatprep.subr.bf16.mxu0 %v2631
    %6452 = vmatpush1.bf16.xpose.msra.mxu0 %v2630
    %6453 = vmatprep.subr.bf16.mxu0 %v2639
    %6454 = vmatpush1.bf16.xpose.msra.mxu0 %v2638
    %6455 = vmatprep.subr.bf16.mxu0 %v2647
    %6456 = vmatpush1.bf16.xpose.msra.mxu0 %v2646
    %6457 = vmatprep.subr.bf16.mxu0 %v2655
    %6458 = vmatpush1.bf16.xpose.msra.mxu0 %v2654
    %6459 = vmatprep.subr.bf16.mxu0 %v2663
    %6460 = vmatpush1.bf16.xpose.msra.mxu0 %v2662
    %6461 = vmatprep.subr.bf16.mxu0 %v2671
    %6462 = vmatpush1.bf16.xpose.msra.mxu0 %v2670
    %6463 = vmatprep.subr.bf16.mxu0 %v2679
    %6464 = vmatpush1.bf16.xpose.msra.mxu0 %v2678
    %6465 = vmatprep.subr.bf16.mxu0 %v2687
    %6466 = vmatpush1.bf16.xpose.msra.mxu0 %v2686
    %6467 = vmatprep.subr.bf16.mxu0 %v2695
    %6468 = vmatpush1.bf16.xpose.msra.mxu0 %v2694
    %6469 = vmatprep.subr.bf16.mxu0 %v2703
    %6470 = vmatpush1.bf16.xpose.msra.mxu0 %v2702
    %6471 = vmatprep.subr.bf16.mxu0 %v2711
    %6472 = vmatpush1.bf16.xpose.msra.mxu0 %v2710
    %6473 = vmatprep.subr.bf16.mxu0 %v2719
    %6474 = vmatpush1.bf16.xpose.msra.mxu0 %v2718
    %6475 = vmatprep.subr.bf16.mxu0 %v2727
    %6476 = vmatpush1.bf16.xpose.msra.mxu0 %v2726
    %6477 = vmatprep.subr.bf16.mxu0 %v2735
    %6478 = vmatpush1.bf16.xpose.msra.mxu0 %v2734
    %6479 = vmatprep.subr.bf16.mxu0 %v2743
    %6480 = vmatpush1.bf16.xpose.msra.mxu0 %v2742
    %6481 = vmatprep.mubr.bf16.mxu0 %v5975
    %6482 = vmatmul.mubr.bf16.gmra.mrb[0].mxu0 %v5974
    %v6483 = vpop.f32.mrb[0].mxu0
    %v6484 = vadd.f32 %v6441, %v6483
    %v6485 = vpop.f32.mrb[0].mxu0
    %v6486 = vadd.f32 %v6443, %v6485
    %v6487 = vpop.f32.mrb[0].mxu0
    %v6488 = vadd.f32 %v6445, %v6487
    %v6489 = vpop.f32.mrb[0].mxu0
    %v6490 = vadd.f32 %v6447, %v6489
    %6491 = vdwg.mxu0
    %6492 = vmatprep.subr.bf16.mxu0 %v2745
    %6493 = vmatpush1.bf16.xpose.msra.mxu0 %v2744
    %6494 = vmatprep.subr.bf16.mxu0 %v2753
    %6495 = vmatpush1.bf16.xpose.msra.mxu0 %v2752
    %6496 = vmatprep.subr.bf16.mxu0 %v2761
    %6497 = vmatpush1.bf16.xpose.msra.mxu0 %v2760
    %6498 = vmatprep.subr.bf16.mxu0 %v2769
    %6499 = vmatpush1.bf16.xpose.msra.mxu0 %v2768
    %6500 = vmatprep.subr.bf16.mxu0 %v2777
    %6501 = vmatpush1.bf16.xpose.msra.mxu0 %v2776
    %6502 = vmatprep.subr.bf16.mxu0 %v2785
    %6503 = vmatpush1.bf16.xpose.msra.mxu0 %v2784
    %6504 = vmatprep.subr.bf16.mxu0 %v2793
    %6505 = vmatpush1.bf16.xpose.msra.mxu0 %v2792
    %6506 = vmatprep.subr.bf16.mxu0 %v2801
    %6507 = vmatpush1.bf16.xpose.msra.mxu0 %v2800
    %6508 = vmatprep.subr.bf16.mxu0 %v2809
    %6509 = vmatpush1.bf16.xpose.msra.mxu0 %v2808
    %6510 = vmatprep.subr.bf16.mxu0 %v2817
    %6511 = vmatpush1.bf16.xpose.msra.mxu0 %v2816
    %6512 = vmatprep.subr.bf16.mxu0 %v2825
    %6513 = vmatpush1.bf16.xpose.msra.mxu0 %v2824
    %6514 = vmatprep.subr.bf16.mxu0 %v2833
    %6515 = vmatpush1.bf16.xpose.msra.mxu0 %v2832
    %6516 = vmatprep.subr.bf16.mxu0 %v2841
    %6517 = vmatpush1.bf16.xpose.msra.mxu0 %v2840
    %6518 = vmatprep.subr.bf16.mxu0 %v2849
    %6519 = vmatpush1.bf16.xpose.msra.mxu0 %v2848
    %6520 = vmatprep.subr.bf16.mxu0 %v2857
    %6521 = vmatpush1.bf16.xpose.msra.mxu0 %v2856
    %6522 = vmatprep.subr.bf16.mxu0 %v2865
    %6523 = vmatpush1.bf16.xpose.msra.mxu0 %v2864
    %6524 = vmatprep.mubr.bf16.mxu0 %v5969
    %6525 = vmatmul.mubr.bf16.gmra.mrb[0].mxu0 %v5968
    %v6526 = vpop.f32.mrb[0].mxu0
    %v6527 = vadd.f32 0.0, %v6526
    %v6528 = vpop.f32.mrb[0].mxu0
    %v6529 = vadd.f32 0.0, %v6528
    %v6530 = vpop.f32.mrb[0].mxu0
    %v6531 = vadd.f32 0.0, %v6530
    %v6532 = vpop.f32.mrb[0].mxu0
    %v6533 = vadd.f32 0.0, %v6532
    %6534 = vdwg.mxu0
    %6535 = vmatprep.subr.bf16.mxu0 %v2747
    %6536 = vmatpush1.bf16.xpose.msra.mxu0 %v2746
    %6537 = vmatprep.subr.bf16.mxu0 %v2755
    %6538 = vmatpush1.bf16.xpose.msra.mxu0 %v2754
    %6539 = vmatprep.subr.bf16.mxu0 %v2763
    %6540 = vmatpush1.bf16.xpose.msra.mxu0 %v2762
    %6541 = vmatprep.subr.bf16.mxu0 %v2771
    %6542 = vmatpush1.bf16.xpose.msra.mxu0 %v2770
    %6543 = vmatprep.subr.bf16.mxu0 %v2779
    %6544 = vmatpush1.bf16.xpose.msra.mxu0 %v2778
    %6545 = vmatprep.subr.bf16.mxu0 %v2787
    %6546 = vmatpush1.bf16.xpose.msra.mxu0 %v2786
    %6547 = vmatprep.subr.bf16.mxu0 %v2795
    %6548 = vmatpush1.bf16.xpose.msra.mxu0 %v2794
    %6549 = vmatprep.subr.bf16.mxu0 %v2803
    %6550 = vmatpush1.bf16.xpose.msra.mxu0 %v2802
    %6551 = vmatprep.subr.bf16.mxu0 %v2811
    %6552 = vmatpush1.bf16.xpose.msra.mxu0 %v2810
    %6553 = vmatprep.subr.bf16.mxu0 %v2819
    %6554 = vmatpush1.bf16.xpose.msra.mxu0 %v2818
    %6555 = vmatprep.subr.bf16.mxu0 %v2827
    %6556 = vmatpush1.bf16.xpose.msra.mxu0 %v2826
    %6557 = vmatprep.subr.bf16.mxu0 %v2835
    %6558 = vmatpush1.bf16.xpose.msra.mxu0 %v2834
    %6559 = vmatprep.subr.bf16.mxu0 %v2843
    %6560 = vmatpush1.bf16.xpose.msra.mxu0 %v2842
    %6561 = vmatprep.subr.bf16.mxu0 %v2851
    %6562 = vmatpush1.bf16.xpose.msra.mxu0 %v2850
    %6563 = vmatprep.subr.bf16.mxu0 %v2859
    %6564 = vmatpush1.bf16.xpose.msra.mxu0 %v2858
    %6565 = vmatprep.subr.bf16.mxu0 %v2867
    %6566 = vmatpush1.bf16.xpose.msra.mxu0 %v2866
    %6567 = vmatprep.mubr.bf16.mxu0 %v5971
    %6568 = vmatmul.mubr.bf16.gmra.mrb[0].mxu0 %v5970
    %v6569 = vpop.f32.mrb[0].mxu0
    %v6570 = vadd.f32 %v6527, %v6569
    %v6571 = vpop.f32.mrb[0].mxu0
    %v6572 = vadd.f32 %v6529, %v6571
    %v6573 = vpop.f32.mrb[0].mxu0
    %v6574 = vadd.f32 %v6531, %v6573
    %v6575 = vpop.f32.mrb[0].mxu0
    %v6576 = vadd.f32 %v6533, %v6575
    %6577 = vdwg.mxu0
    %6578 = vmatprep.subr.bf16.mxu0 %v2749
    %6579 = vmatpush1.bf16.xpose.msra.mxu0 %v2748
    %6580 = vmatprep.subr.bf16.mxu0 %v2757
    %6581 = vmatpush1.bf16.xpose.msra.mxu0 %v2756
    %6582 = vmatprep.subr.bf16.mxu0 %v2765
    %6583 = vmatpush1.bf16.xpose.msra.mxu0 %v2764
    %6584 = vmatprep.subr.bf16.mxu0 %v2773
    %6585 = vmatpush1.bf16.xpose.msra.mxu0 %v2772
    %6586 = vmatprep.subr.bf16.mxu0 %v2781
    %6587 = vmatpush1.bf16.xpose.msra.mxu0 %v2780
    %6588 = vmatprep.subr.bf16.mxu0 %v2789
    %6589 = vmatpush1.bf16.xpose.msra.mxu0 %v2788
    %6590 = vmatprep.subr.bf16.mxu0 %v2797
    %6591 = vmatpush1.bf16.xpose.msra.mxu0 %v2796
    %6592 = vmatprep.subr.bf16.mxu0 %v2805
    %6593 = vmatpush1.bf16.xpose.msra.mxu0 %v2804
    %6594 = vmatprep.subr.bf16.mxu0 %v2813
    %6595 = vmatpush1.bf16.xpose.msra.mxu0 %v2812
    %6596 = vmatprep.subr.bf16.mxu0 %v2821
    %6597 = vmatpush1.bf16.xpose.msra.mxu0 %v2820
    %6598 = vmatprep.subr.bf16.mxu0 %v2829
    %6599 = vmatpush1.bf16.xpose.msra.mxu0 %v2828
    %6600 = vmatprep.subr.bf16.mxu0 %v2837
    %6601 = vmatpush1.bf16.xpose.msra.mxu0 %v2836
    %6602 = vmatprep.subr.bf16.mxu0 %v2845
    %6603 = vmatpush1.bf16.xpose.msra.mxu0 %v2844
    %6604 = vmatprep.subr.bf16.mxu0 %v2853
    %6605 = vmatpush1.bf16.xpose.msra.mxu0 %v2852
    %6606 = vmatprep.subr.bf16.mxu0 %v2861
    %6607 = vmatpush1.bf16.xpose.msra.mxu0 %v2860
    %6608 = vmatprep.subr.bf16.mxu0 %v2869
    %6609 = vmatpush1.bf16.xpose.msra.mxu0 %v2868
    %6610 = vmatprep.mubr.bf16.mxu0 %v5973
    %6611 = vmatmul.mubr.bf16.gmra.mrb[0].mxu0 %v5972
    %v6612 = vpop.f32.mrb[0].mxu0
    %v6613 = vadd.f32 %v6570, %v6612
    %v6614 = vpop.f32.mrb[0].mxu0
    %v6615 = vadd.f32 %v6572, %v6614
    %v6616 = vpop.f32.mrb[0].mxu0
    %v6617 = vadd.f32 %v6574, %v6616
    %v6618 = vpop.f32.mrb[0].mxu0
    %v6619 = vadd.f32 %v6576, %v6618
    %6620 = vdwg.mxu0
    %6621 = vmatprep.subr.bf16.mxu0 %v2751
    %6622 = vmatpush1.bf16.xpose.msra.mxu0 %v2750
    %6623 = vmatprep.subr.bf16.mxu0 %v2759
    %6624 = vmatpush1.bf16.xpose.msra.mxu0 %v2758
    %6625 = vmatprep.subr.bf16.mxu0 %v2767
    %6626 = vmatpush1.bf16.xpose.msra.mxu0 %v2766
    %6627 = vmatprep.subr.bf16.mxu0 %v2775
    %6628 = vmatpush1.bf16.xpose.msra.mxu0 %v2774
    %6629 = vmatprep.subr.bf16.mxu0 %v2783
    %6630 = vmatpush1.bf16.xpose.msra.mxu0 %v2782
    %6631 = vmatprep.subr.bf16.mxu0 %v2791
    %6632 = vmatpush1.bf16.xpose.msra.mxu0 %v2790
    %6633 = vmatprep.subr.bf16.mxu0 %v2799
    %6634 = vmatpush1.bf16.xpose.msra.mxu0 %v2798
    %6635 = vmatprep.subr.bf16.mxu0 %v2807
    %6636 = vmatpush1.bf16.xpose.msra.mxu0 %v2806
    %6637 = vmatprep.subr.bf16.mxu0 %v2815
    %6638 = vmatpush1.bf16.xpose.msra.mxu0 %v2814
    %6639 = vmatprep.subr.bf16.mxu0 %v2823
    %6640 = vmatpush1.bf16.xpose.msra.mxu0 %v2822
    %6641 = vmatprep.subr.bf16.mxu0 %v2831
    %6642 = vmatpush1.bf16.xpose.msra.mxu0 %v2830
    %6643 = vmatprep.subr.bf16.mxu0 %v2839
    %6644 = vmatpush1.bf16.xpose.msra.mxu0 %v2838
    %6645 = vmatprep.subr.bf16.mxu0 %v2847
    %6646 = vmatpush1.bf16.xpose.msra.mxu0 %v2846
    %6647 = vmatprep.subr.bf16.mxu0 %v2855
    %6648 = vmatpush1.bf16.xpose.msra.mxu0 %v2854
    %6649 = vmatprep.subr.bf16.mxu0 %v2863
    %6650 = vmatpush1.bf16.xpose.msra.mxu0 %v2862
    %6651 = vmatprep.subr.bf16.mxu0 %v2871
    %6652 = vmatpush1.bf16.xpose.msra.mxu0 %v2870
    %6653 = vmatprep.mubr.bf16.mxu0 %v5975
    %6654 = vmatmul.mubr.bf16.gmra.mrb[0].mxu0 %v5974
    %v6655 = vpop.f32.mrb[0].mxu0
    %v6656 = vadd.f32 %v6613, %v6655
    %v6657 = vpop.f32.mrb[0].mxu0
    %v6658 = vadd.f32 %v6615, %v6657
    %v6659 = vpop.f32.mrb[0].mxu0
    %v6660 = vadd.f32 %v6617, %v6659
    %v6661 = vpop.f32.mrb[0].mxu0
    %v6662 = vadd.f32 %v6619, %v6661
    %6663 = vdwg.mxu0
    %6664 = vmatprep.subr.bf16.mxu0 %v2361
    %6665 = vmatpush1.bf16.xpose.msra.mxu0 %v2360
    %6666 = vmatprep.subr.bf16.mxu0 %v2369
    %6667 = vmatpush1.bf16.xpose.msra.mxu0 %v2368
    %6668 = vmatprep.subr.bf16.mxu0 %v2377
    %6669 = vmatpush1.bf16.xpose.msra.mxu0 %v2376
    %6670 = vmatprep.subr.bf16.mxu0 %v2385
    %6671 = vmatpush1.bf16.xpose.msra.mxu0 %v2384
    %6672 = vmatprep.subr.bf16.mxu0 %v2393
    %6673 = vmatpush1.bf16.xpose.msra.mxu0 %v2392
    %6674 = vmatprep.subr.bf16.mxu0 %v2401
    %6675 = vmatpush1.bf16.xpose.msra.mxu0 %v2400
    %6676 = vmatprep.subr.bf16.mxu0 %v2409
    %6677 = vmatpush1.bf16.xpose.msra.mxu0 %v2408
    %6678 = vmatprep.subr.bf16.mxu0 %v2417
    %6679 = vmatpush1.bf16.xpose.msra.mxu0 %v2416
    %6680 = vmatprep.subr.bf16.mxu0 %v2425
    %6681 = vmatpush1.bf16.xpose.msra.mxu0 %v2424
    %6682 = vmatprep.subr.bf16.mxu0 %v2433
    %6683 = vmatpush1.bf16.xpose.msra.mxu0 %v2432
    %6684 = vmatprep.subr.bf16.mxu0 %v2441
    %6685 = vmatpush1.bf16.xpose.msra.mxu0 %v2440
    %6686 = vmatprep.subr.bf16.mxu0 %v2449
    %6687 = vmatpush1.bf16.xpose.msra.mxu0 %v2448
    %6688 = vmatprep.subr.bf16.mxu0 %v2457
    %6689 = vmatpush1.bf16.xpose.msra.mxu0 %v2456
    %6690 = vmatprep.subr.bf16.mxu0 %v2465
    %6691 = vmatpush1.bf16.xpose.msra.mxu0 %v2464
    %6692 = vmatprep.subr.bf16.mxu0 %v2473
    %6693 = vmatpush1.bf16.xpose.msra.mxu0 %v2472
    %6694 = vmatprep.subr.bf16.mxu0 %v2481
    %6695 = vmatpush1.bf16.xpose.msra.mxu0 %v2480
    %6696 = vmatprep.mubr.bf16.mxu0 %v5929
    %6697 = vmatmul.mubr.bf16.gmra.mrb[0].mxu0 %v5928
    %v6698 = vpop.f32.mrb[0].mxu0
    %v6699 = vadd.f32 %v6140, %v6698
    %v6700 = vpop.f32.mrb[0].mxu0
    %v6701 = vadd.f32 %v6142, %v6700
    %v6702 = vpop.f32.mrb[0].mxu0
    %v6703 = vadd.f32 %v6144, %v6702
    %v6704 = vpop.f32.mrb[0].mxu0
    %v6705 = vadd.f32 %v6146, %v6704
    %6706 = vdwg.mxu0
    %6707 = vmatprep.subr.bf16.mxu0 %v2363
    %6708 = vmatpush1.bf16.xpose.msra.mxu0 %v2362
    %6709 = vmatprep.subr.bf16.mxu0 %v2371
    %6710 = vmatpush1.bf16.xpose.msra.mxu0 %v2370
    %6711 = vmatprep.subr.bf16.mxu0 %v2379
    %6712 = vmatpush1.bf16.xpose.msra.mxu0 %v2378
    %6713 = vmatprep.subr.bf16.mxu0 %v2387
    %6714 = vmatpush1.bf16.xpose.msra.mxu0 %v2386
    %6715 = vmatprep.subr.bf16.mxu0 %v2395
    %6716 = vmatpush1.bf16.xpose.msra.mxu0 %v2394
    %6717 = vmatprep.subr.bf16.mxu0 %v2403
    %6718 = vmatpush1.bf16.xpose.msra.mxu0 %v2402
    %6719 = vmatprep.subr.bf16.mxu0 %v2411
    %6720 = vmatpush1.bf16.xpose.msra.mxu0 %v2410
    %6721 = vmatprep.subr.bf16.mxu0 %v2419
    %6722 = vmatpush1.bf16.xpose.msra.mxu0 %v2418
    %6723 = vmatprep.subr.bf16.mxu0 %v2427
    %6724 = vmatpush1.bf16.xpose.msra.mxu0 %v2426
    %6725 = vmatprep.subr.bf16.mxu0 %v2435
    %6726 = vmatpush1.bf16.xpose.msra.mxu0 %v2434
    %6727 = vmatprep.subr.bf16.mxu0 %v2443
    %6728 = vmatpush1.bf16.xpose.msra.mxu0 %v2442
    %6729 = vmatprep.subr.bf16.mxu0 %v2451
    %6730 = vmatpush1.bf16.xpose.msra.mxu0 %v2450
    %6731 = vmatprep.subr.bf16.mxu0 %v2459
    %6732 = vmatpush1.bf16.xpose.msra.mxu0 %v2458
    %6733 = vmatprep.subr.bf16.mxu0 %v2467
    %6734 = vmatpush1.bf16.xpose.msra.mxu0 %v2466
    %6735 = vmatprep.subr.bf16.mxu0 %v2475
    %6736 = vmatpush1.bf16.xpose.msra.mxu0 %v2474
    %6737 = vmatprep.subr.bf16.mxu0 %v2483
    %6738 = vmatpush1.bf16.xpose.msra.mxu0 %v2482
    %6739 = vmatprep.mubr.bf16.mxu0 %v5931
    %6740 = vmatmul.mubr.bf16.gmra.mrb[0].mxu0 %v5930
    %v6741 = vpop.f32.mrb[0].mxu0
    %v6742 = vadd.f32 %v6699, %v6741
    %v6743 = vpop.f32.mrb[0].mxu0
    %v6744 = vadd.f32 %v6701, %v6743
    %v6745 = vpop.f32.mrb[0].mxu0
    %v6746 = vadd.f32 %v6703, %v6745
    %v6747 = vpop.f32.mrb[0].mxu0
    %v6748 = vadd.f32 %v6705, %v6747
    %6749 = vdwg.mxu0
    %6750 = vmatprep.subr.bf16.mxu0 %v2365
    %6751 = vmatpush1.bf16.xpose.msra.mxu0 %v2364
    %6752 = vmatprep.subr.bf16.mxu0 %v2373
    %6753 = vmatpush1.bf16.xpose.msra.mxu0 %v2372
    %6754 = vmatprep.subr.bf16.mxu0 %v2381
    %6755 = vmatpush1.bf16.xpose.msra.mxu0 %v2380
    %6756 = vmatprep.subr.bf16.mxu0 %v2389
    %6757 = vmatpush1.bf16.xpose.msra.mxu0 %v2388
    %6758 = vmatprep.subr.bf16.mxu0 %v2397
    %6759 = vmatpush1.bf16.xpose.msra.mxu0 %v2396
    %6760 = vmatprep.subr.bf16.mxu0 %v2405
    %6761 = vmatpush1.bf16.xpose.msra.mxu0 %v2404
    %6762 = vmatprep.subr.bf16.mxu0 %v2413
    %6763 = vmatpush1.bf16.xpose.msra.mxu0 %v2412
    %6764 = vmatprep.subr.bf16.mxu0 %v2421
    %6765 = vmatpush1.bf16.xpose.msra.mxu0 %v2420
    %6766 = vmatprep.subr.bf16.mxu0 %v2429
    %6767 = vmatpush1.bf16.xpose.msra.mxu0 %v2428
    %6768 = vmatprep.subr.bf16.mxu0 %v2437
    %6769 = vmatpush1.bf16.xpose.msra.mxu0 %v2436
    %6770 = vmatprep.subr.bf16.mxu0 %v2445
    %6771 = vmatpush1.bf16.xpose.msra.mxu0 %v2444
    %6772 = vmatprep.subr.bf16.mxu0 %v2453
    %6773 = vmatpush1.bf16.xpose.msra.mxu0 %v2452
    %6774 = vmatprep.subr.bf16.mxu0 %v2461
    %6775 = vmatpush1.bf16.xpose.msra.mxu0 %v2460
    %6776 = vmatprep.subr.bf16.mxu0 %v2469
    %6777 = vmatpush1.bf16.xpose.msra.mxu0 %v2468
    %6778 = vmatprep.subr.bf16.mxu0 %v2477
    %6779 = vmatpush1.bf16.xpose.msra.mxu0 %v2476
    %6780 = vmatprep.subr.bf16.mxu0 %v2485
    %6781 = vmatpush1.bf16.xpose.msra.mxu0 %v2484
    %6782 = vmatprep.mubr.bf16.mxu0 %v5933
    %6783 = vmatmul.mubr.bf16.gmra.mrb[0].mxu0 %v5932
    %v6784 = vpop.f32.mrb[0].mxu0
    %v6785 = vadd.f32 %v6742, %v6784
    %v6786 = vpop.f32.mrb[0].mxu0
    %v6787 = vadd.f32 %v6744, %v6786
    %v6788 = vpop.f32.mrb[0].mxu0
    %v6789 = vadd.f32 %v6746, %v6788
    %v6790 = vpop.f32.mrb[0].mxu0
    %v6791 = vadd.f32 %v6748, %v6790
    %6792 = vdwg.mxu0
    %6793 = vmatprep.subr.bf16.mxu0 %v2367
    %6794 = vmatpush1.bf16.xpose.msra.mxu0 %v2366
    %6795 = vmatprep.subr.bf16.mxu0 %v2375
    %6796 = vmatpush1.bf16.xpose.msra.mxu0 %v2374
    %6797 = vmatprep.subr.bf16.mxu0 %v2383
    %6798 = vmatpush1.bf16.xpose.msra.mxu0 %v2382
    %6799 = vmatprep.subr.bf16.mxu0 %v2391
    %6800 = vmatpush1.bf16.xpose.msra.mxu0 %v2390
    %6801 = vmatprep.subr.bf16.mxu0 %v2399
    %6802 = vmatpush1.bf16.xpose.msra.mxu0 %v2398
    %6803 = vmatprep.subr.bf16.mxu0 %v2407
    %6804 = vmatpush1.bf16.xpose.msra.mxu0 %v2406
    %6805 = vmatprep.subr.bf16.mxu0 %v2415
    %6806 = vmatpush1.bf16.xpose.msra.mxu0 %v2414
    %6807 = vmatprep.subr.bf16.mxu0 %v2423
    %6808 = vmatpush1.bf16.xpose.msra.mxu0 %v2422
    %6809 = vmatprep.subr.bf16.mxu0 %v2431
    %6810 = vmatpush1.bf16.xpose.msra.mxu0 %v2430
    %6811 = vmatprep.subr.bf16.mxu0 %v2439
    %6812 = vmatpush1.bf16.xpose.msra.mxu0 %v2438
    %6813 = vmatprep.subr.bf16.mxu0 %v2447
    %6814 = vmatpush1.bf16.xpose.msra.mxu0 %v2446
    %6815 = vmatprep.subr.bf16.mxu0 %v2455
    %6816 = vmatpush1.bf16.xpose.msra.mxu0 %v2454
    %6817 = vmatprep.subr.bf16.mxu0 %v2463
    %6818 = vmatpush1.bf16.xpose.msra.mxu0 %v2462
    %6819 = vmatprep.subr.bf16.mxu0 %v2471
    %6820 = vmatpush1.bf16.xpose.msra.mxu0 %v2470
    %6821 = vmatprep.subr.bf16.mxu0 %v2479
    %6822 = vmatpush1.bf16.xpose.msra.mxu0 %v2478
    %6823 = vmatprep.subr.bf16.mxu0 %v2487
    %6824 = vmatpush1.bf16.xpose.msra.mxu0 %v2486
    %6825 = vmatprep.mubr.bf16.mxu0 %v5935
    %6826 = vmatmul.mubr.bf16.gmra.mrb[0].mxu0 %v5934
    %v6827 = vpop.f32.mrb[0].mxu0
    %v6828 = vadd.f32 %v6785, %v6827
    %v6829 = vpop.f32.mrb[0].mxu0
    %v6830 = vadd.f32 %v6787, %v6829
    %v6831 = vpop.f32.mrb[0].mxu0
    %v6832 = vadd.f32 %v6789, %v6831
    %v6833 = vpop.f32.mrb[0].mxu0
    %v6834 = vadd.f32 %v6791, %v6833
    %6835 = vdwg.mxu0
    %6836 = vmatprep.subr.bf16.mxu0 %v2489
    %6837 = vmatpush1.bf16.xpose.msra.mxu0 %v2488
    %6838 = vmatprep.subr.bf16.mxu0 %v2497
    %6839 = vmatpush1.bf16.xpose.msra.mxu0 %v2496
    %6840 = vmatprep.subr.bf16.mxu0 %v2505
    %6841 = vmatpush1.bf16.xpose.msra.mxu0 %v2504
    %6842 = vmatprep.subr.bf16.mxu0 %v2513
    %6843 = vmatpush1.bf16.xpose.msra.mxu0 %v2512
    %6844 = vmatprep.subr.bf16.mxu0 %v2521
    %6845 = vmatpush1.bf16.xpose.msra.mxu0 %v2520
    %6846 = vmatprep.subr.bf16.mxu0 %v2529
    %6847 = vmatpush1.bf16.xpose.msra.mxu0 %v2528
    %6848 = vmatprep.subr.bf16.mxu0 %v2537
    %6849 = vmatpush1.bf16.xpose.msra.mxu0 %v2536
    %6850 = vmatprep.subr.bf16.mxu0 %v2545
    %6851 = vmatpush1.bf16.xpose.msra.mxu0 %v2544
    %6852 = vmatprep.subr.bf16.mxu0 %v2553
    %6853 = vmatpush1.bf16.xpose.msra.mxu0 %v2552
    %6854 = vmatprep.subr.bf16.mxu0 %v2561
    %6855 = vmatpush1.bf16.xpose.msra.mxu0 %v2560
    %6856 = vmatprep.subr.bf16.mxu0 %v2569
    %6857 = vmatpush1.bf16.xpose.msra.mxu0 %v2568
    %6858 = vmatprep.subr.bf16.mxu0 %v2577
    %6859 = vmatpush1.bf16.xpose.msra.mxu0 %v2576
    %6860 = vmatprep.subr.bf16.mxu0 %v2585
    %6861 = vmatpush1.bf16.xpose.msra.mxu0 %v2584
    %6862 = vmatprep.subr.bf16.mxu0 %v2593
    %6863 = vmatpush1.bf16.xpose.msra.mxu0 %v2592
    %6864 = vmatprep.subr.bf16.mxu0 %v2601
    %6865 = vmatpush1.bf16.xpose.msra.mxu0 %v2600
    %6866 = vmatprep.subr.bf16.mxu0 %v2609
    %6867 = vmatpush1.bf16.xpose.msra.mxu0 %v2608
    %6868 = vmatprep.mubr.bf16.mxu0 %v5929
    %6869 = vmatmul.mubr.bf16.gmra.mrb[0].mxu0 %v5928
    %v6870 = vpop.f32.mrb[0].mxu0
    %v6871 = vadd.f32 %v6312, %v6870
    %v6872 = vpop.f32.mrb[0].mxu0
    %v6873 = vadd.f32 %v6314, %v6872
    %v6874 = vpop.f32.mrb[0].mxu0
    %v6875 = vadd.f32 %v6316, %v6874
    %v6876 = vpop.f32.mrb[0].mxu0
    %v6877 = vadd.f32 %v6318, %v6876
    %6878 = vdwg.mxu0
    %6879 = vmatprep.subr.bf16.mxu0 %v2491
    %6880 = vmatpush1.bf16.xpose.msra.mxu0 %v2490
    %6881 = vmatprep.subr.bf16.mxu0 %v2499
    %6882 = vmatpush1.bf16.xpose.msra.mxu0 %v2498
    %6883 = vmatprep.subr.bf16.mxu0 %v2507
    %6884 = vmatpush1.bf16.xpose.msra.mxu0 %v2506
    %6885 = vmatprep.subr.bf16.mxu0 %v2515
    %6886 = vmatpush1.bf16.xpose.msra.mxu0 %v2514
    %6887 = vmatprep.subr.bf16.mxu0 %v2523
    %6888 = vmatpush1.bf16.xpose.msra.mxu0 %v2522
    %6889 = vmatprep.subr.bf16.mxu0 %v2531
    %6890 = vmatpush1.bf16.xpose.msra.mxu0 %v2530
    %6891 = vmatprep.subr.bf16.mxu0 %v2539
    %6892 = vmatpush1.bf16.xpose.msra.mxu0 %v2538
    %6893 = vmatprep.subr.bf16.mxu0 %v2547
    %6894 = vmatpush1.bf16.xpose.msra.mxu0 %v2546
    %6895 = vmatprep.subr.bf16.mxu0 %v2555
    %6896 = vmatpush1.bf16.xpose.msra.mxu0 %v2554
    %6897 = vmatprep.subr.bf16.mxu0 %v2563
    %6898 = vmatpush1.bf16.xpose.msra.mxu0 %v2562
    %6899 = vmatprep.subr.bf16.mxu0 %v2571
    %6900 = vmatpush1.bf16.xpose.msra.mxu0 %v2570
    %6901 = vmatprep.subr.bf16.mxu0 %v2579
    %6902 = vmatpush1.bf16.xpose.msra.mxu0 %v2578
    %6903 = vmatprep.subr.bf16.mxu0 %v2587
    %6904 = vmatpush1.bf16.xpose.msra.mxu0 %v2586
    %6905 = vmatprep.subr.bf16.mxu0 %v2595
    %6906 = vmatpush1.bf16.xpose.msra.mxu0 %v2594
    %6907 = vmatprep.subr.bf16.mxu0 %v2603
    %6908 = vmatpush1.bf16.xpose.msra.mxu0 %v2602
    %6909 = vmatprep.subr.bf16.mxu0 %v2611
    %6910 = vmatpush1.bf16.xpose.msra.mxu0 %v2610
    %6911 = vmatprep.mubr.bf16.mxu0 %v5931
    %6912 = vmatmul.mubr.bf16.gmra.mrb[0].mxu0 %v5930
    %v6913 = vpop.f32.mrb[0].mxu0
    %v6914 = vadd.f32 %v6871, %v6913
    %v6915 = vpop.f32.mrb[0].mxu0
    %v6916 = vadd.f32 %v6873, %v6915
    %v6917 = vpop.f32.mrb[0].mxu0
    %v6918 = vadd.f32 %v6875, %v6917
    %v6919 = vpop.f32.mrb[0].mxu0
    %v6920 = vadd.f32 %v6877, %v6919
    %6921 = vdwg.mxu0
    %6922 = vmatprep.subr.bf16.mxu0 %v2493
    %6923 = vmatpush1.bf16.xpose.msra.mxu0 %v2492
    %6924 = vmatprep.subr.bf16.mxu0 %v2501
    %6925 = vmatpush1.bf16.xpose.msra.mxu0 %v2500
    %6926 = vmatprep.subr.bf16.mxu0 %v2509
    %6927 = vmatpush1.bf16.xpose.msra.mxu0 %v2508
    %6928 = vmatprep.subr.bf16.mxu0 %v2517
    %6929 = vmatpush1.bf16.xpose.msra.mxu0 %v2516
    %6930 = vmatprep.subr.bf16.mxu0 %v2525
    %6931 = vmatpush1.bf16.xpose.msra.mxu0 %v2524
    %6932 = vmatprep.subr.bf16.mxu0 %v2533
    %6933 = vmatpush1.bf16.xpose.msra.mxu0 %v2532
    %6934 = vmatprep.subr.bf16.mxu0 %v2541
    %6935 = vmatpush1.bf16.xpose.msra.mxu0 %v2540
    %6936 = vmatprep.subr.bf16.mxu0 %v2549
    %6937 = vmatpush1.bf16.xpose.msra.mxu0 %v2548
    %6938 = vmatprep.subr.bf16.mxu0 %v2557
    %6939 = vmatpush1.bf16.xpose.msra.mxu0 %v2556
    %6940 = vmatprep.subr.bf16.mxu0 %v2565
    %6941 = vmatpush1.bf16.xpose.msra.mxu0 %v2564
    %6942 = vmatprep.subr.bf16.mxu0 %v2573
    %6943 = vmatpush1.bf16.xpose.msra.mxu0 %v2572
    %6944 = vmatprep.subr.bf16.mxu0 %v2581
    %6945 = vmatpush1.bf16.xpose.msra.mxu0 %v2580
    %6946 = vmatprep.subr.bf16.mxu0 %v2589
    %6947 = vmatpush1.bf16.xpose.msra.mxu0 %v2588
    %6948 = vmatprep.subr.bf16.mxu0 %v2597
    %6949 = vmatpush1.bf16.xpose.msra.mxu0 %v2596
    %6950 = vmatprep.subr.bf16.mxu0 %v2605
    %6951 = vmatpush1.bf16.xpose.msra.mxu0 %v2604
    %6952 = vmatprep.subr.bf16.mxu0 %v2613
    %6953 = vmatpush1.bf16.xpose.msra.mxu0 %v2612
    %6954 = vmatprep.mubr.bf16.mxu0 %v5933
    %6955 = vmatmul.mubr.bf16.gmra.mrb[0].mxu0 %v5932
    %v6956 = vpop.f32.mrb[0].mxu0
    %v6957 = vadd.f32 %v6914, %v6956
    %v6958 = vpop.f32.mrb[0].mxu0
    %v6959 = vadd.f32 %v6916, %v6958
    %v6960 = vpop.f32.mrb[0].mxu0
    %v6961 = vadd.f32 %v6918, %v6960
    %v6962 = vpop.f32.mrb[0].mxu0
    %v6963 = vadd.f32 %v6920, %v6962
    %6964 = vdwg.mxu0
    %6965 = vmatprep.subr.bf16.mxu0 %v2495
    %6966 = vmatpush1.bf16.xpose.msra.mxu0 %v2494
    %6967 = vmatprep.subr.bf16.mxu0 %v2503
    %6968 = vmatpush1.bf16.xpose.msra.mxu0 %v2502
    %6969 = vmatprep.subr.bf16.mxu0 %v2511
    %6970 = vmatpush1.bf16.xpose.msra.mxu0 %v2510
    %6971 = vmatprep.subr.bf16.mxu0 %v2519
    %6972 = vmatpush1.bf16.xpose.msra.mxu0 %v2518
    %6973 = vmatprep.subr.bf16.mxu0 %v2527
    %6974 = vmatpush1.bf16.xpose.msra.mxu0 %v2526
    %6975 = vmatprep.subr.bf16.mxu0 %v2535
    %6976 = vmatpush1.bf16.xpose.msra.mxu0 %v2534
    %6977 = vmatprep.subr.bf16.mxu0 %v2543
    %6978 = vmatpush1.bf16.xpose.msra.mxu0 %v2542
    %6979 = vmatprep.subr.bf16.mxu0 %v2551
    %6980 = vmatpush1.bf16.xpose.msra.mxu0 %v2550
    %6981 = vmatprep.subr.bf16.mxu0 %v2559
    %6982 = vmatpush1.bf16.xpose.msra.mxu0 %v2558
    %6983 = vmatprep.subr.bf16.mxu0 %v2567
    %6984 = vmatpush1.bf16.xpose.msra.mxu0 %v2566
    %6985 = vmatprep.subr.bf16.mxu0 %v2575
    %6986 = vmatpush1.bf16.xpose.msra.mxu0 %v2574
    %6987 = vmatprep.subr.bf16.mxu0 %v2583
    %6988 = vmatpush1.bf16.xpose.msra.mxu0 %v2582
    %6989 = vmatprep.subr.bf16.mxu0 %v2591
    %6990 = vmatpush1.bf16.xpose.msra.mxu0 %v2590
    %6991 = vmatprep.subr.bf16.mxu0 %v2599
    %6992 = vmatpush1.bf16.xpose.msra.mxu0 %v2598
    %6993 = vmatprep.subr.bf16.mxu0 %v2607
    %6994 = vmatpush1.bf16.xpose.msra.mxu0 %v2606
    %6995 = vmatprep.subr.bf16.mxu0 %v2615
    %6996 = vmatpush1.bf16.xpose.msra.mxu0 %v2614
    %6997 = vmatprep.mubr.bf16.mxu0 %v5935
    %6998 = vmatmul.mubr.bf16.gmra.mrb[0].mxu0 %v5934
    %v6999 = vpop.f32.mrb[0].mxu0
    %v7000 = vadd.f32 %v6957, %v6999
    %v7001 = vpop.f32.mrb[0].mxu0
    %v7002 = vadd.f32 %v6959, %v7001
    %v7003 = vpop.f32.mrb[0].mxu0
    %v7004 = vadd.f32 %v6961, %v7003
    %v7005 = vpop.f32.mrb[0].mxu0
    %v7006 = vadd.f32 %v6963, %v7005
    %7007 = vdwg.mxu0
    %7008 = vmatprep.subr.bf16.mxu0 %v2617
    %7009 = vmatpush1.bf16.xpose.msra.mxu0 %v2616
    %7010 = vmatprep.subr.bf16.mxu0 %v2625
    %7011 = vmatpush1.bf16.xpose.msra.mxu0 %v2624
    %7012 = vmatprep.subr.bf16.mxu0 %v2633
    %7013 = vmatpush1.bf16.xpose.msra.mxu0 %v2632
    %7014 = vmatprep.subr.bf16.mxu0 %v2641
    %7015 = vmatpush1.bf16.xpose.msra.mxu0 %v2640
    %7016 = vmatprep.subr.bf16.mxu0 %v2649
    %7017 = vmatpush1.bf16.xpose.msra.mxu0 %v2648
    %7018 = vmatprep.subr.bf16.mxu0 %v2657
    %7019 = vmatpush1.bf16.xpose.msra.mxu0 %v2656
    %7020 = vmatprep.subr.bf16.mxu0 %v2665
    %7021 = vmatpush1.bf16.xpose.msra.mxu0 %v2664
    %7022 = vmatprep.subr.bf16.mxu0 %v2673
    %7023 = vmatpush1.bf16.xpose.msra.mxu0 %v2672
    %7024 = vmatprep.subr.bf16.mxu0 %v2681
    %7025 = vmatpush1.bf16.xpose.msra.mxu0 %v2680
    %7026 = vmatprep.subr.bf16.mxu0 %v2689
    %7027 = vmatpush1.bf16.xpose.msra.mxu0 %v2688
    %7028 = vmatprep.subr.bf16.mxu0 %v2697
    %7029 = vmatpush1.bf16.xpose.msra.mxu0 %v2696
    %7030 = vmatprep.subr.bf16.mxu0 %v2705
    %7031 = vmatpush1.bf16.xpose.msra.mxu0 %v2704
    %7032 = vmatprep.subr.bf16.mxu0 %v2713
    %7033 = vmatpush1.bf16.xpose.msra.mxu0 %v2712
    %7034 = vmatprep.subr.bf16.mxu0 %v2721
    %7035 = vmatpush1.bf16.xpose.msra.mxu0 %v2720
    %7036 = vmatprep.subr.bf16.mxu0 %v2729
    %7037 = vmatpush1.bf16.xpose.msra.mxu0 %v2728
    %7038 = vmatprep.subr.bf16.mxu0 %v2737
    %7039 = vmatpush1.bf16.xpose.msra.mxu0 %v2736
    %7040 = vmatprep.mubr.bf16.mxu0 %v5929
    %7041 = vmatmul.mubr.bf16.gmra.mrb[0].mxu0 %v5928
    %v7042 = vpop.f32.mrb[0].mxu0
    %v7043 = vadd.f32 %v6484, %v7042
    %v7044 = vpop.f32.mrb[0].mxu0
    %v7045 = vadd.f32 %v6486, %v7044
    %v7046 = vpop.f32.mrb[0].mxu0
    %v7047 = vadd.f32 %v6488, %v7046
    %v7048 = vpop.f32.mrb[0].mxu0
    %v7049 = vadd.f32 %v6490, %v7048
    %7050 = vdwg.mxu0
    %7051 = vmatprep.subr.bf16.mxu0 %v2619
    %7052 = vmatpush1.bf16.xpose.msra.mxu0 %v2618
    %7053 = vmatprep.subr.bf16.mxu0 %v2627
    %7054 = vmatpush1.bf16.xpose.msra.mxu0 %v2626
    %7055 = vmatprep.subr.bf16.mxu0 %v2635
    %7056 = vmatpush1.bf16.xpose.msra.mxu0 %v2634
    %7057 = vmatprep.subr.bf16.mxu0 %v2643
    %7058 = vmatpush1.bf16.xpose.msra.mxu0 %v2642
    %7059 = vmatprep.subr.bf16.mxu0 %v2651
    %7060 = vmatpush1.bf16.xpose.msra.mxu0 %v2650
    %7061 = vmatprep.subr.bf16.mxu0 %v2659
    %7062 = vmatpush1.bf16.xpose.msra.mxu0 %v2658
    %7063 = vmatprep.subr.bf16.mxu0 %v2667
    %7064 = vmatpush1.bf16.xpose.msra.mxu0 %v2666
    %7065 = vmatprep.subr.bf16.mxu0 %v2675
    %7066 = vmatpush1.bf16.xpose.msra.mxu0 %v2674
    %7067 = vmatprep.subr.bf16.mxu0 %v2683
    %7068 = vmatpush1.bf16.xpose.msra.mxu0 %v2682
    %7069 = vmatprep.subr.bf16.mxu0 %v2691
    %7070 = vmatpush1.bf16.xpose.msra.mxu0 %v2690
    %7071 = vmatprep.subr.bf16.mxu0 %v2699
    %7072 = vmatpush1.bf16.xpose.msra.mxu0 %v2698
    %7073 = vmatprep.subr.bf16.mxu0 %v2707
    %7074 = vmatpush1.bf16.xpose.msra.mxu0 %v2706
    %7075 = vmatprep.subr.bf16.mxu0 %v2715
    %7076 = vmatpush1.bf16.xpose.msra.mxu0 %v2714
    %7077 = vmatprep.subr.bf16.mxu0 %v2723
    %7078 = vmatpush1.bf16.xpose.msra.mxu0 %v2722
    %7079 = vmatprep.subr.bf16.mxu0 %v2731
    %7080 = vmatpush1.bf16.xpose.msra.mxu0 %v2730
    %7081 = vmatprep.subr.bf16.mxu0 %v2739
    %7082 = vmatpush1.bf16.xpose.msra.mxu0 %v2738
    %7083 = vmatprep.mubr.bf16.mxu0 %v5931
    %7084 = vmatmul.mubr.bf16.gmra.mrb[0].mxu0 %v5930
    %v7085 = vpop.f32.mrb[0].mxu0
    %v7086 = vadd.f32 %v7043, %v7085
    %v7087 = vpop.f32.mrb[0].mxu0
    %v7088 = vadd.f32 %v7045, %v7087
    %v7089 = vpop.f32.mrb[0].mxu0
    %v7090 = vadd.f32 %v7047, %v7089
    %v7091 = vpop.f32.mrb[0].mxu0
    %v7092 = vadd.f32 %v7049, %v7091
    %7093 = vdwg.mxu0
    %7094 = vmatprep.subr.bf16.mxu0 %v2621
    %7095 = vmatpush1.bf16.xpose.msra.mxu0 %v2620
    %7096 = vmatprep.subr.bf16.mxu0 %v2629
    %7097 = vmatpush1.bf16.xpose.msra.mxu0 %v2628
    %7098 = vmatprep.subr.bf16.mxu0 %v2637
    %7099 = vmatpush1.bf16.xpose.msra.mxu0 %v2636
    %7100 = vmatprep.subr.bf16.mxu0 %v2645
    %7101 = vmatpush1.bf16.xpose.msra.mxu0 %v2644
    %7102 = vmatprep.subr.bf16.mxu0 %v2653
    %7103 = vmatpush1.bf16.xpose.msra.mxu0 %v2652
    %7104 = vmatprep.subr.bf16.mxu0 %v2661
    %7105 = vmatpush1.bf16.xpose.msra.mxu0 %v2660
    %7106 = vmatprep.subr.bf16.mxu0 %v2669
    %7107 = vmatpush1.bf16.xpose.msra.mxu0 %v2668
    %7108 = vmatprep.subr.bf16.mxu0 %v2677
    %7109 = vmatpush1.bf16.xpose.msra.mxu0 %v2676
    %7110 = vmatprep.subr.bf16.mxu0 %v2685
    %7111 = vmatpush1.bf16.xpose.msra.mxu0 %v2684
    %7112 = vmatprep.subr.bf16.mxu0 %v2693
    %7113 = vmatpush1.bf16.xpose.msra.mxu0 %v2692
    %7114 = vmatprep.subr.bf16.mxu0 %v2701
    %7115 = vmatpush1.bf16.xpose.msra.mxu0 %v2700
    %7116 = vmatprep.subr.bf16.mxu0 %v2709
    %7117 = vmatpush1.bf16.xpose.msra.mxu0 %v2708
    %7118 = vmatprep.subr.bf16.mxu0 %v2717
    %7119 = vmatpush1.bf16.xpose.msra.mxu0 %v2716
    %7120 = vmatprep.subr.bf16.mxu0 %v2725
    %7121 = vmatpush1.bf16.xpose.msra.mxu0 %v2724
    %7122 = vmatprep.subr.bf16.mxu0 %v2733
    %7123 = vmatpush1.bf16.xpose.msra.mxu0 %v2732
    %7124 = vmatprep.subr.bf16.mxu0 %v2741
    %7125 = vmatpush1.bf16.xpose.msra.mxu0 %v2740
    %7126 = vmatprep.mubr.bf16.mxu0 %v5933
    %7127 = vmatmul.mubr.bf16.gmra.mrb[0].mxu0 %v5932
    %v7128 = vpop.f32.mrb[0].mxu0
    %v7129 = vadd.f32 %v7086, %v7128
    %v7130 = vpop.f32.mrb[0].mxu0
    %v7131 = vadd.f32 %v7088, %v7130
    %v7132 = vpop.f32.mrb[0].mxu0
    %v7133 = vadd.f32 %v7090, %v7132
    %v7134 = vpop.f32.mrb[0].mxu0
    %v7135 = vadd.f32 %v7092, %v7134
    %7136 = vdwg.mxu0
    %7137 = vmatprep.subr.bf16.mxu0 %v2623
    %7138 = vmatpush1.bf16.xpose.msra.mxu0 %v2622
    %7139 = vmatprep.subr.bf16.mxu0 %v2631
    %7140 = vmatpush1.bf16.xpose.msra.mxu0 %v2630
    %7141 = vmatprep.subr.bf16.mxu0 %v2639
    %7142 = vmatpush1.bf16.xpose.msra.mxu0 %v2638
    %7143 = vmatprep.subr.bf16.mxu0 %v2647
    %7144 = vmatpush1.bf16.xpose.msra.mxu0 %v2646
    %7145 = vmatprep.subr.bf16.mxu0 %v2655
    %7146 = vmatpush1.bf16.xpose.msra.mxu0 %v2654
    %7147 = vmatprep.subr.bf16.mxu0 %v2663
    %7148 = vmatpush1.bf16.xpose.msra.mxu0 %v2662
    %7149 = vmatprep.subr.bf16.mxu0 %v2671
    %7150 = vmatpush1.bf16.xpose.msra.mxu0 %v2670
    %7151 = vmatprep.subr.bf16.mxu0 %v2679
    %7152 = vmatpush1.bf16.xpose.msra.mxu0 %v2678
    %7153 = vmatprep.subr.bf16.mxu0 %v2687
    %7154 = vmatpush1.bf16.xpose.msra.mxu0 %v2686
    %7155 = vmatprep.subr.bf16.mxu0 %v2695
    %7156 = vmatpush1.bf16.xpose.msra.mxu0 %v2694
    %7157 = vmatprep.subr.bf16.mxu0 %v2703
    %7158 = vmatpush1.bf16.xpose.msra.mxu0 %v2702
    %7159 = vmatprep.subr.bf16.mxu0 %v2711
    %7160 = vmatpush1.bf16.xpose.msra.mxu0 %v2710
    %7161 = vmatprep.subr.bf16.mxu0 %v2719
    %7162 = vmatpush1.bf16.xpose.msra.mxu0 %v2718
    %7163 = vmatprep.subr.bf16.mxu0 %v2727
    %7164 = vmatpush1.bf16.xpose.msra.mxu0 %v2726
    %7165 = vmatprep.subr.bf16.mxu0 %v2735
    %7166 = vmatpush1.bf16.xpose.msra.mxu0 %v2734
    %7167 = vmatprep.subr.bf16.mxu0 %v2743
    %7168 = vmatpush1.bf16.xpose.msra.mxu0 %v2742
    %7169 = vmatprep.mubr.bf16.mxu0 %v5935
    %7170 = vmatmul.mubr.bf16.gmra.mrb[0].mxu0 %v5934
    %v7171 = vpop.f32.mrb[0].mxu0
    %v7172 = vadd.f32 %v7129, %v7171
    %v7173 = vpop.f32.mrb[0].mxu0
    %v7174 = vadd.f32 %v7131, %v7173
    %v7175 = vpop.f32.mrb[0].mxu0
    %v7176 = vadd.f32 %v7133, %v7175
    %v7177 = vpop.f32.mrb[0].mxu0
    %v7178 = vadd.f32 %v7135, %v7177
    %7179 = vdwg.mxu0
    %7180 = vmatprep.subr.bf16.mxu0 %v2745
    %7181 = vmatpush1.bf16.xpose.msra.mxu0 %v2744
    %7182 = vmatprep.subr.bf16.mxu0 %v2753
    %7183 = vmatpush1.bf16.xpose.msra.mxu0 %v2752
    %7184 = vmatprep.subr.bf16.mxu0 %v2761
    %7185 = vmatpush1.bf16.xpose.msra.mxu0 %v2760
    %7186 = vmatprep.subr.bf16.mxu0 %v2769
    %7187 = vmatpush1.bf16.xpose.msra.mxu0 %v2768
    %7188 = vmatprep.subr.bf16.mxu0 %v2777
    %7189 = vmatpush1.bf16.xpose.msra.mxu0 %v2776
    %7190 = vmatprep.subr.bf16.mxu0 %v2785
    %7191 = vmatpush1.bf16.xpose.msra.mxu0 %v2784
    %7192 = vmatprep.subr.bf16.mxu0 %v2793
    %7193 = vmatpush1.bf16.xpose.msra.mxu0 %v2792
    %7194 = vmatprep.subr.bf16.mxu0 %v2801
    %7195 = vmatpush1.bf16.xpose.msra.mxu0 %v2800
    %7196 = vmatprep.subr.bf16.mxu0 %v2809
    %7197 = vmatpush1.bf16.xpose.msra.mxu0 %v2808
    %7198 = vmatprep.subr.bf16.mxu0 %v2817
    %7199 = vmatpush1.bf16.xpose.msra.mxu0 %v2816
    %7200 = vmatprep.subr.bf16.mxu0 %v2825
    %7201 = vmatpush1.bf16.xpose.msra.mxu0 %v2824
    %7202 = vmatprep.subr.bf16.mxu0 %v2833
    %7203 = vmatpush1.bf16.xpose.msra.mxu0 %v2832
    %7204 = vmatprep.subr.bf16.mxu0 %v2841
    %7205 = vmatpush1.bf16.xpose.msra.mxu0 %v2840
    %7206 = vmatprep.subr.bf16.mxu0 %v2849
    %7207 = vmatpush1.bf16.xpose.msra.mxu0 %v2848
    %7208 = vmatprep.subr.bf16.mxu0 %v2857
    %7209 = vmatpush1.bf16.xpose.msra.mxu0 %v2856
    %7210 = vmatprep.subr.bf16.mxu0 %v2865
    %7211 = vmatpush1.bf16.xpose.msra.mxu0 %v2864
    %7212 = vmatprep.mubr.bf16.mxu0 %v5929
    %7213 = vmatmul.mubr.bf16.gmra.mrb[0].mxu0 %v5928
    %v7214 = vpop.f32.mrb[0].mxu0
    %v7215 = vadd.f32 %v6656, %v7214
    %v7216 = vpop.f32.mrb[0].mxu0
    %v7217 = vadd.f32 %v6658, %v7216
    %v7218 = vpop.f32.mrb[0].mxu0
    %v7219 = vadd.f32 %v6660, %v7218
    %v7220 = vpop.f32.mrb[0].mxu0
    %v7221 = vadd.f32 %v6662, %v7220
    %7222 = vdwg.mxu0
    %7223 = vmatprep.subr.bf16.mxu0 %v2747
    %7224 = vmatpush1.bf16.xpose.msra.mxu0 %v2746
    %7225 = vmatprep.subr.bf16.mxu0 %v2755
    %7226 = vmatpush1.bf16.xpose.msra.mxu0 %v2754
    %7227 = vmatprep.subr.bf16.mxu0 %v2763
    %7228 = vmatpush1.bf16.xpose.msra.mxu0 %v2762
    %7229 = vmatprep.subr.bf16.mxu0 %v2771
    %7230 = vmatpush1.bf16.xpose.msra.mxu0 %v2770
    %7231 = vmatprep.subr.bf16.mxu0 %v2779
    %7232 = vmatpush1.bf16.xpose.msra.mxu0 %v2778
    %7233 = vmatprep.subr.bf16.mxu0 %v2787
    %7234 = vmatpush1.bf16.xpose.msra.mxu0 %v2786
    %7235 = vmatprep.subr.bf16.mxu0 %v2795
    %7236 = vmatpush1.bf16.xpose.msra.mxu0 %v2794
    %7237 = vmatprep.subr.bf16.mxu0 %v2803
    %7238 = vmatpush1.bf16.xpose.msra.mxu0 %v2802
    %7239 = vmatprep.subr.bf16.mxu0 %v2811
    %7240 = vmatpush1.bf16.xpose.msra.mxu0 %v2810
    %7241 = vmatprep.subr.bf16.mxu0 %v2819
    %7242 = vmatpush1.bf16.xpose.msra.mxu0 %v2818
    %7243 = vmatprep.subr.bf16.mxu0 %v2827
    %7244 = vmatpush1.bf16.xpose.msra.mxu0 %v2826
    %7245 = vmatprep.subr.bf16.mxu0 %v2835
    %7246 = vmatpush1.bf16.xpose.msra.mxu0 %v2834
    %7247 = vmatprep.subr.bf16.mxu0 %v2843
    %7248 = vmatpush1.bf16.xpose.msra.mxu0 %v2842
    %7249 = vmatprep.subr.bf16.mxu0 %v2851
    %7250 = vmatpush1.bf16.xpose.msra.mxu0 %v2850
    %7251 = vmatprep.subr.bf16.mxu0 %v2859
    %7252 = vmatpush1.bf16.xpose.msra.mxu0 %v2858
    %7253 = vmatprep.subr.bf16.mxu0 %v2867
    %7254 = vmatpush1.bf16.xpose.msra.mxu0 %v2866
    %7255 = vmatprep.mubr.bf16.mxu0 %v5931
    %7256 = vmatmul.mubr.bf16.gmra.mrb[0].mxu0 %v5930
    %v7257 = vpop.f32.mrb[0].mxu0
    %v7258 = vadd.f32 %v7215, %v7257
    %v7259 = vpop.f32.mrb[0].mxu0
    %v7260 = vadd.f32 %v7217, %v7259
    %v7261 = vpop.f32.mrb[0].mxu0
    %v7262 = vadd.f32 %v7219, %v7261
    %v7263 = vpop.f32.mrb[0].mxu0
    %v7264 = vadd.f32 %v7221, %v7263
    %7265 = vdwg.mxu0
    %7266 = vmatprep.subr.bf16.mxu0 %v2749
    %7267 = vmatpush1.bf16.xpose.msra.mxu0 %v2748
    %7268 = vmatprep.subr.bf16.mxu0 %v2757
    %7269 = vmatpush1.bf16.xpose.msra.mxu0 %v2756
    %7270 = vmatprep.subr.bf16.mxu0 %v2765
    %7271 = vmatpush1.bf16.xpose.msra.mxu0 %v2764
    %7272 = vmatprep.subr.bf16.mxu0 %v2773
    %7273 = vmatpush1.bf16.xpose.msra.mxu0 %v2772
    %7274 = vmatprep.subr.bf16.mxu0 %v2781
    %7275 = vmatpush1.bf16.xpose.msra.mxu0 %v2780
    %7276 = vmatprep.subr.bf16.mxu0 %v2789
    %7277 = vmatpush1.bf16.xpose.msra.mxu0 %v2788
    %7278 = vmatprep.subr.bf16.mxu0 %v2797
    %7279 = vmatpush1.bf16.xpose.msra.mxu0 %v2796
    %7280 = vmatprep.subr.bf16.mxu0 %v2805
    %7281 = vmatpush1.bf16.xpose.msra.mxu0 %v2804
    %7282 = vmatprep.subr.bf16.mxu0 %v2813
    %7283 = vmatpush1.bf16.xpose.msra.mxu0 %v2812
    %7284 = vmatprep.subr.bf16.mxu0 %v2821
    %7285 = vmatpush1.bf16.xpose.msra.mxu0 %v2820
    %7286 = vmatprep.subr.bf16.mxu0 %v2829
    %7287 = vmatpush1.bf16.xpose.msra.mxu0 %v2828
    %7288 = vmatprep.subr.bf16.mxu0 %v2837
    %7289 = vmatpush1.bf16.xpose.msra.mxu0 %v2836
    %7290 = vmatprep.subr.bf16.mxu0 %v2845
    %7291 = vmatpush1.bf16.xpose.msra.mxu0 %v2844
    %7292 = vmatprep.subr.bf16.mxu0 %v2853
    %7293 = vmatpush1.bf16.xpose.msra.mxu0 %v2852
    %7294 = vmatprep.subr.bf16.mxu0 %v2861
    %7295 = vmatpush1.bf16.xpose.msra.mxu0 %v2860
    %7296 = vmatprep.subr.bf16.mxu0 %v2869
    %7297 = vmatpush1.bf16.xpose.msra.mxu0 %v2868
    %7298 = vmatprep.mubr.bf16.mxu0 %v5933
    %7299 = vmatmul.mubr.bf16.gmra.mrb[0].mxu0 %v5932
    %v7300 = vpop.f32.mrb[0].mxu0
    %v7301 = vadd.f32 %v7258, %v7300
    %v7302 = vpop.f32.mrb[0].mxu0
    %v7303 = vadd.f32 %v7260, %v7302
    %v7304 = vpop.f32.mrb[0].mxu0
    %v7305 = vadd.f32 %v7262, %v7304
    %v7306 = vpop.f32.mrb[0].mxu0
    %v7307 = vadd.f32 %v7264, %v7306
    %7308 = vdwg.mxu0
    %7309 = vmatprep.subr.bf16.mxu0 %v2751
    %7310 = vmatpush1.bf16.xpose.msra.mxu0 %v2750
    %7311 = vmatprep.subr.bf16.mxu0 %v2759
    %7312 = vmatpush1.bf16.xpose.msra.mxu0 %v2758
    %7313 = vmatprep.subr.bf16.mxu0 %v2767
    %7314 = vmatpush1.bf16.xpose.msra.mxu0 %v2766
    %7315 = vmatprep.subr.bf16.mxu0 %v2775
    %7316 = vmatpush1.bf16.xpose.msra.mxu0 %v2774
    %7317 = vmatprep.subr.bf16.mxu0 %v2783
    %7318 = vmatpush1.bf16.xpose.msra.mxu0 %v2782
    %7319 = vmatprep.subr.bf16.mxu0 %v2791
    %7320 = vmatpush1.bf16.xpose.msra.mxu0 %v2790
    %7321 = vmatprep.subr.bf16.mxu0 %v2799
    %7322 = vmatpush1.bf16.xpose.msra.mxu0 %v2798
    %7323 = vmatprep.subr.bf16.mxu0 %v2807
    %7324 = vmatpush1.bf16.xpose.msra.mxu0 %v2806
    %7325 = vmatprep.subr.bf16.mxu0 %v2815
    %7326 = vmatpush1.bf16.xpose.msra.mxu0 %v2814
    %7327 = vmatprep.subr.bf16.mxu0 %v2823
    %7328 = vmatpush1.bf16.xpose.msra.mxu0 %v2822
    %7329 = vmatprep.subr.bf16.mxu0 %v2831
    %7330 = vmatpush1.bf16.xpose.msra.mxu0 %v2830
    %7331 = vmatprep.subr.bf16.mxu0 %v2839
    %7332 = vmatpush1.bf16.xpose.msra.mxu0 %v2838
    %7333 = vmatprep.subr.bf16.mxu0 %v2847
    %7334 = vmatpush1.bf16.xpose.msra.mxu0 %v2846
    %7335 = vmatprep.subr.bf16.mxu0 %v2855
    %7336 = vmatpush1.bf16.xpose.msra.mxu0 %v2854
    %7337 = vmatprep.subr.bf16.mxu0 %v2863
    %7338 = vmatpush1.bf16.xpose.msra.mxu0 %v2862
    %7339 = vmatprep.subr.bf16.mxu0 %v2871
    %7340 = vmatpush1.bf16.xpose.msra.mxu0 %v2870
    %7341 = vmatprep.mubr.bf16.mxu0 %v5935
    %7342 = vmatmul.mubr.bf16.gmra.mrb[0].mxu0 %v5934
    %v7343 = vpop.f32.mrb[0].mxu0
    %v7344 = vadd.f32 %v7301, %v7343
    %v7345 = vpop.f32.mrb[0].mxu0
    %v7346 = vadd.f32 %v7303, %v7345
    %v7347 = vpop.f32.mrb[0].mxu0
    %v7348 = vadd.f32 %v7305, %v7347
    %v7349 = vpop.f32.mrb[0].mxu0
    %v7350 = vadd.f32 %v7307, %v7349
    %7351 = vdwg.mxu0
    %v7352 = vmul.f32 %v4760, %v6828
    %v7353 = vmul.f32 %v4760, %v6830
    %v7354 = vmul.f32 %v4760, %v7000
    %v7355 = vmul.f32 %v4760, %v7002
    %v7356 = vmul.f32 %v4760, %v7172
    %v7357 = vmul.f32 %v4760, %v7174
    %v7358 = vmul.f32 %v4760, %v7344
    %v7359 = vmul.f32 %v4760, %v7346
    %v7360 = vmul.f32 %v4760, %v6832
    %v7361 = vmul.f32 %v4760, %v6834
    %v7362 = vmul.f32 %v4760, %v7004
    %v7363 = vmul.f32 %v4760, %v7006
    %v7364 = vmul.f32 %v4760, %v7176
    %v7365 = vmul.f32 %v4760, %v7178
    %v7366 = vmul.f32 %v4760, %v7348
    %v7367 = vmul.f32 %v4760, %v7350
    %v7368 = vadd.f32 %v5912, %v7352
    %v7369 = vadd.f32 %v5913, %v7353
    %v7370 = vadd.f32 %v5914, %v7354
    %v7371 = vadd.f32 %v5915, %v7355
    %v7372 = vadd.f32 %v5916, %v7356
    %v7373 = vadd.f32 %v5917, %v7357
    %v7374 = vadd.f32 %v5918, %v7358
    %v7375 = vadd.f32 %v5919, %v7359
    %v7376 = vadd.f32 %v5920, %v7360
    %v7377 = vadd.f32 %v5921, %v7361
    %v7378 = vadd.f32 %v5922, %v7362
    %v7379 = vadd.f32 %v5923, %v7363
    %v7380 = vadd.f32 %v5924, %v7364
    %v7381 = vadd.f32 %v5925, %v7365
    %v7382 = vadd.f32 %v5926, %v7366
    %v7383 = vadd.f32 %v5927, %v7367
    %v7384 = vld [vmem:[#allocation12] sm:$0x1]
    %v7386 = vlaneseq
    %v7387 = vshrl.u32 %v7386, 7
    %v7388 = vsub.s32 0, %v7387
    %v7389 = vrot.slane %v7384, %v7388
    %v7391 = vmul.f32 %v7389, %v5560
    %v7392 = vmul.f32 %v7389, %v5561
    %v7393 = vpack.c.bf16 %v7376, %v7368
    %v7394 = vpack.c.bf16 %v7377, %v7369
    %v7395 = vpack.c.bf16 %v7378, %v7370
    %v7396 = vpack.c.bf16 %v7379, %v7371
    %v7397 = vpack.c.bf16 %v7380, %v7372
    %v7398 = vpack.c.bf16 %v7381, %v7373
    %v7399 = vpack.c.bf16 %v7382, %v7374
    %v7400 = vpack.c.bf16 %v7383, %v7375
    %v7401 = vunpack.c.l.bf16 %v7393
    %v7402 = vunpack.c.l.bf16 %v7394
    %v7403 = vunpack.c.l.bf16 %v7395
    %v7404 = vunpack.c.l.bf16 %v7396
    %v7405 = vunpack.c.l.bf16 %v7397
    %v7406 = vunpack.c.l.bf16 %v7398
    %v7407 = vunpack.c.l.bf16 %v7399
    %v7408 = vunpack.c.l.bf16 %v7400
    %v7409 = vunpack.c.h.bf16 %v7393
    %v7410 = vunpack.c.h.bf16 %v7394
    %v7411 = vunpack.c.h.bf16 %v7395
    %v7412 = vunpack.c.h.bf16 %v7396
    %v7413 = vunpack.c.h.bf16 %v7397
    %v7414 = vunpack.c.h.bf16 %v7398
    %v7415 = vunpack.c.h.bf16 %v7399
    %v7416 = vunpack.c.h.bf16 %v7400
    %v7417 = vsub.f32 %v7368, %v7401
    %v7418 = vsub.f32 %v7369, %v7402
    %v7419 = vsub.f32 %v7370, %v7403
    %v7420 = vsub.f32 %v7371, %v7404
    %v7421 = vsub.f32 %v7372, %v7405
    %v7422 = vsub.f32 %v7373, %v7406
    %v7423 = vsub.f32 %v7374, %v7407
    %v7424 = vsub.f32 %v7375, %v7408
    %v7425 = vsub.f32 %v7376, %v7409
    %v7426 = vsub.f32 %v7377, %v7410
    %v7427 = vsub.f32 %v7378, %v7411
    %v7428 = vsub.f32 %v7379, %v7412
    %v7429 = vsub.f32 %v7380, %v7413
    %v7430 = vsub.f32 %v7381, %v7414
    %v7431 = vsub.f32 %v7382, %v7415
    %v7432 = vsub.f32 %v7383, %v7416
    %v7433 = vpack.c.bf16 %v7425, %v7417
    %v7434 = vpack.c.bf16 %v7426, %v7418
    %v7435 = vpack.c.bf16 %v7427, %v7419
    %v7436 = vpack.c.bf16 %v7428, %v7420
    %v7437 = vpack.c.bf16 %v7429, %v7421
    %v7438 = vpack.c.bf16 %v7430, %v7422
    %v7439 = vpack.c.bf16 %v7431, %v7423
    %v7440 = vpack.c.bf16 %v7432, %v7424
    %7441 = vmatprep.subr.bf16.mxu0 0
    %7442 = vmatpush1.bf16.msra.mxu0 %v5097
    %7443 = vmatprep.subr.bf16.mxu0 0
    %7444 = vmatpush1.bf16.msra.mxu0 %v5098
    %7445 = vmatprep.subr.bf16.mxu0 0
    %7446 = vmatpush1.bf16.msra.mxu0 %v5099
    %7447 = vmatprep.subr.bf16.mxu0 0
    %7448 = vmatpush1.bf16.msra.mxu0 %v5100
    %7449 = vmatprep.subr.bf16.mxu0 0
    %7450 = vmatpush1.bf16.msra.mxu0 %v5101
    %7451 = vmatprep.subr.bf16.mxu0 0
    %7452 = vmatpush1.bf16.msra.mxu0 %v5102
    %7453 = vmatprep.subr.bf16.mxu0 0
    %7454 = vmatpush1.bf16.msra.mxu0 %v5103
    %7455 = vmatprep.subr.bf16.mxu0 0
    %7456 = vmatpush1.bf16.msra.mxu0 %v5104
    %7457 = vmatprep.subr.bf16.mxu0 0
    %7458 = vmatpush1.bf16.msra.mxu0 %v5105
    %7459 = vmatprep.subr.bf16.mxu0 0
    %7460 = vmatpush1.bf16.msra.mxu0 %v5106
    %7461 = vmatprep.subr.bf16.mxu0 0
    %7462 = vmatpush1.bf16.msra.mxu0 %v5107
    %7463 = vmatprep.subr.bf16.mxu0 0
    %7464 = vmatpush1.bf16.msra.mxu0 %v5108
    %7465 = vmatprep.subr.bf16.mxu0 0
    %7466 = vmatpush1.bf16.msra.mxu0 %v5109
    %7467 = vmatprep.subr.bf16.mxu0 0
    %7468 = vmatpush1.bf16.msra.mxu0 %v5110
    %7469 = vmatprep.subr.bf16.mxu0 0
    %7470 = vmatpush1.bf16.msra.mxu0 %v5111
    %7471 = vmatprep.subr.bf16.mxu0 0
    %7472 = vmatpush1.bf16.msra.mxu0 %v5112
    %7473 = vmatprep.mubr.bf16.mxu0 %v7434
    %7474 = vmatmul.mubr.bf16.gmra.mrb[0].mxu0 %v7433
    %v7475 = vpop.f32.mrb[0].mxu0
    %v7476 = vadd.f32 0.0, %v7475
    %v7477 = vpop.f32.mrb[0].mxu0
    %v7478 = vpop.f32.mrb[0].mxu0
    %v7479 = vadd.f32 0.0, %v7478
    %v7480 = vpop.f32.mrb[0].mxu0
    %7481 = vdwg.mxu0
    %7482 = vmatprep.subr.bf16.mxu0 0
    %7483 = vmatpush1.bf16.msra.mxu0 %v5113
    %7484 = vmatprep.subr.bf16.mxu0 0
    %7485 = vmatpush1.bf16.msra.mxu0 %v5114
    %7486 = vmatprep.subr.bf16.mxu0 0
    %7487 = vmatpush1.bf16.msra.mxu0 %v5115
    %7488 = vmatprep.subr.bf16.mxu0 0
    %7489 = vmatpush1.bf16.msra.mxu0 %v5116
    %7490 = vmatprep.subr.bf16.mxu0 0
    %7491 = vmatpush1.bf16.msra.mxu0 %v5117
    %7492 = vmatprep.subr.bf16.mxu0 0
    %7493 = vmatpush1.bf16.msra.mxu0 %v5118
    %7494 = vmatprep.subr.bf16.mxu0 0
    %7495 = vmatpush1.bf16.msra.mxu0 %v5119
    %7496 = vmatprep.subr.bf16.mxu0 0
    %7497 = vmatpush1.bf16.msra.mxu0 %v5120
    %7498 = vmatprep.subr.bf16.mxu0 0
    %7499 = vmatpush1.bf16.msra.mxu0 %v5121
    %7500 = vmatprep.subr.bf16.mxu0 0
    %7501 = vmatpush1.bf16.msra.mxu0 %v5122
    %7502 = vmatprep.subr.bf16.mxu0 0
    %7503 = vmatpush1.bf16.msra.mxu0 %v5123
    %7504 = vmatprep.subr.bf16.mxu0 0
    %7505 = vmatpush1.bf16.msra.mxu0 %v5124
    %7506 = vmatprep.subr.bf16.mxu0 0
    %7507 = vmatpush1.bf16.msra.mxu0 %v5125
    %7508 = vmatprep.subr.bf16.mxu0 0
    %7509 = vmatpush1.bf16.msra.mxu0 %v5126
    %7510 = vmatprep.subr.bf16.mxu0 0
    %7511 = vmatpush1.bf16.msra.mxu0 %v5127
    %7512 = vmatprep.subr.bf16.mxu0 0
    %7513 = vmatpush1.bf16.msra.mxu0 %v5128
    %7514 = vmatprep.mubr.bf16.mxu0 %v7436
    %7515 = vmatmul.mubr.bf16.gmra.mrb[0].mxu0 %v7435
    %v7516 = vpop.f32.mrb[0].mxu0
    %v7517 = vadd.f32 %v7476, %v7516
    %v7518 = vpop.f32.mrb[0].mxu0
    %v7519 = vpop.f32.mrb[0].mxu0
    %v7520 = vadd.f32 %v7479, %v7519
    %v7521 = vpop.f32.mrb[0].mxu0
    %7522 = vdwg.mxu0
    %7523 = vmatprep.subr.bf16.mxu0 0
    %7524 = vmatpush1.bf16.msra.mxu0 %v5129
    %7525 = vmatprep.subr.bf16.mxu0 0
    %7526 = vmatpush1.bf16.msra.mxu0 %v5130
    %7527 = vmatprep.subr.bf16.mxu0 0
    %7528 = vmatpush1.bf16.msra.mxu0 %v5131
    %7529 = vmatprep.subr.bf16.mxu0 0
    %7530 = vmatpush1.bf16.msra.mxu0 %v5132
    %7531 = vmatprep.subr.bf16.mxu0 0
    %7532 = vmatpush1.bf16.msra.mxu0 %v5133
    %7533 = vmatprep.subr.bf16.mxu0 0
    %7534 = vmatpush1.bf16.msra.mxu0 %v5134
    %7535 = vmatprep.subr.bf16.mxu0 0
    %7536 = vmatpush1.bf16.msra.mxu0 %v5135
    %7537 = vmatprep.subr.bf16.mxu0 0
    %7538 = vmatpush1.bf16.msra.mxu0 %v5136
    %7539 = vmatprep.subr.bf16.mxu0 0
    %7540 = vmatpush1.bf16.msra.mxu0 %v5137
    %7541 = vmatprep.subr.bf16.mxu0 0
    %7542 = vmatpush1.bf16.msra.mxu0 %v5138
    %7543 = vmatprep.subr.bf16.mxu0 0
    %7544 = vmatpush1.bf16.msra.mxu0 %v5139
    %7545 = vmatprep.subr.bf16.mxu0 0
    %7546 = vmatpush1.bf16.msra.mxu0 %v5140
    %7547 = vmatprep.subr.bf16.mxu0 0
    %7548 = vmatpush1.bf16.msra.mxu0 %v5141
    %7549 = vmatprep.subr.bf16.mxu0 0
    %7550 = vmatpush1.bf16.msra.mxu0 %v5142
    %7551 = vmatprep.subr.bf16.mxu0 0
    %7552 = vmatpush1.bf16.msra.mxu0 %v5143
    %7553 = vmatprep.subr.bf16.mxu0 0
    %7554 = vmatpush1.bf16.msra.mxu0 %v5144
    %7555 = vmatprep.mubr.bf16.mxu0 %v7438
    %7556 = vmatmul.mubr.bf16.gmra.mrb[0].mxu0 %v7437
    %v7557 = vpop.f32.mrb[0].mxu0
    %v7558 = vadd.f32 %v7517, %v7557
    %v7559 = vpop.f32.mrb[0].mxu0
    %v7560 = vpop.f32.mrb[0].mxu0
    %v7561 = vadd.f32 %v7520, %v7560
    %v7562 = vpop.f32.mrb[0].mxu0
    %7563 = vdwg.mxu0
    %7564 = vmatprep.subr.bf16.mxu0 0
    %7565 = vmatpush1.bf16.msra.mxu0 %v5145
    %7566 = vmatprep.subr.bf16.mxu0 0
    %7567 = vmatpush1.bf16.msra.mxu0 %v5146
    %7568 = vmatprep.subr.bf16.mxu0 0
    %7569 = vmatpush1.bf16.msra.mxu0 %v5147
    %7570 = vmatprep.subr.bf16.mxu0 0
    %7571 = vmatpush1.bf16.msra.mxu0 %v5148
    %7572 = vmatprep.subr.bf16.mxu0 0
    %7573 = vmatpush1.bf16.msra.mxu0 %v5149
    %7574 = vmatprep.subr.bf16.mxu0 0
    %7575 = vmatpush1.bf16.msra.mxu0 %v5150
    %7576 = vmatprep.subr.bf16.mxu0 0
    %7577 = vmatpush1.bf16.msra.mxu0 %v5151
    %7578 = vmatprep.subr.bf16.mxu0 0
    %7579 = vmatpush1.bf16.msra.mxu0 %v5152
    %7580 = vmatprep.subr.bf16.mxu0 0
    %7581 = vmatpush1.bf16.msra.mxu0 %v5153
    %7582 = vmatprep.subr.bf16.mxu0 0
    %7583 = vmatpush1.bf16.msra.mxu0 %v5154
    %7584 = vmatprep.subr.bf16.mxu0 0
    %7585 = vmatpush1.bf16.msra.mxu0 %v5155
    %7586 = vmatprep.subr.bf16.mxu0 0
    %7587 = vmatpush1.bf16.msra.mxu0 %v5156
    %7588 = vmatprep.subr.bf16.mxu0 0
    %7589 = vmatpush1.bf16.msra.mxu0 %v5157
    %7590 = vmatprep.subr.bf16.mxu0 0
    %7591 = vmatpush1.bf16.msra.mxu0 %v5158
    %7592 = vmatprep.subr.bf16.mxu0 0
    %7593 = vmatpush1.bf16.msra.mxu0 %v5159
    %7594 = vmatprep.subr.bf16.mxu0 0
    %7595 = vmatpush1.bf16.msra.mxu0 %v5160
    %7596 = vmatprep.mubr.bf16.mxu0 %v7440
    %7597 = vmatmul.mubr.bf16.gmra.mrb[0].mxu0 %v7439
    %v7598 = vpop.f32.mrb[0].mxu0
    %v7599 = vadd.f32 %v7558, %v7598
    %v7600 = vpop.f32.mrb[0].mxu0
    %v7601 = vpop.f32.mrb[0].mxu0
    %v7602 = vadd.f32 %v7561, %v7601
    %v7603 = vpop.f32.mrb[0].mxu0
    %7604 = vdwg.mxu0
    %7605 = vmatprep.subr.bf16.mxu0 0
    %7606 = vmatpush1.bf16.msra.mxu0 %v5097
    %7607 = vmatprep.subr.bf16.mxu0 0
    %7608 = vmatpush1.bf16.msra.mxu0 %v5098
    %7609 = vmatprep.subr.bf16.mxu0 0
    %7610 = vmatpush1.bf16.msra.mxu0 %v5099
    %7611 = vmatprep.subr.bf16.mxu0 0
    %7612 = vmatpush1.bf16.msra.mxu0 %v5100
    %7613 = vmatprep.subr.bf16.mxu0 0
    %7614 = vmatpush1.bf16.msra.mxu0 %v5101
    %7615 = vmatprep.subr.bf16.mxu0 0
    %7616 = vmatpush1.bf16.msra.mxu0 %v5102
    %7617 = vmatprep.subr.bf16.mxu0 0
    %7618 = vmatpush1.bf16.msra.mxu0 %v5103
    %7619 = vmatprep.subr.bf16.mxu0 0
    %7620 = vmatpush1.bf16.msra.mxu0 %v5104
    %7621 = vmatprep.subr.bf16.mxu0 0
    %7622 = vmatpush1.bf16.msra.mxu0 %v5105
    %7623 = vmatprep.subr.bf16.mxu0 0
    %7624 = vmatpush1.bf16.msra.mxu0 %v5106
    %7625 = vmatprep.subr.bf16.mxu0 0
    %7626 = vmatpush1.bf16.msra.mxu0 %v5107
    %7627 = vmatprep.subr.bf16.mxu0 0
    %7628 = vmatpush1.bf16.msra.mxu0 %v5108
    %7629 = vmatprep.subr.bf16.mxu0 0
    %7630 = vmatpush1.bf16.msra.mxu0 %v5109
    %7631 = vmatprep.subr.bf16.mxu0 0
    %7632 = vmatpush1.bf16.msra.mxu0 %v5110
    %7633 = vmatprep.subr.bf16.mxu0 0
    %7634 = vmatpush1.bf16.msra.mxu0 %v5111
    %7635 = vmatprep.subr.bf16.mxu0 0
    %7636 = vmatpush1.bf16.msra.mxu0 %v5112
    %7637 = vmatprep.mubr.bf16.mxu0 %v7394
    %7638 = vmatmul.mubr.bf16.gmra.mrb[0].mxu0 %v7393
    %v7639 = vpop.f32.mrb[0].mxu0
    %v7640 = vadd.f32 %v7599, %v7639
    %v7641 = vpop.f32.mrb[0].mxu0
    %v7642 = vpop.f32.mrb[0].mxu0
    %v7643 = vadd.f32 %v7602, %v7642
    %v7644 = vpop.f32.mrb[0].mxu0
    %7645 = vdwg.mxu0
    %7646 = vmatprep.subr.bf16.mxu0 0
    %7647 = vmatpush1.bf16.msra.mxu0 %v5113
    %7648 = vmatprep.subr.bf16.mxu0 0
    %7649 = vmatpush1.bf16.msra.mxu0 %v5114
    %7650 = vmatprep.subr.bf16.mxu0 0
    %7651 = vmatpush1.bf16.msra.mxu0 %v5115
    %7652 = vmatprep.subr.bf16.mxu0 0
    %7653 = vmatpush1.bf16.msra.mxu0 %v5116
    %7654 = vmatprep.subr.bf16.mxu0 0
    %7655 = vmatpush1.bf16.msra.mxu0 %v5117
    %7656 = vmatprep.subr.bf16.mxu0 0
    %7657 = vmatpush1.bf16.msra.mxu0 %v5118
    %7658 = vmatprep.subr.bf16.mxu0 0
    %7659 = vmatpush1.bf16.msra.mxu0 %v5119
    %7660 = vmatprep.subr.bf16.mxu0 0
    %7661 = vmatpush1.bf16.msra.mxu0 %v5120
    %7662 = vmatprep.subr.bf16.mxu0 0
    %7663 = vmatpush1.bf16.msra.mxu0 %v5121
    %7664 = vmatprep.subr.bf16.mxu0 0
    %7665 = vmatpush1.bf16.msra.mxu0 %v5122
    %7666 = vmatprep.subr.bf16.mxu0 0
    %7667 = vmatpush1.bf16.msra.mxu0 %v5123
    %7668 = vmatprep.subr.bf16.mxu0 0
    %7669 = vmatpush1.bf16.msra.mxu0 %v5124
    %7670 = vmatprep.subr.bf16.mxu0 0
    %7671 = vmatpush1.bf16.msra.mxu0 %v5125
    %7672 = vmatprep.subr.bf16.mxu0 0
    %7673 = vmatpush1.bf16.msra.mxu0 %v5126
    %7674 = vmatprep.subr.bf16.mxu0 0
    %7675 = vmatpush1.bf16.msra.mxu0 %v5127
    %7676 = vmatprep.subr.bf16.mxu0 0
    %7677 = vmatpush1.bf16.msra.mxu0 %v5128
    %7678 = vmatprep.mubr.bf16.mxu0 %v7396
    %7679 = vmatmul.mubr.bf16.gmra.mrb[0].mxu0 %v7395
    %v7680 = vpop.f32.mrb[0].mxu0
    %v7681 = vadd.f32 %v7640, %v7680
    %v7682 = vpop.f32.mrb[0].mxu0
    %v7683 = vpop.f32.mrb[0].mxu0
    %v7684 = vadd.f32 %v7643, %v7683
    %v7685 = vpop.f32.mrb[0].mxu0
    %7686 = vdwg.mxu0
    %7687 = vmatprep.subr.bf16.mxu0 0
    %7688 = vmatpush1.bf16.msra.mxu0 %v5129
    %7689 = vmatprep.subr.bf16.mxu0 0
    %7690 = vmatpush1.bf16.msra.mxu0 %v5130
    %7691 = vmatprep.subr.bf16.mxu0 0
    %7692 = vmatpush1.bf16.msra.mxu0 %v5131
    %7693 = vmatprep.subr.bf16.mxu0 0
    %7694 = vmatpush1.bf16.msra.mxu0 %v5132
    %7695 = vmatprep.subr.bf16.mxu0 0
    %7696 = vmatpush1.bf16.msra.mxu0 %v5133
    %7697 = vmatprep.subr.bf16.mxu0 0
    %7698 = vmatpush1.bf16.msra.mxu0 %v5134
    %7699 = vmatprep.subr.bf16.mxu0 0
    %7700 = vmatpush1.bf16.msra.mxu0 %v5135
    %7701 = vmatprep.subr.bf16.mxu0 0
    %7702 = vmatpush1.bf16.msra.mxu0 %v5136
    %7703 = vmatprep.subr.bf16.mxu0 0
    %7704 = vmatpush1.bf16.msra.mxu0 %v5137
    %7705 = vmatprep.subr.bf16.mxu0 0
    %7706 = vmatpush1.bf16.msra.mxu0 %v5138
    %7707 = vmatprep.subr.bf16.mxu0 0
    %7708 = vmatpush1.bf16.msra.mxu0 %v5139
    %7709 = vmatprep.subr.bf16.mxu0 0
    %7710 = vmatpush1.bf16.msra.mxu0 %v5140
    %7711 = vmatprep.subr.bf16.mxu0 0
    %7712 = vmatpush1.bf16.msra.mxu0 %v5141
    %7713 = vmatprep.subr.bf16.mxu0 0
    %7714 = vmatpush1.bf16.msra.mxu0 %v5142
    %7715 = vmatprep.subr.bf16.mxu0 0
    %7716 = vmatpush1.bf16.msra.mxu0 %v5143
    %7717 = vmatprep.subr.bf16.mxu0 0
    %7718 = vmatpush1.bf16.msra.mxu0 %v5144
    %7719 = vmatprep.mubr.bf16.mxu0 %v7398
    %7720 = vmatmul.mubr.bf16.gmra.mrb[0].mxu0 %v7397
    %v7721 = vpop.f32.mrb[0].mxu0
    %v7722 = vadd.f32 %v7681, %v7721
    %v7723 = vpop.f32.mrb[0].mxu0
    %v7724 = vpop.f32.mrb[0].mxu0
    %v7725 = vadd.f32 %v7684, %v7724
    %v7726 = vpop.f32.mrb[0].mxu0
    %7727 = vdwg.mxu0
    %7728 = vmatprep.subr.bf16.mxu0 0
    %7729 = vmatpush1.bf16.msra.mxu0 %v5145
    %7730 = vmatprep.subr.bf16.mxu0 0
    %7731 = vmatpush1.bf16.msra.mxu0 %v5146
    %7732 = vmatprep.subr.bf16.mxu0 0
    %7733 = vmatpush1.bf16.msra.mxu0 %v5147
    %7734 = vmatprep.subr.bf16.mxu0 0
    %7735 = vmatpush1.bf16.msra.mxu0 %v5148
    %7736 = vmatprep.subr.bf16.mxu0 0
    %7737 = vmatpush1.bf16.msra.mxu0 %v5149
    %7738 = vmatprep.subr.bf16.mxu0 0
    %7739 = vmatpush1.bf16.msra.mxu0 %v5150
    %7740 = vmatprep.subr.bf16.mxu0 0
    %7741 = vmatpush1.bf16.msra.mxu0 %v5151
    %7742 = vmatprep.subr.bf16.mxu0 0
    %7743 = vmatpush1.bf16.msra.mxu0 %v5152
    %7744 = vmatprep.subr.bf16.mxu0 0
    %7745 = vmatpush1.bf16.msra.mxu0 %v5153
    %7746 = vmatprep.subr.bf16.mxu0 0
    %7747 = vmatpush1.bf16.msra.mxu0 %v5154
    %7748 = vmatprep.subr.bf16.mxu0 0
    %7749 = vmatpush1.bf16.msra.mxu0 %v5155
    %7750 = vmatprep.subr.bf16.mxu0 0
    %7751 = vmatpush1.bf16.msra.mxu0 %v5156
    %7752 = vmatprep.subr.bf16.mxu0 0
    %7753 = vmatpush1.bf16.msra.mxu0 %v5157
    %7754 = vmatprep.subr.bf16.mxu0 0
    %7755 = vmatpush1.bf16.msra.mxu0 %v5158
    %7756 = vmatprep.subr.bf16.mxu0 0
    %7757 = vmatpush1.bf16.msra.mxu0 %v5159
    %7758 = vmatprep.subr.bf16.mxu0 0
    %7759 = vmatpush1.bf16.msra.mxu0 %v5160
    %7760 = vmatprep.mubr.bf16.mxu0 %v7400
    %7761 = vmatmul.mubr.bf16.gmra.mrb[0].mxu0 %v7399
    %v7762 = vpop.f32.mrb[0].mxu0
    %v7763 = vadd.f32 %v7722, %v7762
    %v7764 = vpop.f32.mrb[0].mxu0
    %v7765 = vpop.f32.mrb[0].mxu0
    %v7766 = vadd.f32 %v7725, %v7765
    %v7767 = vpop.f32.mrb[0].mxu0
    %7768 = vdwg.mxu0
    %v7769 = vstv %s102
    %v7770 = vmul.f32 %v7769, %v7763
    %v7771 = vmul.f32 %v7769, %v7766
    %v7772 = vadd.f32 %v7391, %v7770
    %v7773 = vadd.f32 %v7392, %v7771
    %v7774 = vmul.f32 %v5560, %v7772
    %v7775 = vmul.f32 %v5561, %v7773
    %7776 = vadd.xlane.f32.xlu0 %v7774
    %v7777 = vpop.xlane.xlu0 %7776
    %7778 = vadd.xlane.f32.xlu0 %v7775
    %v7779 = vpop.xlane.xlu0 %7778
    %v7780 = vmul.f32 %v7772, %v7772
    %v7781 = vmul.f32 %v7773, %v7773
    %7782 = vadd.xlane.f32.xlu0 %v7780
    %v7783 = vpop.xlane.xlu0 %7782
    %7784 = vadd.xlane.f32.xlu0 %v7781
    %v7785 = vpop.xlane.xlu0 %7784
    %vm7786 = vcmp.gt.f32.partialorder %v7783, 0.0
    %vm7787 = vcmp.gt.f32.partialorder %v7785, 0.0
    %v7788 = vsel %vm7786, %v7783, 1.0
    %v7789 = vsel %vm7787, %v7785, 1.0
    %v7790 = vrcp.pop %v7788
    %v7791 = vmul.f32 %v7777, %v7790
    %v7792 = vrcp.pop %v7789
    %v7793 = vmul.f32 %v7779, %v7792
    %v7794 = vsel %vm7786, %v7791, 0.0
    %v7795 = vsel %vm7787, %v7793, 0.0
    %v7796 = vmul.f32 %v7794, %v7368
    %v7797 = vmul.f32 %v7794, %v7369
    %v7798 = vmul.f32 %v7794, %v7370
    %v7799 = vmul.f32 %v7794, %v7371
    %v7800 = vmul.f32 %v7794, %v7372
    %v7801 = vmul.f32 %v7794, %v7373
    %v7802 = vmul.f32 %v7794, %v7374
    %v7803 = vmul.f32 %v7794, %v7375
    %v7804 = vmul.f32 %v7795, %v7376
    %v7805 = vmul.f32 %v7795, %v7377
    %v7806 = vmul.f32 %v7795, %v7378
    %v7807 = vmul.f32 %v7795, %v7379
    %v7808 = vmul.f32 %v7795, %v7380
    %v7809 = vmul.f32 %v7795, %v7381
    %v7810 = vmul.f32 %v7795, %v7382
    %v7811 = vmul.f32 %v7795, %v7383
    %v7812 = vmul.f32 %v7769, %v7796
    %v7813 = vmul.f32 %v7769, %v7797
    %v7814 = vmul.f32 %v7769, %v7798
    %v7815 = vmul.f32 %v7769, %v7799
    %v7816 = vmul.f32 %v7769, %v7800
    %v7817 = vmul.f32 %v7769, %v7801
    %v7818 = vmul.f32 %v7769, %v7802
    %v7819 = vmul.f32 %v7769, %v7803
    %v7820 = vmul.f32 %v7769, %v7804
    %v7821 = vmul.f32 %v7769, %v7805
    %v7822 = vmul.f32 %v7769, %v7806
    %v7823 = vmul.f32 %v7769, %v7807
    %v7824 = vmul.f32 %v7769, %v7808
    %v7825 = vmul.f32 %v7769, %v7809
    %v7826 = vmul.f32 %v7769, %v7810
    %v7827 = vmul.f32 %v7769, %v7811
    %v7828 = vadd.f32 %v4777, %v7812
    %v7829 = vadd.f32 %v4778, %v7813
    %v7830 = vadd.f32 %v4779, %v7814
    %v7831 = vadd.f32 %v4780, %v7815
    %v7832 = vadd.f32 %v4781, %v7816
    %v7833 = vadd.f32 %v4782, %v7817
    %v7834 = vadd.f32 %v4783, %v7818
    %v7835 = vadd.f32 %v4784, %v7819
    %v7836 = vadd.f32 %v4785, %v7820
    %v7837 = vadd.f32 %v4786, %v7821
    %v7838 = vadd.f32 %v4787, %v7822
    %v7839 = vadd.f32 %v4788, %v7823
    %v7840 = vadd.f32 %v4789, %v7824
    %v7841 = vadd.f32 %v4790, %v7825
    %v7842 = vadd.f32 %v4791, %v7826
    %v7843 = vadd.f32 %v4792, %v7827
    %7844 = vst [vmem:[#allocation13] sm:$0xff] %v7828
    %7845 = vst [vmem:[#allocation13 + $0x8] sm:$0xff] %v7829
    %7846 = vst [vmem:[#allocation13 + $0x10] sm:$0xff] %v7830
    %7847 = vst [vmem:[#allocation13 + $0x18] sm:$0xff] %v7831
    %7848 = vst [vmem:[#allocation13 + $0x20] sm:$0xff] %v7832
    %7849 = vst [vmem:[#allocation13 + $0x28] sm:$0xff] %v7833
    %7850 = vst [vmem:[#allocation13 + $0x30] sm:$0xff] %v7834
    %7851 = vst [vmem:[#allocation13 + $0x38] sm:$0xff] %v7835
    %7852 = vst [vmem:[#allocation13 + $0x40] sm:$0xff] %v7836
    %7853 = vst [vmem:[#allocation13 + $0x48] sm:$0xff] %v7837
    %7854 = vst [vmem:[#allocation13 + $0x50] sm:$0xff] %v7838
    %7855 = vst [vmem:[#allocation13 + $0x58] sm:$0xff] %v7839
    %7856 = vst [vmem:[#allocation13 + $0x60] sm:$0xff] %v7840
    %7857 = vst [vmem:[#allocation13 + $0x68] sm:$0xff] %v7841
    %7858 = vst [vmem:[#allocation13 + $0x70] sm:$0xff] %v7842
    %7859 = vst [vmem:[#allocation13 + $0x78] sm:$0xff] %v7843
    // Predicated region
    $region50: #{tpu_custom_call.1} parent=1 // pred_check
      _
    $region51: #{tpu_custom_call.1} parent=1 // pred_check_branch
      %7861 = sbr.rel (0) target = $region53
    $region52: #{tpu_custom_call.1} parent=1 // pred_region
      %s7863 = ssub.s32 2048, 2048
      %7864 = vsyncadd [#allocation4], %s7863
      %s7865 = sshll.u32 [#allocation13], 4
      %s7866 = int_to_ptr.vmem [resolvable:$true] %s7865
      %7871 = dma.vmem_to_hbm [thread:$0]  %s7866, 2048, %s6, [#allocation4], 1024, 1024, 64
    $region53: #{tpu_custom_call.1} parent=1 // pred_fallthru
      _
    // Predicated region
    $region54: #{tpu_custom_call.1} parent=1 // pred_check
      _
    $region55: #{tpu_custom_call.1} parent=1 // pred_check_branch
      %7873 = sbr.rel (0) target = $region57
    $region56: #{tpu_custom_call.1} parent=1 // pred_region
      %7874 = dma.done [#allocation4], 2048
    $region57: #{tpu_custom_call.1} parent=1 // pred_fallthru
      _
    %7875 = vsyncpa [#allocation3], 1
    %7876 = vsyncpa [#allocation8], 1
    %7877 = vsyncpa [#allocation11], 1
    %7878 = vsyncpa [#allocation4], 1
    %7879 = vsyncpa [#allocation5], 1

</llo_original>
